<compile_context>
chip_gen: v7x
topology: tpu7x:2x2x1
jax: 0.10.0
libtpu: 0.0.40
codegen_flags: <defaults>
</compile_context>

<pallas_src>
import functools
import math

import jax
import jax.numpy as jnp
from jax import lax
from jax.experimental import pallas as pl
from jax.experimental.pallas import tpu as pltpu

# ----- static config (module hyper-parameters) -----
B = 2          # batch
N = 8          # channels (d_channel == the `N` argument of forward)
D_MODEL = 128  # d_model (length of the axis nn.Linear / conv1d act on)
M_LEVELS = 2   # wavelet depth m
KSIZE = 4      # wavelet kernel_size (explicit-kernel branch)
H = M_LEVELS + 1
ALPHA = 0.5    # dot-product vs. wedge-norm mix of the inner GeomAttention


def _roll_lanes(x, shift):
    """Circular shift along the last axis: out[..., t] = x[..., (t - shift) mod L]."""
    L = x.shape[-1]
    s = int(shift) % L
    if s == 0:
        return x
    return pltpu.roll(x, s, axis=x.ndim - 1)   # XLU lane rotation (== jnp.roll)


# ---------------- fused kernel ----------------

def fused_geom_kernel(q_ref, k_ref, v_ref, h0_ref, h1_ref, g0_ref, g1_ref,
                      w_ref, b_ref, out_ref, attn_ref, *, bb, c1, c2):
    # q/k/v_ref: (bb, C, L)    h*/g*_ref: (bb*C, K) (pre-tiled per batch-block)
    # w_ref: (4, L, L) bf16 [q,k,v,o] as (out,in)    b_ref: (4, 1, L) f32
    # out_ref: (bb, C, L) f32   attn_ref: (bb, H, L, L) bf16
    C = q_ref.shape[1]
    L = q_ref.shape[2]
    R = bb * C                      # rows per wavelet coefficient after batch folding

    h0 = h0_ref[...]
    h1 = h1_ref[...]

    # --- SWT analysis: circular, dilated, depthwise conv1d on batch-folded rows.
    #     Coefficient order [approx, det_m, ..., det_1] matches
    #     torch.stack(reversed(coeffs), -2).
    def swt_dec(x):                  # x: (R, L)
        approx = x
        dets = []
        dil = 1
        for _ in range(M_LEVELS):
            pad_l = dil * (KSIZE - 1) - (KSIZE * dil) // 2
            det = jnp.zeros_like(approx)
            nxt = jnp.zeros_like(approx)
            for kk in range(KSIZE):
                xr = _roll_lanes(approx, pad_l - kk * dil)
                det = det + xr * h1[:, kk:kk + 1]
                nxt = nxt + xr * h0[:, kk:kk + 1]
            dets.append(det)
            approx = nxt
            dil *= 2
        return [approx] + dets[::-1]             # H slabs, each (R, L)

    def fold_batches(ref):           # (bb, C, L) block -> (R, L) rows, batch-major
        if bb == 1:
            return ref[0]
        return jnp.concatenate([ref[b] for b in range(bb)], axis=0)

    # --- nn.Linear over the d_model (lane) axis, batched over coeffs & batches.
    #     PyTorch y = x @ W^T + b ; bf16 operands, f32 accumulation, f32 bias.
    def project(rows, wi):           # rows: (H*R, L_in) f32
        y = lax.dot_general(rows.astype(jnp.bfloat16), w_ref[wi],
                            (((1,), (1,)), ((), ())),
                            preferred_element_type=jnp.float32)
        return y + b_ref[wi]         # bias (1, L) broadcasts over rows

    qp = project(jnp.concatenate(swt_dec(fold_batches(q_ref)), axis=0), 0)  # (H*R, L)
    kp = project(jnp.concatenate(swt_dec(fold_batches(k_ref)), axis=0), 1)
    vp = project(jnp.concatenate(swt_dec(fold_batches(v_ref)), axis=0), 2)

    # --- GeomAttention per (head, batch) pair; pair p = hh*bb + b occupies rows
    #     [p*C, (p+1)*C) of the projected slabs (lane-dense (E=C, L) layout).
    o_rows = []
    for hh in range(H):
        for b in range(bb):
            p_i = hh * bb + b
            q = qp[p_i * C:(p_i + 1) * C]        # (E, Lq)
            k = kp[p_i * C:(p_i + 1) * C]        # (E, Lk)
            v = vp[p_i * C:(p_i + 1) * C]        # (E, Lk)

            dot = jnp.dot(q.T, k, preferred_element_type=jnp.float32)      # (Lq, Lk)
            # |q|^2 (x) |k|^2 outer product on the idle MXU (dense (E,L) q*q and a
            # sublane-reduced |k|^2 row), instead of squaring the low-occupancy qt.
            kn = jnp.sum(k * k, axis=0, keepdims=True)                      # (1, Lk)
            outer = jnp.dot((q * q).T, jnp.broadcast_to(kn, (C, L)),
                            preferred_element_type=jnp.float32)             # qn (x) kn
            # wedge-product norm; keep f32 + guard against cancellation.
            wedge = jnp.sqrt(jnp.maximum(outer - dot * dot, 0.0) + 1e-8)
            s = c1 * dot + c2 * wedge            # scale folded into c1/c2 at trace time
            s = s - jnp.max(s, axis=-1, keepdims=True)
            p = jnp.exp(s)
            attn = p * pl.reciprocal(jnp.sum(p, axis=-1, keepdims=True), approx=True)
            attn16 = attn.astype(jnp.bfloat16)
            attn_ref[b, hh] = attn16             # bf16 writeback (halves attn HBM bytes)
            # attention output directly in coeff (E, L) layout:
            #   o[e, i] = sum_j v[e, j] * attn[i, j]   (bf16 operands, f32 acc)
            o_rows.append(lax.dot_general(v.astype(jnp.bfloat16), attn16,
                                          (((1,), (1,)), ((), ())),
                                          preferred_element_type=jnp.float32))

    # --- output projection (Linear over d_model), batched over heads & batches.
    op = project(jnp.concatenate(o_rows, axis=0), 3)                        # (H*R, L)

    # --- SWT synthesis on batch-folded rows, consuming [approx, det_m, ..., det_1].
    g0 = g0_ref[...]
    g1 = g1_ref[...]
    approx = op[0:R]
    dil = 2 ** (M_LEVELS - 1)
    for i in range(M_LEVELS):
        det = op[(1 + i) * R:(2 + i) * R]
        pad_l = (dil * KSIZE) // 2
        y = jnp.zeros_like(approx)
        for kk in range(KSIZE):
            sh = pad_l - kk * dil
            y = y + _roll_lanes(approx, sh) * g0[:, kk:kk + 1]
            y = y + _roll_lanes(det, sh) * g1[:, kk:kk + 1]
        approx = y * 0.5
        dil //= 2

    for b in range(bb):
        out_ref[b] = approx[b * C:(b + 1) * C]


# ---------------- GeomAttentionLayer forward (single pallas_call) ----------------

def _single_core_chip():
    """True for 1-TensorCore chips (v5e/v6e); False when a parallel grid can use >1 core."""
    try:
        kind = jax.devices()[0].device_kind.lower()
    except Exception:
        return True
    return not (("7" in kind) or ("v4" in kind))


def geom_attention_layer(queries, keys, values, params, batch_block=None):
    Bq, C, L = queries.shape
    if batch_block is None:
        # One grid step on single-TC chips; keep >=2 parallel steps on multi-TC chips.
        batch_block = Bq if _single_core_chip() else max(1, Bq // 2)
    bb = max(1, min(batch_block, Bq))
    while Bq % bb:
        bb -= 1
    grid = (Bq // bb,)

    scale = 1.0 / math.sqrt(C)
    kern = functools.partial(fused_geom_kernel, bb=bb,
                             c1=(1.0 - ALPHA) * scale, c2=ALPHA * scale)

    # Pre-tile per-channel wavelet filters for the batch-folded rows (tiny arrays).
    h0 = jnp.tile(params["h0"], (bb, 1))
    h1 = jnp.tile(params["h1"], (bb, 1))
    g0 = jnp.tile(params["g0"], (bb, 1))
    g1 = jnp.tile(params["g1"], (bb, 1))

    out, attn = pl.pallas_call(
        kern,
        out_shape=(jax.ShapeDtypeStruct((Bq, C, L), jnp.float32),
                   jax.ShapeDtypeStruct((Bq, H, L, L), jnp.bfloat16)),
        grid=grid,
        in_specs=[
            pl.BlockSpec((bb, C, L), lambda g: (g, 0, 0)),        # queries
            pl.BlockSpec((bb, C, L), lambda g: (g, 0, 0)),        # keys
            pl.BlockSpec((bb, C, L), lambda g: (g, 0, 0)),        # values
            pl.BlockSpec((bb * C, KSIZE), lambda g: (0, 0)),      # h0 (analysis, tiled)
            pl.BlockSpec((bb * C, KSIZE), lambda g: (0, 0)),      # h1
            pl.BlockSpec((bb * C, KSIZE), lambda g: (0, 0)),      # g0 (synthesis, tiled)
            pl.BlockSpec((bb * C, KSIZE), lambda g: (0, 0)),      # g1
            pl.BlockSpec((4, L, L), lambda g: (0, 0, 0)),         # [wq,wk,wv,wo] bf16
            pl.BlockSpec((4, 1, L), lambda g: (0, 0, 0)),         # [bq,bk,bv,bo] f32
        ],
        out_specs=(pl.BlockSpec((bb, C, L), lambda g: (g, 0, 0)),
                   pl.BlockSpec((bb, H, L, L), lambda g: (g, 0, 0, 0))),
        compiler_params=pltpu.CompilerParams(dimension_semantics=("parallel",)),
    )(queries, keys, values, h0, h1, g0, g1, params["w"], params["b"])
    return out, attn


if __name__ == "__main__":
    key = jax.random.PRNGKey(0)
    ks = jax.random.split(key, 11)

    # inputs: (B, N, d_model) — the NCL layout nn.Linear / conv1d see in the module
    queries = jax.random.normal(ks[0], (B, N, D_MODEL), jnp.float32)
    keys_in = jax.random.normal(ks[1], (B, N, D_MODEL), jnp.float32)
    values = jax.random.normal(ks[2], (B, N, D_MODEL), jnp.float32)

    def wavelet_filter(k_):
        # explicit kernel_size branch: xavier-style init + L2 normalize per channel
        f = jax.random.uniform(k_, (N, KSIZE), jnp.float32, -1.0, 1.0)
        return f / jnp.linalg.norm(f, axis=-1, keepdims=True)

    def linear_params(k_):
        kw, kb = jax.random.split(k_)
        bound = 1.0 / math.sqrt(D_MODEL)
        w = jax.random.uniform(kw, (D_MODEL, D_MODEL), jnp.float32, -bound, bound)
        b = jax.random.uniform(kb, (D_MODEL,), jnp.float32, -bound, bound)
        return w, b

    wq, bq = linear_params(ks[7])
    wk, bk = linear_params(ks[8])
    wv, bv = linear_params(ks[9])
    wo, bo = linear_params(ks[10])

    params = dict(
        h0=wavelet_filter(ks[3]), h1=wavelet_filter(ks[4]),   # analysis  (swt=True)
        g0=wavelet_filter(ks[5]), g1=wavelet_filter(ks[6]),   # synthesis (swt=False)
        # weights stored in bf16 (halves the dominant weight DMA); biases stay f32
        w=jnp.stack([wq, wk, wv, wo], axis=0).astype(jnp.bfloat16),   # (4, L, L)
        b=jnp.stack([bq, bk, bv, bo], axis=0)[:, None, :],            # (4, 1, L)
    )

    out, attn = geom_attention_layer(queries, keys_in, values, params)
    jax.block_until_ready((out, attn))

    assert out.shape == (B, N, D_MODEL), out.shape
    assert attn.shape == (B, H, D_MODEL, D_MODEL), attn.shape
    assert bool(jnp.all(jnp.isfinite(out))) and bool(jnp.all(jnp.isfinite(attn)))
    print("KERNEL_OK")
</pallas_src>

<mosaic_0001>
module attributes {stable_mosaic.version = 11 : i64} {
  func.func @fused_geom_kernel(%arg0: i32, %arg1: memref<2x8x128xf32, #tpu.memory_space<vmem>>, %arg2: memref<2x8x128xf32, #tpu.memory_space<vmem>>, %arg3: memref<2x8x128xf32, #tpu.memory_space<vmem>>, %arg4: memref<16x4xf32, #tpu.memory_space<vmem>>, %arg5: memref<16x4xf32, #tpu.memory_space<vmem>>, %arg6: memref<16x4xf32, #tpu.memory_space<vmem>>, %arg7: memref<16x4xf32, #tpu.memory_space<vmem>>, %arg8: memref<4x128x128xbf16, #tpu.memory_space<vmem>>, %arg9: memref<4x1x128xf32, #tpu.memory_space<vmem>>, %arg10: memref<2x8x128xf32, #tpu.memory_space<vmem>>, %arg11: memref<2x3x128x128xbf16, #tpu.memory_space<vmem>>) attributes {dimension_semantics = [#tpu.dimension_semantics<parallel>], iteration_bounds = array<i64: 1>, scalar_prefetch = 0 : i64, scratch_operands = 0 : i64, tpu.core_type = #tpu.core_type<tc>, window_params = [{transform_indices = @transform_0, window_bounds = array<i64: 2, 8, 128>}, {transform_indices = @transform_1, window_bounds = array<i64: 2, 8, 128>}, {transform_indices = @transform_2, window_bounds = array<i64: 2, 8, 128>}, {pipeline_mode = #tpu.pipeline_mode<synchronous>, transform_indices = @transform_3, window_bounds = array<i64: 16, 4>}, {pipeline_mode = #tpu.pipeline_mode<synchronous>, transform_indices = @transform_4, window_bounds = array<i64: 16, 4>}, {pipeline_mode = #tpu.pipeline_mode<synchronous>, transform_indices = @transform_5, window_bounds = array<i64: 16, 4>}, {pipeline_mode = #tpu.pipeline_mode<synchronous>, transform_indices = @transform_6, window_bounds = array<i64: 16, 4>}, {pipeline_mode = #tpu.pipeline_mode<synchronous>, transform_indices = @transform_7, window_bounds = array<i64: 4, 128, 128>}, {pipeline_mode = #tpu.pipeline_mode<synchronous>, transform_indices = @transform_8, window_bounds = array<i64: 4, 1, 128>}, {transform_indices = @transform_9, window_bounds = array<i64: 2, 8, 128>}, {transform_indices = @transform_10, window_bounds = array<i64: 2, 3, 128, 128>}]} {
    %c0 = arith.constant 0 : index
    %c0_0 = arith.constant 0 : index
    %0 = vector.load %arg4[%c0, %c0_0] : memref<16x4xf32, #tpu.memory_space<vmem>>, vector<16x4xf32>
    %c0_1 = arith.constant 0 : index
    %c0_2 = arith.constant 0 : index
    %1 = vector.load %arg5[%c0_1, %c0_2] : memref<16x4xf32, #tpu.memory_space<vmem>>, vector<16x4xf32>
    %c0_3 = arith.constant 0 : index
    %c0_4 = arith.constant 0 : index
    %c0_5 = arith.constant 0 : index
    %2 = vector.load %arg1[%c0_3, %c0_4, %c0_5] : memref<2x8x128xf32, #tpu.memory_space<vmem>>, vector<1x8x128xf32>
    %3 = vector.shape_cast %2 : vector<1x8x128xf32> to vector<8x128xf32>
    %c1 = arith.constant 1 : index
    %c0_6 = arith.constant 0 : index
    %c0_7 = arith.constant 0 : index
    %4 = vector.load %arg1[%c1, %c0_6, %c0_7] : memref<2x8x128xf32, #tpu.memory_space<vmem>>, vector<1x8x128xf32>
    %5 = vector.shape_cast %4 : vector<1x8x128xf32> to vector<8x128xf32>
    %6 = tpu.concatenate %3, %5 in 0 : vector<8x128xf32>, vector<8x128xf32> -> vector<16x128xf32>
    %cst = arith.constant 0.000000e+00 : f32
    %7 = vector.broadcast %cst : f32 to vector<16x128xf32>
    %cst_8 = arith.constant 0.000000e+00 : f32
    %8 = vector.broadcast %cst_8 : f32 to vector<16x128xf32>
    %c1_i32 = arith.constant 1 : i32
    %9 = tpu.dynamic_rotate %6 by %c1_i32 dim 1 : vector<16x128xf32>, i32 -> vector<16x128xf32>
    %10 = vector.extract_strided_slice %1 {offsets = [0, 0], sizes = [16, 1], strides = [1, 1]} : vector<16x4xf32> to vector<16x1xf32>
    %11 = vector.broadcast %10 : vector<16x1xf32> to vector<16x128xf32>
    %12 = arith.mulf %9, %11 : vector<16x128xf32>
    %13 = arith.addf %7, %12 : vector<16x128xf32>
    %14 = vector.extract_strided_slice %0 {offsets = [0, 0], sizes = [16, 1], strides = [1, 1]} : vector<16x4xf32> to vector<16x1xf32>
    %15 = vector.broadcast %14 : vector<16x1xf32> to vector<16x128xf32>
    %16 = arith.mulf %9, %15 : vector<16x128xf32>
    %17 = arith.addf %8, %16 : vector<16x128xf32>
    %18 = vector.extract_strided_slice %1 {offsets = [0, 1], sizes = [16, 1], strides = [1, 1]} : vector<16x4xf32> to vector<16x1xf32>
    %19 = vector.broadcast %18 : vector<16x1xf32> to vector<16x128xf32>
    %20 = arith.mulf %6, %19 : vector<16x128xf32>
    %21 = arith.addf %13, %20 : vector<16x128xf32>
    %22 = vector.extract_strided_slice %0 {offsets = [0, 1], sizes = [16, 1], strides = [1, 1]} : vector<16x4xf32> to vector<16x1xf32>
    %23 = vector.broadcast %22 : vector<16x1xf32> to vector<16x128xf32>
    %24 = arith.mulf %6, %23 : vector<16x128xf32>
    %25 = arith.addf %17, %24 : vector<16x128xf32>
    %c127_i32 = arith.constant 127 : i32
    %26 = tpu.dynamic_rotate %6 by %c127_i32 dim 1 : vector<16x128xf32>, i32 -> vector<16x128xf32>
    %27 = vector.extract_strided_slice %1 {offsets = [0, 2], sizes = [16, 1], strides = [1, 1]} : vector<16x4xf32> to vector<16x1xf32>
    %28 = vector.broadcast %27 : vector<16x1xf32> to vector<16x128xf32>
    %29 = arith.mulf %26, %28 : vector<16x128xf32>
    %30 = arith.addf %21, %29 : vector<16x128xf32>
    %31 = vector.extract_strided_slice %0 {offsets = [0, 2], sizes = [16, 1], strides = [1, 1]} : vector<16x4xf32> to vector<16x1xf32>
    %32 = vector.broadcast %31 : vector<16x1xf32> to vector<16x128xf32>
    %33 = arith.mulf %26, %32 : vector<16x128xf32>
    %34 = arith.addf %25, %33 : vector<16x128xf32>
    %c126_i32 = arith.constant 126 : i32
    %35 = tpu.dynamic_rotate %6 by %c126_i32 dim 1 : vector<16x128xf32>, i32 -> vector<16x128xf32>
    %36 = vector.extract_strided_slice %1 {offsets = [0, 3], sizes = [16, 1], strides = [1, 1]} : vector<16x4xf32> to vector<16x1xf32>
    %37 = vector.broadcast %36 : vector<16x1xf32> to vector<16x128xf32>
    %38 = arith.mulf %35, %37 : vector<16x128xf32>
    %39 = arith.addf %30, %38 : vector<16x128xf32>
    %40 = vector.extract_strided_slice %0 {offsets = [0, 3], sizes = [16, 1], strides = [1, 1]} : vector<16x4xf32> to vector<16x1xf32>
    %41 = vector.broadcast %40 : vector<16x1xf32> to vector<16x128xf32>
    %42 = arith.mulf %35, %41 : vector<16x128xf32>
    %43 = arith.addf %34, %42 : vector<16x128xf32>
    %cst_9 = arith.constant 0.000000e+00 : f32
    %44 = vector.broadcast %cst_9 : f32 to vector<16x128xf32>
    %cst_10 = arith.constant 0.000000e+00 : f32
    %45 = vector.broadcast %cst_10 : f32 to vector<16x128xf32>
    %c2_i32 = arith.constant 2 : i32
    %46 = tpu.dynamic_rotate %43 by %c2_i32 dim 1 : vector<16x128xf32>, i32 -> vector<16x128xf32>
    %47 = vector.extract_strided_slice %1 {offsets = [0, 0], sizes = [16, 1], strides = [1, 1]} : vector<16x4xf32> to vector<16x1xf32>
    %48 = vector.broadcast %47 : vector<16x1xf32> to vector<16x128xf32>
    %49 = arith.mulf %46, %48 : vector<16x128xf32>
    %50 = arith.addf %44, %49 : vector<16x128xf32>
    %51 = vector.extract_strided_slice %0 {offsets = [0, 0], sizes = [16, 1], strides = [1, 1]} : vector<16x4xf32> to vector<16x1xf32>
    %52 = vector.broadcast %51 : vector<16x1xf32> to vector<16x128xf32>
    %53 = arith.mulf %46, %52 : vector<16x128xf32>
    %54 = arith.addf %45, %53 : vector<16x128xf32>
    %55 = vector.extract_strided_slice %1 {offsets = [0, 1], sizes = [16, 1], strides = [1, 1]} : vector<16x4xf32> to vector<16x1xf32>
    %56 = vector.broadcast %55 : vector<16x1xf32> to vector<16x128xf32>
    %57 = arith.mulf %43, %56 : vector<16x128xf32>
    %58 = arith.addf %50, %57 : vector<16x128xf32>
    %59 = vector.extract_strided_slice %0 {offsets = [0, 1], sizes = [16, 1], strides = [1, 1]} : vector<16x4xf32> to vector<16x1xf32>
    %60 = vector.broadcast %59 : vector<16x1xf32> to vector<16x128xf32>
    %61 = arith.mulf %43, %60 : vector<16x128xf32>
    %62 = arith.addf %54, %61 : vector<16x128xf32>
    %c126_i32_11 = arith.constant 126 : i32
    %63 = tpu.dynamic_rotate %43 by %c126_i32_11 dim 1 : vector<16x128xf32>, i32 -> vector<16x128xf32>
    %64 = vector.extract_strided_slice %1 {offsets = [0, 2], sizes = [16, 1], strides = [1, 1]} : vector<16x4xf32> to vector<16x1xf32>
    %65 = vector.broadcast %64 : vector<16x1xf32> to vector<16x128xf32>
    %66 = arith.mulf %63, %65 : vector<16x128xf32>
    %67 = arith.addf %58, %66 : vector<16x128xf32>
    %68 = vector.extract_strided_slice %0 {offsets = [0, 2], sizes = [16, 1], strides = [1, 1]} : vector<16x4xf32> to vector<16x1xf32>
    %69 = vector.broadcast %68 : vector<16x1xf32> to vector<16x128xf32>
    %70 = arith.mulf %63, %69 : vector<16x128xf32>
    %71 = arith.addf %62, %70 : vector<16x128xf32>
    %c124_i32 = arith.constant 124 : i32
    %72 = tpu.dynamic_rotate %43 by %c124_i32 dim 1 : vector<16x128xf32>, i32 -> vector<16x128xf32>
    %73 = vector.extract_strided_slice %1 {offsets = [0, 3], sizes = [16, 1], strides = [1, 1]} : vector<16x4xf32> to vector<16x1xf32>
    %74 = vector.broadcast %73 : vector<16x1xf32> to vector<16x128xf32>
    %75 = arith.mulf %72, %74 : vector<16x128xf32>
    %76 = arith.addf %67, %75 : vector<16x128xf32>
    %77 = vector.extract_strided_slice %0 {offsets = [0, 3], sizes = [16, 1], strides = [1, 1]} : vector<16x4xf32> to vector<16x1xf32>
    %78 = vector.broadcast %77 : vector<16x1xf32> to vector<16x128xf32>
    %79 = arith.mulf %72, %78 : vector<16x128xf32>
    %80 = arith.addf %71, %79 : vector<16x128xf32>
    %81 = tpu.concatenate %80, %76, %39 in 0 : vector<16x128xf32>, vector<16x128xf32>, vector<16x128xf32> -> vector<48x128xf32>
    %82 = arith.truncf %81 : vector<48x128xf32> to vector<48x128xbf16>
    %c0_12 = arith.constant 0 : index
    %c0_13 = arith.constant 0 : index
    %c0_14 = arith.constant 0 : index
    %83 = vector.load %arg8[%c0_12, %c0_13, %c0_14] : memref<4x128x128xbf16, #tpu.memory_space<vmem>>, vector<1x128x128xbf16>
    %84 = vector.shape_cast %83 : vector<1x128x128xbf16> to vector<128x128xbf16>
    %cst_15 = arith.constant dense<0.000000e+00> : vector<48x128xf32>
    %85 = tpu.matmul %82, %84, %cst_15 {dimension_numbers = #tpu.dot_dimension_numbers<[1], [1], [0], [0], [0, 0, 1, 0], [], []>} : vector<48x128xbf16>, vector<128x128xbf16>, vector<48x128xf32> -> vector<48x128xf32>
    %c0_16 = arith.constant 0 : index
    %c0_17 = arith.constant 0 : index
    %c0_18 = arith.constant 0 : index
    %86 = vector.load %arg9[%c0_16, %c0_17, %c0_18] : memref<4x1x128xf32, #tpu.memory_space<vmem>>, vector<1x1x128xf32>
    %87 = vector.shape_cast %86 : vector<1x1x128xf32> to vector<1x128xf32>
    %88 = vector.broadcast %87 : vector<1x128xf32> to vector<48x128xf32>
    %89 = arith.addf %85, %88 : vector<48x128xf32>
    %c0_19 = arith.constant 0 : index
    %c0_20 = arith.constant 0 : index
    %c0_21 = arith.constant 0 : index
    %90 = vector.load %arg2[%c0_19, %c0_20, %c0_21] : memref<2x8x128xf32, #tpu.memory_space<vmem>>, vector<1x8x128xf32>
    %91 = vector.shape_cast %90 : vector<1x8x128xf32> to vector<8x128xf32>
    %c1_22 = arith.constant 1 : index
    %c0_23 = arith.constant 0 : index
    %c0_24 = arith.constant 0 : index
    %92 = vector.load %arg2[%c1_22, %c0_23, %c0_24] : memref<2x8x128xf32, #tpu.memory_space<vmem>>, vector<1x8x128xf32>
    %93 = vector.shape_cast %92 : vector<1x8x128xf32> to vector<8x128xf32>
    %94 = tpu.concatenate %91, %93 in 0 : vector<8x128xf32>, vector<8x128xf32> -> vector<16x128xf32>
    %cst_25 = arith.constant 0.000000e+00 : f32
    %95 = vector.broadcast %cst_25 : f32 to vector<16x128xf32>
    %cst_26 = arith.constant 0.000000e+00 : f32
    %96 = vector.broadcast %cst_26 : f32 to vector<16x128xf32>
    %c1_i32_27 = arith.constant 1 : i32
    %97 = tpu.dynamic_rotate %94 by %c1_i32_27 dim 1 : vector<16x128xf32>, i32 -> vector<16x128xf32>
    %98 = vector.extract_strided_slice %1 {offsets = [0, 0], sizes = [16, 1], strides = [1, 1]} : vector<16x4xf32> to vector<16x1xf32>
    %99 = vector.broadcast %98 : vector<16x1xf32> to vector<16x128xf32>
    %100 = arith.mulf %97, %99 : vector<16x128xf32>
    %101 = arith.addf %95, %100 : vector<16x128xf32>
    %102 = vector.extract_strided_slice %0 {offsets = [0, 0], sizes = [16, 1], strides = [1, 1]} : vector<16x4xf32> to vector<16x1xf32>
    %103 = vector.broadcast %102 : vector<16x1xf32> to vector<16x128xf32>
    %104 = arith.mulf %97, %103 : vector<16x128xf32>
    %105 = arith.addf %96, %104 : vector<16x128xf32>
    %106 = vector.extract_strided_slice %1 {offsets = [0, 1], sizes = [16, 1], strides = [1, 1]} : vector<16x4xf32> to vector<16x1xf32>
    %107 = vector.broadcast %106 : vector<16x1xf32> to vector<16x128xf32>
    %108 = arith.mulf %94, %107 : vector<16x128xf32>
    %109 = arith.addf %101, %108 : vector<16x128xf32>
    %110 = vector.extract_strided_slice %0 {offsets = [0, 1], sizes = [16, 1], strides = [1, 1]} : vector<16x4xf32> to vector<16x1xf32>
    %111 = vector.broadcast %110 : vector<16x1xf32> to vector<16x128xf32>
    %112 = arith.mulf %94, %111 : vector<16x128xf32>
    %113 = arith.addf %105, %112 : vector<16x128xf32>
    %c127_i32_28 = arith.constant 127 : i32
    %114 = tpu.dynamic_rotate %94 by %c127_i32_28 dim 1 : vector<16x128xf32>, i32 -> vector<16x128xf32>
    %115 = vector.extract_strided_slice %1 {offsets = [0, 2], sizes = [16, 1], strides = [1, 1]} : vector<16x4xf32> to vector<16x1xf32>
    %116 = vector.broadcast %115 : vector<16x1xf32> to vector<16x128xf32>
    %117 = arith.mulf %114, %116 : vector<16x128xf32>
    %118 = arith.addf %109, %117 : vector<16x128xf32>
    %119 = vector.extract_strided_slice %0 {offsets = [0, 2], sizes = [16, 1], strides = [1, 1]} : vector<16x4xf32> to vector<16x1xf32>
    %120 = vector.broadcast %119 : vector<16x1xf32> to vector<16x128xf32>
    %121 = arith.mulf %114, %120 : vector<16x128xf32>
    %122 = arith.addf %113, %121 : vector<16x128xf32>
    %c126_i32_29 = arith.constant 126 : i32
    %123 = tpu.dynamic_rotate %94 by %c126_i32_29 dim 1 : vector<16x128xf32>, i32 -> vector<16x128xf32>
    %124 = vector.extract_strided_slice %1 {offsets = [0, 3], sizes = [16, 1], strides = [1, 1]} : vector<16x4xf32> to vector<16x1xf32>
    %125 = vector.broadcast %124 : vector<16x1xf32> to vector<16x128xf32>
    %126 = arith.mulf %123, %125 : vector<16x128xf32>
    %127 = arith.addf %118, %126 : vector<16x128xf32>
    %128 = vector.extract_strided_slice %0 {offsets = [0, 3], sizes = [16, 1], strides = [1, 1]} : vector<16x4xf32> to vector<16x1xf32>
    %129 = vector.broadcast %128 : vector<16x1xf32> to vector<16x128xf32>
    %130 = arith.mulf %123, %129 : vector<16x128xf32>
    %131 = arith.addf %122, %130 : vector<16x128xf32>
    %cst_30 = arith.constant 0.000000e+00 : f32
    %132 = vector.broadcast %cst_30 : f32 to vector<16x128xf32>
    %cst_31 = arith.constant 0.000000e+00 : f32
    %133 = vector.broadcast %cst_31 : f32 to vector<16x128xf32>
    %c2_i32_32 = arith.constant 2 : i32
    %134 = tpu.dynamic_rotate %131 by %c2_i32_32 dim 1 : vector<16x128xf32>, i32 -> vector<16x128xf32>
    %135 = vector.extract_strided_slice %1 {offsets = [0, 0], sizes = [16, 1], strides = [1, 1]} : vector<16x4xf32> to vector<16x1xf32>
    %136 = vector.broadcast %135 : vector<16x1xf32> to vector<16x128xf32>
    %137 = arith.mulf %134, %136 : vector<16x128xf32>
    %138 = arith.addf %132, %137 : vector<16x128xf32>
    %139 = vector.extract_strided_slice %0 {offsets = [0, 0], sizes = [16, 1], strides = [1, 1]} : vector<16x4xf32> to vector<16x1xf32>
    %140 = vector.broadcast %139 : vector<16x1xf32> to vector<16x128xf32>
    %141 = arith.mulf %134, %140 : vector<16x128xf32>
    %142 = arith.addf %133, %141 : vector<16x128xf32>
    %143 = vector.extract_strided_slice %1 {offsets = [0, 1], sizes = [16, 1], strides = [1, 1]} : vector<16x4xf32> to vector<16x1xf32>
    %144 = vector.broadcast %143 : vector<16x1xf32> to vector<16x128xf32>
    %145 = arith.mulf %131, %144 : vector<16x128xf32>
    %146 = arith.addf %138, %145 : vector<16x128xf32>
    %147 = vector.extract_strided_slice %0 {offsets = [0, 1], sizes = [16, 1], strides = [1, 1]} : vector<16x4xf32> to vector<16x1xf32>
    %148 = vector.broadcast %147 : vector<16x1xf32> to vector<16x128xf32>
    %149 = arith.mulf %131, %148 : vector<16x128xf32>
    %150 = arith.addf %142, %149 : vector<16x128xf32>
    %c126_i32_33 = arith.constant 126 : i32
    %151 = tpu.dynamic_rotate %131 by %c126_i32_33 dim 1 : vector<16x128xf32>, i32 -> vector<16x128xf32>
    %152 = vector.extract_strided_slice %1 {offsets = [0, 2], sizes = [16, 1], strides = [1, 1]} : vector<16x4xf32> to vector<16x1xf32>
    %153 = vector.broadcast %152 : vector<16x1xf32> to vector<16x128xf32>
    %154 = arith.mulf %151, %153 : vector<16x128xf32>
    %155 = arith.addf %146, %154 : vector<16x128xf32>
    %156 = vector.extract_strided_slice %0 {offsets = [0, 2], sizes = [16, 1], strides = [1, 1]} : vector<16x4xf32> to vector<16x1xf32>
    %157 = vector.broadcast %156 : vector<16x1xf32> to vector<16x128xf32>
    %158 = arith.mulf %151, %157 : vector<16x128xf32>
    %159 = arith.addf %150, %158 : vector<16x128xf32>
    %c124_i32_34 = arith.constant 124 : i32
    %160 = tpu.dynamic_rotate %131 by %c124_i32_34 dim 1 : vector<16x128xf32>, i32 -> vector<16x128xf32>
    %161 = vector.extract_strided_slice %1 {offsets = [0, 3], sizes = [16, 1], strides = [1, 1]} : vector<16x4xf32> to vector<16x1xf32>
    %162 = vector.broadcast %161 : vector<16x1xf32> to vector<16x128xf32>
    %163 = arith.mulf %160, %162 : vector<16x128xf32>
    %164 = arith.addf %155, %163 : vector<16x128xf32>
    %165 = vector.extract_strided_slice %0 {offsets = [0, 3], sizes = [16, 1], strides = [1, 1]} : vector<16x4xf32> to vector<16x1xf32>
    %166 = vector.broadcast %165 : vector<16x1xf32> to vector<16x128xf32>
    %167 = arith.mulf %160, %166 : vector<16x128xf32>
    %168 = arith.addf %159, %167 : vector<16x128xf32>
    %169 = tpu.concatenate %168, %164, %127 in 0 : vector<16x128xf32>, vector<16x128xf32>, vector<16x128xf32> -> vector<48x128xf32>
    %170 = arith.truncf %169 : vector<48x128xf32> to vector<48x128xbf16>
    %c1_35 = arith.constant 1 : index
    %c0_36 = arith.constant 0 : index
    %c0_37 = arith.constant 0 : index
    %171 = vector.load %arg8[%c1_35, %c0_36, %c0_37] : memref<4x128x128xbf16, #tpu.memory_space<vmem>>, vector<1x128x128xbf16>
    %172 = vector.shape_cast %171 : vector<1x128x128xbf16> to vector<128x128xbf16>
    %cst_38 = arith.constant dense<0.000000e+00> : vector<48x128xf32>
    %173 = tpu.matmul %170, %172, %cst_38 {dimension_numbers = #tpu.dot_dimension_numbers<[1], [1], [0], [0], [0, 0, 1, 0], [], []>} : vector<48x128xbf16>, vector<128x128xbf16>, vector<48x128xf32> -> vector<48x128xf32>
    %c1_39 = arith.constant 1 : index
    %c0_40 = arith.constant 0 : index
    %c0_41 = arith.constant 0 : index
    %174 = vector.load %arg9[%c1_39, %c0_40, %c0_41] : memref<4x1x128xf32, #tpu.memory_space<vmem>>, vector<1x1x128xf32>
    %175 = vector.shape_cast %174 : vector<1x1x128xf32> to vector<1x128xf32>
    %176 = vector.broadcast %175 : vector<1x128xf32> to vector<48x128xf32>
    %177 = arith.addf %173, %176 : vector<48x128xf32>
    %c0_42 = arith.constant 0 : index
    %c0_43 = arith.constant 0 : index
    %c0_44 = arith.constant 0 : index
    %178 = vector.load %arg3[%c0_42, %c0_43, %c0_44] : memref<2x8x128xf32, #tpu.memory_space<vmem>>, vector<1x8x128xf32>
    %179 = vector.shape_cast %178 : vector<1x8x128xf32> to vector<8x128xf32>
    %c1_45 = arith.constant 1 : index
    %c0_46 = arith.constant 0 : index
    %c0_47 = arith.constant 0 : index
    %180 = vector.load %arg3[%c1_45, %c0_46, %c0_47] : memref<2x8x128xf32, #tpu.memory_space<vmem>>, vector<1x8x128xf32>
    %181 = vector.shape_cast %180 : vector<1x8x128xf32> to vector<8x128xf32>
    %182 = tpu.concatenate %179, %181 in 0 : vector<8x128xf32>, vector<8x128xf32> -> vector<16x128xf32>
    %cst_48 = arith.constant 0.000000e+00 : f32
    %183 = vector.broadcast %cst_48 : f32 to vector<16x128xf32>
    %cst_49 = arith.constant 0.000000e+00 : f32
    %184 = vector.broadcast %cst_49 : f32 to vector<16x128xf32>
    %c1_i32_50 = arith.constant 1 : i32
    %185 = tpu.dynamic_rotate %182 by %c1_i32_50 dim 1 : vector<16x128xf32>, i32 -> vector<16x128xf32>
    %186 = vector.extract_strided_slice %1 {offsets = [0, 0], sizes = [16, 1], strides = [1, 1]} : vector<16x4xf32> to vector<16x1xf32>
    %187 = vector.broadcast %186 : vector<16x1xf32> to vector<16x128xf32>
    %188 = arith.mulf %185, %187 : vector<16x128xf32>
    %189 = arith.addf %183, %188 : vector<16x128xf32>
    %190 = vector.extract_strided_slice %0 {offsets = [0, 0], sizes = [16, 1], strides = [1, 1]} : vector<16x4xf32> to vector<16x1xf32>
    %191 = vector.broadcast %190 : vector<16x1xf32> to vector<16x128xf32>
    %192 = arith.mulf %185, %191 : vector<16x128xf32>
    %193 = arith.addf %184, %192 : vector<16x128xf32>
    %194 = vector.extract_strided_slice %1 {offsets = [0, 1], sizes = [16, 1], strides = [1, 1]} : vector<16x4xf32> to vector<16x1xf32>
    %195 = vector.broadcast %194 : vector<16x1xf32> to vector<16x128xf32>
    %196 = arith.mulf %182, %195 : vector<16x128xf32>
    %197 = arith.addf %189, %196 : vector<16x128xf32>
    %198 = vector.extract_strided_slice %0 {offsets = [0, 1], sizes = [16, 1], strides = [1, 1]} : vector<16x4xf32> to vector<16x1xf32>
    %199 = vector.broadcast %198 : vector<16x1xf32> to vector<16x128xf32>
    %200 = arith.mulf %182, %199 : vector<16x128xf32>
    %201 = arith.addf %193, %200 : vector<16x128xf32>
    %c127_i32_51 = arith.constant 127 : i32
    %202 = tpu.dynamic_rotate %182 by %c127_i32_51 dim 1 : vector<16x128xf32>, i32 -> vector<16x128xf32>
    %203 = vector.extract_strided_slice %1 {offsets = [0, 2], sizes = [16, 1], strides = [1, 1]} : vector<16x4xf32> to vector<16x1xf32>
    %204 = vector.broadcast %203 : vector<16x1xf32> to vector<16x128xf32>
    %205 = arith.mulf %202, %204 : vector<16x128xf32>
    %206 = arith.addf %197, %205 : vector<16x128xf32>
    %207 = vector.extract_strided_slice %0 {offsets = [0, 2], sizes = [16, 1], strides = [1, 1]} : vector<16x4xf32> to vector<16x1xf32>
    %208 = vector.broadcast %207 : vector<16x1xf32> to vector<16x128xf32>
    %209 = arith.mulf %202, %208 : vector<16x128xf32>
    %210 = arith.addf %201, %209 : vector<16x128xf32>
    %c126_i32_52 = arith.constant 126 : i32
    %211 = tpu.dynamic_rotate %182 by %c126_i32_52 dim 1 : vector<16x128xf32>, i32 -> vector<16x128xf32>
    %212 = vector.extract_strided_slice %1 {offsets = [0, 3], sizes = [16, 1], strides = [1, 1]} : vector<16x4xf32> to vector<16x1xf32>
    %213 = vector.broadcast %212 : vector<16x1xf32> to vector<16x128xf32>
    %214 = arith.mulf %211, %213 : vector<16x128xf32>
    %215 = arith.addf %206, %214 : vector<16x128xf32>
    %216 = vector.extract_strided_slice %0 {offsets = [0, 3], sizes = [16, 1], strides = [1, 1]} : vector<16x4xf32> to vector<16x1xf32>
    %217 = vector.broadcast %216 : vector<16x1xf32> to vector<16x128xf32>
    %218 = arith.mulf %211, %217 : vector<16x128xf32>
    %219 = arith.addf %210, %218 : vector<16x128xf32>
    %cst_53 = arith.constant 0.000000e+00 : f32
    %220 = vector.broadcast %cst_53 : f32 to vector<16x128xf32>
    %cst_54 = arith.constant 0.000000e+00 : f32
    %221 = vector.broadcast %cst_54 : f32 to vector<16x128xf32>
    %c2_i32_55 = arith.constant 2 : i32
    %222 = tpu.dynamic_rotate %219 by %c2_i32_55 dim 1 : vector<16x128xf32>, i32 -> vector<16x128xf32>
    %223 = vector.extract_strided_slice %1 {offsets = [0, 0], sizes = [16, 1], strides = [1, 1]} : vector<16x4xf32> to vector<16x1xf32>
    %224 = vector.broadcast %223 : vector<16x1xf32> to vector<16x128xf32>
    %225 = arith.mulf %222, %224 : vector<16x128xf32>
    %226 = arith.addf %220, %225 : vector<16x128xf32>
    %227 = vector.extract_strided_slice %0 {offsets = [0, 0], sizes = [16, 1], strides = [1, 1]} : vector<16x4xf32> to vector<16x1xf32>
    %228 = vector.broadcast %227 : vector<16x1xf32> to vector<16x128xf32>
    %229 = arith.mulf %222, %228 : vector<16x128xf32>
    %230 = arith.addf %221, %229 : vector<16x128xf32>
    %231 = vector.extract_strided_slice %1 {offsets = [0, 1], sizes = [16, 1], strides = [1, 1]} : vector<16x4xf32> to vector<16x1xf32>
    %232 = vector.broadcast %231 : vector<16x1xf32> to vector<16x128xf32>
    %233 = arith.mulf %219, %232 : vector<16x128xf32>
    %234 = arith.addf %226, %233 : vector<16x128xf32>
    %235 = vector.extract_strided_slice %0 {offsets = [0, 1], sizes = [16, 1], strides = [1, 1]} : vector<16x4xf32> to vector<16x1xf32>
    %236 = vector.broadcast %235 : vector<16x1xf32> to vector<16x128xf32>
    %237 = arith.mulf %219, %236 : vector<16x128xf32>
    %238 = arith.addf %230, %237 : vector<16x128xf32>
    %c126_i32_56 = arith.constant 126 : i32
    %239 = tpu.dynamic_rotate %219 by %c126_i32_56 dim 1 : vector<16x128xf32>, i32 -> vector<16x128xf32>
    %240 = vector.extract_strided_slice %1 {offsets = [0, 2], sizes = [16, 1], strides = [1, 1]} : vector<16x4xf32> to vector<16x1xf32>
    %241 = vector.broadcast %240 : vector<16x1xf32> to vector<16x128xf32>
    %242 = arith.mulf %239, %241 : vector<16x128xf32>
    %243 = arith.addf %234, %242 : vector<16x128xf32>
    %244 = vector.extract_strided_slice %0 {offsets = [0, 2], sizes = [16, 1], strides = [1, 1]} : vector<16x4xf32> to vector<16x1xf32>
    %245 = vector.broadcast %244 : vector<16x1xf32> to vector<16x128xf32>
    %246 = arith.mulf %239, %245 : vector<16x128xf32>
    %247 = arith.addf %238, %246 : vector<16x128xf32>
    %c124_i32_57 = arith.constant 124 : i32
    %248 = tpu.dynamic_rotate %219 by %c124_i32_57 dim 1 : vector<16x128xf32>, i32 -> vector<16x128xf32>
    %249 = vector.extract_strided_slice %1 {offsets = [0, 3], sizes = [16, 1], strides = [1, 1]} : vector<16x4xf32> to vector<16x1xf32>
    %250 = vector.broadcast %249 : vector<16x1xf32> to vector<16x128xf32>
    %251 = arith.mulf %248, %250 : vector<16x128xf32>
    %252 = arith.addf %243, %251 : vector<16x128xf32>
    %253 = vector.extract_strided_slice %0 {offsets = [0, 3], sizes = [16, 1], strides = [1, 1]} : vector<16x4xf32> to vector<16x1xf32>
    %254 = vector.broadcast %253 : vector<16x1xf32> to vector<16x128xf32>
    %255 = arith.mulf %248, %254 : vector<16x128xf32>
    %256 = arith.addf %247, %255 : vector<16x128xf32>
    %257 = tpu.concatenate %256, %252, %215 in 0 : vector<16x128xf32>, vector<16x128xf32>, vector<16x128xf32> -> vector<48x128xf32>
    %258 = arith.truncf %257 : vector<48x128xf32> to vector<48x128xbf16>
    %c2 = arith.constant 2 : index
    %c0_58 = arith.constant 0 : index
    %c0_59 = arith.constant 0 : index
    %259 = vector.load %arg8[%c2, %c0_58, %c0_59] : memref<4x128x128xbf16, #tpu.memory_space<vmem>>, vector<1x128x128xbf16>
    %260 = vector.shape_cast %259 : vector<1x128x128xbf16> to vector<128x128xbf16>
    %cst_60 = arith.constant dense<0.000000e+00> : vector<48x128xf32>
    %261 = tpu.matmul %258, %260, %cst_60 {dimension_numbers = #tpu.dot_dimension_numbers<[1], [1], [0], [0], [0, 0, 1, 0], [], []>} : vector<48x128xbf16>, vector<128x128xbf16>, vector<48x128xf32> -> vector<48x128xf32>
    %c2_61 = arith.constant 2 : index
    %c0_62 = arith.constant 0 : index
    %c0_63 = arith.constant 0 : index
    %262 = vector.load %arg9[%c2_61, %c0_62, %c0_63] : memref<4x1x128xf32, #tpu.memory_space<vmem>>, vector<1x1x128xf32>
    %263 = vector.shape_cast %262 : vector<1x1x128xf32> to vector<1x128xf32>
    %264 = vector.broadcast %263 : vector<1x128xf32> to vector<48x128xf32>
    %265 = arith.addf %261, %264 : vector<48x128xf32>
    %266 = vector.extract_strided_slice %89 {offsets = [0, 0], sizes = [8, 128], strides = [1, 1]} : vector<48x128xf32> to vector<8x128xf32>
    %267 = vector.extract_strided_slice %177 {offsets = [0, 0], sizes = [8, 128], strides = [1, 1]} : vector<48x128xf32> to vector<8x128xf32>
    %268 = vector.extract_strided_slice %265 {offsets = [0, 0], sizes = [8, 128], strides = [1, 1]} : vector<48x128xf32> to vector<8x128xf32>
    %269 = tpu.transpose %266, [1, 0] : vector<8x128xf32> -> vector<128x8xf32>
    %cst_64 = arith.constant dense<0.000000e+00> : vector<128x128xf32>
    %270 = tpu.matmul %269, %267, %cst_64 {dimension_numbers = #tpu.dot_dimension_numbers<[1], [0], [0], [1], [0, 0, 1, 1], [], []>} : vector<128x8xf32>, vector<8x128xf32>, vector<128x128xf32> -> vector<128x128xf32>
    %271 = arith.mulf %267, %267 : vector<8x128xf32>
    %cst_65 = arith.constant dense<0.000000e+00> : vector<128xf32>
    %272 = vector.multi_reduction <add>, %271, %cst_65 [0] : vector<8x128xf32> to vector<128xf32>
    %273 = vector.shape_cast %272 : vector<128xf32> to vector<1x128xf32>
    %274 = arith.mulf %266, %266 : vector<8x128xf32>
    %275 = tpu.transpose %274, [1, 0] : vector<8x128xf32> -> vector<128x8xf32>
    %276 = vector.shape_cast %273 : vector<1x128xf32> to vector<1x128xf32>
    %277 = vector.broadcast %276 : vector<1x128xf32> to vector<8x128xf32>
    %cst_66 = arith.constant dense<0.000000e+00> : vector<128x128xf32>
    %278 = tpu.matmul %275, %277, %cst_66 {dimension_numbers = #tpu.dot_dimension_numbers<[1], [0], [0], [1], [0, 0, 1, 1], [], []>} : vector<128x8xf32>, vector<8x128xf32>, vector<128x128xf32> -> vector<128x128xf32>
    %279 = arith.mulf %270, %270 : vector<128x128xf32>
    %280 = arith.subf %278, %279 : vector<128x128xf32>
    %cst_67 = arith.constant 0.000000e+00 : f32
    %281 = vector.broadcast %cst_67 : f32 to vector<128x128xf32>
    %282 = arith.maximumf %280, %281 : vector<128x128xf32>
    %cst_68 = arith.constant 9.99999993E-9 : f32
    %283 = vector.broadcast %cst_68 : f32 to vector<128x128xf32>
    %284 = arith.addf %282, %283 : vector<128x128xf32>
    %285 = math.sqrt %284 : vector<128x128xf32>
    %cst_69 = arith.constant 0.176776692 : f32
    %286 = vector.broadcast %cst_69 : f32 to vector<128x128xf32>
    %287 = arith.mulf %286, %270 : vector<128x128xf32>
    %cst_70 = arith.constant 0.176776692 : f32
    %288 = vector.broadcast %cst_70 : f32 to vector<128x128xf32>
    %289 = arith.mulf %288, %285 : vector<128x128xf32>
    %290 = arith.addf %287, %289 : vector<128x128xf32>
    %cst_71 = arith.constant dense<0xFF800000> : vector<128xf32>
    %291 = vector.multi_reduction <maximumf>, %290, %cst_71 [1] : vector<128x128xf32> to vector<128xf32>
    %292 = vector.shape_cast %291 : vector<128xf32> to vector<128x1xf32>
    %293 = vector.broadcast %292 : vector<128x1xf32> to vector<128x128xf32>
    %294 = arith.subf %290, %293 : vector<128x128xf32>
    %295 = math.exp %294 : vector<128x128xf32>
    %cst_72 = arith.constant dense<0.000000e+00> : vector<128xf32>
    %296 = vector.multi_reduction <add>, %295, %cst_72 [1] : vector<128x128xf32> to vector<128xf32>
    %297 = vector.shape_cast %296 : vector<128xf32> to vector<128x1xf32>
    %298 = tpu.reciprocal %297 {approx = true} : vector<128x1xf32> -> vector<128x1xf32>
    %299 = vector.broadcast %298 : vector<128x1xf32> to vector<128x128xf32>
    %300 = arith.mulf %295, %299 : vector<128x128xf32>
    %301 = arith.truncf %300 : vector<128x128xf32> to vector<128x128xbf16>
    %c0_73 = arith.constant 0 : index
    %c0_74 = arith.constant 0 : index
    %c0_75 = arith.constant 0 : index
    %c0_76 = arith.constant 0 : index
    %302 = vector.load %arg11[%c0_73, %c0_74, %c0_75, %c0_76] : memref<2x3x128x128xbf16, #tpu.memory_space<vmem>>, vector<1x1x128x128xbf16>
    %303 = vector.shape_cast %302 : vector<1x1x128x128xbf16> to vector<128x128xbf16>
    %304 = vector.shape_cast %301 : vector<128x128xbf16> to vector<1x1x128x128xbf16>
    tpu.vector_store %arg11[%c0_73, %c0_74, %c0_75, %c0_76], %304 {strides = array<i32>} : memref<2x3x128x128xbf16, #tpu.memory_space<vmem>>, vector<1x1x128x128xbf16>,
    %305 = arith.truncf %268 : vector<8x128xf32> to vector<8x128xbf16>
    %cst_77 = arith.constant dense<0.000000e+00> : vector<8x128xf32>
    %306 = tpu.matmul %305, %301, %cst_77 {dimension_numbers = #tpu.dot_dimension_numbers<[1], [1], [0], [0], [0, 0, 1, 0], [], []>} : vector<8x128xbf16>, vector<128x128xbf16>, vector<8x128xf32> -> vector<8x128xf32>
    %307 = vector.extract_strided_slice %89 {offsets = [8, 0], sizes = [8, 128], strides = [1, 1]} : vector<48x128xf32> to vector<8x128xf32>
    %308 = vector.extract_strided_slice %177 {offsets = [8, 0], sizes = [8, 128], strides = [1, 1]} : vector<48x128xf32> to vector<8x128xf32>
    %309 = vector.extract_strided_slice %265 {offsets = [8, 0], sizes = [8, 128], strides = [1, 1]} : vector<48x128xf32> to vector<8x128xf32>
    %310 = tpu.transpose %307, [1, 0] : vector<8x128xf32> -> vector<128x8xf32>
    %cst_78 = arith.constant dense<0.000000e+00> : vector<128x128xf32>
    %311 = tpu.matmul %310, %308, %cst_78 {dimension_numbers = #tpu.dot_dimension_numbers<[1], [0], [0], [1], [0, 0, 1, 1], [], []>} : vector<128x8xf32>, vector<8x128xf32>, vector<128x128xf32> -> vector<128x128xf32>
    %312 = arith.mulf %308, %308 : vector<8x128xf32>
    %cst_79 = arith.constant dense<0.000000e+00> : vector<128xf32>
    %313 = vector.multi_reduction <add>, %312, %cst_79 [0] : vector<8x128xf32> to vector<128xf32>
    %314 = vector.shape_cast %313 : vector<128xf32> to vector<1x128xf32>
    %315 = arith.mulf %307, %307 : vector<8x128xf32>
    %316 = tpu.transpose %315, [1, 0] : vector<8x128xf32> -> vector<128x8xf32>
    %317 = vector.shape_cast %314 : vector<1x128xf32> to vector<1x128xf32>
    %318 = vector.broadcast %317 : vector<1x128xf32> to vector<8x128xf32>
    %cst_80 = arith.constant dense<0.000000e+00> : vector<128x128xf32>
    %319 = tpu.matmul %316, %318, %cst_80 {dimension_numbers = #tpu.dot_dimension_numbers<[1], [0], [0], [1], [0, 0, 1, 1], [], []>} : vector<128x8xf32>, vector<8x128xf32>, vector<128x128xf32> -> vector<128x128xf32>
    %320 = arith.mulf %311, %311 : vector<128x128xf32>
    %321 = arith.subf %319, %320 : vector<128x128xf32>
    %cst_81 = arith.constant 0.000000e+00 : f32
    %322 = vector.broadcast %cst_81 : f32 to vector<128x128xf32>
    %323 = arith.maximumf %321, %322 : vector<128x128xf32>
    %cst_82 = arith.constant 9.99999993E-9 : f32
    %324 = vector.broadcast %cst_82 : f32 to vector<128x128xf32>
    %325 = arith.addf %323, %324 : vector<128x128xf32>
    %326 = math.sqrt %325 : vector<128x128xf32>
    %cst_83 = arith.constant 0.176776692 : f32
    %327 = vector.broadcast %cst_83 : f32 to vector<128x128xf32>
    %328 = arith.mulf %327, %311 : vector<128x128xf32>
    %cst_84 = arith.constant 0.176776692 : f32
    %329 = vector.broadcast %cst_84 : f32 to vector<128x128xf32>
    %330 = arith.mulf %329, %326 : vector<128x128xf32>
    %331 = arith.addf %328, %330 : vector<128x128xf32>
    %cst_85 = arith.constant dense<0xFF800000> : vector<128xf32>
    %332 = vector.multi_reduction <maximumf>, %331, %cst_85 [1] : vector<128x128xf32> to vector<128xf32>
    %333 = vector.shape_cast %332 : vector<128xf32> to vector<128x1xf32>
    %334 = vector.broadcast %333 : vector<128x1xf32> to vector<128x128xf32>
    %335 = arith.subf %331, %334 : vector<128x128xf32>
    %336 = math.exp %335 : vector<128x128xf32>
    %cst_86 = arith.constant dense<0.000000e+00> : vector<128xf32>
    %337 = vector.multi_reduction <add>, %336, %cst_86 [1] : vector<128x128xf32> to vector<128xf32>
    %338 = vector.shape_cast %337 : vector<128xf32> to vector<128x1xf32>
    %339 = tpu.reciprocal %338 {approx = true} : vector<128x1xf32> -> vector<128x1xf32>
    %340 = vector.broadcast %339 : vector<128x1xf32> to vector<128x128xf32>
    %341 = arith.mulf %336, %340 : vector<128x128xf32>
    %342 = arith.truncf %341 : vector<128x128xf32> to vector<128x128xbf16>
    %c1_87 = arith.constant 1 : index
    %c0_88 = arith.constant 0 : index
    %c0_89 = arith.constant 0 : index
    %c0_90 = arith.constant 0 : index
    %343 = vector.load %arg11[%c1_87, %c0_88, %c0_89, %c0_90] : memref<2x3x128x128xbf16, #tpu.memory_space<vmem>>, vector<1x1x128x128xbf16>
    %344 = vector.shape_cast %343 : vector<1x1x128x128xbf16> to vector<128x128xbf16>
    %345 = vector.shape_cast %342 : vector<128x128xbf16> to vector<1x1x128x128xbf16>
    tpu.vector_store %arg11[%c1_87, %c0_88, %c0_89, %c0_90], %345 {strides = array<i32>} : memref<2x3x128x128xbf16, #tpu.memory_space<vmem>>, vector<1x1x128x128xbf16>,
    %346 = arith.truncf %309 : vector<8x128xf32> to vector<8x128xbf16>
    %cst_91 = arith.constant dense<0.000000e+00> : vector<8x128xf32>
    %347 = tpu.matmul %346, %342, %cst_91 {dimension_numbers = #tpu.dot_dimension_numbers<[1], [1], [0], [0], [0, 0, 1, 0], [], []>} : vector<8x128xbf16>, vector<128x128xbf16>, vector<8x128xf32> -> vector<8x128xf32>
    %348 = vector.extract_strided_slice %89 {offsets = [16, 0], sizes = [8, 128], strides = [1, 1]} : vector<48x128xf32> to vector<8x128xf32>
    %349 = vector.extract_strided_slice %177 {offsets = [16, 0], sizes = [8, 128], strides = [1, 1]} : vector<48x128xf32> to vector<8x128xf32>
    %350 = vector.extract_strided_slice %265 {offsets = [16, 0], sizes = [8, 128], strides = [1, 1]} : vector<48x128xf32> to vector<8x128xf32>
    %351 = tpu.transpose %348, [1, 0] : vector<8x128xf32> -> vector<128x8xf32>
    %cst_92 = arith.constant dense<0.000000e+00> : vector<128x128xf32>
    %352 = tpu.matmul %351, %349, %cst_92 {dimension_numbers = #tpu.dot_dimension_numbers<[1], [0], [0], [1], [0, 0, 1, 1], [], []>} : vector<128x8xf32>, vector<8x128xf32>, vector<128x128xf32> -> vector<128x128xf32>
    %353 = arith.mulf %349, %349 : vector<8x128xf32>
    %cst_93 = arith.constant dense<0.000000e+00> : vector<128xf32>
    %354 = vector.multi_reduction <add>, %353, %cst_93 [0] : vector<8x128xf32> to vector<128xf32>
    %355 = vector.shape_cast %354 : vector<128xf32> to vector<1x128xf32>
    %356 = arith.mulf %348, %348 : vector<8x128xf32>
    %357 = tpu.transpose %356, [1, 0] : vector<8x128xf32> -> vector<128x8xf32>
    %358 = vector.shape_cast %355 : vector<1x128xf32> to vector<1x128xf32>
    %359 = vector.broadcast %358 : vector<1x128xf32> to vector<8x128xf32>
    %cst_94 = arith.constant dense<0.000000e+00> : vector<128x128xf32>
    %360 = tpu.matmul %357, %359, %cst_94 {dimension_numbers = #tpu.dot_dimension_numbers<[1], [0], [0], [1], [0, 0, 1, 1], [], []>} : vector<128x8xf32>, vector<8x128xf32>, vector<128x128xf32> -> vector<128x128xf32>
    %361 = arith.mulf %352, %352 : vector<128x128xf32>
    %362 = arith.subf %360, %361 : vector<128x128xf32>
    %cst_95 = arith.constant 0.000000e+00 : f32
    %363 = vector.broadcast %cst_95 : f32 to vector<128x128xf32>
    %364 = arith.maximumf %362, %363 : vector<128x128xf32>
    %cst_96 = arith.constant 9.99999993E-9 : f32
    %365 = vector.broadcast %cst_96 : f32 to vector<128x128xf32>
    %366 = arith.addf %364, %365 : vector<128x128xf32>
    %367 = math.sqrt %366 : vector<128x128xf32>
    %cst_97 = arith.constant 0.176776692 : f32
    %368 = vector.broadcast %cst_97 : f32 to vector<128x128xf32>
    %369 = arith.mulf %368, %352 : vector<128x128xf32>
    %cst_98 = arith.constant 0.176776692 : f32
    %370 = vector.broadcast %cst_98 : f32 to vector<128x128xf32>
    %371 = arith.mulf %370, %367 : vector<128x128xf32>
    %372 = arith.addf %369, %371 : vector<128x128xf32>
    %cst_99 = arith.constant dense<0xFF800000> : vector<128xf32>
    %373 = vector.multi_reduction <maximumf>, %372, %cst_99 [1] : vector<128x128xf32> to vector<128xf32>
    %374 = vector.shape_cast %373 : vector<128xf32> to vector<128x1xf32>
    %375 = vector.broadcast %374 : vector<128x1xf32> to vector<128x128xf32>
    %376 = arith.subf %372, %375 : vector<128x128xf32>
    %377 = math.exp %376 : vector<128x128xf32>
    %cst_100 = arith.constant dense<0.000000e+00> : vector<128xf32>
    %378 = vector.multi_reduction <add>, %377, %cst_100 [1] : vector<128x128xf32> to vector<128xf32>
    %379 = vector.shape_cast %378 : vector<128xf32> to vector<128x1xf32>
    %380 = tpu.reciprocal %379 {approx = true} : vector<128x1xf32> -> vector<128x1xf32>
    %381 = vector.broadcast %380 : vector<128x1xf32> to vector<128x128xf32>
    %382 = arith.mulf %377, %381 : vector<128x128xf32>
    %383 = arith.truncf %382 : vector<128x128xf32> to vector<128x128xbf16>
    %c0_101 = arith.constant 0 : index
    %c1_102 = arith.constant 1 : index
    %c0_103 = arith.constant 0 : index
    %c0_104 = arith.constant 0 : index
    %384 = vector.load %arg11[%c0_101, %c1_102, %c0_103, %c0_104] : memref<2x3x128x128xbf16, #tpu.memory_space<vmem>>, vector<1x1x128x128xbf16>
    %385 = vector.shape_cast %384 : vector<1x1x128x128xbf16> to vector<128x128xbf16>
    %386 = vector.shape_cast %383 : vector<128x128xbf16> to vector<1x1x128x128xbf16>
    tpu.vector_store %arg11[%c0_101, %c1_102, %c0_103, %c0_104], %386 {strides = array<i32>} : memref<2x3x128x128xbf16, #tpu.memory_space<vmem>>, vector<1x1x128x128xbf16>,
    %387 = arith.truncf %350 : vector<8x128xf32> to vector<8x128xbf16>
    %cst_105 = arith.constant dense<0.000000e+00> : vector<8x128xf32>
    %388 = tpu.matmul %387, %383, %cst_105 {dimension_numbers = #tpu.dot_dimension_numbers<[1], [1], [0], [0], [0, 0, 1, 0], [], []>} : vector<8x128xbf16>, vector<128x128xbf16>, vector<8x128xf32> -> vector<8x128xf32>
    %389 = vector.extract_strided_slice %89 {offsets = [24, 0], sizes = [8, 128], strides = [1, 1]} : vector<48x128xf32> to vector<8x128xf32>
    %390 = vector.extract_strided_slice %177 {offsets = [24, 0], sizes = [8, 128], strides = [1, 1]} : vector<48x128xf32> to vector<8x128xf32>
    %391 = vector.extract_strided_slice %265 {offsets = [24, 0], sizes = [8, 128], strides = [1, 1]} : vector<48x128xf32> to vector<8x128xf32>
    %392 = tpu.transpose %389, [1, 0] : vector<8x128xf32> -> vector<128x8xf32>
    %cst_106 = arith.constant dense<0.000000e+00> : vector<128x128xf32>
    %393 = tpu.matmul %392, %390, %cst_106 {dimension_numbers = #tpu.dot_dimension_numbers<[1], [0], [0], [1], [0, 0, 1, 1], [], []>} : vector<128x8xf32>, vector<8x128xf32>, vector<128x128xf32> -> vector<128x128xf32>
    %394 = arith.mulf %390, %390 : vector<8x128xf32>
    %cst_107 = arith.constant dense<0.000000e+00> : vector<128xf32>
    %395 = vector.multi_reduction <add>, %394, %cst_107 [0] : vector<8x128xf32> to vector<128xf32>
    %396 = vector.shape_cast %395 : vector<128xf32> to vector<1x128xf32>
    %397 = arith.mulf %389, %389 : vector<8x128xf32>
    %398 = tpu.transpose %397, [1, 0] : vector<8x128xf32> -> vector<128x8xf32>
    %399 = vector.shape_cast %396 : vector<1x128xf32> to vector<1x128xf32>
    %400 = vector.broadcast %399 : vector<1x128xf32> to vector<8x128xf32>
    %cst_108 = arith.constant dense<0.000000e+00> : vector<128x128xf32>
    %401 = tpu.matmul %398, %400, %cst_108 {dimension_numbers = #tpu.dot_dimension_numbers<[1], [0], [0], [1], [0, 0, 1, 1], [], []>} : vector<128x8xf32>, vector<8x128xf32>, vector<128x128xf32> -> vector<128x128xf32>
    %402 = arith.mulf %393, %393 : vector<128x128xf32>
    %403 = arith.subf %401, %402 : vector<128x128xf32>
    %cst_109 = arith.constant 0.000000e+00 : f32
    %404 = vector.broadcast %cst_109 : f32 to vector<128x128xf32>
    %405 = arith.maximumf %403, %404 : vector<128x128xf32>
    %cst_110 = arith.constant 9.99999993E-9 : f32
    %406 = vector.broadcast %cst_110 : f32 to vector<128x128xf32>
    %407 = arith.addf %405, %406 : vector<128x128xf32>
    %408 = math.sqrt %407 : vector<128x128xf32>
    %cst_111 = arith.constant 0.176776692 : f32
    %409 = vector.broadcast %cst_111 : f32 to vector<128x128xf32>
    %410 = arith.mulf %409, %393 : vector<128x128xf32>
    %cst_112 = arith.constant 0.176776692 : f32
    %411 = vector.broadcast %cst_112 : f32 to vector<128x128xf32>
    %412 = arith.mulf %411, %408 : vector<128x128xf32>
    %413 = arith.addf %410, %412 : vector<128x128xf32>
    %cst_113 = arith.constant dense<0xFF800000> : vector<128xf32>
    %414 = vector.multi_reduction <maximumf>, %413, %cst_113 [1] : vector<128x128xf32> to vector<128xf32>
    %415 = vector.shape_cast %414 : vector<128xf32> to vector<128x1xf32>
    %416 = vector.broadcast %415 : vector<128x1xf32> to vector<128x128xf32>
    %417 = arith.subf %413, %416 : vector<128x128xf32>
    %418 = math.exp %417 : vector<128x128xf32>
    %cst_114 = arith.constant dense<0.000000e+00> : vector<128xf32>
    %419 = vector.multi_reduction <add>, %418, %cst_114 [1] : vector<128x128xf32> to vector<128xf32>
    %420 = vector.shape_cast %419 : vector<128xf32> to vector<128x1xf32>
    %421 = tpu.reciprocal %420 {approx = true} : vector<128x1xf32> -> vector<128x1xf32>
    %422 = vector.broadcast %421 : vector<128x1xf32> to vector<128x128xf32>
    %423 = arith.mulf %418, %422 : vector<128x128xf32>
    %424 = arith.truncf %423 : vector<128x128xf32> to vector<128x128xbf16>
    %c1_115 = arith.constant 1 : index
    %c1_116 = arith.constant 1 : index
    %c0_117 = arith.constant 0 : index
    %c0_118 = arith.constant 0 : index
    %425 = vector.load %arg11[%c1_115, %c1_116, %c0_117, %c0_118] : memref<2x3x128x128xbf16, #tpu.memory_space<vmem>>, vector<1x1x128x128xbf16>
    %426 = vector.shape_cast %425 : vector<1x1x128x128xbf16> to vector<128x128xbf16>
    %427 = vector.shape_cast %424 : vector<128x128xbf16> to vector<1x1x128x128xbf16>
    tpu.vector_store %arg11[%c1_115, %c1_116, %c0_117, %c0_118], %427 {strides = array<i32>} : memref<2x3x128x128xbf16, #tpu.memory_space<vmem>>, vector<1x1x128x128xbf16>,
    %428 = arith.truncf %391 : vector<8x128xf32> to vector<8x128xbf16>
    %cst_119 = arith.constant dense<0.000000e+00> : vector<8x128xf32>
    %429 = tpu.matmul %428, %424, %cst_119 {dimension_numbers = #tpu.dot_dimension_numbers<[1], [1], [0], [0], [0, 0, 1, 0], [], []>} : vector<8x128xbf16>, vector<128x128xbf16>, vector<8x128xf32> -> vector<8x128xf32>
    %430 = vector.extract_strided_slice %89 {offsets = [32, 0], sizes = [8, 128], strides = [1, 1]} : vector<48x128xf32> to vector<8x128xf32>
    %431 = vector.extract_strided_slice %177 {offsets = [32, 0], sizes = [8, 128], strides = [1, 1]} : vector<48x128xf32> to vector<8x128xf32>
    %432 = vector.extract_strided_slice %265 {offsets = [32, 0], sizes = [8, 128], strides = [1, 1]} : vector<48x128xf32> to vector<8x128xf32>
    %433 = tpu.transpose %430, [1, 0] : vector<8x128xf32> -> vector<128x8xf32>
    %cst_120 = arith.constant dense<0.000000e+00> : vector<128x128xf32>
    %434 = tpu.matmul %433, %431, %cst_120 {dimension_numbers = #tpu.dot_dimension_numbers<[1], [0], [0], [1], [0, 0, 1, 1], [], []>} : vector<128x8xf32>, vector<8x128xf32>, vector<128x128xf32> -> vector<128x128xf32>
    %435 = arith.mulf %431, %431 : vector<8x128xf32>
    %cst_121 = arith.constant dense<0.000000e+00> : vector<128xf32>
    %436 = vector.multi_reduction <add>, %435, %cst_121 [0] : vector<8x128xf32> to vector<128xf32>
    %437 = vector.shape_cast %436 : vector<128xf32> to vector<1x128xf32>
    %438 = arith.mulf %430, %430 : vector<8x128xf32>
    %439 = tpu.transpose %438, [1, 0] : vector<8x128xf32> -> vector<128x8xf32>
    %440 = vector.shape_cast %437 : vector<1x128xf32> to vector<1x128xf32>
    %441 = vector.broadcast %440 : vector<1x128xf32> to vector<8x128xf32>
    %cst_122 = arith.constant dense<0.000000e+00> : vector<128x128xf32>
    %442 = tpu.matmul %439, %441, %cst_122 {dimension_numbers = #tpu.dot_dimension_numbers<[1], [0], [0], [1], [0, 0, 1, 1], [], []>} : vector<128x8xf32>, vector<8x128xf32>, vector<128x128xf32> -> vector<128x128xf32>
    %443 = arith.mulf %434, %434 : vector<128x128xf32>
    %444 = arith.subf %442, %443 : vector<128x128xf32>
    %cst_123 = arith.constant 0.000000e+00 : f32
    %445 = vector.broadcast %cst_123 : f32 to vector<128x128xf32>
    %446 = arith.maximumf %444, %445 : vector<128x128xf32>
    %cst_124 = arith.constant 9.99999993E-9 : f32
    %447 = vector.broadcast %cst_124 : f32 to vector<128x128xf32>
    %448 = arith.addf %446, %447 : vector<128x128xf32>
    %449 = math.sqrt %448 : vector<128x128xf32>
    %cst_125 = arith.constant 0.176776692 : f32
    %450 = vector.broadcast %cst_125 : f32 to vector<128x128xf32>
    %451 = arith.mulf %450, %434 : vector<128x128xf32>
    %cst_126 = arith.constant 0.176776692 : f32
    %452 = vector.broadcast %cst_126 : f32 to vector<128x128xf32>
    %453 = arith.mulf %452, %449 : vector<128x128xf32>
    %454 = arith.addf %451, %453 : vector<128x128xf32>
    %cst_127 = arith.constant dense<0xFF800000> : vector<128xf32>
    %455 = vector.multi_reduction <maximumf>, %454, %cst_127 [1] : vector<128x128xf32> to vector<128xf32>
    %456 = vector.shape_cast %455 : vector<128xf32> to vector<128x1xf32>
    %457 = vector.broadcast %456 : vector<128x1xf32> to vector<128x128xf32>
    %458 = arith.subf %454, %457 : vector<128x128xf32>
    %459 = math.exp %458 : vector<128x128xf32>
    %cst_128 = arith.constant dense<0.000000e+00> : vector<128xf32>
    %460 = vector.multi_reduction <add>, %459, %cst_128 [1] : vector<128x128xf32> to vector<128xf32>
    %461 = vector.shape_cast %460 : vector<128xf32> to vector<128x1xf32>
    %462 = tpu.reciprocal %461 {approx = true} : vector<128x1xf32> -> vector<128x1xf32>
    %463 = vector.broadcast %462 : vector<128x1xf32> to vector<128x128xf32>
    %464 = arith.mulf %459, %463 : vector<128x128xf32>
    %465 = arith.truncf %464 : vector<128x128xf32> to vector<128x128xbf16>
    %c0_129 = arith.constant 0 : index
    %c2_130 = arith.constant 2 : index
    %c0_131 = arith.constant 0 : index
    %c0_132 = arith.constant 0 : index
    %466 = vector.load %arg11[%c0_129, %c2_130, %c0_131, %c0_132] : memref<2x3x128x128xbf16, #tpu.memory_space<vmem>>, vector<1x1x128x128xbf16>
    %467 = vector.shape_cast %466 : vector<1x1x128x128xbf16> to vector<128x128xbf16>
    %468 = vector.shape_cast %465 : vector<128x128xbf16> to vector<1x1x128x128xbf16>
    tpu.vector_store %arg11[%c0_129, %c2_130, %c0_131, %c0_132], %468 {strides = array<i32>} : memref<2x3x128x128xbf16, #tpu.memory_space<vmem>>, vector<1x1x128x128xbf16>,
    %469 = arith.truncf %432 : vector<8x128xf32> to vector<8x128xbf16>
    %cst_133 = arith.constant dense<0.000000e+00> : vector<8x128xf32>
    %470 = tpu.matmul %469, %465, %cst_133 {dimension_numbers = #tpu.dot_dimension_numbers<[1], [1], [0], [0], [0, 0, 1, 0], [], []>} : vector<8x128xbf16>, vector<128x128xbf16>, vector<8x128xf32> -> vector<8x128xf32>
    %471 = vector.extract_strided_slice %89 {offsets = [40, 0], sizes = [8, 128], strides = [1, 1]} : vector<48x128xf32> to vector<8x128xf32>
    %472 = vector.extract_strided_slice %177 {offsets = [40, 0], sizes = [8, 128], strides = [1, 1]} : vector<48x128xf32> to vector<8x128xf32>
    %473 = vector.extract_strided_slice %265 {offsets = [40, 0], sizes = [8, 128], strides = [1, 1]} : vector<48x128xf32> to vector<8x128xf32>
    %474 = tpu.transpose %471, [1, 0] : vector<8x128xf32> -> vector<128x8xf32>
    %cst_134 = arith.constant dense<0.000000e+00> : vector<128x128xf32>
    %475 = tpu.matmul %474, %472, %cst_134 {dimension_numbers = #tpu.dot_dimension_numbers<[1], [0], [0], [1], [0, 0, 1, 1], [], []>} : vector<128x8xf32>, vector<8x128xf32>, vector<128x128xf32> -> vector<128x128xf32>
    %476 = arith.mulf %472, %472 : vector<8x128xf32>
    %cst_135 = arith.constant dense<0.000000e+00> : vector<128xf32>
    %477 = vector.multi_reduction <add>, %476, %cst_135 [0] : vector<8x128xf32> to vector<128xf32>
    %478 = vector.shape_cast %477 : vector<128xf32> to vector<1x128xf32>
    %479 = arith.mulf %471, %471 : vector<8x128xf32>
    %480 = tpu.transpose %479, [1, 0] : vector<8x128xf32> -> vector<128x8xf32>
    %481 = vector.shape_cast %478 : vector<1x128xf32> to vector<1x128xf32>
    %482 = vector.broadcast %481 : vector<1x128xf32> to vector<8x128xf32>
    %cst_136 = arith.constant dense<0.000000e+00> : vector<128x128xf32>
    %483 = tpu.matmul %480, %482, %cst_136 {dimension_numbers = #tpu.dot_dimension_numbers<[1], [0], [0], [1], [0, 0, 1, 1], [], []>} : vector<128x8xf32>, vector<8x128xf32>, vector<128x128xf32> -> vector<128x128xf32>
    %484 = arith.mulf %475, %475 : vector<128x128xf32>
    %485 = arith.subf %483, %484 : vector<128x128xf32>
    %cst_137 = arith.constant 0.000000e+00 : f32
    %486 = vector.broadcast %cst_137 : f32 to vector<128x128xf32>
    %487 = arith.maximumf %485, %486 : vector<128x128xf32>
    %cst_138 = arith.constant 9.99999993E-9 : f32
    %488 = vector.broadcast %cst_138 : f32 to vector<128x128xf32>
    %489 = arith.addf %487, %488 : vector<128x128xf32>
    %490 = math.sqrt %489 : vector<128x128xf32>
    %cst_139 = arith.constant 0.176776692 : f32
    %491 = vector.broadcast %cst_139 : f32 to vector<128x128xf32>
    %492 = arith.mulf %491, %475 : vector<128x128xf32>
    %cst_140 = arith.constant 0.176776692 : f32
    %493 = vector.broadcast %cst_140 : f32 to vector<128x128xf32>
    %494 = arith.mulf %493, %490 : vector<128x128xf32>
    %495 = arith.addf %492, %494 : vector<128x128xf32>
    %cst_141 = arith.constant dense<0xFF800000> : vector<128xf32>
    %496 = vector.multi_reduction <maximumf>, %495, %cst_141 [1] : vector<128x128xf32> to vector<128xf32>
    %497 = vector.shape_cast %496 : vector<128xf32> to vector<128x1xf32>
    %498 = vector.broadcast %497 : vector<128x1xf32> to vector<128x128xf32>
    %499 = arith.subf %495, %498 : vector<128x128xf32>
    %500 = math.exp %499 : vector<128x128xf32>
    %cst_142 = arith.constant dense<0.000000e+00> : vector<128xf32>
    %501 = vector.multi_reduction <add>, %500, %cst_142 [1] : vector<128x128xf32> to vector<128xf32>
    %502 = vector.shape_cast %501 : vector<128xf32> to vector<128x1xf32>
    %503 = tpu.reciprocal %502 {approx = true} : vector<128x1xf32> -> vector<128x1xf32>
    %504 = vector.broadcast %503 : vector<128x1xf32> to vector<128x128xf32>
    %505 = arith.mulf %500, %504 : vector<128x128xf32>
    %506 = arith.truncf %505 : vector<128x128xf32> to vector<128x128xbf16>
    %c1_143 = arith.constant 1 : index
    %c2_144 = arith.constant 2 : index
    %c0_145 = arith.constant 0 : index
    %c0_146 = arith.constant 0 : index
    %507 = vector.load %arg11[%c1_143, %c2_144, %c0_145, %c0_146] : memref<2x3x128x128xbf16, #tpu.memory_space<vmem>>, vector<1x1x128x128xbf16>
    %508 = vector.shape_cast %507 : vector<1x1x128x128xbf16> to vector<128x128xbf16>
    %509 = vector.shape_cast %506 : vector<128x128xbf16> to vector<1x1x128x128xbf16>
    tpu.vector_store %arg11[%c1_143, %c2_144, %c0_145, %c0_146], %509 {strides = array<i32>} : memref<2x3x128x128xbf16, #tpu.memory_space<vmem>>, vector<1x1x128x128xbf16>,
    %510 = arith.truncf %473 : vector<8x128xf32> to vector<8x128xbf16>
    %cst_147 = arith.constant dense<0.000000e+00> : vector<8x128xf32>
    %511 = tpu.matmul %510, %506, %cst_147 {dimension_numbers = #tpu.dot_dimension_numbers<[1], [1], [0], [0], [0, 0, 1, 0], [], []>} : vector<8x128xbf16>, vector<128x128xbf16>, vector<8x128xf32> -> vector<8x128xf32>
    %512 = tpu.concatenate %306, %347, %388, %429, %470, %511 in 0 : vector<8x128xf32>, vector<8x128xf32>, vector<8x128xf32>, vector<8x128xf32>, vector<8x128xf32>, vector<8x128xf32> -> vector<48x128xf32>
    %513 = arith.truncf %512 : vector<48x128xf32> to vector<48x128xbf16>
    %c3 = arith.constant 3 : index
    %c0_148 = arith.constant 0 : index
    %c0_149 = arith.constant 0 : index
    %514 = vector.load %arg8[%c3, %c0_148, %c0_149] : memref<4x128x128xbf16, #tpu.memory_space<vmem>>, vector<1x128x128xbf16>
    %515 = vector.shape_cast %514 : vector<1x128x128xbf16> to vector<128x128xbf16>
    %cst_150 = arith.constant dense<0.000000e+00> : vector<48x128xf32>
    %516 = tpu.matmul %513, %515, %cst_150 {dimension_numbers = #tpu.dot_dimension_numbers<[1], [1], [0], [0], [0, 0, 1, 0], [], []>} : vector<48x128xbf16>, vector<128x128xbf16>, vector<48x128xf32> -> vector<48x128xf32>
    %c3_151 = arith.constant 3 : index
    %c0_152 = arith.constant 0 : index
    %c0_153 = arith.constant 0 : index
    %517 = vector.load %arg9[%c3_151, %c0_152, %c0_153] : memref<4x1x128xf32, #tpu.memory_space<vmem>>, vector<1x1x128xf32>
    %518 = vector.shape_cast %517 : vector<1x1x128xf32> to vector<1x128xf32>
    %519 = vector.broadcast %518 : vector<1x128xf32> to vector<48x128xf32>
    %520 = arith.addf %516, %519 : vector<48x128xf32>
    %c0_154 = arith.constant 0 : index
    %c0_155 = arith.constant 0 : index
    %521 = vector.load %arg6[%c0_154, %c0_155] : memref<16x4xf32, #tpu.memory_space<vmem>>, vector<16x4xf32>
    %c0_156 = arith.constant 0 : index
    %c0_157 = arith.constant 0 : index
    %522 = vector.load %arg7[%c0_156, %c0_157] : memref<16x4xf32, #tpu.memory_space<vmem>>, vector<16x4xf32>
    %523 = vector.extract_strided_slice %520 {offsets = [0, 0], sizes = [16, 128], strides = [1, 1]} : vector<48x128xf32> to vector<16x128xf32>
    %524 = vector.extract_strided_slice %520 {offsets = [16, 0], sizes = [16, 128], strides = [1, 1]} : vector<48x128xf32> to vector<16x128xf32>
    %cst_158 = arith.constant 0.000000e+00 : f32
    %525 = vector.broadcast %cst_158 : f32 to vector<16x128xf32>
    %c4_i32 = arith.constant 4 : i32
    %526 = tpu.dynamic_rotate %523 by %c4_i32 dim 1 : vector<16x128xf32>, i32 -> vector<16x128xf32>
    %527 = vector.extract_strided_slice %521 {offsets = [0, 0], sizes = [16, 1], strides = [1, 1]} : vector<16x4xf32> to vector<16x1xf32>
    %528 = vector.broadcast %527 : vector<16x1xf32> to vector<16x128xf32>
    %529 = arith.mulf %526, %528 : vector<16x128xf32>
    %530 = arith.addf %525, %529 : vector<16x128xf32>
    %c4_i32_159 = arith.constant 4 : i32
    %531 = tpu.dynamic_rotate %524 by %c4_i32_159 dim 1 : vector<16x128xf32>, i32 -> vector<16x128xf32>
    %532 = vector.extract_strided_slice %522 {offsets = [0, 0], sizes = [16, 1], strides = [1, 1]} : vector<16x4xf32> to vector<16x1xf32>
    %533 = vector.broadcast %532 : vector<16x1xf32> to vector<16x128xf32>
    %534 = arith.mulf %531, %533 : vector<16x128xf32>
    %535 = arith.addf %530, %534 : vector<16x128xf32>
    %c2_i32_160 = arith.constant 2 : i32
    %536 = tpu.dynamic_rotate %523 by %c2_i32_160 dim 1 : vector<16x128xf32>, i32 -> vector<16x128xf32>
    %537 = vector.extract_strided_slice %521 {offsets = [0, 1], sizes = [16, 1], strides = [1, 1]} : vector<16x4xf32> to vector<16x1xf32>
    %538 = vector.broadcast %537 : vector<16x1xf32> to vector<16x128xf32>
    %539 = arith.mulf %536, %538 : vector<16x128xf32>
    %540 = arith.addf %535, %539 : vector<16x128xf32>
    %c2_i32_161 = arith.constant 2 : i32
    %541 = tpu.dynamic_rotate %524 by %c2_i32_161 dim 1 : vector<16x128xf32>, i32 -> vector<16x128xf32>
    %542 = vector.extract_strided_slice %522 {offsets = [0, 1], sizes = [16, 1], strides = [1, 1]} : vector<16x4xf32> to vector<16x1xf32>
    %543 = vector.broadcast %542 : vector<16x1xf32> to vector<16x128xf32>
    %544 = arith.mulf %541, %543 : vector<16x128xf32>
    %545 = arith.addf %540, %544 : vector<16x128xf32>
    %546 = vector.extract_strided_slice %521 {offsets = [0, 2], sizes = [16, 1], strides = [1, 1]} : vector<16x4xf32> to vector<16x1xf32>
    %547 = vector.broadcast %546 : vector<16x1xf32> to vector<16x128xf32>
    %548 = arith.mulf %523, %547 : vector<16x128xf32>
    %549 = arith.addf %545, %548 : vector<16x128xf32>
    %550 = vector.extract_strided_slice %522 {offsets = [0, 2], sizes = [16, 1], strides = [1, 1]} : vector<16x4xf32> to vector<16x1xf32>
    %551 = vector.broadcast %550 : vector<16x1xf32> to vector<16x128xf32>
    %552 = arith.mulf %524, %551 : vector<16x128xf32>
    %553 = arith.addf %549, %552 : vector<16x128xf32>
    %c126_i32_162 = arith.constant 126 : i32
    %554 = tpu.dynamic_rotate %523 by %c126_i32_162 dim 1 : vector<16x128xf32>, i32 -> vector<16x128xf32>
    %555 = vector.extract_strided_slice %521 {offsets = [0, 3], sizes = [16, 1], strides = [1, 1]} : vector<16x4xf32> to vector<16x1xf32>
    %556 = vector.broadcast %555 : vector<16x1xf32> to vector<16x128xf32>
    %557 = arith.mulf %554, %556 : vector<16x128xf32>
    %558 = arith.addf %553, %557 : vector<16x128xf32>
    %c126_i32_163 = arith.constant 126 : i32
    %559 = tpu.dynamic_rotate %524 by %c126_i32_163 dim 1 : vector<16x128xf32>, i32 -> vector<16x128xf32>
    %560 = vector.extract_strided_slice %522 {offsets = [0, 3], sizes = [16, 1], strides = [1, 1]} : vector<16x4xf32> to vector<16x1xf32>
    %561 = vector.broadcast %560 : vector<16x1xf32> to vector<16x128xf32>
    %562 = arith.mulf %559, %561 : vector<16x128xf32>
    %563 = arith.addf %558, %562 : vector<16x128xf32>
    %cst_164 = arith.constant 5.000000e-01 : f32
    %564 = vector.broadcast %cst_164 : f32 to vector<16x128xf32>
    %565 = arith.mulf %563, %564 : vector<16x128xf32>
    %566 = vector.extract_strided_slice %520 {offsets = [32, 0], sizes = [16, 128], strides = [1, 1]} : vector<48x128xf32> to vector<16x128xf32>
    %cst_165 = arith.constant 0.000000e+00 : f32
    %567 = vector.broadcast %cst_165 : f32 to vector<16x128xf32>
    %c2_i32_166 = arith.constant 2 : i32
    %568 = tpu.dynamic_rotate %565 by %c2_i32_166 dim 1 : vector<16x128xf32>, i32 -> vector<16x128xf32>
    %569 = vector.extract_strided_slice %521 {offsets = [0, 0], sizes = [16, 1], strides = [1, 1]} : vector<16x4xf32> to vector<16x1xf32>
    %570 = vector.broadcast %569 : vector<16x1xf32> to vector<16x128xf32>
    %571 = arith.mulf %568, %570 : vector<16x128xf32>
    %572 = arith.addf %567, %571 : vector<16x128xf32>
    %c2_i32_167 = arith.constant 2 : i32
    %573 = tpu.dynamic_rotate %566 by %c2_i32_167 dim 1 : vector<16x128xf32>, i32 -> vector<16x128xf32>
    %574 = vector.extract_strided_slice %522 {offsets = [0, 0], sizes = [16, 1], strides = [1, 1]} : vector<16x4xf32> to vector<16x1xf32>
    %575 = vector.broadcast %574 : vector<16x1xf32> to vector<16x128xf32>
    %576 = arith.mulf %573, %575 : vector<16x128xf32>
    %577 = arith.addf %572, %576 : vector<16x128xf32>
    %c1_i32_168 = arith.constant 1 : i32
    %578 = tpu.dynamic_rotate %565 by %c1_i32_168 dim 1 : vector<16x128xf32>, i32 -> vector<16x128xf32>
    %579 = vector.extract_strided_slice %521 {offsets = [0, 1], sizes = [16, 1], strides = [1, 1]} : vector<16x4xf32> to vector<16x1xf32>
    %580 = vector.broadcast %579 : vector<16x1xf32> to vector<16x128xf32>
    %581 = arith.mulf %578, %580 : vector<16x128xf32>
    %582 = arith.addf %577, %581 : vector<16x128xf32>
    %c1_i32_169 = arith.constant 1 : i32
    %583 = tpu.dynamic_rotate %566 by %c1_i32_169 dim 1 : vector<16x128xf32>, i32 -> vector<16x128xf32>
    %584 = vector.extract_strided_slice %522 {offsets = [0, 1], sizes = [16, 1], strides = [1, 1]} : vector<16x4xf32> to vector<16x1xf32>
    %585 = vector.broadcast %584 : vector<16x1xf32> to vector<16x128xf32>
    %586 = arith.mulf %583, %585 : vector<16x128xf32>
    %587 = arith.addf %582, %586 : vector<16x128xf32>
    %588 = vector.extract_strided_slice %521 {offsets = [0, 2], sizes = [16, 1], strides = [1, 1]} : vector<16x4xf32> to vector<16x1xf32>
    %589 = vector.broadcast %588 : vector<16x1xf32> to vector<16x128xf32>
    %590 = arith.mulf %565, %589 : vector<16x128xf32>
    %591 = arith.addf %587, %590 : vector<16x128xf32>
    %592 = vector.extract_strided_slice %522 {offsets = [0, 2], sizes = [16, 1], strides = [1, 1]} : vector<16x4xf32> to vector<16x1xf32>
    %593 = vector.broadcast %592 : vector<16x1xf32> to vector<16x128xf32>
    %594 = arith.mulf %566, %593 : vector<16x128xf32>
    %595 = arith.addf %591, %594 : vector<16x128xf32>
    %c127_i32_170 = arith.constant 127 : i32
    %596 = tpu.dynamic_rotate %565 by %c127_i32_170 dim 1 : vector<16x128xf32>, i32 -> vector<16x128xf32>
    %597 = vector.extract_strided_slice %521 {offsets = [0, 3], sizes = [16, 1], strides = [1, 1]} : vector<16x4xf32> to vector<16x1xf32>
    %598 = vector.broadcast %597 : vector<16x1xf32> to vector<16x128xf32>
    %599 = arith.mulf %596, %598 : vector<16x128xf32>
    %600 = arith.addf %595, %599 : vector<16x128xf32>
    %c127_i32_171 = arith.constant 127 : i32
    %601 = tpu.dynamic_rotate %566 by %c127_i32_171 dim 1 : vector<16x128xf32>, i32 -> vector<16x128xf32>
    %602 = vector.extract_strided_slice %522 {offsets = [0, 3], sizes = [16, 1], strides = [1, 1]} : vector<16x4xf32> to vector<16x1xf32>
    %603 = vector.broadcast %602 : vector<16x1xf32> to vector<16x128xf32>
    %604 = arith.mulf %601, %603 : vector<16x128xf32>
    %605 = arith.addf %600, %604 : vector<16x128xf32>
    %cst_172 = arith.constant 5.000000e-01 : f32
    %606 = vector.broadcast %cst_172 : f32 to vector<16x128xf32>
    %607 = arith.mulf %605, %606 : vector<16x128xf32>
    %608 = vector.extract_strided_slice %607 {offsets = [0, 0], sizes = [8, 128], strides = [1, 1]} : vector<16x128xf32> to vector<8x128xf32>
    %c0_173 = arith.constant 0 : index
    %c0_174 = arith.constant 0 : index
    %c0_175 = arith.constant 0 : index
    %609 = vector.load %arg10[%c0_173, %c0_174, %c0_175] : memref<2x8x128xf32, #tpu.memory_space<vmem>>, vector<1x8x128xf32>
    %610 = vector.shape_cast %609 : vector<1x8x128xf32> to vector<8x128xf32>
    %611 = vector.shape_cast %608 : vector<8x128xf32> to vector<1x8x128xf32>
    tpu.vector_store %arg10[%c0_173, %c0_174, %c0_175], %611 {strides = array<i32>} : memref<2x8x128xf32, #tpu.memory_space<vmem>>, vector<1x8x128xf32>,
    %612 = vector.extract_strided_slice %607 {offsets = [8, 0], sizes = [8, 128], strides = [1, 1]} : vector<16x128xf32> to vector<8x128xf32>
    %c1_176 = arith.constant 1 : index
    %c0_177 = arith.constant 0 : index
    %c0_178 = arith.constant 0 : index
    %613 = vector.load %arg10[%c1_176, %c0_177, %c0_178] : memref<2x8x128xf32, #tpu.memory_space<vmem>>, vector<1x8x128xf32>
    %614 = vector.shape_cast %613 : vector<1x8x128xf32> to vector<8x128xf32>
    %615 = vector.shape_cast %612 : vector<8x128xf32> to vector<1x8x128xf32>
    tpu.vector_store %arg10[%c1_176, %c0_177, %c0_178], %615 {strides = array<i32>} : memref<2x8x128xf32, #tpu.memory_space<vmem>>, vector<1x8x128xf32>,
    return
  }
  func.func @transform_0(%arg0: i32) -> (i32, i32, i32) {
    %c0_i32 = arith.constant 0 : i32
    %c0_i32_0 = arith.constant 0 : i32
    %c0_i32_1 = arith.constant 0 : i32
    return %arg0, %c0_i32, %c0_i32_0 : i32, i32, i32
  }
  func.func @transform_1(%arg0: i32) -> (i32, i32, i32) {
    %c0_i32 = arith.constant 0 : i32
    %c0_i32_0 = arith.constant 0 : i32
    %c0_i32_1 = arith.constant 0 : i32
    return %arg0, %c0_i32, %c0_i32_0 : i32, i32, i32
  }
  func.func @transform_2(%arg0: i32) -> (i32, i32, i32) {
    %c0_i32 = arith.constant 0 : i32
    %c0_i32_0 = arith.constant 0 : i32
    %c0_i32_1 = arith.constant 0 : i32
    return %arg0, %c0_i32, %c0_i32_0 : i32, i32, i32
  }
  func.func @transform_3(%arg0: i32) -> (i32, i32) {
    %c0_i32 = arith.constant 0 : i32
    %c0_i32_0 = arith.constant 0 : i32
    %c0_i32_1 = arith.constant 0 : i32
    return %c0_i32, %c0_i32_0 : i32, i32
  }
  func.func @transform_4(%arg0: i32) -> (i32, i32) {
    %c0_i32 = arith.constant 0 : i32
    %c0_i32_0 = arith.constant 0 : i32
    %c0_i32_1 = arith.constant 0 : i32
    return %c0_i32, %c0_i32_0 : i32, i32
  }
  func.func @transform_5(%arg0: i32) -> (i32, i32) {
    %c0_i32 = arith.constant 0 : i32
    %c0_i32_0 = arith.constant 0 : i32
    %c0_i32_1 = arith.constant 0 : i32
    return %c0_i32, %c0_i32_0 : i32, i32
  }
  func.func @transform_6(%arg0: i32) -> (i32, i32) {
    %c0_i32 = arith.constant 0 : i32
    %c0_i32_0 = arith.constant 0 : i32
    %c0_i32_1 = arith.constant 0 : i32
    return %c0_i32, %c0_i32_0 : i32, i32
  }
  func.func @transform_7(%arg0: i32) -> (i32, i32, i32) {
    %c0_i32 = arith.constant 0 : i32
    %c0_i32_0 = arith.constant 0 : i32
    %c0_i32_1 = arith.constant 0 : i32
    %c0_i32_2 = arith.constant 0 : i32
    return %c0_i32, %c0_i32_0, %c0_i32_1 : i32, i32, i32
  }
  func.func @transform_8(%arg0: i32) -> (i32, i32, i32) {
    %c0_i32 = arith.constant 0 : i32
    %c0_i32_0 = arith.constant 0 : i32
    %c0_i32_1 = arith.constant 0 : i32
    %c0_i32_2 = arith.constant 0 : i32
    return %c0_i32, %c0_i32_0, %c0_i32_1 : i32, i32, i32
  }
  func.func @transform_9(%arg0: i32) -> (i32, i32, i32) {
    %c0_i32 = arith.constant 0 : i32
    %c0_i32_0 = arith.constant 0 : i32
    %c0_i32_1 = arith.constant 0 : i32
    return %arg0, %c0_i32, %c0_i32_0 : i32, i32, i32
  }
  func.func @transform_10(%arg0: i32) -> (i32, i32, i32, i32) {
    %c0_i32 = arith.constant 0 : i32
    %c0_i32_0 = arith.constant 0 : i32
    %c0_i32_1 = arith.constant 0 : i32
    %c0_i32_2 = arith.constant 0 : i32
    return %arg0, %c0_i32, %c0_i32_0, %c0_i32_1 : i32, i32, i32, i32
  }
}

</mosaic_0001>

<llo_original>
// kernel: tpu_custom_call.1
$region0: #{tpu_custom_call.1}
  #allocation0 [shape = 'u32[]', space=smem, size = 0x4, offset = 0x4, fixed_abs, tag = 'smem constant byte address 0x4 - core index']
  #allocation1 [shape = 'u32[144,128]{1,0:T(1,128)}', space=vmem, size = 0x12000, scoped, tag = 'internal scratch']
  %s0 = inlined_call_operand.vmem [shape: f32[2,8,128], index: 0, kind: input, shape index: {}]
  %s1 = inlined_call_operand.vmem [shape: f32[2,8,128], index: 1, kind: input, shape index: {}]
  %s2 = inlined_call_operand.vmem [shape: f32[2,8,128], index: 2, kind: input, shape index: {}]
  %s3 = inlined_call_operand.vmem [shape: f32[16,4], index: 3, kind: input, shape index: {}]
  %s4 = inlined_call_operand.vmem [shape: f32[16,4], index: 4, kind: input, shape index: {}]
  %s5 = inlined_call_operand.vmem [shape: f32[16,4], index: 5, kind: input, shape index: {}]
  %s6 = inlined_call_operand.vmem [shape: f32[16,4], index: 6, kind: input, shape index: {}]
  %s7 = inlined_call_operand.hbm [shape: bf16[4,128,128], index: 7, kind: input, shape index: {}]
  %s8 = inlined_call_operand.vmem [shape: f32[4,1,128], index: 8, kind: input, shape index: {}]
  %s9 = inlined_call_operand.hbm [shape: f32[2,8,128], index: 9, kind: output, shape index: {0}]
  %s10 = inlined_call_operand.hbm [shape: bf16[2,3,128,128], index: 10, kind: output, shape index: {1}]
  %11 = xla_tuple %s9, %s10
  %s12 = sld [smem:[#allocation0]]
  $region58: #{tpu_custom_call.1} parent=0
    _
  %s14 = ssub.s32 1, %s12
  %s15 = scalar_select 0, %s14, %s12
  $region1: #{tpu_custom_call.1} parent=0
    #allocation2 [shape = 'u8[131072]{0}', space=vmem, size = 0x20000, scoped, tag = 'input window, operand 7, single buffered']
    #allocation3 [shape = 's32[1]{0}', space=sflag, size = 0x4, scoped, tag = 'scoped memory for tpu_custom_call.1']
    #allocation4 [shape = 's32[1]{0}', space=sflag, size = 0x4, scoped, tag = 'scoped memory for tpu_custom_call.1']
    #allocation5 [shape = 'u8[8192]{0}', space=vmem, size = 0x2000, scoped, tag = 'output window, operand 0, single buffered']
    #allocation6 [shape = 'u8[196608]{0}', space=vmem, size = 0x30000, scoped, tag = 'output window, operand 1, single buffered']
    #allocation7 [shape = 's32[1]{0}', space=sflag, size = 0x4, scoped, tag = 'scoped memory for tpu_custom_call.1']
    %16 = vsyncpa [#allocation3], 0
    %17 = vsyncpa [#allocation4], 0
    %18 = vsyncpa [#allocation7], 0
    // Predicated region
    $region2: #{tpu_custom_call.1} parent=1 // pred_check
      _
    $region3: #{tpu_custom_call.1} parent=1 // pred_check_branch
      %20 = sbr.rel (0) target = $region5
    $region4: #{tpu_custom_call.1} parent=1 // pred_region
      _
    $region5: #{tpu_custom_call.1} parent=1 // pred_fallthru
      _
    // Predicated region
    $region6: #{tpu_custom_call.1} parent=1 // pred_check
      _
    $region7: #{tpu_custom_call.1} parent=1 // pred_check_branch
      %22 = sbr.rel (0) target = $region9
    $region8: #{tpu_custom_call.1} parent=1 // pred_region
      _
    $region9: #{tpu_custom_call.1} parent=1 // pred_fallthru
      _
    // Predicated region
    $region10: #{tpu_custom_call.1} parent=1 // pred_check
      _
    $region11: #{tpu_custom_call.1} parent=1 // pred_check_branch
      %24 = sbr.rel (0) target = $region13
    $region12: #{tpu_custom_call.1} parent=1 // pred_region
      _
    $region13: #{tpu_custom_call.1} parent=1 // pred_fallthru
      _
    // Predicated region
    $region14: #{tpu_custom_call.1} parent=1 // pred_check
      _
    $region15: #{tpu_custom_call.1} parent=1 // pred_check_branch
      %26 = sbr.rel (0) target = $region17
    $region16: #{tpu_custom_call.1} parent=1 // pred_region
      _
    $region17: #{tpu_custom_call.1} parent=1 // pred_fallthru
      _
    // Predicated region
    $region18: #{tpu_custom_call.1} parent=1 // pred_check
      _
    $region19: #{tpu_custom_call.1} parent=1 // pred_check_branch
      %28 = sbr.rel (0) target = $region21
    $region20: #{tpu_custom_call.1} parent=1 // pred_region
      _
    $region21: #{tpu_custom_call.1} parent=1 // pred_fallthru
      _
    // Predicated region
    $region22: #{tpu_custom_call.1} parent=1 // pred_check
      _
    $region23: #{tpu_custom_call.1} parent=1 // pred_check_branch
      %30 = sbr.rel (0) target = $region25
    $region24: #{tpu_custom_call.1} parent=1 // pred_region
      _
    $region25: #{tpu_custom_call.1} parent=1 // pred_fallthru
      _
    // Predicated region
    $region26: #{tpu_custom_call.1} parent=1 // pred_check
      _
    $region27: #{tpu_custom_call.1} parent=1 // pred_check_branch
      %32 = sbr.rel (0) target = $region29
    $region28: #{tpu_custom_call.1} parent=1 // pred_region
      _
    $region29: #{tpu_custom_call.1} parent=1 // pred_fallthru
      _
    // Predicated region
    $region30: #{tpu_custom_call.1} parent=1 // pred_check
      _
    $region31: #{tpu_custom_call.1} parent=1 // pred_check_branch
      %34 = sbr.rel (0) target = $region33
    $region32: #{tpu_custom_call.1} parent=1 // pred_region
      %s36 = ssub.s32 4096, 4096
      %37 = vsyncadd [#allocation3], %s36
      %s38 = sshll.u32 [#allocation2], 4
      %s39 = int_to_ptr.vmem [resolvable:$true] %s38
      %44 = dma.hbm_to_vmem [thread:$0]  %s7, 4096, %s39, [#allocation3], 64, 64, 4
    $region33: #{tpu_custom_call.1} parent=1 // pred_fallthru
      _
    // Predicated region
    $region34: #{tpu_custom_call.1} parent=1 // pred_check
      _
    $region35: #{tpu_custom_call.1} parent=1 // pred_check_branch
      %46 = sbr.rel (0) target = $region37
    $region36: #{tpu_custom_call.1} parent=1 // pred_region
      _
    $region37: #{tpu_custom_call.1} parent=1 // pred_fallthru
      _
    // Predicated region
    $region38: #{tpu_custom_call.1} parent=1 // pred_check
      _
    $region39: #{tpu_custom_call.1} parent=1 // pred_check_branch
      %48 = sbr.rel (0) target = $region41
    $region40: #{tpu_custom_call.1} parent=1 // pred_region
      %49 = dma.done [#allocation3], 4096
    $region41: #{tpu_custom_call.1} parent=1 // pred_fallthru
      _
    %v51 = vld [vmem:[%s3] sm:$0xff]
    %v52 = vld [vmem:[%s3 + $0x8] sm:$0xff]
    %v53 = vld [vmem:[%s4] sm:$0xff]
    %v54 = vld [vmem:[%s4 + $0x8] sm:$0xff]
    %v55 = vld [vmem:[%s0] sm:$0xff]
    %s56 = scalar_lea.vmem %s0, 8
    %v57 = vld [vmem:[%s56] sm:$0xff]
    %58 = vrot.lane.b32.xlu0 %v55, 1
    %v59 = vpop.permute.xlu0 %58
    %60 = vrot.lane.b32.xlu0 %v57, 1
    %v61 = vpop.permute.xlu0 %60
    %63 = vset.pattern.permute.xlu0 0
    %64 = vperm.xlu0 %63, %v53
    %v65 = vpop.permute.xlu0 %64
    %68 = vset.pattern.permute.xlu0 0
    %69 = vperm.xlu0 %68, %v54
    %v70 = vpop.permute.xlu0 %69
    %v72 = vmul.f32 %v59, %v65
    %v73 = vmul.f32 %v61, %v70
    %v74 = vadd.f32 %v72, 0.0
    %v75 = vadd.f32 %v73, 0.0
    %77 = vset.pattern.permute.xlu0 0
    %78 = vperm.xlu0 %77, %v51
    %v79 = vpop.permute.xlu0 %78
    %82 = vset.pattern.permute.xlu0 0
    %83 = vperm.xlu0 %82, %v52
    %v84 = vpop.permute.xlu0 %83
    %v86 = vmul.f32 %v59, %v79
    %v87 = vmul.f32 %v61, %v84
    %v88 = vadd.f32 %v86, 0.0
    %v89 = vadd.f32 %v87, 0.0
    %90 = vset.pattern.permute.xlu0 1
    %91 = vperm.xlu0 %90, %v53
    %v92 = vpop.permute.xlu0 %91
    %94 = vset.pattern.permute.xlu0 1
    %95 = vperm.xlu0 %94, %v54
    %v96 = vpop.permute.xlu0 %95
    %v98 = vmul.f32 %v55, %v92
    %v99 = vmul.f32 %v57, %v96
    %v100 = vadd.f32 %v74, %v98
    %v101 = vadd.f32 %v75, %v99
    %102 = vset.pattern.permute.xlu0 1
    %103 = vperm.xlu0 %102, %v51
    %v104 = vpop.permute.xlu0 %103
    %106 = vset.pattern.permute.xlu0 1
    %107 = vperm.xlu0 %106, %v52
    %v108 = vpop.permute.xlu0 %107
    %v110 = vmul.f32 %v55, %v104
    %v111 = vmul.f32 %v57, %v108
    %v112 = vadd.f32 %v88, %v110
    %v113 = vadd.f32 %v89, %v111
    %114 = vrot.lane.b32.xlu0 %v55, 127
    %v115 = vpop.permute.xlu0 %114
    %116 = vrot.lane.b32.xlu0 %v57, 127
    %v117 = vpop.permute.xlu0 %116
    %118 = vset.pattern.permute.xlu0 2
    %119 = vperm.xlu0 %118, %v53
    %v120 = vpop.permute.xlu0 %119
    %122 = vset.pattern.permute.xlu0 2
    %123 = vperm.xlu0 %122, %v54
    %v124 = vpop.permute.xlu0 %123
    %v126 = vmul.f32 %v115, %v120
    %v127 = vmul.f32 %v117, %v124
    %v128 = vadd.f32 %v100, %v126
    %v129 = vadd.f32 %v101, %v127
    %130 = vset.pattern.permute.xlu0 2
    %131 = vperm.xlu0 %130, %v51
    %v132 = vpop.permute.xlu0 %131
    %134 = vset.pattern.permute.xlu0 2
    %135 = vperm.xlu0 %134, %v52
    %v136 = vpop.permute.xlu0 %135
    %v138 = vmul.f32 %v115, %v132
    %v139 = vmul.f32 %v117, %v136
    %v140 = vadd.f32 %v112, %v138
    %v141 = vadd.f32 %v113, %v139
    %142 = vrot.lane.b32.xlu0 %v55, 126
    %v143 = vpop.permute.xlu0 %142
    %144 = vrot.lane.b32.xlu0 %v57, 126
    %v145 = vpop.permute.xlu0 %144
    %146 = vset.pattern.permute.xlu0 3
    %147 = vperm.xlu0 %146, %v53
    %v148 = vpop.permute.xlu0 %147
    %150 = vset.pattern.permute.xlu0 3
    %151 = vperm.xlu0 %150, %v54
    %v152 = vpop.permute.xlu0 %151
    %v154 = vmul.f32 %v143, %v148
    %v155 = vmul.f32 %v145, %v152
    %v156 = vadd.f32 %v128, %v154
    %v157 = vadd.f32 %v129, %v155
    %158 = vset.pattern.permute.xlu0 3
    %159 = vperm.xlu0 %158, %v51
    %v160 = vpop.permute.xlu0 %159
    %162 = vset.pattern.permute.xlu0 3
    %163 = vperm.xlu0 %162, %v52
    %v164 = vpop.permute.xlu0 %163
    %v166 = vmul.f32 %v143, %v160
    %v167 = vmul.f32 %v145, %v164
    %v168 = vadd.f32 %v140, %v166
    %v169 = vadd.f32 %v141, %v167
    %170 = vrot.lane.b32.xlu0 %v168, 2
    %v171 = vpop.permute.xlu0 %170
    %172 = vrot.lane.b32.xlu0 %v169, 2
    %v173 = vpop.permute.xlu0 %172
    %v174 = vmul.f32 %v171, %v65
    %v175 = vmul.f32 %v173, %v70
    %v176 = vadd.f32 %v174, 0.0
    %v177 = vadd.f32 %v175, 0.0
    %v178 = vmul.f32 %v171, %v79
    %v179 = vmul.f32 %v173, %v84
    %v180 = vadd.f32 %v178, 0.0
    %v181 = vadd.f32 %v179, 0.0
    %v182 = vmul.f32 %v168, %v92
    %v183 = vmul.f32 %v169, %v96
    %v184 = vadd.f32 %v176, %v182
    %v185 = vadd.f32 %v177, %v183
    %v186 = vmul.f32 %v168, %v104
    %v187 = vmul.f32 %v169, %v108
    %v188 = vadd.f32 %v180, %v186
    %v189 = vadd.f32 %v181, %v187
    %190 = vrot.lane.b32.xlu0 %v168, 126
    %v191 = vpop.permute.xlu0 %190
    %192 = vrot.lane.b32.xlu0 %v169, 126
    %v193 = vpop.permute.xlu0 %192
    %v194 = vmul.f32 %v191, %v120
    %v195 = vmul.f32 %v193, %v124
    %v196 = vadd.f32 %v184, %v194
    %v197 = vadd.f32 %v185, %v195
    %v198 = vmul.f32 %v191, %v132
    %v199 = vmul.f32 %v193, %v136
    %v200 = vadd.f32 %v188, %v198
    %v201 = vadd.f32 %v189, %v199
    %202 = vrot.lane.b32.xlu0 %v168, 124
    %v203 = vpop.permute.xlu0 %202
    %204 = vrot.lane.b32.xlu0 %v169, 124
    %v205 = vpop.permute.xlu0 %204
    %v206 = vmul.f32 %v203, %v148
    %v207 = vmul.f32 %v205, %v152
    %v208 = vadd.f32 %v196, %v206
    %v209 = vadd.f32 %v197, %v207
    %v210 = vmul.f32 %v203, %v160
    %v211 = vmul.f32 %v205, %v164
    %v212 = vadd.f32 %v200, %v210
    %v213 = vadd.f32 %v201, %v211
    %v214 = vpack.c.bf16 %v213, %v212
    %v215 = vpack.c.bf16 %v209, %v208
    %v216 = vpack.c.bf16 %v157, %v156
    %v217 = vld [vmem:[#allocation2] sm:$0xf]
    %v218 = vld [vmem:[#allocation2 + $0x4] sm:$0xf]
    %v219 = vld [vmem:[#allocation2 + $0x8] sm:$0xf]
    %v220 = vld [vmem:[#allocation2 + $0xc] sm:$0xf]
    %v221 = vld [vmem:[#allocation2 + $0x10] sm:$0xf]
    %v222 = vld [vmem:[#allocation2 + $0x14] sm:$0xf]
    %v223 = vld [vmem:[#allocation2 + $0x18] sm:$0xf]
    %v224 = vld [vmem:[#allocation2 + $0x1c] sm:$0xf]
    %v225 = vld [vmem:[#allocation2 + $0x20] sm:$0xf]
    %v226 = vld [vmem:[#allocation2 + $0x24] sm:$0xf]
    %v227 = vld [vmem:[#allocation2 + $0x28] sm:$0xf]
    %v228 = vld [vmem:[#allocation2 + $0x2c] sm:$0xf]
    %v229 = vld [vmem:[#allocation2 + $0x30] sm:$0xf]
    %v230 = vld [vmem:[#allocation2 + $0x34] sm:$0xf]
    %v231 = vld [vmem:[#allocation2 + $0x38] sm:$0xf]
    %v232 = vld [vmem:[#allocation2 + $0x3c] sm:$0xf]
    %v233 = vld [vmem:[%s8] sm:$0x1]
    %v235 = vlaneseq
    %v236 = vshrl.u32 %v235, 7
    %v237 = vsub.s32 0, %v236
    %v238 = vrot.slane %v233, %v237
    %v256 = vunpack.c.l.b16 %v217
    %v257 = vunpack.c.l.b16 %v218
    %v258 = vunpack.c.l.b16 %v219
    %v259 = vunpack.c.l.b16 %v220
    %v260 = vunpack.c.l.b16 %v221
    %v261 = vunpack.c.l.b16 %v222
    %v262 = vunpack.c.l.b16 %v223
    %v263 = vunpack.c.l.b16 %v224
    %v264 = vunpack.c.l.b16 %v225
    %v265 = vunpack.c.l.b16 %v226
    %v266 = vunpack.c.l.b16 %v227
    %v267 = vunpack.c.l.b16 %v228
    %v268 = vunpack.c.l.b16 %v229
    %v269 = vunpack.c.l.b16 %v230
    %v270 = vunpack.c.l.b16 %v231
    %v271 = vunpack.c.l.b16 %v232
    %v272 = vpack.c.b16 %v257, %v256
    %v273 = vpack.c.b16 %v259, %v258
    %v274 = vpack.c.b16 %v261, %v260
    %v275 = vpack.c.b16 %v263, %v262
    %v276 = vpack.c.b16 %v265, %v264
    %v277 = vpack.c.b16 %v267, %v266
    %v278 = vpack.c.b16 %v269, %v268
    %v279 = vpack.c.b16 %v271, %v270
    %288 = vmatprep.subr.bf16.mxu0 0
    %289 = vmatpush1.bf16.xpose.msra.mxu0 %v272
    %290 = vmatprep.subr.bf16.mxu0 0
    %291 = vmatpush1.bf16.xpose.msra.mxu0 %v273
    %292 = vmatprep.subr.bf16.mxu0 0
    %293 = vmatpush1.bf16.xpose.msra.mxu0 %v274
    %294 = vmatprep.subr.bf16.mxu0 0
    %295 = vmatpush1.bf16.xpose.msra.mxu0 %v275
    %296 = vmatprep.subr.bf16.mxu0 0
    %297 = vmatpush1.bf16.xpose.msra.mxu0 %v276
    %298 = vmatprep.subr.bf16.mxu0 0
    %299 = vmatpush1.bf16.xpose.msra.mxu0 %v277
    %300 = vmatprep.subr.bf16.mxu0 0
    %301 = vmatpush1.bf16.xpose.msra.mxu0 %v278
    %302 = vmatprep.subr.bf16.mxu0 0
    %303 = vmatpush1.bf16.xpose.msra.mxu0 %v279
    %304 = vmatprep.subr.bf16.mxu0 0
    %305 = vmatpush1.bf16.xpose.msra.mxu0 0
    %306 = vmatprep.subr.bf16.mxu0 0
    %307 = vmatpush1.bf16.xpose.msra.mxu0 0
    %308 = vmatprep.subr.bf16.mxu0 0
    %309 = vmatpush1.bf16.xpose.msra.mxu0 0
    %310 = vmatprep.subr.bf16.mxu0 0
    %311 = vmatpush1.bf16.xpose.msra.mxu0 0
    %312 = vmatprep.subr.bf16.mxu0 0
    %313 = vmatpush1.bf16.xpose.msra.mxu0 0
    %314 = vmatprep.subr.bf16.mxu0 0
    %315 = vmatpush1.bf16.xpose.msra.mxu0 0
    %316 = vmatprep.subr.bf16.mxu0 0
    %317 = vmatpush1.bf16.xpose.msra.mxu0 0
    %318 = vmatprep.subr.bf16.mxu0 0
    %319 = vmatpush1.bf16.xpose.msra.mxu0 0
    %320 = vmatprep.mubr.bf16.mxu0 0
    %321 = vmatmul.mubr.bf16.gmra.mrb[0].mxu0 %v214
    %v322 = vpop.f32.mrb[0].mxu0
    %v323 = vadd.f32 %v238, %v322
    %v324 = vpop.f32.mrb[0].mxu0
    %v325 = vpop.f32.mrb[0].mxu0
    %v326 = vadd.f32 %v238, %v325
    %v327 = vpop.f32.mrb[0].mxu0
    %328 = vmatprep.mubr.bf16.mxu0 0
    %329 = vmatmul.mubr.bf16.gmra.mrb[0].mxu0 %v215
    %v330 = vpop.f32.mrb[0].mxu0
    %v331 = vadd.f32 %v238, %v330
    %v332 = vpop.f32.mrb[0].mxu0
    %v333 = vpop.f32.mrb[0].mxu0
    %v334 = vadd.f32 %v238, %v333
    %v335 = vpop.f32.mrb[0].mxu0
    %336 = vmatprep.mubr.bf16.mxu0 0
    %337 = vmatmul.mubr.bf16.gmra.mrb[0].mxu0 %v216
    %v338 = vpop.f32.mrb[0].mxu0
    %v339 = vadd.f32 %v238, %v338
    %v340 = vpop.f32.mrb[0].mxu0
    %v341 = vpop.f32.mrb[0].mxu0
    %v342 = vadd.f32 %v238, %v341
    %v343 = vpop.f32.mrb[0].mxu0
    %344 = vdwg.mxu0
    %v345 = vld [vmem:[%s1] sm:$0xff]
    %s346 = scalar_lea.vmem %s1, 8
    %v347 = vld [vmem:[%s346] sm:$0xff]
    %348 = vrot.lane.b32.xlu0 %v345, 1
    %v349 = vpop.permute.xlu0 %348
    %350 = vrot.lane.b32.xlu0 %v347, 1
    %v351 = vpop.permute.xlu0 %350
    %v352 = vmul.f32 %v349, %v65
    %v353 = vmul.f32 %v351, %v70
    %v354 = vadd.f32 %v352, 0.0
    %v355 = vadd.f32 %v353, 0.0
    %v356 = vmul.f32 %v349, %v79
    %v357 = vmul.f32 %v351, %v84
    %v358 = vadd.f32 %v356, 0.0
    %v359 = vadd.f32 %v357, 0.0
    %v360 = vmul.f32 %v345, %v92
    %v361 = vmul.f32 %v347, %v96
    %v362 = vadd.f32 %v354, %v360
    %v363 = vadd.f32 %v355, %v361
    %v364 = vmul.f32 %v345, %v104
    %v365 = vmul.f32 %v347, %v108
    %v366 = vadd.f32 %v358, %v364
    %v367 = vadd.f32 %v359, %v365
    %368 = vrot.lane.b32.xlu0 %v345, 127
    %v369 = vpop.permute.xlu0 %368
    %370 = vrot.lane.b32.xlu0 %v347, 127
    %v371 = vpop.permute.xlu0 %370
    %v372 = vmul.f32 %v369, %v120
    %v373 = vmul.f32 %v371, %v124
    %v374 = vadd.f32 %v362, %v372
    %v375 = vadd.f32 %v363, %v373
    %v376 = vmul.f32 %v369, %v132
    %v377 = vmul.f32 %v371, %v136
    %v378 = vadd.f32 %v366, %v376
    %v379 = vadd.f32 %v367, %v377
    %380 = vrot.lane.b32.xlu0 %v345, 126
    %v381 = vpop.permute.xlu0 %380
    %382 = vrot.lane.b32.xlu0 %v347, 126
    %v383 = vpop.permute.xlu0 %382
    %v384 = vmul.f32 %v381, %v148
    %v385 = vmul.f32 %v383, %v152
    %v386 = vadd.f32 %v374, %v384
    %v387 = vadd.f32 %v375, %v385
    %v388 = vmul.f32 %v381, %v160
    %v389 = vmul.f32 %v383, %v164
    %v390 = vadd.f32 %v378, %v388
    %v391 = vadd.f32 %v379, %v389
    %392 = vrot.lane.b32.xlu0 %v390, 2
    %v393 = vpop.permute.xlu0 %392
    %394 = vrot.lane.b32.xlu0 %v391, 2
    %v395 = vpop.permute.xlu0 %394
    %v396 = vmul.f32 %v393, %v65
    %v397 = vmul.f32 %v395, %v70
    %v398 = vadd.f32 %v396, 0.0
    %v399 = vadd.f32 %v397, 0.0
    %v400 = vmul.f32 %v393, %v79
    %v401 = vmul.f32 %v395, %v84
    %v402 = vadd.f32 %v400, 0.0
    %v403 = vadd.f32 %v401, 0.0
    %v404 = vmul.f32 %v390, %v92
    %v405 = vmul.f32 %v391, %v96
    %v406 = vadd.f32 %v398, %v404
    %v407 = vadd.f32 %v399, %v405
    %v408 = vmul.f32 %v390, %v104
    %v409 = vmul.f32 %v391, %v108
    %v410 = vadd.f32 %v402, %v408
    %v411 = vadd.f32 %v403, %v409
    %412 = vrot.lane.b32.xlu0 %v390, 126
    %v413 = vpop.permute.xlu0 %412
    %414 = vrot.lane.b32.xlu0 %v391, 126
    %v415 = vpop.permute.xlu0 %414
    %v416 = vmul.f32 %v413, %v120
    %v417 = vmul.f32 %v415, %v124
    %v418 = vadd.f32 %v406, %v416
    %v419 = vadd.f32 %v407, %v417
    %v420 = vmul.f32 %v413, %v132
    %v421 = vmul.f32 %v415, %v136
    %v422 = vadd.f32 %v410, %v420
    %v423 = vadd.f32 %v411, %v421
    %424 = vrot.lane.b32.xlu0 %v390, 124
    %v425 = vpop.permute.xlu0 %424
    %426 = vrot.lane.b32.xlu0 %v391, 124
    %v427 = vpop.permute.xlu0 %426
    %v428 = vmul.f32 %v425, %v148
    %v429 = vmul.f32 %v427, %v152
    %v430 = vadd.f32 %v418, %v428
    %v431 = vadd.f32 %v419, %v429
    %v432 = vmul.f32 %v425, %v160
    %v433 = vmul.f32 %v427, %v164
    %v434 = vadd.f32 %v422, %v432
    %v435 = vadd.f32 %v423, %v433
    %v436 = vpack.c.bf16 %v435, %v434
    %v437 = vpack.c.bf16 %v431, %v430
    %v438 = vpack.c.bf16 %v387, %v386
    %s439 = scalar_lea.vmem [#allocation2], 64
    %v440 = vld [vmem:[%s439] sm:$0xf]
    %v441 = vld [vmem:[%s439 + $0x4] sm:$0xf]
    %v442 = vld [vmem:[%s439 + $0x8] sm:$0xf]
    %v443 = vld [vmem:[%s439 + $0xc] sm:$0xf]
    %v444 = vld [vmem:[%s439 + $0x10] sm:$0xf]
    %v445 = vld [vmem:[%s439 + $0x14] sm:$0xf]
    %v446 = vld [vmem:[%s439 + $0x18] sm:$0xf]
    %v447 = vld [vmem:[%s439 + $0x1c] sm:$0xf]
    %v448 = vld [vmem:[%s439 + $0x20] sm:$0xf]
    %v449 = vld [vmem:[%s439 + $0x24] sm:$0xf]
    %v450 = vld [vmem:[%s439 + $0x28] sm:$0xf]
    %v451 = vld [vmem:[%s439 + $0x2c] sm:$0xf]
    %v452 = vld [vmem:[%s439 + $0x30] sm:$0xf]
    %v453 = vld [vmem:[%s439 + $0x34] sm:$0xf]
    %v454 = vld [vmem:[%s439 + $0x38] sm:$0xf]
    %v455 = vld [vmem:[%s439 + $0x3c] sm:$0xf]
    %s456 = scalar_lea.vmem %s8, 1
    %v457 = vld [vmem:[%s456] sm:$0x1]
    %v459 = vlaneseq
    %v460 = vshrl.u32 %v459, 7
    %v461 = vsub.s32 0, %v460
    %v462 = vrot.slane %v457, %v461
    %v480 = vunpack.c.l.b16 %v440
    %v481 = vunpack.c.l.b16 %v441
    %v482 = vunpack.c.l.b16 %v442
    %v483 = vunpack.c.l.b16 %v443
    %v484 = vunpack.c.l.b16 %v444
    %v485 = vunpack.c.l.b16 %v445
    %v486 = vunpack.c.l.b16 %v446
    %v487 = vunpack.c.l.b16 %v447
    %v488 = vunpack.c.l.b16 %v448
    %v489 = vunpack.c.l.b16 %v449
    %v490 = vunpack.c.l.b16 %v450
    %v491 = vunpack.c.l.b16 %v451
    %v492 = vunpack.c.l.b16 %v452
    %v493 = vunpack.c.l.b16 %v453
    %v494 = vunpack.c.l.b16 %v454
    %v495 = vunpack.c.l.b16 %v455
    %v496 = vpack.c.b16 %v481, %v480
    %v497 = vpack.c.b16 %v483, %v482
    %v498 = vpack.c.b16 %v485, %v484
    %v499 = vpack.c.b16 %v487, %v486
    %v500 = vpack.c.b16 %v489, %v488
    %v501 = vpack.c.b16 %v491, %v490
    %v502 = vpack.c.b16 %v493, %v492
    %v503 = vpack.c.b16 %v495, %v494
    %512 = vmatprep.subr.bf16.mxu0 0
    %513 = vmatpush1.bf16.xpose.msra.mxu0 %v496
    %514 = vmatprep.subr.bf16.mxu0 0
    %515 = vmatpush1.bf16.xpose.msra.mxu0 %v497
    %516 = vmatprep.subr.bf16.mxu0 0
    %517 = vmatpush1.bf16.xpose.msra.mxu0 %v498
    %518 = vmatprep.subr.bf16.mxu0 0
    %519 = vmatpush1.bf16.xpose.msra.mxu0 %v499
    %520 = vmatprep.subr.bf16.mxu0 0
    %521 = vmatpush1.bf16.xpose.msra.mxu0 %v500
    %522 = vmatprep.subr.bf16.mxu0 0
    %523 = vmatpush1.bf16.xpose.msra.mxu0 %v501
    %524 = vmatprep.subr.bf16.mxu0 0
    %525 = vmatpush1.bf16.xpose.msra.mxu0 %v502
    %526 = vmatprep.subr.bf16.mxu0 0
    %527 = vmatpush1.bf16.xpose.msra.mxu0 %v503
    %528 = vmatprep.subr.bf16.mxu0 0
    %529 = vmatpush1.bf16.xpose.msra.mxu0 0
    %530 = vmatprep.subr.bf16.mxu0 0
    %531 = vmatpush1.bf16.xpose.msra.mxu0 0
    %532 = vmatprep.subr.bf16.mxu0 0
    %533 = vmatpush1.bf16.xpose.msra.mxu0 0
    %534 = vmatprep.subr.bf16.mxu0 0
    %535 = vmatpush1.bf16.xpose.msra.mxu0 0
    %536 = vmatprep.subr.bf16.mxu0 0
    %537 = vmatpush1.bf16.xpose.msra.mxu0 0
    %538 = vmatprep.subr.bf16.mxu0 0
    %539 = vmatpush1.bf16.xpose.msra.mxu0 0
    %540 = vmatprep.subr.bf16.mxu0 0
    %541 = vmatpush1.bf16.xpose.msra.mxu0 0
    %542 = vmatprep.subr.bf16.mxu0 0
    %543 = vmatpush1.bf16.xpose.msra.mxu0 0
    %544 = vmatprep.mubr.bf16.mxu0 0
    %545 = vmatmul.mubr.bf16.gmra.mrb[0].mxu0 %v436
    %v546 = vpop.f32.mrb[0].mxu0
    %v547 = vadd.f32 %v462, %v546
    %v548 = vpop.f32.mrb[0].mxu0
    %v549 = vpop.f32.mrb[0].mxu0
    %v550 = vadd.f32 %v462, %v549
    %v551 = vpop.f32.mrb[0].mxu0
    %552 = vmatprep.mubr.bf16.mxu0 0
    %553 = vmatmul.mubr.bf16.gmra.mrb[0].mxu0 %v437
    %v554 = vpop.f32.mrb[0].mxu0
    %v555 = vadd.f32 %v462, %v554
    %v556 = vpop.f32.mrb[0].mxu0
    %v557 = vpop.f32.mrb[0].mxu0
    %v558 = vadd.f32 %v462, %v557
    %v559 = vpop.f32.mrb[0].mxu0
    %560 = vmatprep.mubr.bf16.mxu0 0
    %561 = vmatmul.mubr.bf16.gmra.mrb[0].mxu0 %v438
    %v562 = vpop.f32.mrb[0].mxu0
    %v563 = vadd.f32 %v462, %v562
    %v564 = vpop.f32.mrb[0].mxu0
    %v565 = vpop.f32.mrb[0].mxu0
    %v566 = vadd.f32 %v462, %v565
    %v567 = vpop.f32.mrb[0].mxu0
    %568 = vdwg.mxu0
    %v569 = vld [vmem:[%s2] sm:$0xff]
    %s570 = scalar_lea.vmem %s2, 8
    %v571 = vld [vmem:[%s570] sm:$0xff]
    %572 = vrot.lane.b32.xlu0 %v569, 1
    %v573 = vpop.permute.xlu0 %572
    %574 = vrot.lane.b32.xlu0 %v571, 1
    %v575 = vpop.permute.xlu0 %574
    %v576 = vmul.f32 %v573, %v65
    %v577 = vmul.f32 %v575, %v70
    %v578 = vadd.f32 %v576, 0.0
    %v579 = vadd.f32 %v577, 0.0
    %v580 = vmul.f32 %v573, %v79
    %v581 = vmul.f32 %v575, %v84
    %v582 = vadd.f32 %v580, 0.0
    %v583 = vadd.f32 %v581, 0.0
    %v584 = vmul.f32 %v569, %v92
    %v585 = vmul.f32 %v571, %v96
    %v586 = vadd.f32 %v578, %v584
    %v587 = vadd.f32 %v579, %v585
    %v588 = vmul.f32 %v569, %v104
    %v589 = vmul.f32 %v571, %v108
    %v590 = vadd.f32 %v582, %v588
    %v591 = vadd.f32 %v583, %v589
    %592 = vrot.lane.b32.xlu0 %v569, 127
    %v593 = vpop.permute.xlu0 %592
    %594 = vrot.lane.b32.xlu0 %v571, 127
    %v595 = vpop.permute.xlu0 %594
    %v596 = vmul.f32 %v593, %v120
    %v597 = vmul.f32 %v595, %v124
    %v598 = vadd.f32 %v586, %v596
    %v599 = vadd.f32 %v587, %v597
    %v600 = vmul.f32 %v593, %v132
    %v601 = vmul.f32 %v595, %v136
    %v602 = vadd.f32 %v590, %v600
    %v603 = vadd.f32 %v591, %v601
    %604 = vrot.lane.b32.xlu0 %v569, 126
    %v605 = vpop.permute.xlu0 %604
    %606 = vrot.lane.b32.xlu0 %v571, 126
    %v607 = vpop.permute.xlu0 %606
    %v608 = vmul.f32 %v605, %v148
    %v609 = vmul.f32 %v607, %v152
    %v610 = vadd.f32 %v598, %v608
    %v611 = vadd.f32 %v599, %v609
    %v612 = vmul.f32 %v605, %v160
    %v613 = vmul.f32 %v607, %v164
    %v614 = vadd.f32 %v602, %v612
    %v615 = vadd.f32 %v603, %v613
    %616 = vrot.lane.b32.xlu0 %v614, 2
    %v617 = vpop.permute.xlu0 %616
    %618 = vrot.lane.b32.xlu0 %v615, 2
    %v619 = vpop.permute.xlu0 %618
    %v620 = vmul.f32 %v617, %v65
    %v621 = vmul.f32 %v619, %v70
    %v622 = vadd.f32 %v620, 0.0
    %v623 = vadd.f32 %v621, 0.0
    %v624 = vmul.f32 %v617, %v79
    %v625 = vmul.f32 %v619, %v84
    %v626 = vadd.f32 %v624, 0.0
    %v627 = vadd.f32 %v625, 0.0
    %v628 = vmul.f32 %v614, %v92
    %v629 = vmul.f32 %v615, %v96
    %v630 = vadd.f32 %v622, %v628
    %v631 = vadd.f32 %v623, %v629
    %v632 = vmul.f32 %v614, %v104
    %v633 = vmul.f32 %v615, %v108
    %v634 = vadd.f32 %v626, %v632
    %v635 = vadd.f32 %v627, %v633
    %636 = vrot.lane.b32.xlu0 %v614, 126
    %v637 = vpop.permute.xlu0 %636
    %638 = vrot.lane.b32.xlu0 %v615, 126
    %v639 = vpop.permute.xlu0 %638
    %v640 = vmul.f32 %v637, %v120
    %v641 = vmul.f32 %v639, %v124
    %v642 = vadd.f32 %v630, %v640
    %v643 = vadd.f32 %v631, %v641
    %v644 = vmul.f32 %v637, %v132
    %v645 = vmul.f32 %v639, %v136
    %v646 = vadd.f32 %v634, %v644
    %v647 = vadd.f32 %v635, %v645
    %648 = vrot.lane.b32.xlu0 %v614, 124
    %v649 = vpop.permute.xlu0 %648
    %650 = vrot.lane.b32.xlu0 %v615, 124
    %v651 = vpop.permute.xlu0 %650
    %v652 = vmul.f32 %v649, %v148
    %v653 = vmul.f32 %v651, %v152
    %v654 = vadd.f32 %v642, %v652
    %v655 = vadd.f32 %v643, %v653
    %v656 = vmul.f32 %v649, %v160
    %v657 = vmul.f32 %v651, %v164
    %v658 = vadd.f32 %v646, %v656
    %v659 = vadd.f32 %v647, %v657
    %v660 = vpack.c.bf16 %v659, %v658
    %v661 = vpack.c.bf16 %v655, %v654
    %v662 = vpack.c.bf16 %v611, %v610
    %s663 = scalar_lea.vmem [#allocation2], 128
    %v664 = vld [vmem:[%s663] sm:$0xf]
    %v665 = vld [vmem:[%s663 + $0x4] sm:$0xf]
    %v666 = vld [vmem:[%s663 + $0x8] sm:$0xf]
    %v667 = vld [vmem:[%s663 + $0xc] sm:$0xf]
    %v668 = vld [vmem:[%s663 + $0x10] sm:$0xf]
    %v669 = vld [vmem:[%s663 + $0x14] sm:$0xf]
    %v670 = vld [vmem:[%s663 + $0x18] sm:$0xf]
    %v671 = vld [vmem:[%s663 + $0x1c] sm:$0xf]
    %v672 = vld [vmem:[%s663 + $0x20] sm:$0xf]
    %v673 = vld [vmem:[%s663 + $0x24] sm:$0xf]
    %v674 = vld [vmem:[%s663 + $0x28] sm:$0xf]
    %v675 = vld [vmem:[%s663 + $0x2c] sm:$0xf]
    %v676 = vld [vmem:[%s663 + $0x30] sm:$0xf]
    %v677 = vld [vmem:[%s663 + $0x34] sm:$0xf]
    %v678 = vld [vmem:[%s663 + $0x38] sm:$0xf]
    %v679 = vld [vmem:[%s663 + $0x3c] sm:$0xf]
    %s680 = scalar_lea.vmem %s8, 2
    %v681 = vld [vmem:[%s680] sm:$0x1]
    %v683 = vlaneseq
    %v684 = vshrl.u32 %v683, 7
    %v685 = vsub.s32 0, %v684
    %v686 = vrot.slane %v681, %v685
    %v704 = vunpack.c.l.b16 %v664
    %v705 = vunpack.c.l.b16 %v665
    %v706 = vunpack.c.l.b16 %v666
    %v707 = vunpack.c.l.b16 %v667
    %v708 = vunpack.c.l.b16 %v668
    %v709 = vunpack.c.l.b16 %v669
    %v710 = vunpack.c.l.b16 %v670
    %v711 = vunpack.c.l.b16 %v671
    %v712 = vunpack.c.l.b16 %v672
    %v713 = vunpack.c.l.b16 %v673
    %v714 = vunpack.c.l.b16 %v674
    %v715 = vunpack.c.l.b16 %v675
    %v716 = vunpack.c.l.b16 %v676
    %v717 = vunpack.c.l.b16 %v677
    %v718 = vunpack.c.l.b16 %v678
    %v719 = vunpack.c.l.b16 %v679
    %v720 = vpack.c.b16 %v705, %v704
    %v721 = vpack.c.b16 %v707, %v706
    %v722 = vpack.c.b16 %v709, %v708
    %v723 = vpack.c.b16 %v711, %v710
    %v724 = vpack.c.b16 %v713, %v712
    %v725 = vpack.c.b16 %v715, %v714
    %v726 = vpack.c.b16 %v717, %v716
    %v727 = vpack.c.b16 %v719, %v718
    %736 = vmatprep.subr.bf16.mxu0 0
    %737 = vmatpush1.bf16.xpose.msra.mxu0 %v720
    %738 = vmatprep.subr.bf16.mxu0 0
    %739 = vmatpush1.bf16.xpose.msra.mxu0 %v721
    %740 = vmatprep.subr.bf16.mxu0 0
    %741 = vmatpush1.bf16.xpose.msra.mxu0 %v722
    %742 = vmatprep.subr.bf16.mxu0 0
    %743 = vmatpush1.bf16.xpose.msra.mxu0 %v723
    %744 = vmatprep.subr.bf16.mxu0 0
    %745 = vmatpush1.bf16.xpose.msra.mxu0 %v724
    %746 = vmatprep.subr.bf16.mxu0 0
    %747 = vmatpush1.bf16.xpose.msra.mxu0 %v725
    %748 = vmatprep.subr.bf16.mxu0 0
    %749 = vmatpush1.bf16.xpose.msra.mxu0 %v726
    %750 = vmatprep.subr.bf16.mxu0 0
    %751 = vmatpush1.bf16.xpose.msra.mxu0 %v727
    %752 = vmatprep.subr.bf16.mxu0 0
    %753 = vmatpush1.bf16.xpose.msra.mxu0 0
    %754 = vmatprep.subr.bf16.mxu0 0
    %755 = vmatpush1.bf16.xpose.msra.mxu0 0
    %756 = vmatprep.subr.bf16.mxu0 0
    %757 = vmatpush1.bf16.xpose.msra.mxu0 0
    %758 = vmatprep.subr.bf16.mxu0 0
    %759 = vmatpush1.bf16.xpose.msra.mxu0 0
    %760 = vmatprep.subr.bf16.mxu0 0
    %761 = vmatpush1.bf16.xpose.msra.mxu0 0
    %762 = vmatprep.subr.bf16.mxu0 0
    %763 = vmatpush1.bf16.xpose.msra.mxu0 0
    %764 = vmatprep.subr.bf16.mxu0 0
    %765 = vmatpush1.bf16.xpose.msra.mxu0 0
    %766 = vmatprep.subr.bf16.mxu0 0
    %767 = vmatpush1.bf16.xpose.msra.mxu0 0
    %768 = vmatprep.mubr.bf16.mxu0 0
    %769 = vmatmul.mubr.bf16.gmra.mrb[0].mxu0 %v660
    %v770 = vpop.f32.mrb[0].mxu0
    %v771 = vadd.f32 %v686, %v770
    %v772 = vpop.f32.mrb[0].mxu0
    %v773 = vpop.f32.mrb[0].mxu0
    %v774 = vadd.f32 %v686, %v773
    %v775 = vpop.f32.mrb[0].mxu0
    %776 = vmatprep.mubr.bf16.mxu0 0
    %777 = vmatmul.mubr.bf16.gmra.mrb[0].mxu0 %v661
    %v778 = vpop.f32.mrb[0].mxu0
    %v779 = vadd.f32 %v686, %v778
    %v780 = vpop.f32.mrb[0].mxu0
    %v781 = vpop.f32.mrb[0].mxu0
    %v782 = vadd.f32 %v686, %v781
    %v783 = vpop.f32.mrb[0].mxu0
    %784 = vmatprep.mubr.bf16.mxu0 0
    %785 = vmatmul.mubr.bf16.gmra.mrb[0].mxu0 %v662
    %v786 = vpop.f32.mrb[0].mxu0
    %v787 = vadd.f32 %v686, %v786
    %v788 = vpop.f32.mrb[0].mxu0
    %v789 = vpop.f32.mrb[0].mxu0
    %v790 = vadd.f32 %v686, %v789
    %v791 = vpop.f32.mrb[0].mxu0
    %792 = vdwg.mxu0
    %793 = vxpose.xlu0.b32.start [1/16] %v323, 128
    %794 = vxpose.xlu0.b32.cont [2/16] 0.0, 128
    %795 = vxpose.xlu0.b32.cont [3/16] 0.0, 128
    %796 = vxpose.xlu0.b32.cont [4/16] 0.0, 128
    %797 = vxpose.xlu0.b32.cont [5/16] 0.0, 128
    %798 = vxpose.xlu0.b32.cont [6/16] 0.0, 128
    %799 = vxpose.xlu0.b32.cont [7/16] 0.0, 128
    %800 = vxpose.xlu0.b32.cont [8/16] 0.0, 128
    %801 = vxpose.xlu0.b32.cont [9/16] 0.0, 128
    %802 = vxpose.xlu0.b32.cont [10/16] 0.0, 128
    %803 = vxpose.xlu0.b32.cont [11/16] 0.0, 128
    %804 = vxpose.xlu0.b32.cont [12/16] 0.0, 128
    %805 = vxpose.xlu0.b32.cont [13/16] 0.0, 128
    %806 = vxpose.xlu0.b32.cont [14/16] 0.0, 128
    %807 = vxpose.xlu0.b32.cont [15/16] 0.0, 128
    %808 = vxpose.xlu0.b32.end [16/16] 0.0, 128
    %v809 = vpop.trf.xlu0
    %v810 = vpop.trf.xlu0
    %v811 = vpop.trf.xlu0
    %v812 = vpop.trf.xlu0
    %v813 = vpop.trf.xlu0
    %v814 = vpop.trf.xlu0
    %v815 = vpop.trf.xlu0
    %v816 = vpop.trf.xlu0
    %v817 = vpop.trf.xlu0
    %v818 = vpop.trf.xlu0
    %v819 = vpop.trf.xlu0
    %v820 = vpop.trf.xlu0
    %v821 = vpop.trf.xlu0
    %v822 = vpop.trf.xlu0
    %v823 = vpop.trf.xlu0
    %v824 = vpop.trf.xlu0
    %vm825 = vcmask 64512
    %v827 = vsel %vm825, %v809, 0
    %v830 = vsel %vm825, %v810, 0
    %v833 = vsel %vm825, %v811, 0
    %v836 = vsel %vm825, %v812, 0
    %v839 = vsel %vm825, %v813, 0
    %v842 = vsel %vm825, %v814, 0
    %v845 = vsel %vm825, %v815, 0
    %v848 = vsel %vm825, %v816, 0
    %v851 = vsel %vm825, %v817, 0
    %v854 = vsel %vm825, %v818, 0
    %v857 = vsel %vm825, %v819, 0
    %v860 = vsel %vm825, %v820, 0
    %v863 = vsel %vm825, %v821, 0
    %v866 = vsel %vm825, %v822, 0
    %v869 = vsel %vm825, %v823, 0
    %v872 = vsel %vm825, %v824, 0
    %874 = vmatprep.subr.mxu0 0.0
    %875 = vmatpush1.msra.mxu0 %v547
    %876 = vmatprep.subr.mxu0 0.0
    %877 = vmatpush1.msra.mxu0 0.0
    %878 = vmatprep.subr.mxu0 0.0
    %879 = vmatpush1.msra.mxu0 0.0
    %880 = vmatprep.subr.mxu0 0.0
    %881 = vmatpush1.msra.mxu0 0.0
    %882 = vmatprep.subr.mxu0 0.0
    %883 = vmatpush1.msra.mxu0 0.0
    %884 = vmatprep.subr.mxu0 0.0
    %885 = vmatpush1.msra.mxu0 0.0
    %886 = vmatprep.subr.mxu0 0.0
    %887 = vmatpush1.msra.mxu0 0.0
    %888 = vmatprep.subr.mxu0 0.0
    %889 = vmatpush1.msra.mxu0 0.0
    %890 = vmatprep.subr.mxu0 0.0
    %891 = vmatpush1.msra.mxu0 0.0
    %892 = vmatprep.subr.mxu0 0.0
    %893 = vmatpush1.msra.mxu0 0.0
    %894 = vmatprep.subr.mxu0 0.0
    %895 = vmatpush1.msra.mxu0 0.0
    %896 = vmatprep.subr.mxu0 0.0
    %897 = vmatpush1.msra.mxu0 0.0
    %898 = vmatprep.subr.mxu0 0.0
    %899 = vmatpush1.msra.mxu0 0.0
    %900 = vmatprep.subr.mxu0 0.0
    %901 = vmatpush1.msra.mxu0 0.0
    %902 = vmatprep.subr.mxu0 0.0
    %903 = vmatpush1.msra.mxu0 0.0
    %904 = vmatprep.subr.mxu0 0.0
    %905 = vmatpush1.msra.mxu0 0.0
    %906 = vmatprep.subr.mxu0 0.0
    %907 = vmatpush1.msra.mxu0 0.0
    %908 = vmatprep.subr.mxu0 0.0
    %909 = vmatpush1.msra.mxu0 0.0
    %910 = vmatprep.subr.mxu0 0.0
    %911 = vmatpush1.msra.mxu0 0.0
    %912 = vmatprep.subr.mxu0 0.0
    %913 = vmatpush1.msra.mxu0 0.0
    %914 = vmatprep.subr.mxu0 0.0
    %915 = vmatpush1.msra.mxu0 0.0
    %916 = vmatprep.subr.mxu0 0.0
    %917 = vmatpush1.msra.mxu0 0.0
    %918 = vmatprep.subr.mxu0 0.0
    %919 = vmatpush1.msra.mxu0 0.0
    %920 = vmatprep.subr.mxu0 0.0
    %921 = vmatpush1.msra.mxu0 0.0
    %922 = vmatprep.subr.mxu0 0.0
    %923 = vmatpush1.msra.mxu0 0.0
    %924 = vmatprep.subr.mxu0 0.0
    %925 = vmatpush1.msra.mxu0 0.0
    %926 = vmatprep.subr.mxu0 0.0
    %927 = vmatpush1.msra.mxu0 0.0
    %928 = vmatprep.subr.mxu0 0.0
    %929 = vmatpush1.msra.mxu0 0.0
    %930 = vmatprep.subr.mxu0 0.0
    %931 = vmatpush1.msra.mxu0 0.0
    %932 = vmatprep.subr.mxu0 0.0
    %933 = vmatpush1.msra.mxu0 0.0
    %934 = vmatprep.subr.mxu0 0.0
    %935 = vmatpush1.msra.mxu0 0.0
    %936 = vmatprep.subr.mxu0 0.0
    %937 = vmatpush1.msra.mxu0 0.0
    %938 = vmatprep.mubr.f32.mxu0 0.0
    %939 = vmatmul.mubr.f32.gmra.mrb[0].mxu0 %v827
    %v940 = vpop.f32.mrb[0].mxu0
    %v941 = vadd.f32 0.0, %v940
    %v942 = vpop.f32.mrb[0].mxu0
    %943 = vmatprep.mubr.f32.mxu0 0.0
    %944 = vmatmul.mubr.f32.gmra.mrb[0].mxu0 %v830
    %v945 = vpop.f32.mrb[0].mxu0
    %v946 = vadd.f32 0.0, %v945
    %v947 = vpop.f32.mrb[0].mxu0
    %948 = vmatprep.mubr.f32.mxu0 0.0
    %949 = vmatmul.mubr.f32.gmra.mrb[0].mxu0 %v833
    %v950 = vpop.f32.mrb[0].mxu0
    %v951 = vadd.f32 0.0, %v950
    %v952 = vpop.f32.mrb[0].mxu0
    %953 = vmatprep.mubr.f32.mxu0 0.0
    %954 = vmatmul.mubr.f32.gmra.mrb[0].mxu0 %v836
    %v955 = vpop.f32.mrb[0].mxu0
    %v956 = vadd.f32 0.0, %v955
    %v957 = vpop.f32.mrb[0].mxu0
    %958 = vmatprep.mubr.f32.mxu0 0.0
    %959 = vmatmul.mubr.f32.gmra.mrb[0].mxu0 %v839
    %v960 = vpop.f32.mrb[0].mxu0
    %v961 = vadd.f32 0.0, %v960
    %v962 = vpop.f32.mrb[0].mxu0
    %963 = vmatprep.mubr.f32.mxu0 0.0
    %964 = vmatmul.mubr.f32.gmra.mrb[0].mxu0 %v842
    %v965 = vpop.f32.mrb[0].mxu0
    %v966 = vadd.f32 0.0, %v965
    %v967 = vpop.f32.mrb[0].mxu0
    %968 = vmatprep.mubr.f32.mxu0 0.0
    %969 = vmatmul.mubr.f32.gmra.mrb[0].mxu0 %v845
    %v970 = vpop.f32.mrb[0].mxu0
    %v971 = vadd.f32 0.0, %v970
    %v972 = vpop.f32.mrb[0].mxu0
    %973 = vmatprep.mubr.f32.mxu0 0.0
    %974 = vmatmul.mubr.f32.gmra.mrb[0].mxu0 %v848
    %v975 = vpop.f32.mrb[0].mxu0
    %v976 = vadd.f32 0.0, %v975
    %v977 = vpop.f32.mrb[0].mxu0
    %978 = vmatprep.mubr.f32.mxu0 0.0
    %979 = vmatmul.mubr.f32.gmra.mrb[0].mxu0 %v851
    %v980 = vpop.f32.mrb[0].mxu0
    %v981 = vadd.f32 0.0, %v980
    %v982 = vpop.f32.mrb[0].mxu0
    %983 = vmatprep.mubr.f32.mxu0 0.0
    %984 = vmatmul.mubr.f32.gmra.mrb[0].mxu0 %v854
    %v985 = vpop.f32.mrb[0].mxu0
    %v986 = vadd.f32 0.0, %v985
    %v987 = vpop.f32.mrb[0].mxu0
    %988 = vmatprep.mubr.f32.mxu0 0.0
    %989 = vmatmul.mubr.f32.gmra.mrb[0].mxu0 %v857
    %v990 = vpop.f32.mrb[0].mxu0
    %v991 = vadd.f32 0.0, %v990
    %v992 = vpop.f32.mrb[0].mxu0
    %993 = vmatprep.mubr.f32.mxu0 0.0
    %994 = vmatmul.mubr.f32.gmra.mrb[0].mxu0 %v860
    %v995 = vpop.f32.mrb[0].mxu0
    %v996 = vadd.f32 0.0, %v995
    %v997 = vpop.f32.mrb[0].mxu0
    %998 = vmatprep.mubr.f32.mxu0 0.0
    %999 = vmatmul.mubr.f32.gmra.mrb[0].mxu0 %v863
    %v1000 = vpop.f32.mrb[0].mxu0
    %v1001 = vadd.f32 0.0, %v1000
    %v1002 = vpop.f32.mrb[0].mxu0
    %1003 = vmatprep.mubr.f32.mxu0 0.0
    %1004 = vmatmul.mubr.f32.gmra.mrb[0].mxu0 %v866
    %v1005 = vpop.f32.mrb[0].mxu0
    %v1006 = vadd.f32 0.0, %v1005
    %v1007 = vpop.f32.mrb[0].mxu0
    %1008 = vmatprep.mubr.f32.mxu0 0.0
    %1009 = vmatmul.mubr.f32.gmra.mrb[0].mxu0 %v869
    %v1010 = vpop.f32.mrb[0].mxu0
    %v1011 = vadd.f32 0.0, %v1010
    %v1012 = vpop.f32.mrb[0].mxu0
    %1013 = vmatprep.mubr.f32.mxu0 0.0
    %1014 = vmatmul.mubr.f32.gmra.mrb[0].mxu0 %v872
    %v1015 = vpop.f32.mrb[0].mxu0
    %v1016 = vadd.f32 0.0, %v1015
    %v1017 = vpop.f32.mrb[0].mxu0
    %1018 = vdwg.mxu0
    %v1019 = vmul.f32 %v547, %v547
    %v1020 = vrot.slane %v1019, 4
    %v1021 = vadd.f32 %v1019, %v1020
    %v1022 = vrot.slane %v1021, 2
    %v1023 = vadd.f32 %v1021, %v1022
    %v1024 = vrot.slane %v1023, 1
    %v1025 = vadd.f32 %v1023, %v1024
    %v1026 = vmul.f32 %v323, %v323
    %1027 = vxpose.xlu0.b32.start [1/16] %v1026, 128
    %1028 = vxpose.xlu0.b32.cont [2/16] 0.0, 128
    %1029 = vxpose.xlu0.b32.cont [3/16] 0.0, 128
    %1030 = vxpose.xlu0.b32.cont [4/16] 0.0, 128
    %1031 = vxpose.xlu0.b32.cont [5/16] 0.0, 128
    %1032 = vxpose.xlu0.b32.cont [6/16] 0.0, 128
    %1033 = vxpose.xlu0.b32.cont [7/16] 0.0, 128
    %1034 = vxpose.xlu0.b32.cont [8/16] 0.0, 128
    %1035 = vxpose.xlu0.b32.cont [9/16] 0.0, 128
    %1036 = vxpose.xlu0.b32.cont [10/16] 0.0, 128
    %1037 = vxpose.xlu0.b32.cont [11/16] 0.0, 128
    %1038 = vxpose.xlu0.b32.cont [12/16] 0.0, 128
    %1039 = vxpose.xlu0.b32.cont [13/16] 0.0, 128
    %1040 = vxpose.xlu0.b32.cont [14/16] 0.0, 128
    %1041 = vxpose.xlu0.b32.cont [15/16] 0.0, 128
    %1042 = vxpose.xlu0.b32.end [16/16] 0.0, 128
    %v1043 = vpop.trf.xlu0
    %v1044 = vpop.trf.xlu0
    %v1045 = vpop.trf.xlu0
    %v1046 = vpop.trf.xlu0
    %v1047 = vpop.trf.xlu0
    %v1048 = vpop.trf.xlu0
    %v1049 = vpop.trf.xlu0
    %v1050 = vpop.trf.xlu0
    %v1051 = vpop.trf.xlu0
    %v1052 = vpop.trf.xlu0
    %v1053 = vpop.trf.xlu0
    %v1054 = vpop.trf.xlu0
    %v1055 = vpop.trf.xlu0
    %v1056 = vpop.trf.xlu0
    %v1057 = vpop.trf.xlu0
    %v1058 = vpop.trf.xlu0
    %v1060 = vsel %vm825, %v1043, 0
    %v1063 = vsel %vm825, %v1044, 0
    %v1066 = vsel %vm825, %v1045, 0
    %v1069 = vsel %vm825, %v1046, 0
    %v1072 = vsel %vm825, %v1047, 0
    %v1075 = vsel %vm825, %v1048, 0
    %v1078 = vsel %vm825, %v1049, 0
    %v1081 = vsel %vm825, %v1050, 0
    %v1084 = vsel %vm825, %v1051, 0
    %v1087 = vsel %vm825, %v1052, 0
    %v1090 = vsel %vm825, %v1053, 0
    %v1093 = vsel %vm825, %v1054, 0
    %v1096 = vsel %vm825, %v1055, 0
    %v1099 = vsel %vm825, %v1056, 0
    %v1102 = vsel %vm825, %v1057, 0
    %v1105 = vsel %vm825, %v1058, 0
    %1107 = vmatprep.subr.mxu0 0.0
    %1108 = vmatpush1.msra.mxu0 %v1025
    %1109 = vmatprep.subr.mxu0 0.0
    %1110 = vmatpush1.msra.mxu0 0.0
    %1111 = vmatprep.subr.mxu0 0.0
    %1112 = vmatpush1.msra.mxu0 0.0
    %1113 = vmatprep.subr.mxu0 0.0
    %1114 = vmatpush1.msra.mxu0 0.0
    %1115 = vmatprep.subr.mxu0 0.0
    %1116 = vmatpush1.msra.mxu0 0.0
    %1117 = vmatprep.subr.mxu0 0.0
    %1118 = vmatpush1.msra.mxu0 0.0
    %1119 = vmatprep.subr.mxu0 0.0
    %1120 = vmatpush1.msra.mxu0 0.0
    %1121 = vmatprep.subr.mxu0 0.0
    %1122 = vmatpush1.msra.mxu0 0.0
    %1123 = vmatprep.subr.mxu0 0.0
    %1124 = vmatpush1.msra.mxu0 0.0
    %1125 = vmatprep.subr.mxu0 0.0
    %1126 = vmatpush1.msra.mxu0 0.0
    %1127 = vmatprep.subr.mxu0 0.0
    %1128 = vmatpush1.msra.mxu0 0.0
    %1129 = vmatprep.subr.mxu0 0.0
    %1130 = vmatpush1.msra.mxu0 0.0
    %1131 = vmatprep.subr.mxu0 0.0
    %1132 = vmatpush1.msra.mxu0 0.0
    %1133 = vmatprep.subr.mxu0 0.0
    %1134 = vmatpush1.msra.mxu0 0.0
    %1135 = vmatprep.subr.mxu0 0.0
    %1136 = vmatpush1.msra.mxu0 0.0
    %1137 = vmatprep.subr.mxu0 0.0
    %1138 = vmatpush1.msra.mxu0 0.0
    %1139 = vmatprep.subr.mxu0 0.0
    %1140 = vmatpush1.msra.mxu0 0.0
    %1141 = vmatprep.subr.mxu0 0.0
    %1142 = vmatpush1.msra.mxu0 0.0
    %1143 = vmatprep.subr.mxu0 0.0
    %1144 = vmatpush1.msra.mxu0 0.0
    %1145 = vmatprep.subr.mxu0 0.0
    %1146 = vmatpush1.msra.mxu0 0.0
    %1147 = vmatprep.subr.mxu0 0.0
    %1148 = vmatpush1.msra.mxu0 0.0
    %1149 = vmatprep.subr.mxu0 0.0
    %1150 = vmatpush1.msra.mxu0 0.0
    %1151 = vmatprep.subr.mxu0 0.0
    %1152 = vmatpush1.msra.mxu0 0.0
    %1153 = vmatprep.subr.mxu0 0.0
    %1154 = vmatpush1.msra.mxu0 0.0
    %1155 = vmatprep.subr.mxu0 0.0
    %1156 = vmatpush1.msra.mxu0 0.0
    %1157 = vmatprep.subr.mxu0 0.0
    %1158 = vmatpush1.msra.mxu0 0.0
    %1159 = vmatprep.subr.mxu0 0.0
    %1160 = vmatpush1.msra.mxu0 0.0
    %1161 = vmatprep.subr.mxu0 0.0
    %1162 = vmatpush1.msra.mxu0 0.0
    %1163 = vmatprep.subr.mxu0 0.0
    %1164 = vmatpush1.msra.mxu0 0.0
    %1165 = vmatprep.subr.mxu0 0.0
    %1166 = vmatpush1.msra.mxu0 0.0
    %1167 = vmatprep.subr.mxu0 0.0
    %1168 = vmatpush1.msra.mxu0 0.0
    %1169 = vmatprep.subr.mxu0 0.0
    %1170 = vmatpush1.msra.mxu0 0.0
    %1171 = vmatprep.mubr.f32.mxu0 0.0
    %1172 = vmatmul.mubr.f32.gmra.mrb[0].mxu0 %v1060
    %v1173 = vpop.f32.mrb[0].mxu0
    %v1174 = vadd.f32 0.0, %v1173
    %v1175 = vpop.f32.mrb[0].mxu0
    %1176 = vmatprep.mubr.f32.mxu0 0.0
    %1177 = vmatmul.mubr.f32.gmra.mrb[0].mxu0 %v1063
    %v1178 = vpop.f32.mrb[0].mxu0
    %v1179 = vadd.f32 0.0, %v1178
    %v1180 = vpop.f32.mrb[0].mxu0
    %1181 = vmatprep.mubr.f32.mxu0 0.0
    %1182 = vmatmul.mubr.f32.gmra.mrb[0].mxu0 %v1066
    %v1183 = vpop.f32.mrb[0].mxu0
    %v1184 = vadd.f32 0.0, %v1183
    %v1185 = vpop.f32.mrb[0].mxu0
    %1186 = vmatprep.mubr.f32.mxu0 0.0
    %1187 = vmatmul.mubr.f32.gmra.mrb[0].mxu0 %v1069
    %v1188 = vpop.f32.mrb[0].mxu0
    %v1189 = vadd.f32 0.0, %v1188
    %v1190 = vpop.f32.mrb[0].mxu0
    %1191 = vmatprep.mubr.f32.mxu0 0.0
    %1192 = vmatmul.mubr.f32.gmra.mrb[0].mxu0 %v1072
    %v1193 = vpop.f32.mrb[0].mxu0
    %v1194 = vadd.f32 0.0, %v1193
    %v1195 = vpop.f32.mrb[0].mxu0
    %1196 = vmatprep.mubr.f32.mxu0 0.0
    %1197 = vmatmul.mubr.f32.gmra.mrb[0].mxu0 %v1075
    %v1198 = vpop.f32.mrb[0].mxu0
    %v1199 = vadd.f32 0.0, %v1198
    %v1200 = vpop.f32.mrb[0].mxu0
    %1201 = vmatprep.mubr.f32.mxu0 0.0
    %1202 = vmatmul.mubr.f32.gmra.mrb[0].mxu0 %v1078
    %v1203 = vpop.f32.mrb[0].mxu0
    %v1204 = vadd.f32 0.0, %v1203
    %v1205 = vpop.f32.mrb[0].mxu0
    %1206 = vmatprep.mubr.f32.mxu0 0.0
    %1207 = vmatmul.mubr.f32.gmra.mrb[0].mxu0 %v1081
    %v1208 = vpop.f32.mrb[0].mxu0
    %v1209 = vadd.f32 0.0, %v1208
    %v1210 = vpop.f32.mrb[0].mxu0
    %1211 = vmatprep.mubr.f32.mxu0 0.0
    %1212 = vmatmul.mubr.f32.gmra.mrb[0].mxu0 %v1084
    %v1213 = vpop.f32.mrb[0].mxu0
    %v1214 = vadd.f32 0.0, %v1213
    %v1215 = vpop.f32.mrb[0].mxu0
    %1216 = vmatprep.mubr.f32.mxu0 0.0
    %1217 = vmatmul.mubr.f32.gmra.mrb[0].mxu0 %v1087
    %v1218 = vpop.f32.mrb[0].mxu0
    %v1219 = vadd.f32 0.0, %v1218
    %v1220 = vpop.f32.mrb[0].mxu0
    %1221 = vmatprep.mubr.f32.mxu0 0.0
    %1222 = vmatmul.mubr.f32.gmra.mrb[0].mxu0 %v1090
    %v1223 = vpop.f32.mrb[0].mxu0
    %v1224 = vadd.f32 0.0, %v1223
    %v1225 = vpop.f32.mrb[0].mxu0
    %1226 = vmatprep.mubr.f32.mxu0 0.0
    %1227 = vmatmul.mubr.f32.gmra.mrb[0].mxu0 %v1093
    %v1228 = vpop.f32.mrb[0].mxu0
    %v1229 = vadd.f32 0.0, %v1228
    %v1230 = vpop.f32.mrb[0].mxu0
    %1231 = vmatprep.mubr.f32.mxu0 0.0
    %1232 = vmatmul.mubr.f32.gmra.mrb[0].mxu0 %v1096
    %v1233 = vpop.f32.mrb[0].mxu0
    %v1234 = vadd.f32 0.0, %v1233
    %v1235 = vpop.f32.mrb[0].mxu0
    %1236 = vmatprep.mubr.f32.mxu0 0.0
    %1237 = vmatmul.mubr.f32.gmra.mrb[0].mxu0 %v1099
    %v1238 = vpop.f32.mrb[0].mxu0
    %v1239 = vadd.f32 0.0, %v1238
    %v1240 = vpop.f32.mrb[0].mxu0
    %1241 = vmatprep.mubr.f32.mxu0 0.0
    %1242 = vmatmul.mubr.f32.gmra.mrb[0].mxu0 %v1102
    %v1243 = vpop.f32.mrb[0].mxu0
    %v1244 = vadd.f32 0.0, %v1243
    %v1245 = vpop.f32.mrb[0].mxu0
    %1246 = vmatprep.mubr.f32.mxu0 0.0
    %1247 = vmatmul.mubr.f32.gmra.mrb[0].mxu0 %v1105
    %v1248 = vpop.f32.mrb[0].mxu0
    %v1249 = vadd.f32 0.0, %v1248
    %v1250 = vpop.f32.mrb[0].mxu0
    %1251 = vdwg.mxu0
    %v1252 = vmul.f32 %v941, %v941
    %v1253 = vmul.f32 %v946, %v946
    %v1254 = vmul.f32 %v951, %v951
    %v1255 = vmul.f32 %v956, %v956
    %v1256 = vmul.f32 %v961, %v961
    %v1257 = vmul.f32 %v966, %v966
    %v1258 = vmul.f32 %v971, %v971
    %v1259 = vmul.f32 %v976, %v976
    %v1260 = vmul.f32 %v981, %v981
    %v1261 = vmul.f32 %v986, %v986
    %v1262 = vmul.f32 %v991, %v991
    %v1263 = vmul.f32 %v996, %v996
    %v1264 = vmul.f32 %v1001, %v1001
    %v1265 = vmul.f32 %v1006, %v1006
    %v1266 = vmul.f32 %v1011, %v1011
    %v1267 = vmul.f32 %v1016, %v1016
    %v1268 = vsub.f32 %v1174, %v1252
    %v1269 = vsub.f32 %v1179, %v1253
    %v1270 = vsub.f32 %v1184, %v1254
    %v1271 = vsub.f32 %v1189, %v1255
    %v1272 = vsub.f32 %v1194, %v1256
    %v1273 = vsub.f32 %v1199, %v1257
    %v1274 = vsub.f32 %v1204, %v1258
    %v1275 = vsub.f32 %v1209, %v1259
    %v1276 = vsub.f32 %v1214, %v1260
    %v1277 = vsub.f32 %v1219, %v1261
    %v1278 = vsub.f32 %v1224, %v1262
    %v1279 = vsub.f32 %v1229, %v1263
    %v1280 = vsub.f32 %v1234, %v1264
    %v1281 = vsub.f32 %v1239, %v1265
    %v1282 = vsub.f32 %v1244, %v1266
    %v1283 = vsub.f32 %v1249, %v1267
    %v1284 = vmax.f32 %v1268, 0.0
    %v1285 = vmax.f32 %v1269, 0.0
    %v1286 = vmax.f32 %v1270, 0.0
    %v1287 = vmax.f32 %v1271, 0.0
    %v1288 = vmax.f32 %v1272, 0.0
    %v1289 = vmax.f32 %v1273, 0.0
    %v1290 = vmax.f32 %v1274, 0.0
    %v1291 = vmax.f32 %v1275, 0.0
    %v1292 = vmax.f32 %v1276, 0.0
    %v1293 = vmax.f32 %v1277, 0.0
    %v1294 = vmax.f32 %v1278, 0.0
    %v1295 = vmax.f32 %v1279, 0.0
    %v1296 = vmax.f32 %v1280, 0.0
    %v1297 = vmax.f32 %v1281, 0.0
    %v1298 = vmax.f32 %v1282, 0.0
    %v1299 = vmax.f32 %v1283, 0.0
    %v1300 = vadd.f32 %v1284, 1e-08
    %v1301 = vadd.f32 %v1285, 1e-08
    %v1302 = vadd.f32 %v1286, 1e-08
    %v1303 = vadd.f32 %v1287, 1e-08
    %v1304 = vadd.f32 %v1288, 1e-08
    %v1305 = vadd.f32 %v1289, 1e-08
    %v1306 = vadd.f32 %v1290, 1e-08
    %v1307 = vadd.f32 %v1291, 1e-08
    %v1308 = vadd.f32 %v1292, 1e-08
    %v1309 = vadd.f32 %v1293, 1e-08
    %v1310 = vadd.f32 %v1294, 1e-08
    %v1311 = vadd.f32 %v1295, 1e-08
    %v1312 = vadd.f32 %v1296, 1e-08
    %v1313 = vadd.f32 %v1297, 1e-08
    %v1314 = vadd.f32 %v1298, 1e-08
    %v1315 = vadd.f32 %v1299, 1e-08
    %v1316 = vrsqrt.pop %v1300
    %v1317 = vmul.f32 %v1300, %v1316
    %vm1318 = vcmp.eq.f32.partialorder %v1300, inf
    %v1319 = vsel %vm1318, %v1300, %v1317
    %vm1320 = vcmp.eq.f32.partialorder %v1300, 0.0
    %v1321 = vand.u32 %v1300, 2147483648
    %v1322 = vsel %vm1320, %v1321, %v1319
    %v1323 = vrsqrt.pop %v1301
    %v1324 = vmul.f32 %v1301, %v1323
    %vm1325 = vcmp.eq.f32.partialorder %v1301, inf
    %v1326 = vsel %vm1325, %v1301, %v1324
    %vm1327 = vcmp.eq.f32.partialorder %v1301, 0.0
    %v1328 = vand.u32 %v1301, 2147483648
    %v1329 = vsel %vm1327, %v1328, %v1326
    %v1330 = vrsqrt.pop %v1302
    %v1331 = vmul.f32 %v1302, %v1330
    %vm1332 = vcmp.eq.f32.partialorder %v1302, inf
    %v1333 = vsel %vm1332, %v1302, %v1331
    %vm1334 = vcmp.eq.f32.partialorder %v1302, 0.0
    %v1335 = vand.u32 %v1302, 2147483648
    %v1336 = vsel %vm1334, %v1335, %v1333
    %v1337 = vrsqrt.pop %v1303
    %v1338 = vmul.f32 %v1303, %v1337
    %vm1339 = vcmp.eq.f32.partialorder %v1303, inf
    %v1340 = vsel %vm1339, %v1303, %v1338
    %vm1341 = vcmp.eq.f32.partialorder %v1303, 0.0
    %v1342 = vand.u32 %v1303, 2147483648
    %v1343 = vsel %vm1341, %v1342, %v1340
    %v1344 = vrsqrt.pop %v1304
    %v1345 = vmul.f32 %v1304, %v1344
    %vm1346 = vcmp.eq.f32.partialorder %v1304, inf
    %v1347 = vsel %vm1346, %v1304, %v1345
    %vm1348 = vcmp.eq.f32.partialorder %v1304, 0.0
    %v1349 = vand.u32 %v1304, 2147483648
    %v1350 = vsel %vm1348, %v1349, %v1347
    %v1351 = vrsqrt.pop %v1305
    %v1352 = vmul.f32 %v1305, %v1351
    %vm1353 = vcmp.eq.f32.partialorder %v1305, inf
    %v1354 = vsel %vm1353, %v1305, %v1352
    %vm1355 = vcmp.eq.f32.partialorder %v1305, 0.0
    %v1356 = vand.u32 %v1305, 2147483648
    %v1357 = vsel %vm1355, %v1356, %v1354
    %v1358 = vrsqrt.pop %v1306
    %v1359 = vmul.f32 %v1306, %v1358
    %vm1360 = vcmp.eq.f32.partialorder %v1306, inf
    %v1361 = vsel %vm1360, %v1306, %v1359
    %vm1362 = vcmp.eq.f32.partialorder %v1306, 0.0
    %v1363 = vand.u32 %v1306, 2147483648
    %v1364 = vsel %vm1362, %v1363, %v1361
    %v1365 = vrsqrt.pop %v1307
    %v1366 = vmul.f32 %v1307, %v1365
    %vm1367 = vcmp.eq.f32.partialorder %v1307, inf
    %v1368 = vsel %vm1367, %v1307, %v1366
    %vm1369 = vcmp.eq.f32.partialorder %v1307, 0.0
    %v1370 = vand.u32 %v1307, 2147483648
    %v1371 = vsel %vm1369, %v1370, %v1368
    %v1372 = vrsqrt.pop %v1308
    %v1373 = vmul.f32 %v1308, %v1372
    %vm1374 = vcmp.eq.f32.partialorder %v1308, inf
    %v1375 = vsel %vm1374, %v1308, %v1373
    %vm1376 = vcmp.eq.f32.partialorder %v1308, 0.0
    %v1377 = vand.u32 %v1308, 2147483648
    %v1378 = vsel %vm1376, %v1377, %v1375
    %v1379 = vrsqrt.pop %v1309
    %v1380 = vmul.f32 %v1309, %v1379
    %vm1381 = vcmp.eq.f32.partialorder %v1309, inf
    %v1382 = vsel %vm1381, %v1309, %v1380
    %vm1383 = vcmp.eq.f32.partialorder %v1309, 0.0
    %v1384 = vand.u32 %v1309, 2147483648
    %v1385 = vsel %vm1383, %v1384, %v1382
    %v1386 = vrsqrt.pop %v1310
    %v1387 = vmul.f32 %v1310, %v1386
    %vm1388 = vcmp.eq.f32.partialorder %v1310, inf
    %v1389 = vsel %vm1388, %v1310, %v1387
    %vm1390 = vcmp.eq.f32.partialorder %v1310, 0.0
    %v1391 = vand.u32 %v1310, 2147483648
    %v1392 = vsel %vm1390, %v1391, %v1389
    %v1393 = vrsqrt.pop %v1311
    %v1394 = vmul.f32 %v1311, %v1393
    %vm1395 = vcmp.eq.f32.partialorder %v1311, inf
    %v1396 = vsel %vm1395, %v1311, %v1394
    %vm1397 = vcmp.eq.f32.partialorder %v1311, 0.0
    %v1398 = vand.u32 %v1311, 2147483648
    %v1399 = vsel %vm1397, %v1398, %v1396
    %v1400 = vrsqrt.pop %v1312
    %v1401 = vmul.f32 %v1312, %v1400
    %vm1402 = vcmp.eq.f32.partialorder %v1312, inf
    %v1403 = vsel %vm1402, %v1312, %v1401
    %vm1404 = vcmp.eq.f32.partialorder %v1312, 0.0
    %v1405 = vand.u32 %v1312, 2147483648
    %v1406 = vsel %vm1404, %v1405, %v1403
    %v1407 = vrsqrt.pop %v1313
    %v1408 = vmul.f32 %v1313, %v1407
    %vm1409 = vcmp.eq.f32.partialorder %v1313, inf
    %v1410 = vsel %vm1409, %v1313, %v1408
    %vm1411 = vcmp.eq.f32.partialorder %v1313, 0.0
    %v1412 = vand.u32 %v1313, 2147483648
    %v1413 = vsel %vm1411, %v1412, %v1410
    %v1414 = vrsqrt.pop %v1314
    %v1415 = vmul.f32 %v1314, %v1414
    %vm1416 = vcmp.eq.f32.partialorder %v1314, inf
    %v1417 = vsel %vm1416, %v1314, %v1415
    %vm1418 = vcmp.eq.f32.partialorder %v1314, 0.0
    %v1419 = vand.u32 %v1314, 2147483648
    %v1420 = vsel %vm1418, %v1419, %v1417
    %v1421 = vrsqrt.pop %v1315
    %v1422 = vmul.f32 %v1315, %v1421
    %vm1423 = vcmp.eq.f32.partialorder %v1315, inf
    %v1424 = vsel %vm1423, %v1315, %v1422
    %vm1425 = vcmp.eq.f32.partialorder %v1315, 0.0
    %v1426 = vand.u32 %v1315, 2147483648
    %v1427 = vsel %vm1425, %v1426, %v1424
    %v1428 = vmul.f32 %v941, 0.17677669
    %v1429 = vmul.f32 %v946, 0.17677669
    %v1430 = vmul.f32 %v951, 0.17677669
    %v1431 = vmul.f32 %v956, 0.17677669
    %v1432 = vmul.f32 %v961, 0.17677669
    %v1433 = vmul.f32 %v966, 0.17677669
    %v1434 = vmul.f32 %v971, 0.17677669
    %v1435 = vmul.f32 %v976, 0.17677669
    %v1436 = vmul.f32 %v981, 0.17677669
    %v1437 = vmul.f32 %v986, 0.17677669
    %v1438 = vmul.f32 %v991, 0.17677669
    %v1439 = vmul.f32 %v996, 0.17677669
    %v1440 = vmul.f32 %v1001, 0.17677669
    %v1441 = vmul.f32 %v1006, 0.17677669
    %v1442 = vmul.f32 %v1011, 0.17677669
    %v1443 = vmul.f32 %v1016, 0.17677669
    %v1444 = vmul.f32 %v1322, 0.17677669
    %v1445 = vmul.f32 %v1329, 0.17677669
    %v1446 = vmul.f32 %v1336, 0.17677669
    %v1447 = vmul.f32 %v1343, 0.17677669
    %v1448 = vmul.f32 %v1350, 0.17677669
    %v1449 = vmul.f32 %v1357, 0.17677669
    %v1450 = vmul.f32 %v1364, 0.17677669
    %v1451 = vmul.f32 %v1371, 0.17677669
    %v1452 = vmul.f32 %v1378, 0.17677669
    %v1453 = vmul.f32 %v1385, 0.17677669
    %v1454 = vmul.f32 %v1392, 0.17677669
    %v1455 = vmul.f32 %v1399, 0.17677669
    %v1456 = vmul.f32 %v1406, 0.17677669
    %v1457 = vmul.f32 %v1413, 0.17677669
    %v1458 = vmul.f32 %v1420, 0.17677669
    %v1459 = vmul.f32 %v1427, 0.17677669
    %v1460 = vadd.f32 %v1428, %v1444
    %v1461 = vadd.f32 %v1429, %v1445
    %v1462 = vadd.f32 %v1430, %v1446
    %v1463 = vadd.f32 %v1431, %v1447
    %v1464 = vadd.f32 %v1432, %v1448
    %v1465 = vadd.f32 %v1433, %v1449
    %v1466 = vadd.f32 %v1434, %v1450
    %v1467 = vadd.f32 %v1435, %v1451
    %v1468 = vadd.f32 %v1436, %v1452
    %v1469 = vadd.f32 %v1437, %v1453
    %v1470 = vadd.f32 %v1438, %v1454
    %v1471 = vadd.f32 %v1439, %v1455
    %v1472 = vadd.f32 %v1440, %v1456
    %v1473 = vadd.f32 %v1441, %v1457
    %v1474 = vadd.f32 %v1442, %v1458
    %v1475 = vadd.f32 %v1443, %v1459
    %1476 = vmax.xlane.f32.xlu0 %v1460
    %v1477 = vpop.xlane.xlu0 %1476
    %1478 = vmax.xlane.f32.xlu0 %v1461
    %v1479 = vpop.xlane.xlu0 %1478
    %1480 = vmax.xlane.f32.xlu0 %v1462
    %v1481 = vpop.xlane.xlu0 %1480
    %1482 = vmax.xlane.f32.xlu0 %v1463
    %v1483 = vpop.xlane.xlu0 %1482
    %1484 = vmax.xlane.f32.xlu0 %v1464
    %v1485 = vpop.xlane.xlu0 %1484
    %1486 = vmax.xlane.f32.xlu0 %v1465
    %v1487 = vpop.xlane.xlu0 %1486
    %1488 = vmax.xlane.f32.xlu0 %v1466
    %v1489 = vpop.xlane.xlu0 %1488
    %1490 = vmax.xlane.f32.xlu0 %v1467
    %v1491 = vpop.xlane.xlu0 %1490
    %1492 = vmax.xlane.f32.xlu0 %v1468
    %v1493 = vpop.xlane.xlu0 %1492
    %1494 = vmax.xlane.f32.xlu0 %v1469
    %v1495 = vpop.xlane.xlu0 %1494
    %1496 = vmax.xlane.f32.xlu0 %v1470
    %v1497 = vpop.xlane.xlu0 %1496
    %1498 = vmax.xlane.f32.xlu0 %v1471
    %v1499 = vpop.xlane.xlu0 %1498
    %1500 = vmax.xlane.f32.xlu0 %v1472
    %v1501 = vpop.xlane.xlu0 %1500
    %1502 = vmax.xlane.f32.xlu0 %v1473
    %v1503 = vpop.xlane.xlu0 %1502
    %1504 = vmax.xlane.f32.xlu0 %v1474
    %v1505 = vpop.xlane.xlu0 %1504
    %1506 = vmax.xlane.f32.xlu0 %v1475
    %v1507 = vpop.xlane.xlu0 %1506
    %v1508 = vsub.f32 %v1460, %v1477
    %v1509 = vsub.f32 %v1461, %v1479
    %v1510 = vsub.f32 %v1462, %v1481
    %v1511 = vsub.f32 %v1463, %v1483
    %v1512 = vsub.f32 %v1464, %v1485
    %v1513 = vsub.f32 %v1465, %v1487
    %v1514 = vsub.f32 %v1466, %v1489
    %v1515 = vsub.f32 %v1467, %v1491
    %v1516 = vsub.f32 %v1468, %v1493
    %v1517 = vsub.f32 %v1469, %v1495
    %v1518 = vsub.f32 %v1470, %v1497
    %v1519 = vsub.f32 %v1471, %v1499
    %v1520 = vsub.f32 %v1472, %v1501
    %v1521 = vsub.f32 %v1473, %v1503
    %v1522 = vsub.f32 %v1474, %v1505
    %v1523 = vsub.f32 %v1475, %v1507
    %v1524 = vmul.f32 %v1508, 1.442695
    %v1525 = vpow.pop %v1524
    %v1526 = vmul.f32 %v1509, 1.442695
    %v1527 = vpow.pop %v1526
    %v1528 = vmul.f32 %v1510, 1.442695
    %v1529 = vpow.pop %v1528
    %v1530 = vmul.f32 %v1511, 1.442695
    %v1531 = vpow.pop %v1530
    %v1532 = vmul.f32 %v1512, 1.442695
    %v1533 = vpow.pop %v1532
    %v1534 = vmul.f32 %v1513, 1.442695
    %v1535 = vpow.pop %v1534
    %v1536 = vmul.f32 %v1514, 1.442695
    %v1537 = vpow.pop %v1536
    %v1538 = vmul.f32 %v1515, 1.442695
    %v1539 = vpow.pop %v1538
    %v1540 = vmul.f32 %v1516, 1.442695
    %v1541 = vpow.pop %v1540
    %v1542 = vmul.f32 %v1517, 1.442695
    %v1543 = vpow.pop %v1542
    %v1544 = vmul.f32 %v1518, 1.442695
    %v1545 = vpow.pop %v1544
    %v1546 = vmul.f32 %v1519, 1.442695
    %v1547 = vpow.pop %v1546
    %v1548 = vmul.f32 %v1520, 1.442695
    %v1549 = vpow.pop %v1548
    %v1550 = vmul.f32 %v1521, 1.442695
    %v1551 = vpow.pop %v1550
    %v1552 = vmul.f32 %v1522, 1.442695
    %v1553 = vpow.pop %v1552
    %v1554 = vmul.f32 %v1523, 1.442695
    %v1555 = vpow.pop %v1554
    %1556 = vadd.xlane.f32.xlu0 %v1525
    %v1557 = vpop.xlane.xlu0 %1556
    %1558 = vadd.xlane.f32.xlu0 %v1527
    %v1559 = vpop.xlane.xlu0 %1558
    %1560 = vadd.xlane.f32.xlu0 %v1529
    %v1561 = vpop.xlane.xlu0 %1560
    %1562 = vadd.xlane.f32.xlu0 %v1531
    %v1563 = vpop.xlane.xlu0 %1562
    %1564 = vadd.xlane.f32.xlu0 %v1533
    %v1565 = vpop.xlane.xlu0 %1564
    %1566 = vadd.xlane.f32.xlu0 %v1535
    %v1567 = vpop.xlane.xlu0 %1566
    %1568 = vadd.xlane.f32.xlu0 %v1537
    %v1569 = vpop.xlane.xlu0 %1568
    %1570 = vadd.xlane.f32.xlu0 %v1539
    %v1571 = vpop.xlane.xlu0 %1570
    %1572 = vadd.xlane.f32.xlu0 %v1541
    %v1573 = vpop.xlane.xlu0 %1572
    %1574 = vadd.xlane.f32.xlu0 %v1543
    %v1575 = vpop.xlane.xlu0 %1574
    %1576 = vadd.xlane.f32.xlu0 %v1545
    %v1577 = vpop.xlane.xlu0 %1576
    %1578 = vadd.xlane.f32.xlu0 %v1547
    %v1579 = vpop.xlane.xlu0 %1578
    %1580 = vadd.xlane.f32.xlu0 %v1549
    %v1581 = vpop.xlane.xlu0 %1580
    %1582 = vadd.xlane.f32.xlu0 %v1551
    %v1583 = vpop.xlane.xlu0 %1582
    %1584 = vadd.xlane.f32.xlu0 %v1553
    %v1585 = vpop.xlane.xlu0 %1584
    %1586 = vadd.xlane.f32.xlu0 %v1555
    %v1587 = vpop.xlane.xlu0 %1586
    %v1588 = vrcp.pop %v1557
    %v1589 = vrcp.pop %v1559
    %v1590 = vrcp.pop %v1561
    %v1591 = vrcp.pop %v1563
    %v1592 = vrcp.pop %v1565
    %v1593 = vrcp.pop %v1567
    %v1594 = vrcp.pop %v1569
    %v1595 = vrcp.pop %v1571
    %v1596 = vrcp.pop %v1573
    %v1597 = vrcp.pop %v1575
    %v1598 = vrcp.pop %v1577
    %v1599 = vrcp.pop %v1579
    %v1600 = vrcp.pop %v1581
    %v1601 = vrcp.pop %v1583
    %v1602 = vrcp.pop %v1585
    %v1603 = vrcp.pop %v1587
    %v1604 = vmul.f32 %v1525, %v1588
    %v1605 = vmul.f32 %v1527, %v1589
    %v1606 = vmul.f32 %v1529, %v1590
    %v1607 = vmul.f32 %v1531, %v1591
    %v1608 = vmul.f32 %v1533, %v1592
    %v1609 = vmul.f32 %v1535, %v1593
    %v1610 = vmul.f32 %v1537, %v1594
    %v1611 = vmul.f32 %v1539, %v1595
    %v1612 = vmul.f32 %v1541, %v1596
    %v1613 = vmul.f32 %v1543, %v1597
    %v1614 = vmul.f32 %v1545, %v1598
    %v1615 = vmul.f32 %v1547, %v1599
    %v1616 = vmul.f32 %v1549, %v1600
    %v1617 = vmul.f32 %v1551, %v1601
    %v1618 = vmul.f32 %v1553, %v1602
    %v1619 = vmul.f32 %v1555, %v1603
    %v1620 = vpack.c.bf16 %v1605, %v1604
    %v1621 = vpack.c.bf16 %v1607, %v1606
    %v1622 = vpack.c.bf16 %v1609, %v1608
    %v1623 = vpack.c.bf16 %v1611, %v1610
    %v1624 = vpack.c.bf16 %v1613, %v1612
    %v1625 = vpack.c.bf16 %v1615, %v1614
    %v1626 = vpack.c.bf16 %v1617, %v1616
    %v1627 = vpack.c.bf16 %v1619, %v1618
    %v1636 = vunpack.c.l.b16 %v1620
    %v1637 = vunpack.c.h.b16 %v1620
    %v1638 = vunpack.c.l.b16 %v1621
    %v1639 = vunpack.c.h.b16 %v1621
    %v1640 = vunpack.c.l.b16 %v1622
    %v1641 = vunpack.c.h.b16 %v1622
    %v1642 = vunpack.c.l.b16 %v1623
    %v1643 = vunpack.c.h.b16 %v1623
    %v1644 = vunpack.c.l.b16 %v1624
    %v1645 = vunpack.c.h.b16 %v1624
    %v1646 = vunpack.c.l.b16 %v1625
    %v1647 = vunpack.c.h.b16 %v1625
    %v1648 = vunpack.c.l.b16 %v1626
    %v1649 = vunpack.c.h.b16 %v1626
    %v1650 = vunpack.c.l.b16 %v1627
    %v1651 = vunpack.c.h.b16 %v1627
    %v1652 = vpack.c.b16 %v1636, %v1636
    %v1653 = vpack.c.b16 %v1637, %v1637
    %v1654 = vpack.c.b16 %v1638, %v1638
    %v1655 = vpack.c.b16 %v1639, %v1639
    %v1656 = vpack.c.b16 %v1640, %v1640
    %v1657 = vpack.c.b16 %v1641, %v1641
    %v1658 = vpack.c.b16 %v1642, %v1642
    %v1659 = vpack.c.b16 %v1643, %v1643
    %v1660 = vpack.c.b16 %v1644, %v1644
    %v1661 = vpack.c.b16 %v1645, %v1645
    %v1662 = vpack.c.b16 %v1646, %v1646
    %v1663 = vpack.c.b16 %v1647, %v1647
    %v1664 = vpack.c.b16 %v1648, %v1648
    %v1665 = vpack.c.b16 %v1649, %v1649
    %v1666 = vpack.c.b16 %v1650, %v1650
    %v1667 = vpack.c.b16 %v1651, %v1651
    %1684 = vst [vmem:[#allocation6] sm:$0xf] %v1652
    %1685 = vst [vmem:[#allocation6 + $0x4] sm:$0xf] %v1653
    %1686 = vst [vmem:[#allocation6 + $0x8] sm:$0xf] %v1654
    %1687 = vst [vmem:[#allocation6 + $0xc] sm:$0xf] %v1655
    %1688 = vst [vmem:[#allocation6 + $0x10] sm:$0xf] %v1656
    %1689 = vst [vmem:[#allocation6 + $0x14] sm:$0xf] %v1657
    %1690 = vst [vmem:[#allocation6 + $0x18] sm:$0xf] %v1658
    %1691 = vst [vmem:[#allocation6 + $0x1c] sm:$0xf] %v1659
    %1692 = vst [vmem:[#allocation6 + $0x20] sm:$0xf] %v1660
    %1693 = vst [vmem:[#allocation6 + $0x24] sm:$0xf] %v1661
    %1694 = vst [vmem:[#allocation6 + $0x28] sm:$0xf] %v1662
    %1695 = vst [vmem:[#allocation6 + $0x2c] sm:$0xf] %v1663
    %1696 = vst [vmem:[#allocation6 + $0x30] sm:$0xf] %v1664
    %1697 = vst [vmem:[#allocation6 + $0x34] sm:$0xf] %v1665
    %1698 = vst [vmem:[#allocation6 + $0x38] sm:$0xf] %v1666
    %1699 = vst [vmem:[#allocation6 + $0x3c] sm:$0xf] %v1667
    %v1700 = vpack.c.bf16 %v771, %v771
    %1701 = vmatprep.subr.bf16.mxu0 0
    %1702 = vmatpush1.bf16.xpose.msra.mxu0 %v1620
    %1703 = vmatprep.subr.bf16.mxu0 0
    %1704 = vmatpush1.bf16.xpose.msra.mxu0 %v1621
    %1705 = vmatprep.subr.bf16.mxu0 0
    %1706 = vmatpush1.bf16.xpose.msra.mxu0 %v1622
    %1707 = vmatprep.subr.bf16.mxu0 0
    %1708 = vmatpush1.bf16.xpose.msra.mxu0 %v1623
    %1709 = vmatprep.subr.bf16.mxu0 0
    %1710 = vmatpush1.bf16.xpose.msra.mxu0 %v1624
    %1711 = vmatprep.subr.bf16.mxu0 0
    %1712 = vmatpush1.bf16.xpose.msra.mxu0 %v1625
    %1713 = vmatprep.subr.bf16.mxu0 0
    %1714 = vmatpush1.bf16.xpose.msra.mxu0 %v1626
    %1715 = vmatprep.subr.bf16.mxu0 0
    %1716 = vmatpush1.bf16.xpose.msra.mxu0 %v1627
    %1717 = vmatprep.subr.bf16.mxu0 0
    %1718 = vmatpush1.bf16.xpose.msra.mxu0 0
    %1719 = vmatprep.subr.bf16.mxu0 0
    %1720 = vmatpush1.bf16.xpose.msra.mxu0 0
    %1721 = vmatprep.subr.bf16.mxu0 0
    %1722 = vmatpush1.bf16.xpose.msra.mxu0 0
    %1723 = vmatprep.subr.bf16.mxu0 0
    %1724 = vmatpush1.bf16.xpose.msra.mxu0 0
    %1725 = vmatprep.subr.bf16.mxu0 0
    %1726 = vmatpush1.bf16.xpose.msra.mxu0 0
    %1727 = vmatprep.subr.bf16.mxu0 0
    %1728 = vmatpush1.bf16.xpose.msra.mxu0 0
    %1729 = vmatprep.subr.bf16.mxu0 0
    %1730 = vmatpush1.bf16.xpose.msra.mxu0 0
    %1731 = vmatprep.subr.bf16.mxu0 0
    %1732 = vmatpush1.bf16.xpose.msra.mxu0 0
    %1733 = vmatprep.mubr.bf16.mxu0 0
    %1734 = vmatmul.mubr.bf16.gmra.mrb[0].mxu0 %v1700
    %v1735 = vpop.f32.mrb[0].mxu0
    %v1736 = vadd.f32 0.0, %v1735
    %v1737 = vpop.f32.mrb[0].mxu0
    %v1738 = vpop.f32.mrb[0].mxu0
    %v1739 = vpop.f32.mrb[0].mxu0
    %1740 = vdwg.mxu0
    %1741 = vxpose.xlu0.b32.start [1/16] %v326, 128
    %1742 = vxpose.xlu0.b32.cont [2/16] 0.0, 128
    %1743 = vxpose.xlu0.b32.cont [3/16] 0.0, 128
    %1744 = vxpose.xlu0.b32.cont [4/16] 0.0, 128
    %1745 = vxpose.xlu0.b32.cont [5/16] 0.0, 128
    %1746 = vxpose.xlu0.b32.cont [6/16] 0.0, 128
    %1747 = vxpose.xlu0.b32.cont [7/16] 0.0, 128
    %1748 = vxpose.xlu0.b32.cont [8/16] 0.0, 128
    %1749 = vxpose.xlu0.b32.cont [9/16] 0.0, 128
    %1750 = vxpose.xlu0.b32.cont [10/16] 0.0, 128
    %1751 = vxpose.xlu0.b32.cont [11/16] 0.0, 128
    %1752 = vxpose.xlu0.b32.cont [12/16] 0.0, 128
    %1753 = vxpose.xlu0.b32.cont [13/16] 0.0, 128
    %1754 = vxpose.xlu0.b32.cont [14/16] 0.0, 128
    %1755 = vxpose.xlu0.b32.cont [15/16] 0.0, 128
    %1756 = vxpose.xlu0.b32.end [16/16] 0.0, 128
    %v1757 = vpop.trf.xlu0
    %v1758 = vpop.trf.xlu0
    %v1759 = vpop.trf.xlu0
    %v1760 = vpop.trf.xlu0
    %v1761 = vpop.trf.xlu0
    %v1762 = vpop.trf.xlu0
    %v1763 = vpop.trf.xlu0
    %v1764 = vpop.trf.xlu0
    %v1765 = vpop.trf.xlu0
    %v1766 = vpop.trf.xlu0
    %v1767 = vpop.trf.xlu0
    %v1768 = vpop.trf.xlu0
    %v1769 = vpop.trf.xlu0
    %v1770 = vpop.trf.xlu0
    %v1771 = vpop.trf.xlu0
    %v1772 = vpop.trf.xlu0
    %v1774 = vsel %vm825, %v1757, 0
    %v1777 = vsel %vm825, %v1758, 0
    %v1780 = vsel %vm825, %v1759, 0
    %v1783 = vsel %vm825, %v1760, 0
    %v1786 = vsel %vm825, %v1761, 0
    %v1789 = vsel %vm825, %v1762, 0
    %v1792 = vsel %vm825, %v1763, 0
    %v1795 = vsel %vm825, %v1764, 0
    %v1798 = vsel %vm825, %v1765, 0
    %v1801 = vsel %vm825, %v1766, 0
    %v1804 = vsel %vm825, %v1767, 0
    %v1807 = vsel %vm825, %v1768, 0
    %v1810 = vsel %vm825, %v1769, 0
    %v1813 = vsel %vm825, %v1770, 0
    %v1816 = vsel %vm825, %v1771, 0
    %v1819 = vsel %vm825, %v1772, 0
    %1821 = vmatprep.subr.mxu0 0.0
    %1822 = vmatpush1.msra.mxu0 %v550
    %1823 = vmatprep.subr.mxu0 0.0
    %1824 = vmatpush1.msra.mxu0 0.0
    %1825 = vmatprep.subr.mxu0 0.0
    %1826 = vmatpush1.msra.mxu0 0.0
    %1827 = vmatprep.subr.mxu0 0.0
    %1828 = vmatpush1.msra.mxu0 0.0
    %1829 = vmatprep.subr.mxu0 0.0
    %1830 = vmatpush1.msra.mxu0 0.0
    %1831 = vmatprep.subr.mxu0 0.0
    %1832 = vmatpush1.msra.mxu0 0.0
    %1833 = vmatprep.subr.mxu0 0.0
    %1834 = vmatpush1.msra.mxu0 0.0
    %1835 = vmatprep.subr.mxu0 0.0
    %1836 = vmatpush1.msra.mxu0 0.0
    %1837 = vmatprep.subr.mxu0 0.0
    %1838 = vmatpush1.msra.mxu0 0.0
    %1839 = vmatprep.subr.mxu0 0.0
    %1840 = vmatpush1.msra.mxu0 0.0
    %1841 = vmatprep.subr.mxu0 0.0
    %1842 = vmatpush1.msra.mxu0 0.0
    %1843 = vmatprep.subr.mxu0 0.0
    %1844 = vmatpush1.msra.mxu0 0.0
    %1845 = vmatprep.subr.mxu0 0.0
    %1846 = vmatpush1.msra.mxu0 0.0
    %1847 = vmatprep.subr.mxu0 0.0
    %1848 = vmatpush1.msra.mxu0 0.0
    %1849 = vmatprep.subr.mxu0 0.0
    %1850 = vmatpush1.msra.mxu0 0.0
    %1851 = vmatprep.subr.mxu0 0.0
    %1852 = vmatpush1.msra.mxu0 0.0
    %1853 = vmatprep.subr.mxu0 0.0
    %1854 = vmatpush1.msra.mxu0 0.0
    %1855 = vmatprep.subr.mxu0 0.0
    %1856 = vmatpush1.msra.mxu0 0.0
    %1857 = vmatprep.subr.mxu0 0.0
    %1858 = vmatpush1.msra.mxu0 0.0
    %1859 = vmatprep.subr.mxu0 0.0
    %1860 = vmatpush1.msra.mxu0 0.0
    %1861 = vmatprep.subr.mxu0 0.0
    %1862 = vmatpush1.msra.mxu0 0.0
    %1863 = vmatprep.subr.mxu0 0.0
    %1864 = vmatpush1.msra.mxu0 0.0
    %1865 = vmatprep.subr.mxu0 0.0
    %1866 = vmatpush1.msra.mxu0 0.0
    %1867 = vmatprep.subr.mxu0 0.0
    %1868 = vmatpush1.msra.mxu0 0.0
    %1869 = vmatprep.subr.mxu0 0.0
    %1870 = vmatpush1.msra.mxu0 0.0
    %1871 = vmatprep.subr.mxu0 0.0
    %1872 = vmatpush1.msra.mxu0 0.0
    %1873 = vmatprep.subr.mxu0 0.0
    %1874 = vmatpush1.msra.mxu0 0.0
    %1875 = vmatprep.subr.mxu0 0.0
    %1876 = vmatpush1.msra.mxu0 0.0
    %1877 = vmatprep.subr.mxu0 0.0
    %1878 = vmatpush1.msra.mxu0 0.0
    %1879 = vmatprep.subr.mxu0 0.0
    %1880 = vmatpush1.msra.mxu0 0.0
    %1881 = vmatprep.subr.mxu0 0.0
    %1882 = vmatpush1.msra.mxu0 0.0
    %1883 = vmatprep.subr.mxu0 0.0
    %1884 = vmatpush1.msra.mxu0 0.0
    %1885 = vmatprep.mubr.f32.mxu0 0.0
    %1886 = vmatmul.mubr.f32.gmra.mrb[0].mxu0 %v1774
    %v1887 = vpop.f32.mrb[0].mxu0
    %v1888 = vadd.f32 0.0, %v1887
    %v1889 = vpop.f32.mrb[0].mxu0
    %1890 = vmatprep.mubr.f32.mxu0 0.0
    %1891 = vmatmul.mubr.f32.gmra.mrb[0].mxu0 %v1777
    %v1892 = vpop.f32.mrb[0].mxu0
    %v1893 = vadd.f32 0.0, %v1892
    %v1894 = vpop.f32.mrb[0].mxu0
    %1895 = vmatprep.mubr.f32.mxu0 0.0
    %1896 = vmatmul.mubr.f32.gmra.mrb[0].mxu0 %v1780
    %v1897 = vpop.f32.mrb[0].mxu0
    %v1898 = vadd.f32 0.0, %v1897
    %v1899 = vpop.f32.mrb[0].mxu0
    %1900 = vmatprep.mubr.f32.mxu0 0.0
    %1901 = vmatmul.mubr.f32.gmra.mrb[0].mxu0 %v1783
    %v1902 = vpop.f32.mrb[0].mxu0
    %v1903 = vadd.f32 0.0, %v1902
    %v1904 = vpop.f32.mrb[0].mxu0
    %1905 = vmatprep.mubr.f32.mxu0 0.0
    %1906 = vmatmul.mubr.f32.gmra.mrb[0].mxu0 %v1786
    %v1907 = vpop.f32.mrb[0].mxu0
    %v1908 = vadd.f32 0.0, %v1907
    %v1909 = vpop.f32.mrb[0].mxu0
    %1910 = vmatprep.mubr.f32.mxu0 0.0
    %1911 = vmatmul.mubr.f32.gmra.mrb[0].mxu0 %v1789
    %v1912 = vpop.f32.mrb[0].mxu0
    %v1913 = vadd.f32 0.0, %v1912
    %v1914 = vpop.f32.mrb[0].mxu0
    %1915 = vmatprep.mubr.f32.mxu0 0.0
    %1916 = vmatmul.mubr.f32.gmra.mrb[0].mxu0 %v1792
    %v1917 = vpop.f32.mrb[0].mxu0
    %v1918 = vadd.f32 0.0, %v1917
    %v1919 = vpop.f32.mrb[0].mxu0
    %1920 = vmatprep.mubr.f32.mxu0 0.0
    %1921 = vmatmul.mubr.f32.gmra.mrb[0].mxu0 %v1795
    %v1922 = vpop.f32.mrb[0].mxu0
    %v1923 = vadd.f32 0.0, %v1922
    %v1924 = vpop.f32.mrb[0].mxu0
    %1925 = vmatprep.mubr.f32.mxu0 0.0
    %1926 = vmatmul.mubr.f32.gmra.mrb[0].mxu0 %v1798
    %v1927 = vpop.f32.mrb[0].mxu0
    %v1928 = vadd.f32 0.0, %v1927
    %v1929 = vpop.f32.mrb[0].mxu0
    %1930 = vmatprep.mubr.f32.mxu0 0.0
    %1931 = vmatmul.mubr.f32.gmra.mrb[0].mxu0 %v1801
    %v1932 = vpop.f32.mrb[0].mxu0
    %v1933 = vadd.f32 0.0, %v1932
    %v1934 = vpop.f32.mrb[0].mxu0
    %1935 = vmatprep.mubr.f32.mxu0 0.0
    %1936 = vmatmul.mubr.f32.gmra.mrb[0].mxu0 %v1804
    %v1937 = vpop.f32.mrb[0].mxu0
    %v1938 = vadd.f32 0.0, %v1937
    %v1939 = vpop.f32.mrb[0].mxu0
    %1940 = vmatprep.mubr.f32.mxu0 0.0
    %1941 = vmatmul.mubr.f32.gmra.mrb[0].mxu0 %v1807
    %v1942 = vpop.f32.mrb[0].mxu0
    %v1943 = vadd.f32 0.0, %v1942
    %v1944 = vpop.f32.mrb[0].mxu0
    %1945 = vmatprep.mubr.f32.mxu0 0.0
    %1946 = vmatmul.mubr.f32.gmra.mrb[0].mxu0 %v1810
    %v1947 = vpop.f32.mrb[0].mxu0
    %v1948 = vadd.f32 0.0, %v1947
    %v1949 = vpop.f32.mrb[0].mxu0
    %1950 = vmatprep.mubr.f32.mxu0 0.0
    %1951 = vmatmul.mubr.f32.gmra.mrb[0].mxu0 %v1813
    %v1952 = vpop.f32.mrb[0].mxu0
    %v1953 = vadd.f32 0.0, %v1952
    %v1954 = vpop.f32.mrb[0].mxu0
    %1955 = vmatprep.mubr.f32.mxu0 0.0
    %1956 = vmatmul.mubr.f32.gmra.mrb[0].mxu0 %v1816
    %v1957 = vpop.f32.mrb[0].mxu0
    %v1958 = vadd.f32 0.0, %v1957
    %v1959 = vpop.f32.mrb[0].mxu0
    %1960 = vmatprep.mubr.f32.mxu0 0.0
    %1961 = vmatmul.mubr.f32.gmra.mrb[0].mxu0 %v1819
    %v1962 = vpop.f32.mrb[0].mxu0
    %v1963 = vadd.f32 0.0, %v1962
    %v1964 = vpop.f32.mrb[0].mxu0
    %1965 = vdwg.mxu0
    %v1966 = vmul.f32 %v550, %v550
    %v1967 = vrot.slane %v1966, 4
    %v1968 = vadd.f32 %v1966, %v1967
    %v1969 = vrot.slane %v1968, 2
    %v1970 = vadd.f32 %v1968, %v1969
    %v1971 = vrot.slane %v1970, 1
    %v1972 = vadd.f32 %v1970, %v1971
    %v1973 = vmul.f32 %v326, %v326
    %1974 = vxpose.xlu0.b32.start [1/16] %v1973, 128
    %1975 = vxpose.xlu0.b32.cont [2/16] 0.0, 128
    %1976 = vxpose.xlu0.b32.cont [3/16] 0.0, 128
    %1977 = vxpose.xlu0.b32.cont [4/16] 0.0, 128
    %1978 = vxpose.xlu0.b32.cont [5/16] 0.0, 128
    %1979 = vxpose.xlu0.b32.cont [6/16] 0.0, 128
    %1980 = vxpose.xlu0.b32.cont [7/16] 0.0, 128
    %1981 = vxpose.xlu0.b32.cont [8/16] 0.0, 128
    %1982 = vxpose.xlu0.b32.cont [9/16] 0.0, 128
    %1983 = vxpose.xlu0.b32.cont [10/16] 0.0, 128
    %1984 = vxpose.xlu0.b32.cont [11/16] 0.0, 128
    %1985 = vxpose.xlu0.b32.cont [12/16] 0.0, 128
    %1986 = vxpose.xlu0.b32.cont [13/16] 0.0, 128
    %1987 = vxpose.xlu0.b32.cont [14/16] 0.0, 128
    %1988 = vxpose.xlu0.b32.cont [15/16] 0.0, 128
    %1989 = vxpose.xlu0.b32.end [16/16] 0.0, 128
    %v1990 = vpop.trf.xlu0
    %v1991 = vpop.trf.xlu0
    %v1992 = vpop.trf.xlu0
    %v1993 = vpop.trf.xlu0
    %v1994 = vpop.trf.xlu0
    %v1995 = vpop.trf.xlu0
    %v1996 = vpop.trf.xlu0
    %v1997 = vpop.trf.xlu0
    %v1998 = vpop.trf.xlu0
    %v1999 = vpop.trf.xlu0
    %v2000 = vpop.trf.xlu0
    %v2001 = vpop.trf.xlu0
    %v2002 = vpop.trf.xlu0
    %v2003 = vpop.trf.xlu0
    %v2004 = vpop.trf.xlu0
    %v2005 = vpop.trf.xlu0
    %v2007 = vsel %vm825, %v1990, 0
    %v2010 = vsel %vm825, %v1991, 0
    %v2013 = vsel %vm825, %v1992, 0
    %v2016 = vsel %vm825, %v1993, 0
    %v2019 = vsel %vm825, %v1994, 0
    %v2022 = vsel %vm825, %v1995, 0
    %v2025 = vsel %vm825, %v1996, 0
    %v2028 = vsel %vm825, %v1997, 0
    %v2031 = vsel %vm825, %v1998, 0
    %v2034 = vsel %vm825, %v1999, 0
    %v2037 = vsel %vm825, %v2000, 0
    %v2040 = vsel %vm825, %v2001, 0
    %v2043 = vsel %vm825, %v2002, 0
    %v2046 = vsel %vm825, %v2003, 0
    %v2049 = vsel %vm825, %v2004, 0
    %v2052 = vsel %vm825, %v2005, 0
    %2054 = vmatprep.subr.mxu0 0.0
    %2055 = vmatpush1.msra.mxu0 %v1972
    %2056 = vmatprep.subr.mxu0 0.0
    %2057 = vmatpush1.msra.mxu0 0.0
    %2058 = vmatprep.subr.mxu0 0.0
    %2059 = vmatpush1.msra.mxu0 0.0
    %2060 = vmatprep.subr.mxu0 0.0
    %2061 = vmatpush1.msra.mxu0 0.0
    %2062 = vmatprep.subr.mxu0 0.0
    %2063 = vmatpush1.msra.mxu0 0.0
    %2064 = vmatprep.subr.mxu0 0.0
    %2065 = vmatpush1.msra.mxu0 0.0
    %2066 = vmatprep.subr.mxu0 0.0
    %2067 = vmatpush1.msra.mxu0 0.0
    %2068 = vmatprep.subr.mxu0 0.0
    %2069 = vmatpush1.msra.mxu0 0.0
    %2070 = vmatprep.subr.mxu0 0.0
    %2071 = vmatpush1.msra.mxu0 0.0
    %2072 = vmatprep.subr.mxu0 0.0
    %2073 = vmatpush1.msra.mxu0 0.0
    %2074 = vmatprep.subr.mxu0 0.0
    %2075 = vmatpush1.msra.mxu0 0.0
    %2076 = vmatprep.subr.mxu0 0.0
    %2077 = vmatpush1.msra.mxu0 0.0
    %2078 = vmatprep.subr.mxu0 0.0
    %2079 = vmatpush1.msra.mxu0 0.0
    %2080 = vmatprep.subr.mxu0 0.0
    %2081 = vmatpush1.msra.mxu0 0.0
    %2082 = vmatprep.subr.mxu0 0.0
    %2083 = vmatpush1.msra.mxu0 0.0
    %2084 = vmatprep.subr.mxu0 0.0
    %2085 = vmatpush1.msra.mxu0 0.0
    %2086 = vmatprep.subr.mxu0 0.0
    %2087 = vmatpush1.msra.mxu0 0.0
    %2088 = vmatprep.subr.mxu0 0.0
    %2089 = vmatpush1.msra.mxu0 0.0
    %2090 = vmatprep.subr.mxu0 0.0
    %2091 = vmatpush1.msra.mxu0 0.0
    %2092 = vmatprep.subr.mxu0 0.0
    %2093 = vmatpush1.msra.mxu0 0.0
    %2094 = vmatprep.subr.mxu0 0.0
    %2095 = vmatpush1.msra.mxu0 0.0
    %2096 = vmatprep.subr.mxu0 0.0
    %2097 = vmatpush1.msra.mxu0 0.0
    %2098 = vmatprep.subr.mxu0 0.0
    %2099 = vmatpush1.msra.mxu0 0.0
    %2100 = vmatprep.subr.mxu0 0.0
    %2101 = vmatpush1.msra.mxu0 0.0
    %2102 = vmatprep.subr.mxu0 0.0
    %2103 = vmatpush1.msra.mxu0 0.0
    %2104 = vmatprep.subr.mxu0 0.0
    %2105 = vmatpush1.msra.mxu0 0.0
    %2106 = vmatprep.subr.mxu0 0.0
    %2107 = vmatpush1.msra.mxu0 0.0
    %2108 = vmatprep.subr.mxu0 0.0
    %2109 = vmatpush1.msra.mxu0 0.0
    %2110 = vmatprep.subr.mxu0 0.0
    %2111 = vmatpush1.msra.mxu0 0.0
    %2112 = vmatprep.subr.mxu0 0.0
    %2113 = vmatpush1.msra.mxu0 0.0
    %2114 = vmatprep.subr.mxu0 0.0
    %2115 = vmatpush1.msra.mxu0 0.0
    %2116 = vmatprep.subr.mxu0 0.0
    %2117 = vmatpush1.msra.mxu0 0.0
    %2118 = vmatprep.mubr.f32.mxu0 0.0
    %2119 = vmatmul.mubr.f32.gmra.mrb[0].mxu0 %v2007
    %v2120 = vpop.f32.mrb[0].mxu0
    %v2121 = vadd.f32 0.0, %v2120
    %v2122 = vpop.f32.mrb[0].mxu0
    %2123 = vmatprep.mubr.f32.mxu0 0.0
    %2124 = vmatmul.mubr.f32.gmra.mrb[0].mxu0 %v2010
    %v2125 = vpop.f32.mrb[0].mxu0
    %v2126 = vadd.f32 0.0, %v2125
    %v2127 = vpop.f32.mrb[0].mxu0
    %2128 = vmatprep.mubr.f32.mxu0 0.0
    %2129 = vmatmul.mubr.f32.gmra.mrb[0].mxu0 %v2013
    %v2130 = vpop.f32.mrb[0].mxu0
    %v2131 = vadd.f32 0.0, %v2130
    %v2132 = vpop.f32.mrb[0].mxu0
    %2133 = vmatprep.mubr.f32.mxu0 0.0
    %2134 = vmatmul.mubr.f32.gmra.mrb[0].mxu0 %v2016
    %v2135 = vpop.f32.mrb[0].mxu0
    %v2136 = vadd.f32 0.0, %v2135
    %v2137 = vpop.f32.mrb[0].mxu0
    %2138 = vmatprep.mubr.f32.mxu0 0.0
    %2139 = vmatmul.mubr.f32.gmra.mrb[0].mxu0 %v2019
    %v2140 = vpop.f32.mrb[0].mxu0
    %v2141 = vadd.f32 0.0, %v2140
    %v2142 = vpop.f32.mrb[0].mxu0
    %2143 = vmatprep.mubr.f32.mxu0 0.0
    %2144 = vmatmul.mubr.f32.gmra.mrb[0].mxu0 %v2022
    %v2145 = vpop.f32.mrb[0].mxu0
    %v2146 = vadd.f32 0.0, %v2145
    %v2147 = vpop.f32.mrb[0].mxu0
    %2148 = vmatprep.mubr.f32.mxu0 0.0
    %2149 = vmatmul.mubr.f32.gmra.mrb[0].mxu0 %v2025
    %v2150 = vpop.f32.mrb[0].mxu0
    %v2151 = vadd.f32 0.0, %v2150
    %v2152 = vpop.f32.mrb[0].mxu0
    %2153 = vmatprep.mubr.f32.mxu0 0.0
    %2154 = vmatmul.mubr.f32.gmra.mrb[0].mxu0 %v2028
    %v2155 = vpop.f32.mrb[0].mxu0
    %v2156 = vadd.f32 0.0, %v2155
    %v2157 = vpop.f32.mrb[0].mxu0
    %2158 = vmatprep.mubr.f32.mxu0 0.0
    %2159 = vmatmul.mubr.f32.gmra.mrb[0].mxu0 %v2031
    %v2160 = vpop.f32.mrb[0].mxu0
    %v2161 = vadd.f32 0.0, %v2160
    %v2162 = vpop.f32.mrb[0].mxu0
    %2163 = vmatprep.mubr.f32.mxu0 0.0
    %2164 = vmatmul.mubr.f32.gmra.mrb[0].mxu0 %v2034
    %v2165 = vpop.f32.mrb[0].mxu0
    %v2166 = vadd.f32 0.0, %v2165
    %v2167 = vpop.f32.mrb[0].mxu0
    %2168 = vmatprep.mubr.f32.mxu0 0.0
    %2169 = vmatmul.mubr.f32.gmra.mrb[0].mxu0 %v2037
    %v2170 = vpop.f32.mrb[0].mxu0
    %v2171 = vadd.f32 0.0, %v2170
    %v2172 = vpop.f32.mrb[0].mxu0
    %2173 = vmatprep.mubr.f32.mxu0 0.0
    %2174 = vmatmul.mubr.f32.gmra.mrb[0].mxu0 %v2040
    %v2175 = vpop.f32.mrb[0].mxu0
    %v2176 = vadd.f32 0.0, %v2175
    %v2177 = vpop.f32.mrb[0].mxu0
    %2178 = vmatprep.mubr.f32.mxu0 0.0
    %2179 = vmatmul.mubr.f32.gmra.mrb[0].mxu0 %v2043
    %v2180 = vpop.f32.mrb[0].mxu0
    %v2181 = vadd.f32 0.0, %v2180
    %v2182 = vpop.f32.mrb[0].mxu0
    %2183 = vmatprep.mubr.f32.mxu0 0.0
    %2184 = vmatmul.mubr.f32.gmra.mrb[0].mxu0 %v2046
    %v2185 = vpop.f32.mrb[0].mxu0
    %v2186 = vadd.f32 0.0, %v2185
    %v2187 = vpop.f32.mrb[0].mxu0
    %2188 = vmatprep.mubr.f32.mxu0 0.0
    %2189 = vmatmul.mubr.f32.gmra.mrb[0].mxu0 %v2049
    %v2190 = vpop.f32.mrb[0].mxu0
    %v2191 = vadd.f32 0.0, %v2190
    %v2192 = vpop.f32.mrb[0].mxu0
    %2193 = vmatprep.mubr.f32.mxu0 0.0
    %2194 = vmatmul.mubr.f32.gmra.mrb[0].mxu0 %v2052
    %v2195 = vpop.f32.mrb[0].mxu0
    %v2196 = vadd.f32 0.0, %v2195
    %v2197 = vpop.f32.mrb[0].mxu0
    %2198 = vdwg.mxu0
    %v2199 = vmul.f32 %v1888, %v1888
    %v2200 = vmul.f32 %v1893, %v1893
    %v2201 = vmul.f32 %v1898, %v1898
    %v2202 = vmul.f32 %v1903, %v1903
    %v2203 = vmul.f32 %v1908, %v1908
    %v2204 = vmul.f32 %v1913, %v1913
    %v2205 = vmul.f32 %v1918, %v1918
    %v2206 = vmul.f32 %v1923, %v1923
    %v2207 = vmul.f32 %v1928, %v1928
    %v2208 = vmul.f32 %v1933, %v1933
    %v2209 = vmul.f32 %v1938, %v1938
    %v2210 = vmul.f32 %v1943, %v1943
    %v2211 = vmul.f32 %v1948, %v1948
    %v2212 = vmul.f32 %v1953, %v1953
    %v2213 = vmul.f32 %v1958, %v1958
    %v2214 = vmul.f32 %v1963, %v1963
    %v2215 = vsub.f32 %v2121, %v2199
    %v2216 = vsub.f32 %v2126, %v2200
    %v2217 = vsub.f32 %v2131, %v2201
    %v2218 = vsub.f32 %v2136, %v2202
    %v2219 = vsub.f32 %v2141, %v2203
    %v2220 = vsub.f32 %v2146, %v2204
    %v2221 = vsub.f32 %v2151, %v2205
    %v2222 = vsub.f32 %v2156, %v2206
    %v2223 = vsub.f32 %v2161, %v2207
    %v2224 = vsub.f32 %v2166, %v2208
    %v2225 = vsub.f32 %v2171, %v2209
    %v2226 = vsub.f32 %v2176, %v2210
    %v2227 = vsub.f32 %v2181, %v2211
    %v2228 = vsub.f32 %v2186, %v2212
    %v2229 = vsub.f32 %v2191, %v2213
    %v2230 = vsub.f32 %v2196, %v2214
    %v2231 = vmax.f32 %v2215, 0.0
    %v2232 = vmax.f32 %v2216, 0.0
    %v2233 = vmax.f32 %v2217, 0.0
    %v2234 = vmax.f32 %v2218, 0.0
    %v2235 = vmax.f32 %v2219, 0.0
    %v2236 = vmax.f32 %v2220, 0.0
    %v2237 = vmax.f32 %v2221, 0.0
    %v2238 = vmax.f32 %v2222, 0.0
    %v2239 = vmax.f32 %v2223, 0.0
    %v2240 = vmax.f32 %v2224, 0.0
    %v2241 = vmax.f32 %v2225, 0.0
    %v2242 = vmax.f32 %v2226, 0.0
    %v2243 = vmax.f32 %v2227, 0.0
    %v2244 = vmax.f32 %v2228, 0.0
    %v2245 = vmax.f32 %v2229, 0.0
    %v2246 = vmax.f32 %v2230, 0.0
    %v2247 = vadd.f32 %v2231, 1e-08
    %v2248 = vadd.f32 %v2232, 1e-08
    %v2249 = vadd.f32 %v2233, 1e-08
    %v2250 = vadd.f32 %v2234, 1e-08
    %v2251 = vadd.f32 %v2235, 1e-08
    %v2252 = vadd.f32 %v2236, 1e-08
    %v2253 = vadd.f32 %v2237, 1e-08
    %v2254 = vadd.f32 %v2238, 1e-08
    %v2255 = vadd.f32 %v2239, 1e-08
    %v2256 = vadd.f32 %v2240, 1e-08
    %v2257 = vadd.f32 %v2241, 1e-08
    %v2258 = vadd.f32 %v2242, 1e-08
    %v2259 = vadd.f32 %v2243, 1e-08
    %v2260 = vadd.f32 %v2244, 1e-08
    %v2261 = vadd.f32 %v2245, 1e-08
    %v2262 = vadd.f32 %v2246, 1e-08
    %v2263 = vrsqrt.pop %v2247
    %v2264 = vmul.f32 %v2247, %v2263
    %vm2265 = vcmp.eq.f32.partialorder %v2247, inf
    %v2266 = vsel %vm2265, %v2247, %v2264
    %vm2267 = vcmp.eq.f32.partialorder %v2247, 0.0
    %v2268 = vand.u32 %v2247, 2147483648
    %v2269 = vsel %vm2267, %v2268, %v2266
    %v2270 = vrsqrt.pop %v2248
    %v2271 = vmul.f32 %v2248, %v2270
    %vm2272 = vcmp.eq.f32.partialorder %v2248, inf
    %v2273 = vsel %vm2272, %v2248, %v2271
    %vm2274 = vcmp.eq.f32.partialorder %v2248, 0.0
    %v2275 = vand.u32 %v2248, 2147483648
    %v2276 = vsel %vm2274, %v2275, %v2273
    %v2277 = vrsqrt.pop %v2249
    %v2278 = vmul.f32 %v2249, %v2277
    %vm2279 = vcmp.eq.f32.partialorder %v2249, inf
    %v2280 = vsel %vm2279, %v2249, %v2278
    %vm2281 = vcmp.eq.f32.partialorder %v2249, 0.0
    %v2282 = vand.u32 %v2249, 2147483648
    %v2283 = vsel %vm2281, %v2282, %v2280
    %v2284 = vrsqrt.pop %v2250
    %v2285 = vmul.f32 %v2250, %v2284
    %vm2286 = vcmp.eq.f32.partialorder %v2250, inf
    %v2287 = vsel %vm2286, %v2250, %v2285
    %vm2288 = vcmp.eq.f32.partialorder %v2250, 0.0
    %v2289 = vand.u32 %v2250, 2147483648
    %v2290 = vsel %vm2288, %v2289, %v2287
    %v2291 = vrsqrt.pop %v2251
    %v2292 = vmul.f32 %v2251, %v2291
    %vm2293 = vcmp.eq.f32.partialorder %v2251, inf
    %v2294 = vsel %vm2293, %v2251, %v2292
    %vm2295 = vcmp.eq.f32.partialorder %v2251, 0.0
    %v2296 = vand.u32 %v2251, 2147483648
    %v2297 = vsel %vm2295, %v2296, %v2294
    %v2298 = vrsqrt.pop %v2252
    %v2299 = vmul.f32 %v2252, %v2298
    %vm2300 = vcmp.eq.f32.partialorder %v2252, inf
    %v2301 = vsel %vm2300, %v2252, %v2299
    %vm2302 = vcmp.eq.f32.partialorder %v2252, 0.0
    %v2303 = vand.u32 %v2252, 2147483648
    %v2304 = vsel %vm2302, %v2303, %v2301
    %v2305 = vrsqrt.pop %v2253
    %v2306 = vmul.f32 %v2253, %v2305
    %vm2307 = vcmp.eq.f32.partialorder %v2253, inf
    %v2308 = vsel %vm2307, %v2253, %v2306
    %vm2309 = vcmp.eq.f32.partialorder %v2253, 0.0
    %v2310 = vand.u32 %v2253, 2147483648
    %v2311 = vsel %vm2309, %v2310, %v2308
    %v2312 = vrsqrt.pop %v2254
    %v2313 = vmul.f32 %v2254, %v2312
    %vm2314 = vcmp.eq.f32.partialorder %v2254, inf
    %v2315 = vsel %vm2314, %v2254, %v2313
    %vm2316 = vcmp.eq.f32.partialorder %v2254, 0.0
    %v2317 = vand.u32 %v2254, 2147483648
    %v2318 = vsel %vm2316, %v2317, %v2315
    %v2319 = vrsqrt.pop %v2255
    %v2320 = vmul.f32 %v2255, %v2319
    %vm2321 = vcmp.eq.f32.partialorder %v2255, inf
    %v2322 = vsel %vm2321, %v2255, %v2320
    %vm2323 = vcmp.eq.f32.partialorder %v2255, 0.0
    %v2324 = vand.u32 %v2255, 2147483648
    %v2325 = vsel %vm2323, %v2324, %v2322
    %v2326 = vrsqrt.pop %v2256
    %v2327 = vmul.f32 %v2256, %v2326
    %vm2328 = vcmp.eq.f32.partialorder %v2256, inf
    %v2329 = vsel %vm2328, %v2256, %v2327
    %vm2330 = vcmp.eq.f32.partialorder %v2256, 0.0
    %v2331 = vand.u32 %v2256, 2147483648
    %v2332 = vsel %vm2330, %v2331, %v2329
    %v2333 = vrsqrt.pop %v2257
    %v2334 = vmul.f32 %v2257, %v2333
    %vm2335 = vcmp.eq.f32.partialorder %v2257, inf
    %v2336 = vsel %vm2335, %v2257, %v2334
    %vm2337 = vcmp.eq.f32.partialorder %v2257, 0.0
    %v2338 = vand.u32 %v2257, 2147483648
    %v2339 = vsel %vm2337, %v2338, %v2336
    %v2340 = vrsqrt.pop %v2258
    %v2341 = vmul.f32 %v2258, %v2340
    %vm2342 = vcmp.eq.f32.partialorder %v2258, inf
    %v2343 = vsel %vm2342, %v2258, %v2341
    %vm2344 = vcmp.eq.f32.partialorder %v2258, 0.0
    %v2345 = vand.u32 %v2258, 2147483648
    %v2346 = vsel %vm2344, %v2345, %v2343
    %v2347 = vrsqrt.pop %v2259
    %v2348 = vmul.f32 %v2259, %v2347
    %vm2349 = vcmp.eq.f32.partialorder %v2259, inf
    %v2350 = vsel %vm2349, %v2259, %v2348
    %vm2351 = vcmp.eq.f32.partialorder %v2259, 0.0
    %v2352 = vand.u32 %v2259, 2147483648
    %v2353 = vsel %vm2351, %v2352, %v2350
    %v2354 = vrsqrt.pop %v2260
    %v2355 = vmul.f32 %v2260, %v2354
    %vm2356 = vcmp.eq.f32.partialorder %v2260, inf
    %v2357 = vsel %vm2356, %v2260, %v2355
    %vm2358 = vcmp.eq.f32.partialorder %v2260, 0.0
    %v2359 = vand.u32 %v2260, 2147483648
    %v2360 = vsel %vm2358, %v2359, %v2357
    %v2361 = vrsqrt.pop %v2261
    %v2362 = vmul.f32 %v2261, %v2361
    %vm2363 = vcmp.eq.f32.partialorder %v2261, inf
    %v2364 = vsel %vm2363, %v2261, %v2362
    %vm2365 = vcmp.eq.f32.partialorder %v2261, 0.0
    %v2366 = vand.u32 %v2261, 2147483648
    %v2367 = vsel %vm2365, %v2366, %v2364
    %v2368 = vrsqrt.pop %v2262
    %v2369 = vmul.f32 %v2262, %v2368
    %vm2370 = vcmp.eq.f32.partialorder %v2262, inf
    %v2371 = vsel %vm2370, %v2262, %v2369
    %vm2372 = vcmp.eq.f32.partialorder %v2262, 0.0
    %v2373 = vand.u32 %v2262, 2147483648
    %v2374 = vsel %vm2372, %v2373, %v2371
    %v2375 = vmul.f32 %v1888, 0.17677669
    %v2376 = vmul.f32 %v1893, 0.17677669
    %v2377 = vmul.f32 %v1898, 0.17677669
    %v2378 = vmul.f32 %v1903, 0.17677669
    %v2379 = vmul.f32 %v1908, 0.17677669
    %v2380 = vmul.f32 %v1913, 0.17677669
    %v2381 = vmul.f32 %v1918, 0.17677669
    %v2382 = vmul.f32 %v1923, 0.17677669
    %v2383 = vmul.f32 %v1928, 0.17677669
    %v2384 = vmul.f32 %v1933, 0.17677669
    %v2385 = vmul.f32 %v1938, 0.17677669
    %v2386 = vmul.f32 %v1943, 0.17677669
    %v2387 = vmul.f32 %v1948, 0.17677669
    %v2388 = vmul.f32 %v1953, 0.17677669
    %v2389 = vmul.f32 %v1958, 0.17677669
    %v2390 = vmul.f32 %v1963, 0.17677669
    %v2391 = vmul.f32 %v2269, 0.17677669
    %v2392 = vmul.f32 %v2276, 0.17677669
    %v2393 = vmul.f32 %v2283, 0.17677669
    %v2394 = vmul.f32 %v2290, 0.17677669
    %v2395 = vmul.f32 %v2297, 0.17677669
    %v2396 = vmul.f32 %v2304, 0.17677669
    %v2397 = vmul.f32 %v2311, 0.17677669
    %v2398 = vmul.f32 %v2318, 0.17677669
    %v2399 = vmul.f32 %v2325, 0.17677669
    %v2400 = vmul.f32 %v2332, 0.17677669
    %v2401 = vmul.f32 %v2339, 0.17677669
    %v2402 = vmul.f32 %v2346, 0.17677669
    %v2403 = vmul.f32 %v2353, 0.17677669
    %v2404 = vmul.f32 %v2360, 0.17677669
    %v2405 = vmul.f32 %v2367, 0.17677669
    %v2406 = vmul.f32 %v2374, 0.17677669
    %v2407 = vadd.f32 %v2375, %v2391
    %v2408 = vadd.f32 %v2376, %v2392
    %v2409 = vadd.f32 %v2377, %v2393
    %v2410 = vadd.f32 %v2378, %v2394
    %v2411 = vadd.f32 %v2379, %v2395
    %v2412 = vadd.f32 %v2380, %v2396
    %v2413 = vadd.f32 %v2381, %v2397
    %v2414 = vadd.f32 %v2382, %v2398
    %v2415 = vadd.f32 %v2383, %v2399
    %v2416 = vadd.f32 %v2384, %v2400
    %v2417 = vadd.f32 %v2385, %v2401
    %v2418 = vadd.f32 %v2386, %v2402
    %v2419 = vadd.f32 %v2387, %v2403
    %v2420 = vadd.f32 %v2388, %v2404
    %v2421 = vadd.f32 %v2389, %v2405
    %v2422 = vadd.f32 %v2390, %v2406
    %2423 = vmax.xlane.f32.xlu0 %v2407
    %v2424 = vpop.xlane.xlu0 %2423
    %2425 = vmax.xlane.f32.xlu0 %v2408
    %v2426 = vpop.xlane.xlu0 %2425
    %2427 = vmax.xlane.f32.xlu0 %v2409
    %v2428 = vpop.xlane.xlu0 %2427
    %2429 = vmax.xlane.f32.xlu0 %v2410
    %v2430 = vpop.xlane.xlu0 %2429
    %2431 = vmax.xlane.f32.xlu0 %v2411
    %v2432 = vpop.xlane.xlu0 %2431
    %2433 = vmax.xlane.f32.xlu0 %v2412
    %v2434 = vpop.xlane.xlu0 %2433
    %2435 = vmax.xlane.f32.xlu0 %v2413
    %v2436 = vpop.xlane.xlu0 %2435
    %2437 = vmax.xlane.f32.xlu0 %v2414
    %v2438 = vpop.xlane.xlu0 %2437
    %2439 = vmax.xlane.f32.xlu0 %v2415
    %v2440 = vpop.xlane.xlu0 %2439
    %2441 = vmax.xlane.f32.xlu0 %v2416
    %v2442 = vpop.xlane.xlu0 %2441
    %2443 = vmax.xlane.f32.xlu0 %v2417
    %v2444 = vpop.xlane.xlu0 %2443
    %2445 = vmax.xlane.f32.xlu0 %v2418
    %v2446 = vpop.xlane.xlu0 %2445
    %2447 = vmax.xlane.f32.xlu0 %v2419
    %v2448 = vpop.xlane.xlu0 %2447
    %2449 = vmax.xlane.f32.xlu0 %v2420
    %v2450 = vpop.xlane.xlu0 %2449
    %2451 = vmax.xlane.f32.xlu0 %v2421
    %v2452 = vpop.xlane.xlu0 %2451
    %2453 = vmax.xlane.f32.xlu0 %v2422
    %v2454 = vpop.xlane.xlu0 %2453
    %v2455 = vsub.f32 %v2407, %v2424
    %v2456 = vsub.f32 %v2408, %v2426
    %v2457 = vsub.f32 %v2409, %v2428
    %v2458 = vsub.f32 %v2410, %v2430
    %v2459 = vsub.f32 %v2411, %v2432
    %v2460 = vsub.f32 %v2412, %v2434
    %v2461 = vsub.f32 %v2413, %v2436
    %v2462 = vsub.f32 %v2414, %v2438
    %v2463 = vsub.f32 %v2415, %v2440
    %v2464 = vsub.f32 %v2416, %v2442
    %v2465 = vsub.f32 %v2417, %v2444
    %v2466 = vsub.f32 %v2418, %v2446
    %v2467 = vsub.f32 %v2419, %v2448
    %v2468 = vsub.f32 %v2420, %v2450
    %v2469 = vsub.f32 %v2421, %v2452
    %v2470 = vsub.f32 %v2422, %v2454
    %v2471 = vmul.f32 %v2455, 1.442695
    %v2472 = vpow.pop %v2471
    %v2473 = vmul.f32 %v2456, 1.442695
    %v2474 = vpow.pop %v2473
    %v2475 = vmul.f32 %v2457, 1.442695
    %v2476 = vpow.pop %v2475
    %v2477 = vmul.f32 %v2458, 1.442695
    %v2478 = vpow.pop %v2477
    %v2479 = vmul.f32 %v2459, 1.442695
    %v2480 = vpow.pop %v2479
    %v2481 = vmul.f32 %v2460, 1.442695
    %v2482 = vpow.pop %v2481
    %v2483 = vmul.f32 %v2461, 1.442695
    %v2484 = vpow.pop %v2483
    %v2485 = vmul.f32 %v2462, 1.442695
    %v2486 = vpow.pop %v2485
    %v2487 = vmul.f32 %v2463, 1.442695
    %v2488 = vpow.pop %v2487
    %v2489 = vmul.f32 %v2464, 1.442695
    %v2490 = vpow.pop %v2489
    %v2491 = vmul.f32 %v2465, 1.442695
    %v2492 = vpow.pop %v2491
    %v2493 = vmul.f32 %v2466, 1.442695
    %v2494 = vpow.pop %v2493
    %v2495 = vmul.f32 %v2467, 1.442695
    %v2496 = vpow.pop %v2495
    %v2497 = vmul.f32 %v2468, 1.442695
    %v2498 = vpow.pop %v2497
    %v2499 = vmul.f32 %v2469, 1.442695
    %v2500 = vpow.pop %v2499
    %v2501 = vmul.f32 %v2470, 1.442695
    %v2502 = vpow.pop %v2501
    %2503 = vadd.xlane.f32.xlu0 %v2472
    %v2504 = vpop.xlane.xlu0 %2503
    %2505 = vadd.xlane.f32.xlu0 %v2474
    %v2506 = vpop.xlane.xlu0 %2505
    %2507 = vadd.xlane.f32.xlu0 %v2476
    %v2508 = vpop.xlane.xlu0 %2507
    %2509 = vadd.xlane.f32.xlu0 %v2478
    %v2510 = vpop.xlane.xlu0 %2509
    %2511 = vadd.xlane.f32.xlu0 %v2480
    %v2512 = vpop.xlane.xlu0 %2511
    %2513 = vadd.xlane.f32.xlu0 %v2482
    %v2514 = vpop.xlane.xlu0 %2513
    %2515 = vadd.xlane.f32.xlu0 %v2484
    %v2516 = vpop.xlane.xlu0 %2515
    %2517 = vadd.xlane.f32.xlu0 %v2486
    %v2518 = vpop.xlane.xlu0 %2517
    %2519 = vadd.xlane.f32.xlu0 %v2488
    %v2520 = vpop.xlane.xlu0 %2519
    %2521 = vadd.xlane.f32.xlu0 %v2490
    %v2522 = vpop.xlane.xlu0 %2521
    %2523 = vadd.xlane.f32.xlu0 %v2492
    %v2524 = vpop.xlane.xlu0 %2523
    %2525 = vadd.xlane.f32.xlu0 %v2494
    %v2526 = vpop.xlane.xlu0 %2525
    %2527 = vadd.xlane.f32.xlu0 %v2496
    %v2528 = vpop.xlane.xlu0 %2527
    %2529 = vadd.xlane.f32.xlu0 %v2498
    %v2530 = vpop.xlane.xlu0 %2529
    %2531 = vadd.xlane.f32.xlu0 %v2500
    %v2532 = vpop.xlane.xlu0 %2531
    %2533 = vadd.xlane.f32.xlu0 %v2502
    %v2534 = vpop.xlane.xlu0 %2533
    %v2535 = vrcp.pop %v2504
    %v2536 = vrcp.pop %v2506
    %v2537 = vrcp.pop %v2508
    %v2538 = vrcp.pop %v2510
    %v2539 = vrcp.pop %v2512
    %v2540 = vrcp.pop %v2514
    %v2541 = vrcp.pop %v2516
    %v2542 = vrcp.pop %v2518
    %v2543 = vrcp.pop %v2520
    %v2544 = vrcp.pop %v2522
    %v2545 = vrcp.pop %v2524
    %v2546 = vrcp.pop %v2526
    %v2547 = vrcp.pop %v2528
    %v2548 = vrcp.pop %v2530
    %v2549 = vrcp.pop %v2532
    %v2550 = vrcp.pop %v2534
    %v2551 = vmul.f32 %v2472, %v2535
    %v2552 = vmul.f32 %v2474, %v2536
    %v2553 = vmul.f32 %v2476, %v2537
    %v2554 = vmul.f32 %v2478, %v2538
    %v2555 = vmul.f32 %v2480, %v2539
    %v2556 = vmul.f32 %v2482, %v2540
    %v2557 = vmul.f32 %v2484, %v2541
    %v2558 = vmul.f32 %v2486, %v2542
    %v2559 = vmul.f32 %v2488, %v2543
    %v2560 = vmul.f32 %v2490, %v2544
    %v2561 = vmul.f32 %v2492, %v2545
    %v2562 = vmul.f32 %v2494, %v2546
    %v2563 = vmul.f32 %v2496, %v2547
    %v2564 = vmul.f32 %v2498, %v2548
    %v2565 = vmul.f32 %v2500, %v2549
    %v2566 = vmul.f32 %v2502, %v2550
    %v2567 = vpack.c.bf16 %v2552, %v2551
    %v2568 = vpack.c.bf16 %v2554, %v2553
    %v2569 = vpack.c.bf16 %v2556, %v2555
    %v2570 = vpack.c.bf16 %v2558, %v2557
    %v2571 = vpack.c.bf16 %v2560, %v2559
    %v2572 = vpack.c.bf16 %v2562, %v2561
    %v2573 = vpack.c.bf16 %v2564, %v2563
    %v2574 = vpack.c.bf16 %v2566, %v2565
    %v2583 = vunpack.c.l.b16 %v2567
    %v2584 = vunpack.c.h.b16 %v2567
    %v2585 = vunpack.c.l.b16 %v2568
    %v2586 = vunpack.c.h.b16 %v2568
    %v2587 = vunpack.c.l.b16 %v2569
    %v2588 = vunpack.c.h.b16 %v2569
    %v2589 = vunpack.c.l.b16 %v2570
    %v2590 = vunpack.c.h.b16 %v2570
    %v2591 = vunpack.c.l.b16 %v2571
    %v2592 = vunpack.c.h.b16 %v2571
    %v2593 = vunpack.c.l.b16 %v2572
    %v2594 = vunpack.c.h.b16 %v2572
    %v2595 = vunpack.c.l.b16 %v2573
    %v2596 = vunpack.c.h.b16 %v2573
    %v2597 = vunpack.c.l.b16 %v2574
    %v2598 = vunpack.c.h.b16 %v2574
    %v2599 = vpack.c.b16 %v2583, %v2583
    %v2600 = vpack.c.b16 %v2584, %v2584
    %v2601 = vpack.c.b16 %v2585, %v2585
    %v2602 = vpack.c.b16 %v2586, %v2586
    %v2603 = vpack.c.b16 %v2587, %v2587
    %v2604 = vpack.c.b16 %v2588, %v2588
    %v2605 = vpack.c.b16 %v2589, %v2589
    %v2606 = vpack.c.b16 %v2590, %v2590
    %v2607 = vpack.c.b16 %v2591, %v2591
    %v2608 = vpack.c.b16 %v2592, %v2592
    %v2609 = vpack.c.b16 %v2593, %v2593
    %v2610 = vpack.c.b16 %v2594, %v2594
    %v2611 = vpack.c.b16 %v2595, %v2595
    %v2612 = vpack.c.b16 %v2596, %v2596
    %v2613 = vpack.c.b16 %v2597, %v2597
    %v2614 = vpack.c.b16 %v2598, %v2598
    %s2631 = scalar_lea.vmem [#allocation6], 192
    %2632 = vst [vmem:[%s2631] sm:$0xf] %v2599
    %2633 = vst [vmem:[%s2631 + $0x4] sm:$0xf] %v2600
    %2634 = vst [vmem:[%s2631 + $0x8] sm:$0xf] %v2601
    %2635 = vst [vmem:[%s2631 + $0xc] sm:$0xf] %v2602
    %2636 = vst [vmem:[%s2631 + $0x10] sm:$0xf] %v2603
    %2637 = vst [vmem:[%s2631 + $0x14] sm:$0xf] %v2604
    %2638 = vst [vmem:[%s2631 + $0x18] sm:$0xf] %v2605
    %2639 = vst [vmem:[%s2631 + $0x1c] sm:$0xf] %v2606
    %2640 = vst [vmem:[%s2631 + $0x20] sm:$0xf] %v2607
    %2641 = vst [vmem:[%s2631 + $0x24] sm:$0xf] %v2608
    %2642 = vst [vmem:[%s2631 + $0x28] sm:$0xf] %v2609
    %2643 = vst [vmem:[%s2631 + $0x2c] sm:$0xf] %v2610
    %2644 = vst [vmem:[%s2631 + $0x30] sm:$0xf] %v2611
    %2645 = vst [vmem:[%s2631 + $0x34] sm:$0xf] %v2612
    %2646 = vst [vmem:[%s2631 + $0x38] sm:$0xf] %v2613
    %2647 = vst [vmem:[%s2631 + $0x3c] sm:$0xf] %v2614
    %v2648 = vpack.c.bf16 %v774, %v774
    %2649 = vmatprep.subr.bf16.mxu0 0
    %2650 = vmatpush1.bf16.xpose.msra.mxu0 %v2567
    %2651 = vmatprep.subr.bf16.mxu0 0
    %2652 = vmatpush1.bf16.xpose.msra.mxu0 %v2568
    %2653 = vmatprep.subr.bf16.mxu0 0
    %2654 = vmatpush1.bf16.xpose.msra.mxu0 %v2569
    %2655 = vmatprep.subr.bf16.mxu0 0
    %2656 = vmatpush1.bf16.xpose.msra.mxu0 %v2570
    %2657 = vmatprep.subr.bf16.mxu0 0
    %2658 = vmatpush1.bf16.xpose.msra.mxu0 %v2571
    %2659 = vmatprep.subr.bf16.mxu0 0
    %2660 = vmatpush1.bf16.xpose.msra.mxu0 %v2572
    %2661 = vmatprep.subr.bf16.mxu0 0
    %2662 = vmatpush1.bf16.xpose.msra.mxu0 %v2573
    %2663 = vmatprep.subr.bf16.mxu0 0
    %2664 = vmatpush1.bf16.xpose.msra.mxu0 %v2574
    %2665 = vmatprep.subr.bf16.mxu0 0
    %2666 = vmatpush1.bf16.xpose.msra.mxu0 0
    %2667 = vmatprep.subr.bf16.mxu0 0
    %2668 = vmatpush1.bf16.xpose.msra.mxu0 0
    %2669 = vmatprep.subr.bf16.mxu0 0
    %2670 = vmatpush1.bf16.xpose.msra.mxu0 0
    %2671 = vmatprep.subr.bf16.mxu0 0
    %2672 = vmatpush1.bf16.xpose.msra.mxu0 0
    %2673 = vmatprep.subr.bf16.mxu0 0
    %2674 = vmatpush1.bf16.xpose.msra.mxu0 0
    %2675 = vmatprep.subr.bf16.mxu0 0
    %2676 = vmatpush1.bf16.xpose.msra.mxu0 0
    %2677 = vmatprep.subr.bf16.mxu0 0
    %2678 = vmatpush1.bf16.xpose.msra.mxu0 0
    %2679 = vmatprep.subr.bf16.mxu0 0
    %2680 = vmatpush1.bf16.xpose.msra.mxu0 0
    %2681 = vmatprep.mubr.bf16.mxu0 0
    %2682 = vmatmul.mubr.bf16.gmra.mrb[0].mxu0 %v2648
    %v2683 = vpop.f32.mrb[0].mxu0
    %v2684 = vadd.f32 0.0, %v2683
    %v2685 = vpop.f32.mrb[0].mxu0
    %v2686 = vpop.f32.mrb[0].mxu0
    %v2687 = vpop.f32.mrb[0].mxu0
    %2688 = vdwg.mxu0
    %2689 = vxpose.xlu0.b32.start [1/16] %v331, 128
    %2690 = vxpose.xlu0.b32.cont [2/16] 0.0, 128
    %2691 = vxpose.xlu0.b32.cont [3/16] 0.0, 128
    %2692 = vxpose.xlu0.b32.cont [4/16] 0.0, 128
    %2693 = vxpose.xlu0.b32.cont [5/16] 0.0, 128
    %2694 = vxpose.xlu0.b32.cont [6/16] 0.0, 128
    %2695 = vxpose.xlu0.b32.cont [7/16] 0.0, 128
    %2696 = vxpose.xlu0.b32.cont [8/16] 0.0, 128
    %2697 = vxpose.xlu0.b32.cont [9/16] 0.0, 128
    %2698 = vxpose.xlu0.b32.cont [10/16] 0.0, 128
    %2699 = vxpose.xlu0.b32.cont [11/16] 0.0, 128
    %2700 = vxpose.xlu0.b32.cont [12/16] 0.0, 128
    %2701 = vxpose.xlu0.b32.cont [13/16] 0.0, 128
    %2702 = vxpose.xlu0.b32.cont [14/16] 0.0, 128
    %2703 = vxpose.xlu0.b32.cont [15/16] 0.0, 128
    %2704 = vxpose.xlu0.b32.end [16/16] 0.0, 128
    %v2705 = vpop.trf.xlu0
    %v2706 = vpop.trf.xlu0
    %v2707 = vpop.trf.xlu0
    %v2708 = vpop.trf.xlu0
    %v2709 = vpop.trf.xlu0
    %v2710 = vpop.trf.xlu0
    %v2711 = vpop.trf.xlu0
    %v2712 = vpop.trf.xlu0
    %v2713 = vpop.trf.xlu0
    %v2714 = vpop.trf.xlu0
    %v2715 = vpop.trf.xlu0
    %v2716 = vpop.trf.xlu0
    %v2717 = vpop.trf.xlu0
    %v2718 = vpop.trf.xlu0
    %v2719 = vpop.trf.xlu0
    %v2720 = vpop.trf.xlu0
    %v2722 = vsel %vm825, %v2705, 0
    %v2725 = vsel %vm825, %v2706, 0
    %v2728 = vsel %vm825, %v2707, 0
    %v2731 = vsel %vm825, %v2708, 0
    %v2734 = vsel %vm825, %v2709, 0
    %v2737 = vsel %vm825, %v2710, 0
    %v2740 = vsel %vm825, %v2711, 0
    %v2743 = vsel %vm825, %v2712, 0
    %v2746 = vsel %vm825, %v2713, 0
    %v2749 = vsel %vm825, %v2714, 0
    %v2752 = vsel %vm825, %v2715, 0
    %v2755 = vsel %vm825, %v2716, 0
    %v2758 = vsel %vm825, %v2717, 0
    %v2761 = vsel %vm825, %v2718, 0
    %v2764 = vsel %vm825, %v2719, 0
    %v2767 = vsel %vm825, %v2720, 0
    %2769 = vmatprep.subr.mxu0 0.0
    %2770 = vmatpush1.msra.mxu0 %v555
    %2771 = vmatprep.subr.mxu0 0.0
    %2772 = vmatpush1.msra.mxu0 0.0
    %2773 = vmatprep.subr.mxu0 0.0
    %2774 = vmatpush1.msra.mxu0 0.0
    %2775 = vmatprep.subr.mxu0 0.0
    %2776 = vmatpush1.msra.mxu0 0.0
    %2777 = vmatprep.subr.mxu0 0.0
    %2778 = vmatpush1.msra.mxu0 0.0
    %2779 = vmatprep.subr.mxu0 0.0
    %2780 = vmatpush1.msra.mxu0 0.0
    %2781 = vmatprep.subr.mxu0 0.0
    %2782 = vmatpush1.msra.mxu0 0.0
    %2783 = vmatprep.subr.mxu0 0.0
    %2784 = vmatpush1.msra.mxu0 0.0
    %2785 = vmatprep.subr.mxu0 0.0
    %2786 = vmatpush1.msra.mxu0 0.0
    %2787 = vmatprep.subr.mxu0 0.0
    %2788 = vmatpush1.msra.mxu0 0.0
    %2789 = vmatprep.subr.mxu0 0.0
    %2790 = vmatpush1.msra.mxu0 0.0
    %2791 = vmatprep.subr.mxu0 0.0
    %2792 = vmatpush1.msra.mxu0 0.0
    %2793 = vmatprep.subr.mxu0 0.0
    %2794 = vmatpush1.msra.mxu0 0.0
    %2795 = vmatprep.subr.mxu0 0.0
    %2796 = vmatpush1.msra.mxu0 0.0
    %2797 = vmatprep.subr.mxu0 0.0
    %2798 = vmatpush1.msra.mxu0 0.0
    %2799 = vmatprep.subr.mxu0 0.0
    %2800 = vmatpush1.msra.mxu0 0.0
    %2801 = vmatprep.subr.mxu0 0.0
    %2802 = vmatpush1.msra.mxu0 0.0
    %2803 = vmatprep.subr.mxu0 0.0
    %2804 = vmatpush1.msra.mxu0 0.0
    %2805 = vmatprep.subr.mxu0 0.0
    %2806 = vmatpush1.msra.mxu0 0.0
    %2807 = vmatprep.subr.mxu0 0.0
    %2808 = vmatpush1.msra.mxu0 0.0
    %2809 = vmatprep.subr.mxu0 0.0
    %2810 = vmatpush1.msra.mxu0 0.0
    %2811 = vmatprep.subr.mxu0 0.0
    %2812 = vmatpush1.msra.mxu0 0.0
    %2813 = vmatprep.subr.mxu0 0.0
    %2814 = vmatpush1.msra.mxu0 0.0
    %2815 = vmatprep.subr.mxu0 0.0
    %2816 = vmatpush1.msra.mxu0 0.0
    %2817 = vmatprep.subr.mxu0 0.0
    %2818 = vmatpush1.msra.mxu0 0.0
    %2819 = vmatprep.subr.mxu0 0.0
    %2820 = vmatpush1.msra.mxu0 0.0
    %2821 = vmatprep.subr.mxu0 0.0
    %2822 = vmatpush1.msra.mxu0 0.0
    %2823 = vmatprep.subr.mxu0 0.0
    %2824 = vmatpush1.msra.mxu0 0.0
    %2825 = vmatprep.subr.mxu0 0.0
    %2826 = vmatpush1.msra.mxu0 0.0
    %2827 = vmatprep.subr.mxu0 0.0
    %2828 = vmatpush1.msra.mxu0 0.0
    %2829 = vmatprep.subr.mxu0 0.0
    %2830 = vmatpush1.msra.mxu0 0.0
    %2831 = vmatprep.subr.mxu0 0.0
    %2832 = vmatpush1.msra.mxu0 0.0
    %2833 = vmatprep.mubr.f32.mxu0 0.0
    %2834 = vmatmul.mubr.f32.gmra.mrb[0].mxu0 %v2722
    %v2835 = vpop.f32.mrb[0].mxu0
    %v2836 = vadd.f32 0.0, %v2835
    %v2837 = vpop.f32.mrb[0].mxu0
    %2838 = vmatprep.mubr.f32.mxu0 0.0
    %2839 = vmatmul.mubr.f32.gmra.mrb[0].mxu0 %v2725
    %v2840 = vpop.f32.mrb[0].mxu0
    %v2841 = vadd.f32 0.0, %v2840
    %v2842 = vpop.f32.mrb[0].mxu0
    %2843 = vmatprep.mubr.f32.mxu0 0.0
    %2844 = vmatmul.mubr.f32.gmra.mrb[0].mxu0 %v2728
    %v2845 = vpop.f32.mrb[0].mxu0
    %v2846 = vadd.f32 0.0, %v2845
    %v2847 = vpop.f32.mrb[0].mxu0
    %2848 = vmatprep.mubr.f32.mxu0 0.0
    %2849 = vmatmul.mubr.f32.gmra.mrb[0].mxu0 %v2731
    %v2850 = vpop.f32.mrb[0].mxu0
    %v2851 = vadd.f32 0.0, %v2850
    %v2852 = vpop.f32.mrb[0].mxu0
    %2853 = vmatprep.mubr.f32.mxu0 0.0
    %2854 = vmatmul.mubr.f32.gmra.mrb[0].mxu0 %v2734
    %v2855 = vpop.f32.mrb[0].mxu0
    %v2856 = vadd.f32 0.0, %v2855
    %v2857 = vpop.f32.mrb[0].mxu0
    %2858 = vmatprep.mubr.f32.mxu0 0.0
    %2859 = vmatmul.mubr.f32.gmra.mrb[0].mxu0 %v2737
    %v2860 = vpop.f32.mrb[0].mxu0
    %v2861 = vadd.f32 0.0, %v2860
    %v2862 = vpop.f32.mrb[0].mxu0
    %2863 = vmatprep.mubr.f32.mxu0 0.0
    %2864 = vmatmul.mubr.f32.gmra.mrb[0].mxu0 %v2740
    %v2865 = vpop.f32.mrb[0].mxu0
    %v2866 = vadd.f32 0.0, %v2865
    %v2867 = vpop.f32.mrb[0].mxu0
    %2868 = vmatprep.mubr.f32.mxu0 0.0
    %2869 = vmatmul.mubr.f32.gmra.mrb[0].mxu0 %v2743
    %v2870 = vpop.f32.mrb[0].mxu0
    %v2871 = vadd.f32 0.0, %v2870
    %v2872 = vpop.f32.mrb[0].mxu0
    %2873 = vmatprep.mubr.f32.mxu0 0.0
    %2874 = vmatmul.mubr.f32.gmra.mrb[0].mxu0 %v2746
    %v2875 = vpop.f32.mrb[0].mxu0
    %v2876 = vadd.f32 0.0, %v2875
    %v2877 = vpop.f32.mrb[0].mxu0
    %2878 = vmatprep.mubr.f32.mxu0 0.0
    %2879 = vmatmul.mubr.f32.gmra.mrb[0].mxu0 %v2749
    %v2880 = vpop.f32.mrb[0].mxu0
    %v2881 = vadd.f32 0.0, %v2880
    %v2882 = vpop.f32.mrb[0].mxu0
    %2883 = vmatprep.mubr.f32.mxu0 0.0
    %2884 = vmatmul.mubr.f32.gmra.mrb[0].mxu0 %v2752
    %v2885 = vpop.f32.mrb[0].mxu0
    %v2886 = vadd.f32 0.0, %v2885
    %v2887 = vpop.f32.mrb[0].mxu0
    %2888 = vmatprep.mubr.f32.mxu0 0.0
    %2889 = vmatmul.mubr.f32.gmra.mrb[0].mxu0 %v2755
    %v2890 = vpop.f32.mrb[0].mxu0
    %v2891 = vadd.f32 0.0, %v2890
    %v2892 = vpop.f32.mrb[0].mxu0
    %2893 = vmatprep.mubr.f32.mxu0 0.0
    %2894 = vmatmul.mubr.f32.gmra.mrb[0].mxu0 %v2758
    %v2895 = vpop.f32.mrb[0].mxu0
    %v2896 = vadd.f32 0.0, %v2895
    %v2897 = vpop.f32.mrb[0].mxu0
    %2898 = vmatprep.mubr.f32.mxu0 0.0
    %2899 = vmatmul.mubr.f32.gmra.mrb[0].mxu0 %v2761
    %v2900 = vpop.f32.mrb[0].mxu0
    %v2901 = vadd.f32 0.0, %v2900
    %v2902 = vpop.f32.mrb[0].mxu0
    %2903 = vmatprep.mubr.f32.mxu0 0.0
    %2904 = vmatmul.mubr.f32.gmra.mrb[0].mxu0 %v2764
    %v2905 = vpop.f32.mrb[0].mxu0
    %v2906 = vadd.f32 0.0, %v2905
    %v2907 = vpop.f32.mrb[0].mxu0
    %2908 = vmatprep.mubr.f32.mxu0 0.0
    %2909 = vmatmul.mubr.f32.gmra.mrb[0].mxu0 %v2767
    %v2910 = vpop.f32.mrb[0].mxu0
    %v2911 = vadd.f32 0.0, %v2910
    %v2912 = vpop.f32.mrb[0].mxu0
    %2913 = vdwg.mxu0
    %v2914 = vmul.f32 %v555, %v555
    %v2915 = vrot.slane %v2914, 4
    %v2916 = vadd.f32 %v2914, %v2915
    %v2917 = vrot.slane %v2916, 2
    %v2918 = vadd.f32 %v2916, %v2917
    %v2919 = vrot.slane %v2918, 1
    %v2920 = vadd.f32 %v2918, %v2919
    %v2921 = vmul.f32 %v331, %v331
    %2922 = vxpose.xlu0.b32.start [1/16] %v2921, 128
    %2923 = vxpose.xlu0.b32.cont [2/16] 0.0, 128
    %2924 = vxpose.xlu0.b32.cont [3/16] 0.0, 128
    %2925 = vxpose.xlu0.b32.cont [4/16] 0.0, 128
    %2926 = vxpose.xlu0.b32.cont [5/16] 0.0, 128
    %2927 = vxpose.xlu0.b32.cont [6/16] 0.0, 128
    %2928 = vxpose.xlu0.b32.cont [7/16] 0.0, 128
    %2929 = vxpose.xlu0.b32.cont [8/16] 0.0, 128
    %2930 = vxpose.xlu0.b32.cont [9/16] 0.0, 128
    %2931 = vxpose.xlu0.b32.cont [10/16] 0.0, 128
    %2932 = vxpose.xlu0.b32.cont [11/16] 0.0, 128
    %2933 = vxpose.xlu0.b32.cont [12/16] 0.0, 128
    %2934 = vxpose.xlu0.b32.cont [13/16] 0.0, 128
    %2935 = vxpose.xlu0.b32.cont [14/16] 0.0, 128
    %2936 = vxpose.xlu0.b32.cont [15/16] 0.0, 128
    %2937 = vxpose.xlu0.b32.end [16/16] 0.0, 128
    %v2938 = vpop.trf.xlu0
    %v2939 = vpop.trf.xlu0
    %v2940 = vpop.trf.xlu0
    %v2941 = vpop.trf.xlu0
    %v2942 = vpop.trf.xlu0
    %v2943 = vpop.trf.xlu0
    %v2944 = vpop.trf.xlu0
    %v2945 = vpop.trf.xlu0
    %v2946 = vpop.trf.xlu0
    %v2947 = vpop.trf.xlu0
    %v2948 = vpop.trf.xlu0
    %v2949 = vpop.trf.xlu0
    %v2950 = vpop.trf.xlu0
    %v2951 = vpop.trf.xlu0
    %v2952 = vpop.trf.xlu0
    %v2953 = vpop.trf.xlu0
    %v2955 = vsel %vm825, %v2938, 0
    %v2958 = vsel %vm825, %v2939, 0
    %v2961 = vsel %vm825, %v2940, 0
    %v2964 = vsel %vm825, %v2941, 0
    %v2967 = vsel %vm825, %v2942, 0
    %v2970 = vsel %vm825, %v2943, 0
    %v2973 = vsel %vm825, %v2944, 0
    %v2976 = vsel %vm825, %v2945, 0
    %v2979 = vsel %vm825, %v2946, 0
    %v2982 = vsel %vm825, %v2947, 0
    %v2985 = vsel %vm825, %v2948, 0
    %v2988 = vsel %vm825, %v2949, 0
    %v2991 = vsel %vm825, %v2950, 0
    %v2994 = vsel %vm825, %v2951, 0
    %v2997 = vsel %vm825, %v2952, 0
    %v3000 = vsel %vm825, %v2953, 0
    %3002 = vmatprep.subr.mxu0 0.0
    %3003 = vmatpush1.msra.mxu0 %v2920
    %3004 = vmatprep.subr.mxu0 0.0
    %3005 = vmatpush1.msra.mxu0 0.0
    %3006 = vmatprep.subr.mxu0 0.0
    %3007 = vmatpush1.msra.mxu0 0.0
    %3008 = vmatprep.subr.mxu0 0.0
    %3009 = vmatpush1.msra.mxu0 0.0
    %3010 = vmatprep.subr.mxu0 0.0
    %3011 = vmatpush1.msra.mxu0 0.0
    %3012 = vmatprep.subr.mxu0 0.0
    %3013 = vmatpush1.msra.mxu0 0.0
    %3014 = vmatprep.subr.mxu0 0.0
    %3015 = vmatpush1.msra.mxu0 0.0
    %3016 = vmatprep.subr.mxu0 0.0
    %3017 = vmatpush1.msra.mxu0 0.0
    %3018 = vmatprep.subr.mxu0 0.0
    %3019 = vmatpush1.msra.mxu0 0.0
    %3020 = vmatprep.subr.mxu0 0.0
    %3021 = vmatpush1.msra.mxu0 0.0
    %3022 = vmatprep.subr.mxu0 0.0
    %3023 = vmatpush1.msra.mxu0 0.0
    %3024 = vmatprep.subr.mxu0 0.0
    %3025 = vmatpush1.msra.mxu0 0.0
    %3026 = vmatprep.subr.mxu0 0.0
    %3027 = vmatpush1.msra.mxu0 0.0
    %3028 = vmatprep.subr.mxu0 0.0
    %3029 = vmatpush1.msra.mxu0 0.0
    %3030 = vmatprep.subr.mxu0 0.0
    %3031 = vmatpush1.msra.mxu0 0.0
    %3032 = vmatprep.subr.mxu0 0.0
    %3033 = vmatpush1.msra.mxu0 0.0
    %3034 = vmatprep.subr.mxu0 0.0
    %3035 = vmatpush1.msra.mxu0 0.0
    %3036 = vmatprep.subr.mxu0 0.0
    %3037 = vmatpush1.msra.mxu0 0.0
    %3038 = vmatprep.subr.mxu0 0.0
    %3039 = vmatpush1.msra.mxu0 0.0
    %3040 = vmatprep.subr.mxu0 0.0
    %3041 = vmatpush1.msra.mxu0 0.0
    %3042 = vmatprep.subr.mxu0 0.0
    %3043 = vmatpush1.msra.mxu0 0.0
    %3044 = vmatprep.subr.mxu0 0.0
    %3045 = vmatpush1.msra.mxu0 0.0
    %3046 = vmatprep.subr.mxu0 0.0
    %3047 = vmatpush1.msra.mxu0 0.0
    %3048 = vmatprep.subr.mxu0 0.0
    %3049 = vmatpush1.msra.mxu0 0.0
    %3050 = vmatprep.subr.mxu0 0.0
    %3051 = vmatpush1.msra.mxu0 0.0
    %3052 = vmatprep.subr.mxu0 0.0
    %3053 = vmatpush1.msra.mxu0 0.0
    %3054 = vmatprep.subr.mxu0 0.0
    %3055 = vmatpush1.msra.mxu0 0.0
    %3056 = vmatprep.subr.mxu0 0.0
    %3057 = vmatpush1.msra.mxu0 0.0
    %3058 = vmatprep.subr.mxu0 0.0
    %3059 = vmatpush1.msra.mxu0 0.0
    %3060 = vmatprep.subr.mxu0 0.0
    %3061 = vmatpush1.msra.mxu0 0.0
    %3062 = vmatprep.subr.mxu0 0.0
    %3063 = vmatpush1.msra.mxu0 0.0
    %3064 = vmatprep.subr.mxu0 0.0
    %3065 = vmatpush1.msra.mxu0 0.0
    %3066 = vmatprep.mubr.f32.mxu0 0.0
    %3067 = vmatmul.mubr.f32.gmra.mrb[0].mxu0 %v2955
    %v3068 = vpop.f32.mrb[0].mxu0
    %v3069 = vadd.f32 0.0, %v3068
    %v3070 = vpop.f32.mrb[0].mxu0
    %3071 = vmatprep.mubr.f32.mxu0 0.0
    %3072 = vmatmul.mubr.f32.gmra.mrb[0].mxu0 %v2958
    %v3073 = vpop.f32.mrb[0].mxu0
    %v3074 = vadd.f32 0.0, %v3073
    %v3075 = vpop.f32.mrb[0].mxu0
    %3076 = vmatprep.mubr.f32.mxu0 0.0
    %3077 = vmatmul.mubr.f32.gmra.mrb[0].mxu0 %v2961
    %v3078 = vpop.f32.mrb[0].mxu0
    %v3079 = vadd.f32 0.0, %v3078
    %v3080 = vpop.f32.mrb[0].mxu0
    %3081 = vmatprep.mubr.f32.mxu0 0.0
    %3082 = vmatmul.mubr.f32.gmra.mrb[0].mxu0 %v2964
    %v3083 = vpop.f32.mrb[0].mxu0
    %v3084 = vadd.f32 0.0, %v3083
    %v3085 = vpop.f32.mrb[0].mxu0
    %3086 = vmatprep.mubr.f32.mxu0 0.0
    %3087 = vmatmul.mubr.f32.gmra.mrb[0].mxu0 %v2967
    %v3088 = vpop.f32.mrb[0].mxu0
    %v3089 = vadd.f32 0.0, %v3088
    %v3090 = vpop.f32.mrb[0].mxu0
    %3091 = vmatprep.mubr.f32.mxu0 0.0
    %3092 = vmatmul.mubr.f32.gmra.mrb[0].mxu0 %v2970
    %v3093 = vpop.f32.mrb[0].mxu0
    %v3094 = vadd.f32 0.0, %v3093
    %v3095 = vpop.f32.mrb[0].mxu0
    %3096 = vmatprep.mubr.f32.mxu0 0.0
    %3097 = vmatmul.mubr.f32.gmra.mrb[0].mxu0 %v2973
    %v3098 = vpop.f32.mrb[0].mxu0
    %v3099 = vadd.f32 0.0, %v3098
    %v3100 = vpop.f32.mrb[0].mxu0
    %3101 = vmatprep.mubr.f32.mxu0 0.0
    %3102 = vmatmul.mubr.f32.gmra.mrb[0].mxu0 %v2976
    %v3103 = vpop.f32.mrb[0].mxu0
    %v3104 = vadd.f32 0.0, %v3103
    %v3105 = vpop.f32.mrb[0].mxu0
    %3106 = vmatprep.mubr.f32.mxu0 0.0
    %3107 = vmatmul.mubr.f32.gmra.mrb[0].mxu0 %v2979
    %v3108 = vpop.f32.mrb[0].mxu0
    %v3109 = vadd.f32 0.0, %v3108
    %v3110 = vpop.f32.mrb[0].mxu0
    %3111 = vmatprep.mubr.f32.mxu0 0.0
    %3112 = vmatmul.mubr.f32.gmra.mrb[0].mxu0 %v2982
    %v3113 = vpop.f32.mrb[0].mxu0
    %v3114 = vadd.f32 0.0, %v3113
    %v3115 = vpop.f32.mrb[0].mxu0
    %3116 = vmatprep.mubr.f32.mxu0 0.0
    %3117 = vmatmul.mubr.f32.gmra.mrb[0].mxu0 %v2985
    %v3118 = vpop.f32.mrb[0].mxu0
    %v3119 = vadd.f32 0.0, %v3118
    %v3120 = vpop.f32.mrb[0].mxu0
    %3121 = vmatprep.mubr.f32.mxu0 0.0
    %3122 = vmatmul.mubr.f32.gmra.mrb[0].mxu0 %v2988
    %v3123 = vpop.f32.mrb[0].mxu0
    %v3124 = vadd.f32 0.0, %v3123
    %v3125 = vpop.f32.mrb[0].mxu0
    %3126 = vmatprep.mubr.f32.mxu0 0.0
    %3127 = vmatmul.mubr.f32.gmra.mrb[0].mxu0 %v2991
    %v3128 = vpop.f32.mrb[0].mxu0
    %v3129 = vadd.f32 0.0, %v3128
    %v3130 = vpop.f32.mrb[0].mxu0
    %3131 = vmatprep.mubr.f32.mxu0 0.0
    %3132 = vmatmul.mubr.f32.gmra.mrb[0].mxu0 %v2994
    %v3133 = vpop.f32.mrb[0].mxu0
    %v3134 = vadd.f32 0.0, %v3133
    %v3135 = vpop.f32.mrb[0].mxu0
    %3136 = vmatprep.mubr.f32.mxu0 0.0
    %3137 = vmatmul.mubr.f32.gmra.mrb[0].mxu0 %v2997
    %v3138 = vpop.f32.mrb[0].mxu0
    %v3139 = vadd.f32 0.0, %v3138
    %v3140 = vpop.f32.mrb[0].mxu0
    %3141 = vmatprep.mubr.f32.mxu0 0.0
    %3142 = vmatmul.mubr.f32.gmra.mrb[0].mxu0 %v3000
    %v3143 = vpop.f32.mrb[0].mxu0
    %v3144 = vadd.f32 0.0, %v3143
    %v3145 = vpop.f32.mrb[0].mxu0
    %3146 = vdwg.mxu0
    %v3147 = vmul.f32 %v2836, %v2836
    %v3148 = vmul.f32 %v2841, %v2841
    %v3149 = vmul.f32 %v2846, %v2846
    %v3150 = vmul.f32 %v2851, %v2851
    %v3151 = vmul.f32 %v2856, %v2856
    %v3152 = vmul.f32 %v2861, %v2861
    %v3153 = vmul.f32 %v2866, %v2866
    %v3154 = vmul.f32 %v2871, %v2871
    %v3155 = vmul.f32 %v2876, %v2876
    %v3156 = vmul.f32 %v2881, %v2881
    %v3157 = vmul.f32 %v2886, %v2886
    %v3158 = vmul.f32 %v2891, %v2891
    %v3159 = vmul.f32 %v2896, %v2896
    %v3160 = vmul.f32 %v2901, %v2901
    %v3161 = vmul.f32 %v2906, %v2906
    %v3162 = vmul.f32 %v2911, %v2911
    %v3163 = vsub.f32 %v3069, %v3147
    %v3164 = vsub.f32 %v3074, %v3148
    %v3165 = vsub.f32 %v3079, %v3149
    %v3166 = vsub.f32 %v3084, %v3150
    %v3167 = vsub.f32 %v3089, %v3151
    %v3168 = vsub.f32 %v3094, %v3152
    %v3169 = vsub.f32 %v3099, %v3153
    %v3170 = vsub.f32 %v3104, %v3154
    %v3171 = vsub.f32 %v3109, %v3155
    %v3172 = vsub.f32 %v3114, %v3156
    %v3173 = vsub.f32 %v3119, %v3157
    %v3174 = vsub.f32 %v3124, %v3158
    %v3175 = vsub.f32 %v3129, %v3159
    %v3176 = vsub.f32 %v3134, %v3160
    %v3177 = vsub.f32 %v3139, %v3161
    %v3178 = vsub.f32 %v3144, %v3162
    %v3179 = vmax.f32 %v3163, 0.0
    %v3180 = vmax.f32 %v3164, 0.0
    %v3181 = vmax.f32 %v3165, 0.0
    %v3182 = vmax.f32 %v3166, 0.0
    %v3183 = vmax.f32 %v3167, 0.0
    %v3184 = vmax.f32 %v3168, 0.0
    %v3185 = vmax.f32 %v3169, 0.0
    %v3186 = vmax.f32 %v3170, 0.0
    %v3187 = vmax.f32 %v3171, 0.0
    %v3188 = vmax.f32 %v3172, 0.0
    %v3189 = vmax.f32 %v3173, 0.0
    %v3190 = vmax.f32 %v3174, 0.0
    %v3191 = vmax.f32 %v3175, 0.0
    %v3192 = vmax.f32 %v3176, 0.0
    %v3193 = vmax.f32 %v3177, 0.0
    %v3194 = vmax.f32 %v3178, 0.0
    %v3195 = vadd.f32 %v3179, 1e-08
    %v3196 = vadd.f32 %v3180, 1e-08
    %v3197 = vadd.f32 %v3181, 1e-08
    %v3198 = vadd.f32 %v3182, 1e-08
    %v3199 = vadd.f32 %v3183, 1e-08
    %v3200 = vadd.f32 %v3184, 1e-08
    %v3201 = vadd.f32 %v3185, 1e-08
    %v3202 = vadd.f32 %v3186, 1e-08
    %v3203 = vadd.f32 %v3187, 1e-08
    %v3204 = vadd.f32 %v3188, 1e-08
    %v3205 = vadd.f32 %v3189, 1e-08
    %v3206 = vadd.f32 %v3190, 1e-08
    %v3207 = vadd.f32 %v3191, 1e-08
    %v3208 = vadd.f32 %v3192, 1e-08
    %v3209 = vadd.f32 %v3193, 1e-08
    %v3210 = vadd.f32 %v3194, 1e-08
    %v3211 = vrsqrt.pop %v3195
    %v3212 = vmul.f32 %v3195, %v3211
    %vm3213 = vcmp.eq.f32.partialorder %v3195, inf
    %v3214 = vsel %vm3213, %v3195, %v3212
    %vm3215 = vcmp.eq.f32.partialorder %v3195, 0.0
    %v3216 = vand.u32 %v3195, 2147483648
    %v3217 = vsel %vm3215, %v3216, %v3214
    %v3218 = vrsqrt.pop %v3196
    %v3219 = vmul.f32 %v3196, %v3218
    %vm3220 = vcmp.eq.f32.partialorder %v3196, inf
    %v3221 = vsel %vm3220, %v3196, %v3219
    %vm3222 = vcmp.eq.f32.partialorder %v3196, 0.0
    %v3223 = vand.u32 %v3196, 2147483648
    %v3224 = vsel %vm3222, %v3223, %v3221
    %v3225 = vrsqrt.pop %v3197
    %v3226 = vmul.f32 %v3197, %v3225
    %vm3227 = vcmp.eq.f32.partialorder %v3197, inf
    %v3228 = vsel %vm3227, %v3197, %v3226
    %vm3229 = vcmp.eq.f32.partialorder %v3197, 0.0
    %v3230 = vand.u32 %v3197, 2147483648
    %v3231 = vsel %vm3229, %v3230, %v3228
    %v3232 = vrsqrt.pop %v3198
    %v3233 = vmul.f32 %v3198, %v3232
    %vm3234 = vcmp.eq.f32.partialorder %v3198, inf
    %v3235 = vsel %vm3234, %v3198, %v3233
    %vm3236 = vcmp.eq.f32.partialorder %v3198, 0.0
    %v3237 = vand.u32 %v3198, 2147483648
    %v3238 = vsel %vm3236, %v3237, %v3235
    %v3239 = vrsqrt.pop %v3199
    %v3240 = vmul.f32 %v3199, %v3239
    %vm3241 = vcmp.eq.f32.partialorder %v3199, inf
    %v3242 = vsel %vm3241, %v3199, %v3240
    %vm3243 = vcmp.eq.f32.partialorder %v3199, 0.0
    %v3244 = vand.u32 %v3199, 2147483648
    %v3245 = vsel %vm3243, %v3244, %v3242
    %v3246 = vrsqrt.pop %v3200
    %v3247 = vmul.f32 %v3200, %v3246
    %vm3248 = vcmp.eq.f32.partialorder %v3200, inf
    %v3249 = vsel %vm3248, %v3200, %v3247
    %vm3250 = vcmp.eq.f32.partialorder %v3200, 0.0
    %v3251 = vand.u32 %v3200, 2147483648
    %v3252 = vsel %vm3250, %v3251, %v3249
    %v3253 = vrsqrt.pop %v3201
    %v3254 = vmul.f32 %v3201, %v3253
    %vm3255 = vcmp.eq.f32.partialorder %v3201, inf
    %v3256 = vsel %vm3255, %v3201, %v3254
    %vm3257 = vcmp.eq.f32.partialorder %v3201, 0.0
    %v3258 = vand.u32 %v3201, 2147483648
    %v3259 = vsel %vm3257, %v3258, %v3256
    %v3260 = vrsqrt.pop %v3202
    %v3261 = vmul.f32 %v3202, %v3260
    %vm3262 = vcmp.eq.f32.partialorder %v3202, inf
    %v3263 = vsel %vm3262, %v3202, %v3261
    %vm3264 = vcmp.eq.f32.partialorder %v3202, 0.0
    %v3265 = vand.u32 %v3202, 2147483648
    %v3266 = vsel %vm3264, %v3265, %v3263
    %v3267 = vrsqrt.pop %v3203
    %v3268 = vmul.f32 %v3203, %v3267
    %vm3269 = vcmp.eq.f32.partialorder %v3203, inf
    %v3270 = vsel %vm3269, %v3203, %v3268
    %vm3271 = vcmp.eq.f32.partialorder %v3203, 0.0
    %v3272 = vand.u32 %v3203, 2147483648
    %v3273 = vsel %vm3271, %v3272, %v3270
    %v3274 = vrsqrt.pop %v3204
    %v3275 = vmul.f32 %v3204, %v3274
    %vm3276 = vcmp.eq.f32.partialorder %v3204, inf
    %v3277 = vsel %vm3276, %v3204, %v3275
    %vm3278 = vcmp.eq.f32.partialorder %v3204, 0.0
    %v3279 = vand.u32 %v3204, 2147483648
    %v3280 = vsel %vm3278, %v3279, %v3277
    %v3281 = vrsqrt.pop %v3205
    %v3282 = vmul.f32 %v3205, %v3281
    %vm3283 = vcmp.eq.f32.partialorder %v3205, inf
    %v3284 = vsel %vm3283, %v3205, %v3282
    %vm3285 = vcmp.eq.f32.partialorder %v3205, 0.0
    %v3286 = vand.u32 %v3205, 2147483648
    %v3287 = vsel %vm3285, %v3286, %v3284
    %v3288 = vrsqrt.pop %v3206
    %v3289 = vmul.f32 %v3206, %v3288
    %vm3290 = vcmp.eq.f32.partialorder %v3206, inf
    %v3291 = vsel %vm3290, %v3206, %v3289
    %vm3292 = vcmp.eq.f32.partialorder %v3206, 0.0
    %v3293 = vand.u32 %v3206, 2147483648
    %v3294 = vsel %vm3292, %v3293, %v3291
    %v3295 = vrsqrt.pop %v3207
    %v3296 = vmul.f32 %v3207, %v3295
    %vm3297 = vcmp.eq.f32.partialorder %v3207, inf
    %v3298 = vsel %vm3297, %v3207, %v3296
    %vm3299 = vcmp.eq.f32.partialorder %v3207, 0.0
    %v3300 = vand.u32 %v3207, 2147483648
    %v3301 = vsel %vm3299, %v3300, %v3298
    %v3302 = vrsqrt.pop %v3208
    %v3303 = vmul.f32 %v3208, %v3302
    %vm3304 = vcmp.eq.f32.partialorder %v3208, inf
    %v3305 = vsel %vm3304, %v3208, %v3303
    %vm3306 = vcmp.eq.f32.partialorder %v3208, 0.0
    %v3307 = vand.u32 %v3208, 2147483648
    %v3308 = vsel %vm3306, %v3307, %v3305
    %v3309 = vrsqrt.pop %v3209
    %v3310 = vmul.f32 %v3209, %v3309
    %vm3311 = vcmp.eq.f32.partialorder %v3209, inf
    %v3312 = vsel %vm3311, %v3209, %v3310
    %vm3313 = vcmp.eq.f32.partialorder %v3209, 0.0
    %v3314 = vand.u32 %v3209, 2147483648
    %v3315 = vsel %vm3313, %v3314, %v3312
    %v3316 = vrsqrt.pop %v3210
    %v3317 = vmul.f32 %v3210, %v3316
    %vm3318 = vcmp.eq.f32.partialorder %v3210, inf
    %v3319 = vsel %vm3318, %v3210, %v3317
    %vm3320 = vcmp.eq.f32.partialorder %v3210, 0.0
    %v3321 = vand.u32 %v3210, 2147483648
    %v3322 = vsel %vm3320, %v3321, %v3319
    %v3323 = vmul.f32 %v2836, 0.17677669
    %v3324 = vmul.f32 %v2841, 0.17677669
    %v3325 = vmul.f32 %v2846, 0.17677669
    %v3326 = vmul.f32 %v2851, 0.17677669
    %v3327 = vmul.f32 %v2856, 0.17677669
    %v3328 = vmul.f32 %v2861, 0.17677669
    %v3329 = vmul.f32 %v2866, 0.17677669
    %v3330 = vmul.f32 %v2871, 0.17677669
    %v3331 = vmul.f32 %v2876, 0.17677669
    %v3332 = vmul.f32 %v2881, 0.17677669
    %v3333 = vmul.f32 %v2886, 0.17677669
    %v3334 = vmul.f32 %v2891, 0.17677669
    %v3335 = vmul.f32 %v2896, 0.17677669
    %v3336 = vmul.f32 %v2901, 0.17677669
    %v3337 = vmul.f32 %v2906, 0.17677669
    %v3338 = vmul.f32 %v2911, 0.17677669
    %v3339 = vmul.f32 %v3217, 0.17677669
    %v3340 = vmul.f32 %v3224, 0.17677669
    %v3341 = vmul.f32 %v3231, 0.17677669
    %v3342 = vmul.f32 %v3238, 0.17677669
    %v3343 = vmul.f32 %v3245, 0.17677669
    %v3344 = vmul.f32 %v3252, 0.17677669
    %v3345 = vmul.f32 %v3259, 0.17677669
    %v3346 = vmul.f32 %v3266, 0.17677669
    %v3347 = vmul.f32 %v3273, 0.17677669
    %v3348 = vmul.f32 %v3280, 0.17677669
    %v3349 = vmul.f32 %v3287, 0.17677669
    %v3350 = vmul.f32 %v3294, 0.17677669
    %v3351 = vmul.f32 %v3301, 0.17677669
    %v3352 = vmul.f32 %v3308, 0.17677669
    %v3353 = vmul.f32 %v3315, 0.17677669
    %v3354 = vmul.f32 %v3322, 0.17677669
    %v3355 = vadd.f32 %v3323, %v3339
    %v3356 = vadd.f32 %v3324, %v3340
    %v3357 = vadd.f32 %v3325, %v3341
    %v3358 = vadd.f32 %v3326, %v3342
    %v3359 = vadd.f32 %v3327, %v3343
    %v3360 = vadd.f32 %v3328, %v3344
    %v3361 = vadd.f32 %v3329, %v3345
    %v3362 = vadd.f32 %v3330, %v3346
    %v3363 = vadd.f32 %v3331, %v3347
    %v3364 = vadd.f32 %v3332, %v3348
    %v3365 = vadd.f32 %v3333, %v3349
    %v3366 = vadd.f32 %v3334, %v3350
    %v3367 = vadd.f32 %v3335, %v3351
    %v3368 = vadd.f32 %v3336, %v3352
    %v3369 = vadd.f32 %v3337, %v3353
    %v3370 = vadd.f32 %v3338, %v3354
    %3371 = vmax.xlane.f32.xlu0 %v3355
    %v3372 = vpop.xlane.xlu0 %3371
    %3373 = vmax.xlane.f32.xlu0 %v3356
    %v3374 = vpop.xlane.xlu0 %3373
    %3375 = vmax.xlane.f32.xlu0 %v3357
    %v3376 = vpop.xlane.xlu0 %3375
    %3377 = vmax.xlane.f32.xlu0 %v3358
    %v3378 = vpop.xlane.xlu0 %3377
    %3379 = vmax.xlane.f32.xlu0 %v3359
    %v3380 = vpop.xlane.xlu0 %3379
    %3381 = vmax.xlane.f32.xlu0 %v3360
    %v3382 = vpop.xlane.xlu0 %3381
    %3383 = vmax.xlane.f32.xlu0 %v3361
    %v3384 = vpop.xlane.xlu0 %3383
    %3385 = vmax.xlane.f32.xlu0 %v3362
    %v3386 = vpop.xlane.xlu0 %3385
    %3387 = vmax.xlane.f32.xlu0 %v3363
    %v3388 = vpop.xlane.xlu0 %3387
    %3389 = vmax.xlane.f32.xlu0 %v3364
    %v3390 = vpop.xlane.xlu0 %3389
    %3391 = vmax.xlane.f32.xlu0 %v3365
    %v3392 = vpop.xlane.xlu0 %3391
    %3393 = vmax.xlane.f32.xlu0 %v3366
    %v3394 = vpop.xlane.xlu0 %3393
    %3395 = vmax.xlane.f32.xlu0 %v3367
    %v3396 = vpop.xlane.xlu0 %3395
    %3397 = vmax.xlane.f32.xlu0 %v3368
    %v3398 = vpop.xlane.xlu0 %3397
    %3399 = vmax.xlane.f32.xlu0 %v3369
    %v3400 = vpop.xlane.xlu0 %3399
    %3401 = vmax.xlane.f32.xlu0 %v3370
    %v3402 = vpop.xlane.xlu0 %3401
    %v3403 = vsub.f32 %v3355, %v3372
    %v3404 = vsub.f32 %v3356, %v3374
    %v3405 = vsub.f32 %v3357, %v3376
    %v3406 = vsub.f32 %v3358, %v3378
    %v3407 = vsub.f32 %v3359, %v3380
    %v3408 = vsub.f32 %v3360, %v3382
    %v3409 = vsub.f32 %v3361, %v3384
    %v3410 = vsub.f32 %v3362, %v3386
    %v3411 = vsub.f32 %v3363, %v3388
    %v3412 = vsub.f32 %v3364, %v3390
    %v3413 = vsub.f32 %v3365, %v3392
    %v3414 = vsub.f32 %v3366, %v3394
    %v3415 = vsub.f32 %v3367, %v3396
    %v3416 = vsub.f32 %v3368, %v3398
    %v3417 = vsub.f32 %v3369, %v3400
    %v3418 = vsub.f32 %v3370, %v3402
    %v3419 = vmul.f32 %v3403, 1.442695
    %v3420 = vpow.pop %v3419
    %v3421 = vmul.f32 %v3404, 1.442695
    %v3422 = vpow.pop %v3421
    %v3423 = vmul.f32 %v3405, 1.442695
    %v3424 = vpow.pop %v3423
    %v3425 = vmul.f32 %v3406, 1.442695
    %v3426 = vpow.pop %v3425
    %v3427 = vmul.f32 %v3407, 1.442695
    %v3428 = vpow.pop %v3427
    %v3429 = vmul.f32 %v3408, 1.442695
    %v3430 = vpow.pop %v3429
    %v3431 = vmul.f32 %v3409, 1.442695
    %v3432 = vpow.pop %v3431
    %v3433 = vmul.f32 %v3410, 1.442695
    %v3434 = vpow.pop %v3433
    %v3435 = vmul.f32 %v3411, 1.442695
    %v3436 = vpow.pop %v3435
    %v3437 = vmul.f32 %v3412, 1.442695
    %v3438 = vpow.pop %v3437
    %v3439 = vmul.f32 %v3413, 1.442695
    %v3440 = vpow.pop %v3439
    %v3441 = vmul.f32 %v3414, 1.442695
    %v3442 = vpow.pop %v3441
    %v3443 = vmul.f32 %v3415, 1.442695
    %v3444 = vpow.pop %v3443
    %v3445 = vmul.f32 %v3416, 1.442695
    %v3446 = vpow.pop %v3445
    %v3447 = vmul.f32 %v3417, 1.442695
    %v3448 = vpow.pop %v3447
    %v3449 = vmul.f32 %v3418, 1.442695
    %v3450 = vpow.pop %v3449
    %3451 = vadd.xlane.f32.xlu0 %v3420
    %v3452 = vpop.xlane.xlu0 %3451
    %3453 = vadd.xlane.f32.xlu0 %v3422
    %v3454 = vpop.xlane.xlu0 %3453
    %3455 = vadd.xlane.f32.xlu0 %v3424
    %v3456 = vpop.xlane.xlu0 %3455
    %3457 = vadd.xlane.f32.xlu0 %v3426
    %v3458 = vpop.xlane.xlu0 %3457
    %3459 = vadd.xlane.f32.xlu0 %v3428
    %v3460 = vpop.xlane.xlu0 %3459
    %3461 = vadd.xlane.f32.xlu0 %v3430
    %v3462 = vpop.xlane.xlu0 %3461
    %3463 = vadd.xlane.f32.xlu0 %v3432
    %v3464 = vpop.xlane.xlu0 %3463
    %3465 = vadd.xlane.f32.xlu0 %v3434
    %v3466 = vpop.xlane.xlu0 %3465
    %3467 = vadd.xlane.f32.xlu0 %v3436
    %v3468 = vpop.xlane.xlu0 %3467
    %3469 = vadd.xlane.f32.xlu0 %v3438
    %v3470 = vpop.xlane.xlu0 %3469
    %3471 = vadd.xlane.f32.xlu0 %v3440
    %v3472 = vpop.xlane.xlu0 %3471
    %3473 = vadd.xlane.f32.xlu0 %v3442
    %v3474 = vpop.xlane.xlu0 %3473
    %3475 = vadd.xlane.f32.xlu0 %v3444
    %v3476 = vpop.xlane.xlu0 %3475
    %3477 = vadd.xlane.f32.xlu0 %v3446
    %v3478 = vpop.xlane.xlu0 %3477
    %3479 = vadd.xlane.f32.xlu0 %v3448
    %v3480 = vpop.xlane.xlu0 %3479
    %3481 = vadd.xlane.f32.xlu0 %v3450
    %v3482 = vpop.xlane.xlu0 %3481
    %v3483 = vrcp.pop %v3452
    %v3484 = vrcp.pop %v3454
    %v3485 = vrcp.pop %v3456
    %v3486 = vrcp.pop %v3458
    %v3487 = vrcp.pop %v3460
    %v3488 = vrcp.pop %v3462
    %v3489 = vrcp.pop %v3464
    %v3490 = vrcp.pop %v3466
    %v3491 = vrcp.pop %v3468
    %v3492 = vrcp.pop %v3470
    %v3493 = vrcp.pop %v3472
    %v3494 = vrcp.pop %v3474
    %v3495 = vrcp.pop %v3476
    %v3496 = vrcp.pop %v3478
    %v3497 = vrcp.pop %v3480
    %v3498 = vrcp.pop %v3482
    %v3499 = vmul.f32 %v3420, %v3483
    %v3500 = vmul.f32 %v3422, %v3484
    %v3501 = vmul.f32 %v3424, %v3485
    %v3502 = vmul.f32 %v3426, %v3486
    %v3503 = vmul.f32 %v3428, %v3487
    %v3504 = vmul.f32 %v3430, %v3488
    %v3505 = vmul.f32 %v3432, %v3489
    %v3506 = vmul.f32 %v3434, %v3490
    %v3507 = vmul.f32 %v3436, %v3491
    %v3508 = vmul.f32 %v3438, %v3492
    %v3509 = vmul.f32 %v3440, %v3493
    %v3510 = vmul.f32 %v3442, %v3494
    %v3511 = vmul.f32 %v3444, %v3495
    %v3512 = vmul.f32 %v3446, %v3496
    %v3513 = vmul.f32 %v3448, %v3497
    %v3514 = vmul.f32 %v3450, %v3498
    %v3515 = vpack.c.bf16 %v3500, %v3499
    %v3516 = vpack.c.bf16 %v3502, %v3501
    %v3517 = vpack.c.bf16 %v3504, %v3503
    %v3518 = vpack.c.bf16 %v3506, %v3505
    %v3519 = vpack.c.bf16 %v3508, %v3507
    %v3520 = vpack.c.bf16 %v3510, %v3509
    %v3521 = vpack.c.bf16 %v3512, %v3511
    %v3522 = vpack.c.bf16 %v3514, %v3513
    %v3531 = vunpack.c.l.b16 %v3515
    %v3532 = vunpack.c.h.b16 %v3515
    %v3533 = vunpack.c.l.b16 %v3516
    %v3534 = vunpack.c.h.b16 %v3516
    %v3535 = vunpack.c.l.b16 %v3517
    %v3536 = vunpack.c.h.b16 %v3517
    %v3537 = vunpack.c.l.b16 %v3518
    %v3538 = vunpack.c.h.b16 %v3518
    %v3539 = vunpack.c.l.b16 %v3519
    %v3540 = vunpack.c.h.b16 %v3519
    %v3541 = vunpack.c.l.b16 %v3520
    %v3542 = vunpack.c.h.b16 %v3520
    %v3543 = vunpack.c.l.b16 %v3521
    %v3544 = vunpack.c.h.b16 %v3521
    %v3545 = vunpack.c.l.b16 %v3522
    %v3546 = vunpack.c.h.b16 %v3522
    %v3547 = vpack.c.b16 %v3531, %v3531
    %v3548 = vpack.c.b16 %v3532, %v3532
    %v3549 = vpack.c.b16 %v3533, %v3533
    %v3550 = vpack.c.b16 %v3534, %v3534
    %v3551 = vpack.c.b16 %v3535, %v3535
    %v3552 = vpack.c.b16 %v3536, %v3536
    %v3553 = vpack.c.b16 %v3537, %v3537
    %v3554 = vpack.c.b16 %v3538, %v3538
    %v3555 = vpack.c.b16 %v3539, %v3539
    %v3556 = vpack.c.b16 %v3540, %v3540
    %v3557 = vpack.c.b16 %v3541, %v3541
    %v3558 = vpack.c.b16 %v3542, %v3542
    %v3559 = vpack.c.b16 %v3543, %v3543
    %v3560 = vpack.c.b16 %v3544, %v3544
    %v3561 = vpack.c.b16 %v3545, %v3545
    %v3562 = vpack.c.b16 %v3546, %v3546
    %s3579 = scalar_lea.vmem [#allocation6], 64
    %3580 = vst [vmem:[%s3579] sm:$0xf] %v3547
    %3581 = vst [vmem:[%s3579 + $0x4] sm:$0xf] %v3548
    %3582 = vst [vmem:[%s3579 + $0x8] sm:$0xf] %v3549
    %3583 = vst [vmem:[%s3579 + $0xc] sm:$0xf] %v3550
    %3584 = vst [vmem:[%s3579 + $0x10] sm:$0xf] %v3551
    %3585 = vst [vmem:[%s3579 + $0x14] sm:$0xf] %v3552
    %3586 = vst [vmem:[%s3579 + $0x18] sm:$0xf] %v3553
    %3587 = vst [vmem:[%s3579 + $0x1c] sm:$0xf] %v3554
    %3588 = vst [vmem:[%s3579 + $0x20] sm:$0xf] %v3555
    %3589 = vst [vmem:[%s3579 + $0x24] sm:$0xf] %v3556
    %3590 = vst [vmem:[%s3579 + $0x28] sm:$0xf] %v3557
    %3591 = vst [vmem:[%s3579 + $0x2c] sm:$0xf] %v3558
    %3592 = vst [vmem:[%s3579 + $0x30] sm:$0xf] %v3559
    %3593 = vst [vmem:[%s3579 + $0x34] sm:$0xf] %v3560
    %3594 = vst [vmem:[%s3579 + $0x38] sm:$0xf] %v3561
    %3595 = vst [vmem:[%s3579 + $0x3c] sm:$0xf] %v3562
    %v3596 = vpack.c.bf16 %v779, %v779
    %3597 = vmatprep.subr.bf16.mxu0 0
    %3598 = vmatpush1.bf16.xpose.msra.mxu0 %v3515
    %3599 = vmatprep.subr.bf16.mxu0 0
    %3600 = vmatpush1.bf16.xpose.msra.mxu0 %v3516
    %3601 = vmatprep.subr.bf16.mxu0 0
    %3602 = vmatpush1.bf16.xpose.msra.mxu0 %v3517
    %3603 = vmatprep.subr.bf16.mxu0 0
    %3604 = vmatpush1.bf16.xpose.msra.mxu0 %v3518
    %3605 = vmatprep.subr.bf16.mxu0 0
    %3606 = vmatpush1.bf16.xpose.msra.mxu0 %v3519
    %3607 = vmatprep.subr.bf16.mxu0 0
    %3608 = vmatpush1.bf16.xpose.msra.mxu0 %v3520
    %3609 = vmatprep.subr.bf16.mxu0 0
    %3610 = vmatpush1.bf16.xpose.msra.mxu0 %v3521
    %3611 = vmatprep.subr.bf16.mxu0 0
    %3612 = vmatpush1.bf16.xpose.msra.mxu0 %v3522
    %3613 = vmatprep.subr.bf16.mxu0 0
    %3614 = vmatpush1.bf16.xpose.msra.mxu0 0
    %3615 = vmatprep.subr.bf16.mxu0 0
    %3616 = vmatpush1.bf16.xpose.msra.mxu0 0
    %3617 = vmatprep.subr.bf16.mxu0 0
    %3618 = vmatpush1.bf16.xpose.msra.mxu0 0
    %3619 = vmatprep.subr.bf16.mxu0 0
    %3620 = vmatpush1.bf16.xpose.msra.mxu0 0
    %3621 = vmatprep.subr.bf16.mxu0 0
    %3622 = vmatpush1.bf16.xpose.msra.mxu0 0
    %3623 = vmatprep.subr.bf16.mxu0 0
    %3624 = vmatpush1.bf16.xpose.msra.mxu0 0
    %3625 = vmatprep.subr.bf16.mxu0 0
    %3626 = vmatpush1.bf16.xpose.msra.mxu0 0
    %3627 = vmatprep.subr.bf16.mxu0 0
    %3628 = vmatpush1.bf16.xpose.msra.mxu0 0
    %3629 = vmatprep.mubr.bf16.mxu0 0
    %3630 = vmatmul.mubr.bf16.gmra.mrb[0].mxu0 %v3596
    %v3631 = vpop.f32.mrb[0].mxu0
    %v3632 = vadd.f32 0.0, %v3631
    %v3633 = vpop.f32.mrb[0].mxu0
    %v3634 = vpop.f32.mrb[0].mxu0
    %v3635 = vpop.f32.mrb[0].mxu0
    %3636 = vdwg.mxu0
    %3637 = vxpose.xlu0.b32.start [1/16] %v334, 128
    %3638 = vxpose.xlu0.b32.cont [2/16] 0.0, 128
    %3639 = vxpose.xlu0.b32.cont [3/16] 0.0, 128
    %3640 = vxpose.xlu0.b32.cont [4/16] 0.0, 128
    %3641 = vxpose.xlu0.b32.cont [5/16] 0.0, 128
    %3642 = vxpose.xlu0.b32.cont [6/16] 0.0, 128
    %3643 = vxpose.xlu0.b32.cont [7/16] 0.0, 128
    %3644 = vxpose.xlu0.b32.cont [8/16] 0.0, 128
    %3645 = vxpose.xlu0.b32.cont [9/16] 0.0, 128
    %3646 = vxpose.xlu0.b32.cont [10/16] 0.0, 128
    %3647 = vxpose.xlu0.b32.cont [11/16] 0.0, 128
    %3648 = vxpose.xlu0.b32.cont [12/16] 0.0, 128
    %3649 = vxpose.xlu0.b32.cont [13/16] 0.0, 128
    %3650 = vxpose.xlu0.b32.cont [14/16] 0.0, 128
    %3651 = vxpose.xlu0.b32.cont [15/16] 0.0, 128
    %3652 = vxpose.xlu0.b32.end [16/16] 0.0, 128
    %v3653 = vpop.trf.xlu0
    %v3654 = vpop.trf.xlu0
    %v3655 = vpop.trf.xlu0
    %v3656 = vpop.trf.xlu0
    %v3657 = vpop.trf.xlu0
    %v3658 = vpop.trf.xlu0
    %v3659 = vpop.trf.xlu0
    %v3660 = vpop.trf.xlu0
    %v3661 = vpop.trf.xlu0
    %v3662 = vpop.trf.xlu0
    %v3663 = vpop.trf.xlu0
    %v3664 = vpop.trf.xlu0
    %v3665 = vpop.trf.xlu0
    %v3666 = vpop.trf.xlu0
    %v3667 = vpop.trf.xlu0
    %v3668 = vpop.trf.xlu0
    %v3670 = vsel %vm825, %v3653, 0
    %v3673 = vsel %vm825, %v3654, 0
    %v3676 = vsel %vm825, %v3655, 0
    %v3679 = vsel %vm825, %v3656, 0
    %v3682 = vsel %vm825, %v3657, 0
    %v3685 = vsel %vm825, %v3658, 0
    %v3688 = vsel %vm825, %v3659, 0
    %v3691 = vsel %vm825, %v3660, 0
    %v3694 = vsel %vm825, %v3661, 0
    %v3697 = vsel %vm825, %v3662, 0
    %v3700 = vsel %vm825, %v3663, 0
    %v3703 = vsel %vm825, %v3664, 0
    %v3706 = vsel %vm825, %v3665, 0
    %v3709 = vsel %vm825, %v3666, 0
    %v3712 = vsel %vm825, %v3667, 0
    %v3715 = vsel %vm825, %v3668, 0
    %3717 = vmatprep.subr.mxu0 0.0
    %3718 = vmatpush1.msra.mxu0 %v558
    %3719 = vmatprep.subr.mxu0 0.0
    %3720 = vmatpush1.msra.mxu0 0.0
    %3721 = vmatprep.subr.mxu0 0.0
    %3722 = vmatpush1.msra.mxu0 0.0
    %3723 = vmatprep.subr.mxu0 0.0
    %3724 = vmatpush1.msra.mxu0 0.0
    %3725 = vmatprep.subr.mxu0 0.0
    %3726 = vmatpush1.msra.mxu0 0.0
    %3727 = vmatprep.subr.mxu0 0.0
    %3728 = vmatpush1.msra.mxu0 0.0
    %3729 = vmatprep.subr.mxu0 0.0
    %3730 = vmatpush1.msra.mxu0 0.0
    %3731 = vmatprep.subr.mxu0 0.0
    %3732 = vmatpush1.msra.mxu0 0.0
    %3733 = vmatprep.subr.mxu0 0.0
    %3734 = vmatpush1.msra.mxu0 0.0
    %3735 = vmatprep.subr.mxu0 0.0
    %3736 = vmatpush1.msra.mxu0 0.0
    %3737 = vmatprep.subr.mxu0 0.0
    %3738 = vmatpush1.msra.mxu0 0.0
    %3739 = vmatprep.subr.mxu0 0.0
    %3740 = vmatpush1.msra.mxu0 0.0
    %3741 = vmatprep.subr.mxu0 0.0
    %3742 = vmatpush1.msra.mxu0 0.0
    %3743 = vmatprep.subr.mxu0 0.0
    %3744 = vmatpush1.msra.mxu0 0.0
    %3745 = vmatprep.subr.mxu0 0.0
    %3746 = vmatpush1.msra.mxu0 0.0
    %3747 = vmatprep.subr.mxu0 0.0
    %3748 = vmatpush1.msra.mxu0 0.0
    %3749 = vmatprep.subr.mxu0 0.0
    %3750 = vmatpush1.msra.mxu0 0.0
    %3751 = vmatprep.subr.mxu0 0.0
    %3752 = vmatpush1.msra.mxu0 0.0
    %3753 = vmatprep.subr.mxu0 0.0
    %3754 = vmatpush1.msra.mxu0 0.0
    %3755 = vmatprep.subr.mxu0 0.0
    %3756 = vmatpush1.msra.mxu0 0.0
    %3757 = vmatprep.subr.mxu0 0.0
    %3758 = vmatpush1.msra.mxu0 0.0
    %3759 = vmatprep.subr.mxu0 0.0
    %3760 = vmatpush1.msra.mxu0 0.0
    %3761 = vmatprep.subr.mxu0 0.0
    %3762 = vmatpush1.msra.mxu0 0.0
    %3763 = vmatprep.subr.mxu0 0.0
    %3764 = vmatpush1.msra.mxu0 0.0
    %3765 = vmatprep.subr.mxu0 0.0
    %3766 = vmatpush1.msra.mxu0 0.0
    %3767 = vmatprep.subr.mxu0 0.0
    %3768 = vmatpush1.msra.mxu0 0.0
    %3769 = vmatprep.subr.mxu0 0.0
    %3770 = vmatpush1.msra.mxu0 0.0
    %3771 = vmatprep.subr.mxu0 0.0
    %3772 = vmatpush1.msra.mxu0 0.0
    %3773 = vmatprep.subr.mxu0 0.0
    %3774 = vmatpush1.msra.mxu0 0.0
    %3775 = vmatprep.subr.mxu0 0.0
    %3776 = vmatpush1.msra.mxu0 0.0
    %3777 = vmatprep.subr.mxu0 0.0
    %3778 = vmatpush1.msra.mxu0 0.0
    %3779 = vmatprep.subr.mxu0 0.0
    %3780 = vmatpush1.msra.mxu0 0.0
    %3781 = vmatprep.mubr.f32.mxu0 0.0
    %3782 = vmatmul.mubr.f32.gmra.mrb[0].mxu0 %v3670
    %v3783 = vpop.f32.mrb[0].mxu0
    %v3784 = vadd.f32 0.0, %v3783
    %v3785 = vpop.f32.mrb[0].mxu0
    %3786 = vmatprep.mubr.f32.mxu0 0.0
    %3787 = vmatmul.mubr.f32.gmra.mrb[0].mxu0 %v3673
    %v3788 = vpop.f32.mrb[0].mxu0
    %v3789 = vadd.f32 0.0, %v3788
    %v3790 = vpop.f32.mrb[0].mxu0
    %3791 = vmatprep.mubr.f32.mxu0 0.0
    %3792 = vmatmul.mubr.f32.gmra.mrb[0].mxu0 %v3676
    %v3793 = vpop.f32.mrb[0].mxu0
    %v3794 = vadd.f32 0.0, %v3793
    %v3795 = vpop.f32.mrb[0].mxu0
    %3796 = vmatprep.mubr.f32.mxu0 0.0
    %3797 = vmatmul.mubr.f32.gmra.mrb[0].mxu0 %v3679
    %v3798 = vpop.f32.mrb[0].mxu0
    %v3799 = vadd.f32 0.0, %v3798
    %v3800 = vpop.f32.mrb[0].mxu0
    %3801 = vmatprep.mubr.f32.mxu0 0.0
    %3802 = vmatmul.mubr.f32.gmra.mrb[0].mxu0 %v3682
    %v3803 = vpop.f32.mrb[0].mxu0
    %v3804 = vadd.f32 0.0, %v3803
    %v3805 = vpop.f32.mrb[0].mxu0
    %3806 = vmatprep.mubr.f32.mxu0 0.0
    %3807 = vmatmul.mubr.f32.gmra.mrb[0].mxu0 %v3685
    %v3808 = vpop.f32.mrb[0].mxu0
    %v3809 = vadd.f32 0.0, %v3808
    %v3810 = vpop.f32.mrb[0].mxu0
    %3811 = vmatprep.mubr.f32.mxu0 0.0
    %3812 = vmatmul.mubr.f32.gmra.mrb[0].mxu0 %v3688
    %v3813 = vpop.f32.mrb[0].mxu0
    %v3814 = vadd.f32 0.0, %v3813
    %v3815 = vpop.f32.mrb[0].mxu0
    %3816 = vmatprep.mubr.f32.mxu0 0.0
    %3817 = vmatmul.mubr.f32.gmra.mrb[0].mxu0 %v3691
    %v3818 = vpop.f32.mrb[0].mxu0
    %v3819 = vadd.f32 0.0, %v3818
    %v3820 = vpop.f32.mrb[0].mxu0
    %3821 = vmatprep.mubr.f32.mxu0 0.0
    %3822 = vmatmul.mubr.f32.gmra.mrb[0].mxu0 %v3694
    %v3823 = vpop.f32.mrb[0].mxu0
    %v3824 = vadd.f32 0.0, %v3823
    %v3825 = vpop.f32.mrb[0].mxu0
    %3826 = vmatprep.mubr.f32.mxu0 0.0
    %3827 = vmatmul.mubr.f32.gmra.mrb[0].mxu0 %v3697
    %v3828 = vpop.f32.mrb[0].mxu0
    %v3829 = vadd.f32 0.0, %v3828
    %v3830 = vpop.f32.mrb[0].mxu0
    %3831 = vmatprep.mubr.f32.mxu0 0.0
    %3832 = vmatmul.mubr.f32.gmra.mrb[0].mxu0 %v3700
    %v3833 = vpop.f32.mrb[0].mxu0
    %v3834 = vadd.f32 0.0, %v3833
    %v3835 = vpop.f32.mrb[0].mxu0
    %3836 = vmatprep.mubr.f32.mxu0 0.0
    %3837 = vmatmul.mubr.f32.gmra.mrb[0].mxu0 %v3703
    %v3838 = vpop.f32.mrb[0].mxu0
    %v3839 = vadd.f32 0.0, %v3838
    %v3840 = vpop.f32.mrb[0].mxu0
    %3841 = vmatprep.mubr.f32.mxu0 0.0
    %3842 = vmatmul.mubr.f32.gmra.mrb[0].mxu0 %v3706
    %v3843 = vpop.f32.mrb[0].mxu0
    %v3844 = vadd.f32 0.0, %v3843
    %v3845 = vpop.f32.mrb[0].mxu0
    %3846 = vmatprep.mubr.f32.mxu0 0.0
    %3847 = vmatmul.mubr.f32.gmra.mrb[0].mxu0 %v3709
    %v3848 = vpop.f32.mrb[0].mxu0
    %v3849 = vadd.f32 0.0, %v3848
    %v3850 = vpop.f32.mrb[0].mxu0
    %3851 = vmatprep.mubr.f32.mxu0 0.0
    %3852 = vmatmul.mubr.f32.gmra.mrb[0].mxu0 %v3712
    %v3853 = vpop.f32.mrb[0].mxu0
    %v3854 = vadd.f32 0.0, %v3853
    %v3855 = vpop.f32.mrb[0].mxu0
    %3856 = vmatprep.mubr.f32.mxu0 0.0
    %3857 = vmatmul.mubr.f32.gmra.mrb[0].mxu0 %v3715
    %v3858 = vpop.f32.mrb[0].mxu0
    %v3859 = vadd.f32 0.0, %v3858
    %v3860 = vpop.f32.mrb[0].mxu0
    %3861 = vdwg.mxu0
    %v3862 = vmul.f32 %v558, %v558
    %v3863 = vrot.slane %v3862, 4
    %v3864 = vadd.f32 %v3862, %v3863
    %v3865 = vrot.slane %v3864, 2
    %v3866 = vadd.f32 %v3864, %v3865
    %v3867 = vrot.slane %v3866, 1
    %v3868 = vadd.f32 %v3866, %v3867
    %v3869 = vmul.f32 %v334, %v334
    %3870 = vxpose.xlu0.b32.start [1/16] %v3869, 128
    %3871 = vxpose.xlu0.b32.cont [2/16] 0.0, 128
    %3872 = vxpose.xlu0.b32.cont [3/16] 0.0, 128
    %3873 = vxpose.xlu0.b32.cont [4/16] 0.0, 128
    %3874 = vxpose.xlu0.b32.cont [5/16] 0.0, 128
    %3875 = vxpose.xlu0.b32.cont [6/16] 0.0, 128
    %3876 = vxpose.xlu0.b32.cont [7/16] 0.0, 128
    %3877 = vxpose.xlu0.b32.cont [8/16] 0.0, 128
    %3878 = vxpose.xlu0.b32.cont [9/16] 0.0, 128
    %3879 = vxpose.xlu0.b32.cont [10/16] 0.0, 128
    %3880 = vxpose.xlu0.b32.cont [11/16] 0.0, 128
    %3881 = vxpose.xlu0.b32.cont [12/16] 0.0, 128
    %3882 = vxpose.xlu0.b32.cont [13/16] 0.0, 128
    %3883 = vxpose.xlu0.b32.cont [14/16] 0.0, 128
    %3884 = vxpose.xlu0.b32.cont [15/16] 0.0, 128
    %3885 = vxpose.xlu0.b32.end [16/16] 0.0, 128
    %v3886 = vpop.trf.xlu0
    %v3887 = vpop.trf.xlu0
    %v3888 = vpop.trf.xlu0
    %v3889 = vpop.trf.xlu0
    %v3890 = vpop.trf.xlu0
    %v3891 = vpop.trf.xlu0
    %v3892 = vpop.trf.xlu0
    %v3893 = vpop.trf.xlu0
    %v3894 = vpop.trf.xlu0
    %v3895 = vpop.trf.xlu0
    %v3896 = vpop.trf.xlu0
    %v3897 = vpop.trf.xlu0
    %v3898 = vpop.trf.xlu0
    %v3899 = vpop.trf.xlu0
    %v3900 = vpop.trf.xlu0
    %v3901 = vpop.trf.xlu0
    %v3903 = vsel %vm825, %v3886, 0
    %v3906 = vsel %vm825, %v3887, 0
    %v3909 = vsel %vm825, %v3888, 0
    %v3912 = vsel %vm825, %v3889, 0
    %v3915 = vsel %vm825, %v3890, 0
    %v3918 = vsel %vm825, %v3891, 0
    %v3921 = vsel %vm825, %v3892, 0
    %v3924 = vsel %vm825, %v3893, 0
    %v3927 = vsel %vm825, %v3894, 0
    %v3930 = vsel %vm825, %v3895, 0
    %v3933 = vsel %vm825, %v3896, 0
    %v3936 = vsel %vm825, %v3897, 0
    %v3939 = vsel %vm825, %v3898, 0
    %v3942 = vsel %vm825, %v3899, 0
    %v3945 = vsel %vm825, %v3900, 0
    %v3948 = vsel %vm825, %v3901, 0
    %3950 = vmatprep.subr.mxu0 0.0
    %3951 = vmatpush1.msra.mxu0 %v3868
    %3952 = vmatprep.subr.mxu0 0.0
    %3953 = vmatpush1.msra.mxu0 0.0
    %3954 = vmatprep.subr.mxu0 0.0
    %3955 = vmatpush1.msra.mxu0 0.0
    %3956 = vmatprep.subr.mxu0 0.0
    %3957 = vmatpush1.msra.mxu0 0.0
    %3958 = vmatprep.subr.mxu0 0.0
    %3959 = vmatpush1.msra.mxu0 0.0
    %3960 = vmatprep.subr.mxu0 0.0
    %3961 = vmatpush1.msra.mxu0 0.0
    %3962 = vmatprep.subr.mxu0 0.0
    %3963 = vmatpush1.msra.mxu0 0.0
    %3964 = vmatprep.subr.mxu0 0.0
    %3965 = vmatpush1.msra.mxu0 0.0
    %3966 = vmatprep.subr.mxu0 0.0
    %3967 = vmatpush1.msra.mxu0 0.0
    %3968 = vmatprep.subr.mxu0 0.0
    %3969 = vmatpush1.msra.mxu0 0.0
    %3970 = vmatprep.subr.mxu0 0.0
    %3971 = vmatpush1.msra.mxu0 0.0
    %3972 = vmatprep.subr.mxu0 0.0
    %3973 = vmatpush1.msra.mxu0 0.0
    %3974 = vmatprep.subr.mxu0 0.0
    %3975 = vmatpush1.msra.mxu0 0.0
    %3976 = vmatprep.subr.mxu0 0.0
    %3977 = vmatpush1.msra.mxu0 0.0
    %3978 = vmatprep.subr.mxu0 0.0
    %3979 = vmatpush1.msra.mxu0 0.0
    %3980 = vmatprep.subr.mxu0 0.0
    %3981 = vmatpush1.msra.mxu0 0.0
    %3982 = vmatprep.subr.mxu0 0.0
    %3983 = vmatpush1.msra.mxu0 0.0
    %3984 = vmatprep.subr.mxu0 0.0
    %3985 = vmatpush1.msra.mxu0 0.0
    %3986 = vmatprep.subr.mxu0 0.0
    %3987 = vmatpush1.msra.mxu0 0.0
    %3988 = vmatprep.subr.mxu0 0.0
    %3989 = vmatpush1.msra.mxu0 0.0
    %3990 = vmatprep.subr.mxu0 0.0
    %3991 = vmatpush1.msra.mxu0 0.0
    %3992 = vmatprep.subr.mxu0 0.0
    %3993 = vmatpush1.msra.mxu0 0.0
    %3994 = vmatprep.subr.mxu0 0.0
    %3995 = vmatpush1.msra.mxu0 0.0
    %3996 = vmatprep.subr.mxu0 0.0
    %3997 = vmatpush1.msra.mxu0 0.0
    %3998 = vmatprep.subr.mxu0 0.0
    %3999 = vmatpush1.msra.mxu0 0.0
    %4000 = vmatprep.subr.mxu0 0.0
    %4001 = vmatpush1.msra.mxu0 0.0
    %4002 = vmatprep.subr.mxu0 0.0
    %4003 = vmatpush1.msra.mxu0 0.0
    %4004 = vmatprep.subr.mxu0 0.0
    %4005 = vmatpush1.msra.mxu0 0.0
    %4006 = vmatprep.subr.mxu0 0.0
    %4007 = vmatpush1.msra.mxu0 0.0
    %4008 = vmatprep.subr.mxu0 0.0
    %4009 = vmatpush1.msra.mxu0 0.0
    %4010 = vmatprep.subr.mxu0 0.0
    %4011 = vmatpush1.msra.mxu0 0.0
    %4012 = vmatprep.subr.mxu0 0.0
    %4013 = vmatpush1.msra.mxu0 0.0
    %4014 = vmatprep.mubr.f32.mxu0 0.0
    %4015 = vmatmul.mubr.f32.gmra.mrb[0].mxu0 %v3903
    %v4016 = vpop.f32.mrb[0].mxu0
    %v4017 = vadd.f32 0.0, %v4016
    %v4018 = vpop.f32.mrb[0].mxu0
    %4019 = vmatprep.mubr.f32.mxu0 0.0
    %4020 = vmatmul.mubr.f32.gmra.mrb[0].mxu0 %v3906
    %v4021 = vpop.f32.mrb[0].mxu0
    %v4022 = vadd.f32 0.0, %v4021
    %v4023 = vpop.f32.mrb[0].mxu0
    %4024 = vmatprep.mubr.f32.mxu0 0.0
    %4025 = vmatmul.mubr.f32.gmra.mrb[0].mxu0 %v3909
    %v4026 = vpop.f32.mrb[0].mxu0
    %v4027 = vadd.f32 0.0, %v4026
    %v4028 = vpop.f32.mrb[0].mxu0
    %4029 = vmatprep.mubr.f32.mxu0 0.0
    %4030 = vmatmul.mubr.f32.gmra.mrb[0].mxu0 %v3912
    %v4031 = vpop.f32.mrb[0].mxu0
    %v4032 = vadd.f32 0.0, %v4031
    %v4033 = vpop.f32.mrb[0].mxu0
    %4034 = vmatprep.mubr.f32.mxu0 0.0
    %4035 = vmatmul.mubr.f32.gmra.mrb[0].mxu0 %v3915
    %v4036 = vpop.f32.mrb[0].mxu0
    %v4037 = vadd.f32 0.0, %v4036
    %v4038 = vpop.f32.mrb[0].mxu0
    %4039 = vmatprep.mubr.f32.mxu0 0.0
    %4040 = vmatmul.mubr.f32.gmra.mrb[0].mxu0 %v3918
    %v4041 = vpop.f32.mrb[0].mxu0
    %v4042 = vadd.f32 0.0, %v4041
    %v4043 = vpop.f32.mrb[0].mxu0
    %4044 = vmatprep.mubr.f32.mxu0 0.0
    %4045 = vmatmul.mubr.f32.gmra.mrb[0].mxu0 %v3921
    %v4046 = vpop.f32.mrb[0].mxu0
    %v4047 = vadd.f32 0.0, %v4046
    %v4048 = vpop.f32.mrb[0].mxu0
    %4049 = vmatprep.mubr.f32.mxu0 0.0
    %4050 = vmatmul.mubr.f32.gmra.mrb[0].mxu0 %v3924
    %v4051 = vpop.f32.mrb[0].mxu0
    %v4052 = vadd.f32 0.0, %v4051
    %v4053 = vpop.f32.mrb[0].mxu0
    %4054 = vmatprep.mubr.f32.mxu0 0.0
    %4055 = vmatmul.mubr.f32.gmra.mrb[0].mxu0 %v3927
    %v4056 = vpop.f32.mrb[0].mxu0
    %v4057 = vadd.f32 0.0, %v4056
    %v4058 = vpop.f32.mrb[0].mxu0
    %4059 = vmatprep.mubr.f32.mxu0 0.0
    %4060 = vmatmul.mubr.f32.gmra.mrb[0].mxu0 %v3930
    %v4061 = vpop.f32.mrb[0].mxu0
    %v4062 = vadd.f32 0.0, %v4061
    %v4063 = vpop.f32.mrb[0].mxu0
    %4064 = vmatprep.mubr.f32.mxu0 0.0
    %4065 = vmatmul.mubr.f32.gmra.mrb[0].mxu0 %v3933
    %v4066 = vpop.f32.mrb[0].mxu0
    %v4067 = vadd.f32 0.0, %v4066
    %v4068 = vpop.f32.mrb[0].mxu0
    %4069 = vmatprep.mubr.f32.mxu0 0.0
    %4070 = vmatmul.mubr.f32.gmra.mrb[0].mxu0 %v3936
    %v4071 = vpop.f32.mrb[0].mxu0
    %v4072 = vadd.f32 0.0, %v4071
    %v4073 = vpop.f32.mrb[0].mxu0
    %4074 = vmatprep.mubr.f32.mxu0 0.0
    %4075 = vmatmul.mubr.f32.gmra.mrb[0].mxu0 %v3939
    %v4076 = vpop.f32.mrb[0].mxu0
    %v4077 = vadd.f32 0.0, %v4076
    %v4078 = vpop.f32.mrb[0].mxu0
    %4079 = vmatprep.mubr.f32.mxu0 0.0
    %4080 = vmatmul.mubr.f32.gmra.mrb[0].mxu0 %v3942
    %v4081 = vpop.f32.mrb[0].mxu0
    %v4082 = vadd.f32 0.0, %v4081
    %v4083 = vpop.f32.mrb[0].mxu0
    %4084 = vmatprep.mubr.f32.mxu0 0.0
    %4085 = vmatmul.mubr.f32.gmra.mrb[0].mxu0 %v3945
    %v4086 = vpop.f32.mrb[0].mxu0
    %v4087 = vadd.f32 0.0, %v4086
    %v4088 = vpop.f32.mrb[0].mxu0
    %4089 = vmatprep.mubr.f32.mxu0 0.0
    %4090 = vmatmul.mubr.f32.gmra.mrb[0].mxu0 %v3948
    %v4091 = vpop.f32.mrb[0].mxu0
    %v4092 = vadd.f32 0.0, %v4091
    %v4093 = vpop.f32.mrb[0].mxu0
    %4094 = vdwg.mxu0
    %v4095 = vmul.f32 %v3784, %v3784
    %v4096 = vmul.f32 %v3789, %v3789
    %v4097 = vmul.f32 %v3794, %v3794
    %v4098 = vmul.f32 %v3799, %v3799
    %v4099 = vmul.f32 %v3804, %v3804
    %v4100 = vmul.f32 %v3809, %v3809
    %v4101 = vmul.f32 %v3814, %v3814
    %v4102 = vmul.f32 %v3819, %v3819
    %v4103 = vmul.f32 %v3824, %v3824
    %v4104 = vmul.f32 %v3829, %v3829
    %v4105 = vmul.f32 %v3834, %v3834
    %v4106 = vmul.f32 %v3839, %v3839
    %v4107 = vmul.f32 %v3844, %v3844
    %v4108 = vmul.f32 %v3849, %v3849
    %v4109 = vmul.f32 %v3854, %v3854
    %v4110 = vmul.f32 %v3859, %v3859
    %v4111 = vsub.f32 %v4017, %v4095
    %v4112 = vsub.f32 %v4022, %v4096
    %v4113 = vsub.f32 %v4027, %v4097
    %v4114 = vsub.f32 %v4032, %v4098
    %v4115 = vsub.f32 %v4037, %v4099
    %v4116 = vsub.f32 %v4042, %v4100
    %v4117 = vsub.f32 %v4047, %v4101
    %v4118 = vsub.f32 %v4052, %v4102
    %v4119 = vsub.f32 %v4057, %v4103
    %v4120 = vsub.f32 %v4062, %v4104
    %v4121 = vsub.f32 %v4067, %v4105
    %v4122 = vsub.f32 %v4072, %v4106
    %v4123 = vsub.f32 %v4077, %v4107
    %v4124 = vsub.f32 %v4082, %v4108
    %v4125 = vsub.f32 %v4087, %v4109
    %v4126 = vsub.f32 %v4092, %v4110
    %v4127 = vmax.f32 %v4111, 0.0
    %v4128 = vmax.f32 %v4112, 0.0
    %v4129 = vmax.f32 %v4113, 0.0
    %v4130 = vmax.f32 %v4114, 0.0
    %v4131 = vmax.f32 %v4115, 0.0
    %v4132 = vmax.f32 %v4116, 0.0
    %v4133 = vmax.f32 %v4117, 0.0
    %v4134 = vmax.f32 %v4118, 0.0
    %v4135 = vmax.f32 %v4119, 0.0
    %v4136 = vmax.f32 %v4120, 0.0
    %v4137 = vmax.f32 %v4121, 0.0
    %v4138 = vmax.f32 %v4122, 0.0
    %v4139 = vmax.f32 %v4123, 0.0
    %v4140 = vmax.f32 %v4124, 0.0
    %v4141 = vmax.f32 %v4125, 0.0
    %v4142 = vmax.f32 %v4126, 0.0
    %v4143 = vadd.f32 %v4127, 1e-08
    %v4144 = vadd.f32 %v4128, 1e-08
    %v4145 = vadd.f32 %v4129, 1e-08
    %v4146 = vadd.f32 %v4130, 1e-08
    %v4147 = vadd.f32 %v4131, 1e-08
    %v4148 = vadd.f32 %v4132, 1e-08
    %v4149 = vadd.f32 %v4133, 1e-08
    %v4150 = vadd.f32 %v4134, 1e-08
    %v4151 = vadd.f32 %v4135, 1e-08
    %v4152 = vadd.f32 %v4136, 1e-08
    %v4153 = vadd.f32 %v4137, 1e-08
    %v4154 = vadd.f32 %v4138, 1e-08
    %v4155 = vadd.f32 %v4139, 1e-08
    %v4156 = vadd.f32 %v4140, 1e-08
    %v4157 = vadd.f32 %v4141, 1e-08
    %v4158 = vadd.f32 %v4142, 1e-08
    %v4159 = vrsqrt.pop %v4143
    %v4160 = vmul.f32 %v4143, %v4159
    %vm4161 = vcmp.eq.f32.partialorder %v4143, inf
    %v4162 = vsel %vm4161, %v4143, %v4160
    %vm4163 = vcmp.eq.f32.partialorder %v4143, 0.0
    %v4164 = vand.u32 %v4143, 2147483648
    %v4165 = vsel %vm4163, %v4164, %v4162
    %v4166 = vrsqrt.pop %v4144
    %v4167 = vmul.f32 %v4144, %v4166
    %vm4168 = vcmp.eq.f32.partialorder %v4144, inf
    %v4169 = vsel %vm4168, %v4144, %v4167
    %vm4170 = vcmp.eq.f32.partialorder %v4144, 0.0
    %v4171 = vand.u32 %v4144, 2147483648
    %v4172 = vsel %vm4170, %v4171, %v4169
    %v4173 = vrsqrt.pop %v4145
    %v4174 = vmul.f32 %v4145, %v4173
    %vm4175 = vcmp.eq.f32.partialorder %v4145, inf
    %v4176 = vsel %vm4175, %v4145, %v4174
    %vm4177 = vcmp.eq.f32.partialorder %v4145, 0.0
    %v4178 = vand.u32 %v4145, 2147483648
    %v4179 = vsel %vm4177, %v4178, %v4176
    %v4180 = vrsqrt.pop %v4146
    %v4181 = vmul.f32 %v4146, %v4180
    %vm4182 = vcmp.eq.f32.partialorder %v4146, inf
    %v4183 = vsel %vm4182, %v4146, %v4181
    %vm4184 = vcmp.eq.f32.partialorder %v4146, 0.0
    %v4185 = vand.u32 %v4146, 2147483648
    %v4186 = vsel %vm4184, %v4185, %v4183
    %v4187 = vrsqrt.pop %v4147
    %v4188 = vmul.f32 %v4147, %v4187
    %vm4189 = vcmp.eq.f32.partialorder %v4147, inf
    %v4190 = vsel %vm4189, %v4147, %v4188
    %vm4191 = vcmp.eq.f32.partialorder %v4147, 0.0
    %v4192 = vand.u32 %v4147, 2147483648
    %v4193 = vsel %vm4191, %v4192, %v4190
    %v4194 = vrsqrt.pop %v4148
    %v4195 = vmul.f32 %v4148, %v4194
    %vm4196 = vcmp.eq.f32.partialorder %v4148, inf
    %v4197 = vsel %vm4196, %v4148, %v4195
    %vm4198 = vcmp.eq.f32.partialorder %v4148, 0.0
    %v4199 = vand.u32 %v4148, 2147483648
    %v4200 = vsel %vm4198, %v4199, %v4197
    %v4201 = vrsqrt.pop %v4149
    %v4202 = vmul.f32 %v4149, %v4201
    %vm4203 = vcmp.eq.f32.partialorder %v4149, inf
    %v4204 = vsel %vm4203, %v4149, %v4202
    %vm4205 = vcmp.eq.f32.partialorder %v4149, 0.0
    %v4206 = vand.u32 %v4149, 2147483648
    %v4207 = vsel %vm4205, %v4206, %v4204
    %v4208 = vrsqrt.pop %v4150
    %v4209 = vmul.f32 %v4150, %v4208
    %vm4210 = vcmp.eq.f32.partialorder %v4150, inf
    %v4211 = vsel %vm4210, %v4150, %v4209
    %vm4212 = vcmp.eq.f32.partialorder %v4150, 0.0
    %v4213 = vand.u32 %v4150, 2147483648
    %v4214 = vsel %vm4212, %v4213, %v4211
    %v4215 = vrsqrt.pop %v4151
    %v4216 = vmul.f32 %v4151, %v4215
    %vm4217 = vcmp.eq.f32.partialorder %v4151, inf
    %v4218 = vsel %vm4217, %v4151, %v4216
    %vm4219 = vcmp.eq.f32.partialorder %v4151, 0.0
    %v4220 = vand.u32 %v4151, 2147483648
    %v4221 = vsel %vm4219, %v4220, %v4218
    %v4222 = vrsqrt.pop %v4152
    %v4223 = vmul.f32 %v4152, %v4222
    %vm4224 = vcmp.eq.f32.partialorder %v4152, inf
    %v4225 = vsel %vm4224, %v4152, %v4223
    %vm4226 = vcmp.eq.f32.partialorder %v4152, 0.0
    %v4227 = vand.u32 %v4152, 2147483648
    %v4228 = vsel %vm4226, %v4227, %v4225
    %v4229 = vrsqrt.pop %v4153
    %v4230 = vmul.f32 %v4153, %v4229
    %vm4231 = vcmp.eq.f32.partialorder %v4153, inf
    %v4232 = vsel %vm4231, %v4153, %v4230
    %vm4233 = vcmp.eq.f32.partialorder %v4153, 0.0
    %v4234 = vand.u32 %v4153, 2147483648
    %v4235 = vsel %vm4233, %v4234, %v4232
    %v4236 = vrsqrt.pop %v4154
    %v4237 = vmul.f32 %v4154, %v4236
    %vm4238 = vcmp.eq.f32.partialorder %v4154, inf
    %v4239 = vsel %vm4238, %v4154, %v4237
    %vm4240 = vcmp.eq.f32.partialorder %v4154, 0.0
    %v4241 = vand.u32 %v4154, 2147483648
    %v4242 = vsel %vm4240, %v4241, %v4239
    %v4243 = vrsqrt.pop %v4155
    %v4244 = vmul.f32 %v4155, %v4243
    %vm4245 = vcmp.eq.f32.partialorder %v4155, inf
    %v4246 = vsel %vm4245, %v4155, %v4244
    %vm4247 = vcmp.eq.f32.partialorder %v4155, 0.0
    %v4248 = vand.u32 %v4155, 2147483648
    %v4249 = vsel %vm4247, %v4248, %v4246
    %v4250 = vrsqrt.pop %v4156
    %v4251 = vmul.f32 %v4156, %v4250
    %vm4252 = vcmp.eq.f32.partialorder %v4156, inf
    %v4253 = vsel %vm4252, %v4156, %v4251
    %vm4254 = vcmp.eq.f32.partialorder %v4156, 0.0
    %v4255 = vand.u32 %v4156, 2147483648
    %v4256 = vsel %vm4254, %v4255, %v4253
    %v4257 = vrsqrt.pop %v4157
    %v4258 = vmul.f32 %v4157, %v4257
    %vm4259 = vcmp.eq.f32.partialorder %v4157, inf
    %v4260 = vsel %vm4259, %v4157, %v4258
    %vm4261 = vcmp.eq.f32.partialorder %v4157, 0.0
    %v4262 = vand.u32 %v4157, 2147483648
    %v4263 = vsel %vm4261, %v4262, %v4260
    %v4264 = vrsqrt.pop %v4158
    %v4265 = vmul.f32 %v4158, %v4264
    %vm4266 = vcmp.eq.f32.partialorder %v4158, inf
    %v4267 = vsel %vm4266, %v4158, %v4265
    %vm4268 = vcmp.eq.f32.partialorder %v4158, 0.0
    %v4269 = vand.u32 %v4158, 2147483648
    %v4270 = vsel %vm4268, %v4269, %v4267
    %v4271 = vmul.f32 %v3784, 0.17677669
    %v4272 = vmul.f32 %v3789, 0.17677669
    %v4273 = vmul.f32 %v3794, 0.17677669
    %v4274 = vmul.f32 %v3799, 0.17677669
    %v4275 = vmul.f32 %v3804, 0.17677669
    %v4276 = vmul.f32 %v3809, 0.17677669
    %v4277 = vmul.f32 %v3814, 0.17677669
    %v4278 = vmul.f32 %v3819, 0.17677669
    %v4279 = vmul.f32 %v3824, 0.17677669
    %v4280 = vmul.f32 %v3829, 0.17677669
    %v4281 = vmul.f32 %v3834, 0.17677669
    %v4282 = vmul.f32 %v3839, 0.17677669
    %v4283 = vmul.f32 %v3844, 0.17677669
    %v4284 = vmul.f32 %v3849, 0.17677669
    %v4285 = vmul.f32 %v3854, 0.17677669
    %v4286 = vmul.f32 %v3859, 0.17677669
    %v4287 = vmul.f32 %v4165, 0.17677669
    %v4288 = vmul.f32 %v4172, 0.17677669
    %v4289 = vmul.f32 %v4179, 0.17677669
    %v4290 = vmul.f32 %v4186, 0.17677669
    %v4291 = vmul.f32 %v4193, 0.17677669
    %v4292 = vmul.f32 %v4200, 0.17677669
    %v4293 = vmul.f32 %v4207, 0.17677669
    %v4294 = vmul.f32 %v4214, 0.17677669
    %v4295 = vmul.f32 %v4221, 0.17677669
    %v4296 = vmul.f32 %v4228, 0.17677669
    %v4297 = vmul.f32 %v4235, 0.17677669
    %v4298 = vmul.f32 %v4242, 0.17677669
    %v4299 = vmul.f32 %v4249, 0.17677669
    %v4300 = vmul.f32 %v4256, 0.17677669
    %v4301 = vmul.f32 %v4263, 0.17677669
    %v4302 = vmul.f32 %v4270, 0.17677669
    %v4303 = vadd.f32 %v4271, %v4287
    %v4304 = vadd.f32 %v4272, %v4288
    %v4305 = vadd.f32 %v4273, %v4289
    %v4306 = vadd.f32 %v4274, %v4290
    %v4307 = vadd.f32 %v4275, %v4291
    %v4308 = vadd.f32 %v4276, %v4292
    %v4309 = vadd.f32 %v4277, %v4293
    %v4310 = vadd.f32 %v4278, %v4294
    %v4311 = vadd.f32 %v4279, %v4295
    %v4312 = vadd.f32 %v4280, %v4296
    %v4313 = vadd.f32 %v4281, %v4297
    %v4314 = vadd.f32 %v4282, %v4298
    %v4315 = vadd.f32 %v4283, %v4299
    %v4316 = vadd.f32 %v4284, %v4300
    %v4317 = vadd.f32 %v4285, %v4301
    %v4318 = vadd.f32 %v4286, %v4302
    %4319 = vmax.xlane.f32.xlu0 %v4303
    %v4320 = vpop.xlane.xlu0 %4319
    %4321 = vmax.xlane.f32.xlu0 %v4304
    %v4322 = vpop.xlane.xlu0 %4321
    %4323 = vmax.xlane.f32.xlu0 %v4305
    %v4324 = vpop.xlane.xlu0 %4323
    %4325 = vmax.xlane.f32.xlu0 %v4306
    %v4326 = vpop.xlane.xlu0 %4325
    %4327 = vmax.xlane.f32.xlu0 %v4307
    %v4328 = vpop.xlane.xlu0 %4327
    %4329 = vmax.xlane.f32.xlu0 %v4308
    %v4330 = vpop.xlane.xlu0 %4329
    %4331 = vmax.xlane.f32.xlu0 %v4309
    %v4332 = vpop.xlane.xlu0 %4331
    %4333 = vmax.xlane.f32.xlu0 %v4310
    %v4334 = vpop.xlane.xlu0 %4333
    %4335 = vmax.xlane.f32.xlu0 %v4311
    %v4336 = vpop.xlane.xlu0 %4335
    %4337 = vmax.xlane.f32.xlu0 %v4312
    %v4338 = vpop.xlane.xlu0 %4337
    %4339 = vmax.xlane.f32.xlu0 %v4313
    %v4340 = vpop.xlane.xlu0 %4339
    %4341 = vmax.xlane.f32.xlu0 %v4314
    %v4342 = vpop.xlane.xlu0 %4341
    %4343 = vmax.xlane.f32.xlu0 %v4315
    %v4344 = vpop.xlane.xlu0 %4343
    %4345 = vmax.xlane.f32.xlu0 %v4316
    %v4346 = vpop.xlane.xlu0 %4345
    %4347 = vmax.xlane.f32.xlu0 %v4317
    %v4348 = vpop.xlane.xlu0 %4347
    %4349 = vmax.xlane.f32.xlu0 %v4318
    %v4350 = vpop.xlane.xlu0 %4349
    %v4351 = vsub.f32 %v4303, %v4320
    %v4352 = vsub.f32 %v4304, %v4322
    %v4353 = vsub.f32 %v4305, %v4324
    %v4354 = vsub.f32 %v4306, %v4326
    %v4355 = vsub.f32 %v4307, %v4328
    %v4356 = vsub.f32 %v4308, %v4330
    %v4357 = vsub.f32 %v4309, %v4332
    %v4358 = vsub.f32 %v4310, %v4334
    %v4359 = vsub.f32 %v4311, %v4336
    %v4360 = vsub.f32 %v4312, %v4338
    %v4361 = vsub.f32 %v4313, %v4340
    %v4362 = vsub.f32 %v4314, %v4342
    %v4363 = vsub.f32 %v4315, %v4344
    %v4364 = vsub.f32 %v4316, %v4346
    %v4365 = vsub.f32 %v4317, %v4348
    %v4366 = vsub.f32 %v4318, %v4350
    %v4367 = vmul.f32 %v4351, 1.442695
    %v4368 = vpow.pop %v4367
    %v4369 = vmul.f32 %v4352, 1.442695
    %v4370 = vpow.pop %v4369
    %v4371 = vmul.f32 %v4353, 1.442695
    %v4372 = vpow.pop %v4371
    %v4373 = vmul.f32 %v4354, 1.442695
    %v4374 = vpow.pop %v4373
    %v4375 = vmul.f32 %v4355, 1.442695
    %v4376 = vpow.pop %v4375
    %v4377 = vmul.f32 %v4356, 1.442695
    %v4378 = vpow.pop %v4377
    %v4379 = vmul.f32 %v4357, 1.442695
    %v4380 = vpow.pop %v4379
    %v4381 = vmul.f32 %v4358, 1.442695
    %v4382 = vpow.pop %v4381
    %v4383 = vmul.f32 %v4359, 1.442695
    %v4384 = vpow.pop %v4383
    %v4385 = vmul.f32 %v4360, 1.442695
    %v4386 = vpow.pop %v4385
    %v4387 = vmul.f32 %v4361, 1.442695
    %v4388 = vpow.pop %v4387
    %v4389 = vmul.f32 %v4362, 1.442695
    %v4390 = vpow.pop %v4389
    %v4391 = vmul.f32 %v4363, 1.442695
    %v4392 = vpow.pop %v4391
    %v4393 = vmul.f32 %v4364, 1.442695
    %v4394 = vpow.pop %v4393
    %v4395 = vmul.f32 %v4365, 1.442695
    %v4396 = vpow.pop %v4395
    %v4397 = vmul.f32 %v4366, 1.442695
    %v4398 = vpow.pop %v4397
    %4399 = vadd.xlane.f32.xlu0 %v4368
    %v4400 = vpop.xlane.xlu0 %4399
    %4401 = vadd.xlane.f32.xlu0 %v4370
    %v4402 = vpop.xlane.xlu0 %4401
    %4403 = vadd.xlane.f32.xlu0 %v4372
    %v4404 = vpop.xlane.xlu0 %4403
    %4405 = vadd.xlane.f32.xlu0 %v4374
    %v4406 = vpop.xlane.xlu0 %4405
    %4407 = vadd.xlane.f32.xlu0 %v4376
    %v4408 = vpop.xlane.xlu0 %4407
    %4409 = vadd.xlane.f32.xlu0 %v4378
    %v4410 = vpop.xlane.xlu0 %4409
    %4411 = vadd.xlane.f32.xlu0 %v4380
    %v4412 = vpop.xlane.xlu0 %4411
    %4413 = vadd.xlane.f32.xlu0 %v4382
    %v4414 = vpop.xlane.xlu0 %4413
    %4415 = vadd.xlane.f32.xlu0 %v4384
    %v4416 = vpop.xlane.xlu0 %4415
    %4417 = vadd.xlane.f32.xlu0 %v4386
    %v4418 = vpop.xlane.xlu0 %4417
    %4419 = vadd.xlane.f32.xlu0 %v4388
    %v4420 = vpop.xlane.xlu0 %4419
    %4421 = vadd.xlane.f32.xlu0 %v4390
    %v4422 = vpop.xlane.xlu0 %4421
    %4423 = vadd.xlane.f32.xlu0 %v4392
    %v4424 = vpop.xlane.xlu0 %4423
    %4425 = vadd.xlane.f32.xlu0 %v4394
    %v4426 = vpop.xlane.xlu0 %4425
    %4427 = vadd.xlane.f32.xlu0 %v4396
    %v4428 = vpop.xlane.xlu0 %4427
    %4429 = vadd.xlane.f32.xlu0 %v4398
    %v4430 = vpop.xlane.xlu0 %4429
    %v4431 = vrcp.pop %v4400
    %v4432 = vrcp.pop %v4402
    %v4433 = vrcp.pop %v4404
    %v4434 = vrcp.pop %v4406
    %v4435 = vrcp.pop %v4408
    %v4436 = vrcp.pop %v4410
    %v4437 = vrcp.pop %v4412
    %v4438 = vrcp.pop %v4414
    %v4439 = vrcp.pop %v4416
    %v4440 = vrcp.pop %v4418
    %v4441 = vrcp.pop %v4420
    %v4442 = vrcp.pop %v4422
    %v4443 = vrcp.pop %v4424
    %v4444 = vrcp.pop %v4426
    %v4445 = vrcp.pop %v4428
    %v4446 = vrcp.pop %v4430
    %v4447 = vmul.f32 %v4368, %v4431
    %v4448 = vmul.f32 %v4370, %v4432
    %v4449 = vmul.f32 %v4372, %v4433
    %v4450 = vmul.f32 %v4374, %v4434
    %v4451 = vmul.f32 %v4376, %v4435
    %v4452 = vmul.f32 %v4378, %v4436
    %v4453 = vmul.f32 %v4380, %v4437
    %v4454 = vmul.f32 %v4382, %v4438
    %v4455 = vmul.f32 %v4384, %v4439
    %v4456 = vmul.f32 %v4386, %v4440
    %v4457 = vmul.f32 %v4388, %v4441
    %v4458 = vmul.f32 %v4390, %v4442
    %v4459 = vmul.f32 %v4392, %v4443
    %v4460 = vmul.f32 %v4394, %v4444
    %v4461 = vmul.f32 %v4396, %v4445
    %v4462 = vmul.f32 %v4398, %v4446
    %v4463 = vpack.c.bf16 %v4448, %v4447
    %v4464 = vpack.c.bf16 %v4450, %v4449
    %v4465 = vpack.c.bf16 %v4452, %v4451
    %v4466 = vpack.c.bf16 %v4454, %v4453
    %v4467 = vpack.c.bf16 %v4456, %v4455
    %v4468 = vpack.c.bf16 %v4458, %v4457
    %v4469 = vpack.c.bf16 %v4460, %v4459
    %v4470 = vpack.c.bf16 %v4462, %v4461
    %v4479 = vunpack.c.l.b16 %v4463
    %v4480 = vunpack.c.h.b16 %v4463
    %v4481 = vunpack.c.l.b16 %v4464
    %v4482 = vunpack.c.h.b16 %v4464
    %v4483 = vunpack.c.l.b16 %v4465
    %v4484 = vunpack.c.h.b16 %v4465
    %v4485 = vunpack.c.l.b16 %v4466
    %v4486 = vunpack.c.h.b16 %v4466
    %v4487 = vunpack.c.l.b16 %v4467
    %v4488 = vunpack.c.h.b16 %v4467
    %v4489 = vunpack.c.l.b16 %v4468
    %v4490 = vunpack.c.h.b16 %v4468
    %v4491 = vunpack.c.l.b16 %v4469
    %v4492 = vunpack.c.h.b16 %v4469
    %v4493 = vunpack.c.l.b16 %v4470
    %v4494 = vunpack.c.h.b16 %v4470
    %v4495 = vpack.c.b16 %v4479, %v4479
    %v4496 = vpack.c.b16 %v4480, %v4480
    %v4497 = vpack.c.b16 %v4481, %v4481
    %v4498 = vpack.c.b16 %v4482, %v4482
    %v4499 = vpack.c.b16 %v4483, %v4483
    %v4500 = vpack.c.b16 %v4484, %v4484
    %v4501 = vpack.c.b16 %v4485, %v4485
    %v4502 = vpack.c.b16 %v4486, %v4486
    %v4503 = vpack.c.b16 %v4487, %v4487
    %v4504 = vpack.c.b16 %v4488, %v4488
    %v4505 = vpack.c.b16 %v4489, %v4489
    %v4506 = vpack.c.b16 %v4490, %v4490
    %v4507 = vpack.c.b16 %v4491, %v4491
    %v4508 = vpack.c.b16 %v4492, %v4492
    %v4509 = vpack.c.b16 %v4493, %v4493
    %v4510 = vpack.c.b16 %v4494, %v4494
    %s4527 = scalar_lea.vmem [#allocation6], 256
    %4528 = vst [vmem:[%s4527] sm:$0xf] %v4495
    %4529 = vst [vmem:[%s4527 + $0x4] sm:$0xf] %v4496
    %4530 = vst [vmem:[%s4527 + $0x8] sm:$0xf] %v4497
    %4531 = vst [vmem:[%s4527 + $0xc] sm:$0xf] %v4498
    %4532 = vst [vmem:[%s4527 + $0x10] sm:$0xf] %v4499
    %4533 = vst [vmem:[%s4527 + $0x14] sm:$0xf] %v4500
    %4534 = vst [vmem:[%s4527 + $0x18] sm:$0xf] %v4501
    %4535 = vst [vmem:[%s4527 + $0x1c] sm:$0xf] %v4502
    %4536 = vst [vmem:[%s4527 + $0x20] sm:$0xf] %v4503
    %4537 = vst [vmem:[%s4527 + $0x24] sm:$0xf] %v4504
    %4538 = vst [vmem:[%s4527 + $0x28] sm:$0xf] %v4505
    %4539 = vst [vmem:[%s4527 + $0x2c] sm:$0xf] %v4506
    %4540 = vst [vmem:[%s4527 + $0x30] sm:$0xf] %v4507
    %4541 = vst [vmem:[%s4527 + $0x34] sm:$0xf] %v4508
    %4542 = vst [vmem:[%s4527 + $0x38] sm:$0xf] %v4509
    %4543 = vst [vmem:[%s4527 + $0x3c] sm:$0xf] %v4510
    %v4544 = vpack.c.bf16 %v782, %v782
    %4545 = vmatprep.subr.bf16.mxu0 0
    %4546 = vmatpush1.bf16.xpose.msra.mxu0 %v4463
    %4547 = vmatprep.subr.bf16.mxu0 0
    %4548 = vmatpush1.bf16.xpose.msra.mxu0 %v4464
    %4549 = vmatprep.subr.bf16.mxu0 0
    %4550 = vmatpush1.bf16.xpose.msra.mxu0 %v4465
    %4551 = vmatprep.subr.bf16.mxu0 0
    %4552 = vmatpush1.bf16.xpose.msra.mxu0 %v4466
    %4553 = vmatprep.subr.bf16.mxu0 0
    %4554 = vmatpush1.bf16.xpose.msra.mxu0 %v4467
    %4555 = vmatprep.subr.bf16.mxu0 0
    %4556 = vmatpush1.bf16.xpose.msra.mxu0 %v4468
    %4557 = vmatprep.subr.bf16.mxu0 0
    %4558 = vmatpush1.bf16.xpose.msra.mxu0 %v4469
    %4559 = vmatprep.subr.bf16.mxu0 0
    %4560 = vmatpush1.bf16.xpose.msra.mxu0 %v4470
    %4561 = vmatprep.subr.bf16.mxu0 0
    %4562 = vmatpush1.bf16.xpose.msra.mxu0 0
    %4563 = vmatprep.subr.bf16.mxu0 0
    %4564 = vmatpush1.bf16.xpose.msra.mxu0 0
    %4565 = vmatprep.subr.bf16.mxu0 0
    %4566 = vmatpush1.bf16.xpose.msra.mxu0 0
    %4567 = vmatprep.subr.bf16.mxu0 0
    %4568 = vmatpush1.bf16.xpose.msra.mxu0 0
    %4569 = vmatprep.subr.bf16.mxu0 0
    %4570 = vmatpush1.bf16.xpose.msra.mxu0 0
    %4571 = vmatprep.subr.bf16.mxu0 0
    %4572 = vmatpush1.bf16.xpose.msra.mxu0 0
    %4573 = vmatprep.subr.bf16.mxu0 0
    %4574 = vmatpush1.bf16.xpose.msra.mxu0 0
    %4575 = vmatprep.subr.bf16.mxu0 0
    %4576 = vmatpush1.bf16.xpose.msra.mxu0 0
    %4577 = vmatprep.mubr.bf16.mxu0 0
    %4578 = vmatmul.mubr.bf16.gmra.mrb[0].mxu0 %v4544
    %v4579 = vpop.f32.mrb[0].mxu0
    %v4580 = vadd.f32 0.0, %v4579
    %v4581 = vpop.f32.mrb[0].mxu0
    %v4582 = vpop.f32.mrb[0].mxu0
    %v4583 = vpop.f32.mrb[0].mxu0
    %4584 = vdwg.mxu0
    %4585 = vxpose.xlu0.b32.start [1/16] %v339, 128
    %4586 = vxpose.xlu0.b32.cont [2/16] 0.0, 128
    %4587 = vxpose.xlu0.b32.cont [3/16] 0.0, 128
    %4588 = vxpose.xlu0.b32.cont [4/16] 0.0, 128
    %4589 = vxpose.xlu0.b32.cont [5/16] 0.0, 128
    %4590 = vxpose.xlu0.b32.cont [6/16] 0.0, 128
    %4591 = vxpose.xlu0.b32.cont [7/16] 0.0, 128
    %4592 = vxpose.xlu0.b32.cont [8/16] 0.0, 128
    %4593 = vxpose.xlu0.b32.cont [9/16] 0.0, 128
    %4594 = vxpose.xlu0.b32.cont [10/16] 0.0, 128
    %4595 = vxpose.xlu0.b32.cont [11/16] 0.0, 128
    %4596 = vxpose.xlu0.b32.cont [12/16] 0.0, 128
    %4597 = vxpose.xlu0.b32.cont [13/16] 0.0, 128
    %4598 = vxpose.xlu0.b32.cont [14/16] 0.0, 128
    %4599 = vxpose.xlu0.b32.cont [15/16] 0.0, 128
    %4600 = vxpose.xlu0.b32.end [16/16] 0.0, 128
    %v4601 = vpop.trf.xlu0
    %v4602 = vpop.trf.xlu0
    %v4603 = vpop.trf.xlu0
    %v4604 = vpop.trf.xlu0
    %v4605 = vpop.trf.xlu0
    %v4606 = vpop.trf.xlu0
    %v4607 = vpop.trf.xlu0
    %v4608 = vpop.trf.xlu0
    %v4609 = vpop.trf.xlu0
    %v4610 = vpop.trf.xlu0
    %v4611 = vpop.trf.xlu0
    %v4612 = vpop.trf.xlu0
    %v4613 = vpop.trf.xlu0
    %v4614 = vpop.trf.xlu0
    %v4615 = vpop.trf.xlu0
    %v4616 = vpop.trf.xlu0
    %v4618 = vsel %vm825, %v4601, 0
    %v4621 = vsel %vm825, %v4602, 0
    %v4624 = vsel %vm825, %v4603, 0
    %v4627 = vsel %vm825, %v4604, 0
    %v4630 = vsel %vm825, %v4605, 0
    %v4633 = vsel %vm825, %v4606, 0
    %v4636 = vsel %vm825, %v4607, 0
    %v4639 = vsel %vm825, %v4608, 0
    %v4642 = vsel %vm825, %v4609, 0
    %v4645 = vsel %vm825, %v4610, 0
    %v4648 = vsel %vm825, %v4611, 0
    %v4651 = vsel %vm825, %v4612, 0
    %v4654 = vsel %vm825, %v4613, 0
    %v4657 = vsel %vm825, %v4614, 0
    %v4660 = vsel %vm825, %v4615, 0
    %v4663 = vsel %vm825, %v4616, 0
    %4665 = vmatprep.subr.mxu0 0.0
    %4666 = vmatpush1.msra.mxu0 %v563
    %4667 = vmatprep.subr.mxu0 0.0
    %4668 = vmatpush1.msra.mxu0 0.0
    %4669 = vmatprep.subr.mxu0 0.0
    %4670 = vmatpush1.msra.mxu0 0.0
    %4671 = vmatprep.subr.mxu0 0.0
    %4672 = vmatpush1.msra.mxu0 0.0
    %4673 = vmatprep.subr.mxu0 0.0
    %4674 = vmatpush1.msra.mxu0 0.0
    %4675 = vmatprep.subr.mxu0 0.0
    %4676 = vmatpush1.msra.mxu0 0.0
    %4677 = vmatprep.subr.mxu0 0.0
    %4678 = vmatpush1.msra.mxu0 0.0
    %4679 = vmatprep.subr.mxu0 0.0
    %4680 = vmatpush1.msra.mxu0 0.0
    %4681 = vmatprep.subr.mxu0 0.0
    %4682 = vmatpush1.msra.mxu0 0.0
    %4683 = vmatprep.subr.mxu0 0.0
    %4684 = vmatpush1.msra.mxu0 0.0
    %4685 = vmatprep.subr.mxu0 0.0
    %4686 = vmatpush1.msra.mxu0 0.0
    %4687 = vmatprep.subr.mxu0 0.0
    %4688 = vmatpush1.msra.mxu0 0.0
    %4689 = vmatprep.subr.mxu0 0.0
    %4690 = vmatpush1.msra.mxu0 0.0
    %4691 = vmatprep.subr.mxu0 0.0
    %4692 = vmatpush1.msra.mxu0 0.0
    %4693 = vmatprep.subr.mxu0 0.0
    %4694 = vmatpush1.msra.mxu0 0.0
    %4695 = vmatprep.subr.mxu0 0.0
    %4696 = vmatpush1.msra.mxu0 0.0
    %4697 = vmatprep.subr.mxu0 0.0
    %4698 = vmatpush1.msra.mxu0 0.0
    %4699 = vmatprep.subr.mxu0 0.0
    %4700 = vmatpush1.msra.mxu0 0.0
    %4701 = vmatprep.subr.mxu0 0.0
    %4702 = vmatpush1.msra.mxu0 0.0
    %4703 = vmatprep.subr.mxu0 0.0
    %4704 = vmatpush1.msra.mxu0 0.0
    %4705 = vmatprep.subr.mxu0 0.0
    %4706 = vmatpush1.msra.mxu0 0.0
    %4707 = vmatprep.subr.mxu0 0.0
    %4708 = vmatpush1.msra.mxu0 0.0
    %4709 = vmatprep.subr.mxu0 0.0
    %4710 = vmatpush1.msra.mxu0 0.0
    %4711 = vmatprep.subr.mxu0 0.0
    %4712 = vmatpush1.msra.mxu0 0.0
    %4713 = vmatprep.subr.mxu0 0.0
    %4714 = vmatpush1.msra.mxu0 0.0
    %4715 = vmatprep.subr.mxu0 0.0
    %4716 = vmatpush1.msra.mxu0 0.0
    %4717 = vmatprep.subr.mxu0 0.0
    %4718 = vmatpush1.msra.mxu0 0.0
    %4719 = vmatprep.subr.mxu0 0.0
    %4720 = vmatpush1.msra.mxu0 0.0
    %4721 = vmatprep.subr.mxu0 0.0
    %4722 = vmatpush1.msra.mxu0 0.0
    %4723 = vmatprep.subr.mxu0 0.0
    %4724 = vmatpush1.msra.mxu0 0.0
    %4725 = vmatprep.subr.mxu0 0.0
    %4726 = vmatpush1.msra.mxu0 0.0
    %4727 = vmatprep.subr.mxu0 0.0
    %4728 = vmatpush1.msra.mxu0 0.0
    %4729 = vmatprep.mubr.f32.mxu0 0.0
    %4730 = vmatmul.mubr.f32.gmra.mrb[0].mxu0 %v4618
    %v4731 = vpop.f32.mrb[0].mxu0
    %v4732 = vadd.f32 0.0, %v4731
    %v4733 = vpop.f32.mrb[0].mxu0
    %4734 = vmatprep.mubr.f32.mxu0 0.0
    %4735 = vmatmul.mubr.f32.gmra.mrb[0].mxu0 %v4621
    %v4736 = vpop.f32.mrb[0].mxu0
    %v4737 = vadd.f32 0.0, %v4736
    %v4738 = vpop.f32.mrb[0].mxu0
    %4739 = vmatprep.mubr.f32.mxu0 0.0
    %4740 = vmatmul.mubr.f32.gmra.mrb[0].mxu0 %v4624
    %v4741 = vpop.f32.mrb[0].mxu0
    %v4742 = vadd.f32 0.0, %v4741
    %v4743 = vpop.f32.mrb[0].mxu0
    %4744 = vmatprep.mubr.f32.mxu0 0.0
    %4745 = vmatmul.mubr.f32.gmra.mrb[0].mxu0 %v4627
    %v4746 = vpop.f32.mrb[0].mxu0
    %v4747 = vadd.f32 0.0, %v4746
    %v4748 = vpop.f32.mrb[0].mxu0
    %4749 = vmatprep.mubr.f32.mxu0 0.0
    %4750 = vmatmul.mubr.f32.gmra.mrb[0].mxu0 %v4630
    %v4751 = vpop.f32.mrb[0].mxu0
    %v4752 = vadd.f32 0.0, %v4751
    %v4753 = vpop.f32.mrb[0].mxu0
    %4754 = vmatprep.mubr.f32.mxu0 0.0
    %4755 = vmatmul.mubr.f32.gmra.mrb[0].mxu0 %v4633
    %v4756 = vpop.f32.mrb[0].mxu0
    %v4757 = vadd.f32 0.0, %v4756
    %v4758 = vpop.f32.mrb[0].mxu0
    %4759 = vmatprep.mubr.f32.mxu0 0.0
    %4760 = vmatmul.mubr.f32.gmra.mrb[0].mxu0 %v4636
    %v4761 = vpop.f32.mrb[0].mxu0
    %v4762 = vadd.f32 0.0, %v4761
    %v4763 = vpop.f32.mrb[0].mxu0
    %4764 = vmatprep.mubr.f32.mxu0 0.0
    %4765 = vmatmul.mubr.f32.gmra.mrb[0].mxu0 %v4639
    %v4766 = vpop.f32.mrb[0].mxu0
    %v4767 = vadd.f32 0.0, %v4766
    %v4768 = vpop.f32.mrb[0].mxu0
    %4769 = vmatprep.mubr.f32.mxu0 0.0
    %4770 = vmatmul.mubr.f32.gmra.mrb[0].mxu0 %v4642
    %v4771 = vpop.f32.mrb[0].mxu0
    %v4772 = vadd.f32 0.0, %v4771
    %v4773 = vpop.f32.mrb[0].mxu0
    %4774 = vmatprep.mubr.f32.mxu0 0.0
    %4775 = vmatmul.mubr.f32.gmra.mrb[0].mxu0 %v4645
    %v4776 = vpop.f32.mrb[0].mxu0
    %v4777 = vadd.f32 0.0, %v4776
    %v4778 = vpop.f32.mrb[0].mxu0
    %4779 = vmatprep.mubr.f32.mxu0 0.0
    %4780 = vmatmul.mubr.f32.gmra.mrb[0].mxu0 %v4648
    %v4781 = vpop.f32.mrb[0].mxu0
    %v4782 = vadd.f32 0.0, %v4781
    %v4783 = vpop.f32.mrb[0].mxu0
    %4784 = vmatprep.mubr.f32.mxu0 0.0
    %4785 = vmatmul.mubr.f32.gmra.mrb[0].mxu0 %v4651
    %v4786 = vpop.f32.mrb[0].mxu0
    %v4787 = vadd.f32 0.0, %v4786
    %v4788 = vpop.f32.mrb[0].mxu0
    %4789 = vmatprep.mubr.f32.mxu0 0.0
    %4790 = vmatmul.mubr.f32.gmra.mrb[0].mxu0 %v4654
    %v4791 = vpop.f32.mrb[0].mxu0
    %v4792 = vadd.f32 0.0, %v4791
    %v4793 = vpop.f32.mrb[0].mxu0
    %4794 = vmatprep.mubr.f32.mxu0 0.0
    %4795 = vmatmul.mubr.f32.gmra.mrb[0].mxu0 %v4657
    %v4796 = vpop.f32.mrb[0].mxu0
    %v4797 = vadd.f32 0.0, %v4796
    %v4798 = vpop.f32.mrb[0].mxu0
    %4799 = vmatprep.mubr.f32.mxu0 0.0
    %4800 = vmatmul.mubr.f32.gmra.mrb[0].mxu0 %v4660
    %v4801 = vpop.f32.mrb[0].mxu0
    %v4802 = vadd.f32 0.0, %v4801
    %v4803 = vpop.f32.mrb[0].mxu0
    %4804 = vmatprep.mubr.f32.mxu0 0.0
    %4805 = vmatmul.mubr.f32.gmra.mrb[0].mxu0 %v4663
    %v4806 = vpop.f32.mrb[0].mxu0
    %v4807 = vadd.f32 0.0, %v4806
    %v4808 = vpop.f32.mrb[0].mxu0
    %4809 = vdwg.mxu0
    %v4810 = vmul.f32 %v563, %v563
    %v4811 = vrot.slane %v4810, 4
    %v4812 = vadd.f32 %v4810, %v4811
    %v4813 = vrot.slane %v4812, 2
    %v4814 = vadd.f32 %v4812, %v4813
    %v4815 = vrot.slane %v4814, 1
    %v4816 = vadd.f32 %v4814, %v4815
    %v4817 = vmul.f32 %v339, %v339
    %4818 = vxpose.xlu0.b32.start [1/16] %v4817, 128
    %4819 = vxpose.xlu0.b32.cont [2/16] 0.0, 128
    %4820 = vxpose.xlu0.b32.cont [3/16] 0.0, 128
    %4821 = vxpose.xlu0.b32.cont [4/16] 0.0, 128
    %4822 = vxpose.xlu0.b32.cont [5/16] 0.0, 128
    %4823 = vxpose.xlu0.b32.cont [6/16] 0.0, 128
    %4824 = vxpose.xlu0.b32.cont [7/16] 0.0, 128
    %4825 = vxpose.xlu0.b32.cont [8/16] 0.0, 128
    %4826 = vxpose.xlu0.b32.cont [9/16] 0.0, 128
    %4827 = vxpose.xlu0.b32.cont [10/16] 0.0, 128
    %4828 = vxpose.xlu0.b32.cont [11/16] 0.0, 128
    %4829 = vxpose.xlu0.b32.cont [12/16] 0.0, 128
    %4830 = vxpose.xlu0.b32.cont [13/16] 0.0, 128
    %4831 = vxpose.xlu0.b32.cont [14/16] 0.0, 128
    %4832 = vxpose.xlu0.b32.cont [15/16] 0.0, 128
    %4833 = vxpose.xlu0.b32.end [16/16] 0.0, 128
    %v4834 = vpop.trf.xlu0
    %v4835 = vpop.trf.xlu0
    %v4836 = vpop.trf.xlu0
    %v4837 = vpop.trf.xlu0
    %v4838 = vpop.trf.xlu0
    %v4839 = vpop.trf.xlu0
    %v4840 = vpop.trf.xlu0
    %v4841 = vpop.trf.xlu0
    %v4842 = vpop.trf.xlu0
    %v4843 = vpop.trf.xlu0
    %v4844 = vpop.trf.xlu0
    %v4845 = vpop.trf.xlu0
    %v4846 = vpop.trf.xlu0
    %v4847 = vpop.trf.xlu0
    %v4848 = vpop.trf.xlu0
    %v4849 = vpop.trf.xlu0
    %v4851 = vsel %vm825, %v4834, 0
    %v4854 = vsel %vm825, %v4835, 0
    %v4857 = vsel %vm825, %v4836, 0
    %v4860 = vsel %vm825, %v4837, 0
    %v4863 = vsel %vm825, %v4838, 0
    %v4866 = vsel %vm825, %v4839, 0
    %v4869 = vsel %vm825, %v4840, 0
    %v4872 = vsel %vm825, %v4841, 0
    %v4875 = vsel %vm825, %v4842, 0
    %v4878 = vsel %vm825, %v4843, 0
    %v4881 = vsel %vm825, %v4844, 0
    %v4884 = vsel %vm825, %v4845, 0
    %v4887 = vsel %vm825, %v4846, 0
    %v4890 = vsel %vm825, %v4847, 0
    %v4893 = vsel %vm825, %v4848, 0
    %v4896 = vsel %vm825, %v4849, 0
    %4898 = vmatprep.subr.mxu0 0.0
    %4899 = vmatpush1.msra.mxu0 %v4816
    %4900 = vmatprep.subr.mxu0 0.0
    %4901 = vmatpush1.msra.mxu0 0.0
    %4902 = vmatprep.subr.mxu0 0.0
    %4903 = vmatpush1.msra.mxu0 0.0
    %4904 = vmatprep.subr.mxu0 0.0
    %4905 = vmatpush1.msra.mxu0 0.0
    %4906 = vmatprep.subr.mxu0 0.0
    %4907 = vmatpush1.msra.mxu0 0.0
    %4908 = vmatprep.subr.mxu0 0.0
    %4909 = vmatpush1.msra.mxu0 0.0
    %4910 = vmatprep.subr.mxu0 0.0
    %4911 = vmatpush1.msra.mxu0 0.0
    %4912 = vmatprep.subr.mxu0 0.0
    %4913 = vmatpush1.msra.mxu0 0.0
    %4914 = vmatprep.subr.mxu0 0.0
    %4915 = vmatpush1.msra.mxu0 0.0
    %4916 = vmatprep.subr.mxu0 0.0
    %4917 = vmatpush1.msra.mxu0 0.0
    %4918 = vmatprep.subr.mxu0 0.0
    %4919 = vmatpush1.msra.mxu0 0.0
    %4920 = vmatprep.subr.mxu0 0.0
    %4921 = vmatpush1.msra.mxu0 0.0
    %4922 = vmatprep.subr.mxu0 0.0
    %4923 = vmatpush1.msra.mxu0 0.0
    %4924 = vmatprep.subr.mxu0 0.0
    %4925 = vmatpush1.msra.mxu0 0.0
    %4926 = vmatprep.subr.mxu0 0.0
    %4927 = vmatpush1.msra.mxu0 0.0
    %4928 = vmatprep.subr.mxu0 0.0
    %4929 = vmatpush1.msra.mxu0 0.0
    %4930 = vmatprep.subr.mxu0 0.0
    %4931 = vmatpush1.msra.mxu0 0.0
    %4932 = vmatprep.subr.mxu0 0.0
    %4933 = vmatpush1.msra.mxu0 0.0
    %4934 = vmatprep.subr.mxu0 0.0
    %4935 = vmatpush1.msra.mxu0 0.0
    %4936 = vmatprep.subr.mxu0 0.0
    %4937 = vmatpush1.msra.mxu0 0.0
    %4938 = vmatprep.subr.mxu0 0.0
    %4939 = vmatpush1.msra.mxu0 0.0
    %4940 = vmatprep.subr.mxu0 0.0
    %4941 = vmatpush1.msra.mxu0 0.0
    %4942 = vmatprep.subr.mxu0 0.0
    %4943 = vmatpush1.msra.mxu0 0.0
    %4944 = vmatprep.subr.mxu0 0.0
    %4945 = vmatpush1.msra.mxu0 0.0
    %4946 = vmatprep.subr.mxu0 0.0
    %4947 = vmatpush1.msra.mxu0 0.0
    %4948 = vmatprep.subr.mxu0 0.0
    %4949 = vmatpush1.msra.mxu0 0.0
    %4950 = vmatprep.subr.mxu0 0.0
    %4951 = vmatpush1.msra.mxu0 0.0
    %4952 = vmatprep.subr.mxu0 0.0
    %4953 = vmatpush1.msra.mxu0 0.0
    %4954 = vmatprep.subr.mxu0 0.0
    %4955 = vmatpush1.msra.mxu0 0.0
    %4956 = vmatprep.subr.mxu0 0.0
    %4957 = vmatpush1.msra.mxu0 0.0
    %4958 = vmatprep.subr.mxu0 0.0
    %4959 = vmatpush1.msra.mxu0 0.0
    %4960 = vmatprep.subr.mxu0 0.0
    %4961 = vmatpush1.msra.mxu0 0.0
    %4962 = vmatprep.mubr.f32.mxu0 0.0
    %4963 = vmatmul.mubr.f32.gmra.mrb[0].mxu0 %v4851
    %v4964 = vpop.f32.mrb[0].mxu0
    %v4965 = vadd.f32 0.0, %v4964
    %v4966 = vpop.f32.mrb[0].mxu0
    %4967 = vmatprep.mubr.f32.mxu0 0.0
    %4968 = vmatmul.mubr.f32.gmra.mrb[0].mxu0 %v4854
    %v4969 = vpop.f32.mrb[0].mxu0
    %v4970 = vadd.f32 0.0, %v4969
    %v4971 = vpop.f32.mrb[0].mxu0
    %4972 = vmatprep.mubr.f32.mxu0 0.0
    %4973 = vmatmul.mubr.f32.gmra.mrb[0].mxu0 %v4857
    %v4974 = vpop.f32.mrb[0].mxu0
    %v4975 = vadd.f32 0.0, %v4974
    %v4976 = vpop.f32.mrb[0].mxu0
    %4977 = vmatprep.mubr.f32.mxu0 0.0
    %4978 = vmatmul.mubr.f32.gmra.mrb[0].mxu0 %v4860
    %v4979 = vpop.f32.mrb[0].mxu0
    %v4980 = vadd.f32 0.0, %v4979
    %v4981 = vpop.f32.mrb[0].mxu0
    %4982 = vmatprep.mubr.f32.mxu0 0.0
    %4983 = vmatmul.mubr.f32.gmra.mrb[0].mxu0 %v4863
    %v4984 = vpop.f32.mrb[0].mxu0
    %v4985 = vadd.f32 0.0, %v4984
    %v4986 = vpop.f32.mrb[0].mxu0
    %4987 = vmatprep.mubr.f32.mxu0 0.0
    %4988 = vmatmul.mubr.f32.gmra.mrb[0].mxu0 %v4866
    %v4989 = vpop.f32.mrb[0].mxu0
    %v4990 = vadd.f32 0.0, %v4989
    %v4991 = vpop.f32.mrb[0].mxu0
    %4992 = vmatprep.mubr.f32.mxu0 0.0
    %4993 = vmatmul.mubr.f32.gmra.mrb[0].mxu0 %v4869
    %v4994 = vpop.f32.mrb[0].mxu0
    %v4995 = vadd.f32 0.0, %v4994
    %v4996 = vpop.f32.mrb[0].mxu0
    %4997 = vmatprep.mubr.f32.mxu0 0.0
    %4998 = vmatmul.mubr.f32.gmra.mrb[0].mxu0 %v4872
    %v4999 = vpop.f32.mrb[0].mxu0
    %v5000 = vadd.f32 0.0, %v4999
    %v5001 = vpop.f32.mrb[0].mxu0
    %5002 = vmatprep.mubr.f32.mxu0 0.0
    %5003 = vmatmul.mubr.f32.gmra.mrb[0].mxu0 %v4875
    %v5004 = vpop.f32.mrb[0].mxu0
    %v5005 = vadd.f32 0.0, %v5004
    %v5006 = vpop.f32.mrb[0].mxu0
    %5007 = vmatprep.mubr.f32.mxu0 0.0
    %5008 = vmatmul.mubr.f32.gmra.mrb[0].mxu0 %v4878
    %v5009 = vpop.f32.mrb[0].mxu0
    %v5010 = vadd.f32 0.0, %v5009
    %v5011 = vpop.f32.mrb[0].mxu0
    %5012 = vmatprep.mubr.f32.mxu0 0.0
    %5013 = vmatmul.mubr.f32.gmra.mrb[0].mxu0 %v4881
    %v5014 = vpop.f32.mrb[0].mxu0
    %v5015 = vadd.f32 0.0, %v5014
    %v5016 = vpop.f32.mrb[0].mxu0
    %5017 = vmatprep.mubr.f32.mxu0 0.0
    %5018 = vmatmul.mubr.f32.gmra.mrb[0].mxu0 %v4884
    %v5019 = vpop.f32.mrb[0].mxu0
    %v5020 = vadd.f32 0.0, %v5019
    %v5021 = vpop.f32.mrb[0].mxu0
    %5022 = vmatprep.mubr.f32.mxu0 0.0
    %5023 = vmatmul.mubr.f32.gmra.mrb[0].mxu0 %v4887
    %v5024 = vpop.f32.mrb[0].mxu0
    %v5025 = vadd.f32 0.0, %v5024
    %v5026 = vpop.f32.mrb[0].mxu0
    %5027 = vmatprep.mubr.f32.mxu0 0.0
    %5028 = vmatmul.mubr.f32.gmra.mrb[0].mxu0 %v4890
    %v5029 = vpop.f32.mrb[0].mxu0
    %v5030 = vadd.f32 0.0, %v5029
    %v5031 = vpop.f32.mrb[0].mxu0
    %5032 = vmatprep.mubr.f32.mxu0 0.0
    %5033 = vmatmul.mubr.f32.gmra.mrb[0].mxu0 %v4893
    %v5034 = vpop.f32.mrb[0].mxu0
    %v5035 = vadd.f32 0.0, %v5034
    %v5036 = vpop.f32.mrb[0].mxu0
    %5037 = vmatprep.mubr.f32.mxu0 0.0
    %5038 = vmatmul.mubr.f32.gmra.mrb[0].mxu0 %v4896
    %v5039 = vpop.f32.mrb[0].mxu0
    %v5040 = vadd.f32 0.0, %v5039
    %v5041 = vpop.f32.mrb[0].mxu0
    %5042 = vdwg.mxu0
    %v5043 = vmul.f32 %v4732, %v4732
    %v5044 = vmul.f32 %v4737, %v4737
    %v5045 = vmul.f32 %v4742, %v4742
    %v5046 = vmul.f32 %v4747, %v4747
    %v5047 = vmul.f32 %v4752, %v4752
    %v5048 = vmul.f32 %v4757, %v4757
    %v5049 = vmul.f32 %v4762, %v4762
    %v5050 = vmul.f32 %v4767, %v4767
    %v5051 = vmul.f32 %v4772, %v4772
    %v5052 = vmul.f32 %v4777, %v4777
    %v5053 = vmul.f32 %v4782, %v4782
    %v5054 = vmul.f32 %v4787, %v4787
    %v5055 = vmul.f32 %v4792, %v4792
    %v5056 = vmul.f32 %v4797, %v4797
    %v5057 = vmul.f32 %v4802, %v4802
    %v5058 = vmul.f32 %v4807, %v4807
    %v5059 = vsub.f32 %v4965, %v5043
    %v5060 = vsub.f32 %v4970, %v5044
    %v5061 = vsub.f32 %v4975, %v5045
    %v5062 = vsub.f32 %v4980, %v5046
    %v5063 = vsub.f32 %v4985, %v5047
    %v5064 = vsub.f32 %v4990, %v5048
    %v5065 = vsub.f32 %v4995, %v5049
    %v5066 = vsub.f32 %v5000, %v5050
    %v5067 = vsub.f32 %v5005, %v5051
    %v5068 = vsub.f32 %v5010, %v5052
    %v5069 = vsub.f32 %v5015, %v5053
    %v5070 = vsub.f32 %v5020, %v5054
    %v5071 = vsub.f32 %v5025, %v5055
    %v5072 = vsub.f32 %v5030, %v5056
    %v5073 = vsub.f32 %v5035, %v5057
    %v5074 = vsub.f32 %v5040, %v5058
    %v5075 = vmax.f32 %v5059, 0.0
    %v5076 = vmax.f32 %v5060, 0.0
    %v5077 = vmax.f32 %v5061, 0.0
    %v5078 = vmax.f32 %v5062, 0.0
    %v5079 = vmax.f32 %v5063, 0.0
    %v5080 = vmax.f32 %v5064, 0.0
    %v5081 = vmax.f32 %v5065, 0.0
    %v5082 = vmax.f32 %v5066, 0.0
    %v5083 = vmax.f32 %v5067, 0.0
    %v5084 = vmax.f32 %v5068, 0.0
    %v5085 = vmax.f32 %v5069, 0.0
    %v5086 = vmax.f32 %v5070, 0.0
    %v5087 = vmax.f32 %v5071, 0.0
    %v5088 = vmax.f32 %v5072, 0.0
    %v5089 = vmax.f32 %v5073, 0.0
    %v5090 = vmax.f32 %v5074, 0.0
    %v5091 = vadd.f32 %v5075, 1e-08
    %v5092 = vadd.f32 %v5076, 1e-08
    %v5093 = vadd.f32 %v5077, 1e-08
    %v5094 = vadd.f32 %v5078, 1e-08
    %v5095 = vadd.f32 %v5079, 1e-08
    %v5096 = vadd.f32 %v5080, 1e-08
    %v5097 = vadd.f32 %v5081, 1e-08
    %v5098 = vadd.f32 %v5082, 1e-08
    %v5099 = vadd.f32 %v5083, 1e-08
    %v5100 = vadd.f32 %v5084, 1e-08
    %v5101 = vadd.f32 %v5085, 1e-08
    %v5102 = vadd.f32 %v5086, 1e-08
    %v5103 = vadd.f32 %v5087, 1e-08
    %v5104 = vadd.f32 %v5088, 1e-08
    %v5105 = vadd.f32 %v5089, 1e-08
    %v5106 = vadd.f32 %v5090, 1e-08
    %v5107 = vrsqrt.pop %v5091
    %v5108 = vmul.f32 %v5091, %v5107
    %vm5109 = vcmp.eq.f32.partialorder %v5091, inf
    %v5110 = vsel %vm5109, %v5091, %v5108
    %vm5111 = vcmp.eq.f32.partialorder %v5091, 0.0
    %v5112 = vand.u32 %v5091, 2147483648
    %v5113 = vsel %vm5111, %v5112, %v5110
    %v5114 = vrsqrt.pop %v5092
    %v5115 = vmul.f32 %v5092, %v5114
    %vm5116 = vcmp.eq.f32.partialorder %v5092, inf
    %v5117 = vsel %vm5116, %v5092, %v5115
    %vm5118 = vcmp.eq.f32.partialorder %v5092, 0.0
    %v5119 = vand.u32 %v5092, 2147483648
    %v5120 = vsel %vm5118, %v5119, %v5117
    %v5121 = vrsqrt.pop %v5093
    %v5122 = vmul.f32 %v5093, %v5121
    %vm5123 = vcmp.eq.f32.partialorder %v5093, inf
    %v5124 = vsel %vm5123, %v5093, %v5122
    %vm5125 = vcmp.eq.f32.partialorder %v5093, 0.0
    %v5126 = vand.u32 %v5093, 2147483648
    %v5127 = vsel %vm5125, %v5126, %v5124
    %v5128 = vrsqrt.pop %v5094
    %v5129 = vmul.f32 %v5094, %v5128
    %vm5130 = vcmp.eq.f32.partialorder %v5094, inf
    %v5131 = vsel %vm5130, %v5094, %v5129
    %vm5132 = vcmp.eq.f32.partialorder %v5094, 0.0
    %v5133 = vand.u32 %v5094, 2147483648
    %v5134 = vsel %vm5132, %v5133, %v5131
    %v5135 = vrsqrt.pop %v5095
    %v5136 = vmul.f32 %v5095, %v5135
    %vm5137 = vcmp.eq.f32.partialorder %v5095, inf
    %v5138 = vsel %vm5137, %v5095, %v5136
    %vm5139 = vcmp.eq.f32.partialorder %v5095, 0.0
    %v5140 = vand.u32 %v5095, 2147483648
    %v5141 = vsel %vm5139, %v5140, %v5138
    %v5142 = vrsqrt.pop %v5096
    %v5143 = vmul.f32 %v5096, %v5142
    %vm5144 = vcmp.eq.f32.partialorder %v5096, inf
    %v5145 = vsel %vm5144, %v5096, %v5143
    %vm5146 = vcmp.eq.f32.partialorder %v5096, 0.0
    %v5147 = vand.u32 %v5096, 2147483648
    %v5148 = vsel %vm5146, %v5147, %v5145
    %v5149 = vrsqrt.pop %v5097
    %v5150 = vmul.f32 %v5097, %v5149
    %vm5151 = vcmp.eq.f32.partialorder %v5097, inf
    %v5152 = vsel %vm5151, %v5097, %v5150
    %vm5153 = vcmp.eq.f32.partialorder %v5097, 0.0
    %v5154 = vand.u32 %v5097, 2147483648
    %v5155 = vsel %vm5153, %v5154, %v5152
    %v5156 = vrsqrt.pop %v5098
    %v5157 = vmul.f32 %v5098, %v5156
    %vm5158 = vcmp.eq.f32.partialorder %v5098, inf
    %v5159 = vsel %vm5158, %v5098, %v5157
    %vm5160 = vcmp.eq.f32.partialorder %v5098, 0.0
    %v5161 = vand.u32 %v5098, 2147483648
    %v5162 = vsel %vm5160, %v5161, %v5159
    %v5163 = vrsqrt.pop %v5099
    %v5164 = vmul.f32 %v5099, %v5163
    %vm5165 = vcmp.eq.f32.partialorder %v5099, inf
    %v5166 = vsel %vm5165, %v5099, %v5164
    %vm5167 = vcmp.eq.f32.partialorder %v5099, 0.0
    %v5168 = vand.u32 %v5099, 2147483648
    %v5169 = vsel %vm5167, %v5168, %v5166
    %v5170 = vrsqrt.pop %v5100
    %v5171 = vmul.f32 %v5100, %v5170
    %vm5172 = vcmp.eq.f32.partialorder %v5100, inf
    %v5173 = vsel %vm5172, %v5100, %v5171
    %vm5174 = vcmp.eq.f32.partialorder %v5100, 0.0
    %v5175 = vand.u32 %v5100, 2147483648
    %v5176 = vsel %vm5174, %v5175, %v5173
    %v5177 = vrsqrt.pop %v5101
    %v5178 = vmul.f32 %v5101, %v5177
    %vm5179 = vcmp.eq.f32.partialorder %v5101, inf
    %v5180 = vsel %vm5179, %v5101, %v5178
    %vm5181 = vcmp.eq.f32.partialorder %v5101, 0.0
    %v5182 = vand.u32 %v5101, 2147483648
    %v5183 = vsel %vm5181, %v5182, %v5180
    %v5184 = vrsqrt.pop %v5102
    %v5185 = vmul.f32 %v5102, %v5184
    %vm5186 = vcmp.eq.f32.partialorder %v5102, inf
    %v5187 = vsel %vm5186, %v5102, %v5185
    %vm5188 = vcmp.eq.f32.partialorder %v5102, 0.0
    %v5189 = vand.u32 %v5102, 2147483648
    %v5190 = vsel %vm5188, %v5189, %v5187
    %v5191 = vrsqrt.pop %v5103
    %v5192 = vmul.f32 %v5103, %v5191
    %vm5193 = vcmp.eq.f32.partialorder %v5103, inf
    %v5194 = vsel %vm5193, %v5103, %v5192
    %vm5195 = vcmp.eq.f32.partialorder %v5103, 0.0
    %v5196 = vand.u32 %v5103, 2147483648
    %v5197 = vsel %vm5195, %v5196, %v5194
    %v5198 = vrsqrt.pop %v5104
    %v5199 = vmul.f32 %v5104, %v5198
    %vm5200 = vcmp.eq.f32.partialorder %v5104, inf
    %v5201 = vsel %vm5200, %v5104, %v5199
    %vm5202 = vcmp.eq.f32.partialorder %v5104, 0.0
    %v5203 = vand.u32 %v5104, 2147483648
    %v5204 = vsel %vm5202, %v5203, %v5201
    %v5205 = vrsqrt.pop %v5105
    %v5206 = vmul.f32 %v5105, %v5205
    %vm5207 = vcmp.eq.f32.partialorder %v5105, inf
    %v5208 = vsel %vm5207, %v5105, %v5206
    %vm5209 = vcmp.eq.f32.partialorder %v5105, 0.0
    %v5210 = vand.u32 %v5105, 2147483648
    %v5211 = vsel %vm5209, %v5210, %v5208
    %v5212 = vrsqrt.pop %v5106
    %v5213 = vmul.f32 %v5106, %v5212
    %vm5214 = vcmp.eq.f32.partialorder %v5106, inf
    %v5215 = vsel %vm5214, %v5106, %v5213
    %vm5216 = vcmp.eq.f32.partialorder %v5106, 0.0
    %v5217 = vand.u32 %v5106, 2147483648
    %v5218 = vsel %vm5216, %v5217, %v5215
    %v5219 = vmul.f32 %v4732, 0.17677669
    %v5220 = vmul.f32 %v4737, 0.17677669
    %v5221 = vmul.f32 %v4742, 0.17677669
    %v5222 = vmul.f32 %v4747, 0.17677669
    %v5223 = vmul.f32 %v4752, 0.17677669
    %v5224 = vmul.f32 %v4757, 0.17677669
    %v5225 = vmul.f32 %v4762, 0.17677669
    %v5226 = vmul.f32 %v4767, 0.17677669
    %v5227 = vmul.f32 %v4772, 0.17677669
    %v5228 = vmul.f32 %v4777, 0.17677669
    %v5229 = vmul.f32 %v4782, 0.17677669
    %v5230 = vmul.f32 %v4787, 0.17677669
    %v5231 = vmul.f32 %v4792, 0.17677669
    %v5232 = vmul.f32 %v4797, 0.17677669
    %v5233 = vmul.f32 %v4802, 0.17677669
    %v5234 = vmul.f32 %v4807, 0.17677669
    %v5235 = vmul.f32 %v5113, 0.17677669
    %v5236 = vmul.f32 %v5120, 0.17677669
    %v5237 = vmul.f32 %v5127, 0.17677669
    %v5238 = vmul.f32 %v5134, 0.17677669
    %v5239 = vmul.f32 %v5141, 0.17677669
    %v5240 = vmul.f32 %v5148, 0.17677669
    %v5241 = vmul.f32 %v5155, 0.17677669
    %v5242 = vmul.f32 %v5162, 0.17677669
    %v5243 = vmul.f32 %v5169, 0.17677669
    %v5244 = vmul.f32 %v5176, 0.17677669
    %v5245 = vmul.f32 %v5183, 0.17677669
    %v5246 = vmul.f32 %v5190, 0.17677669
    %v5247 = vmul.f32 %v5197, 0.17677669
    %v5248 = vmul.f32 %v5204, 0.17677669
    %v5249 = vmul.f32 %v5211, 0.17677669
    %v5250 = vmul.f32 %v5218, 0.17677669
    %v5251 = vadd.f32 %v5219, %v5235
    %v5252 = vadd.f32 %v5220, %v5236
    %v5253 = vadd.f32 %v5221, %v5237
    %v5254 = vadd.f32 %v5222, %v5238
    %v5255 = vadd.f32 %v5223, %v5239
    %v5256 = vadd.f32 %v5224, %v5240
    %v5257 = vadd.f32 %v5225, %v5241
    %v5258 = vadd.f32 %v5226, %v5242
    %v5259 = vadd.f32 %v5227, %v5243
    %v5260 = vadd.f32 %v5228, %v5244
    %v5261 = vadd.f32 %v5229, %v5245
    %v5262 = vadd.f32 %v5230, %v5246
    %v5263 = vadd.f32 %v5231, %v5247
    %v5264 = vadd.f32 %v5232, %v5248
    %v5265 = vadd.f32 %v5233, %v5249
    %v5266 = vadd.f32 %v5234, %v5250
    %5267 = vmax.xlane.f32.xlu0 %v5251
    %v5268 = vpop.xlane.xlu0 %5267
    %5269 = vmax.xlane.f32.xlu0 %v5252
    %v5270 = vpop.xlane.xlu0 %5269
    %5271 = vmax.xlane.f32.xlu0 %v5253
    %v5272 = vpop.xlane.xlu0 %5271
    %5273 = vmax.xlane.f32.xlu0 %v5254
    %v5274 = vpop.xlane.xlu0 %5273
    %5275 = vmax.xlane.f32.xlu0 %v5255
    %v5276 = vpop.xlane.xlu0 %5275
    %5277 = vmax.xlane.f32.xlu0 %v5256
    %v5278 = vpop.xlane.xlu0 %5277
    %5279 = vmax.xlane.f32.xlu0 %v5257
    %v5280 = vpop.xlane.xlu0 %5279
    %5281 = vmax.xlane.f32.xlu0 %v5258
    %v5282 = vpop.xlane.xlu0 %5281
    %5283 = vmax.xlane.f32.xlu0 %v5259
    %v5284 = vpop.xlane.xlu0 %5283
    %5285 = vmax.xlane.f32.xlu0 %v5260
    %v5286 = vpop.xlane.xlu0 %5285
    %5287 = vmax.xlane.f32.xlu0 %v5261
    %v5288 = vpop.xlane.xlu0 %5287
    %5289 = vmax.xlane.f32.xlu0 %v5262
    %v5290 = vpop.xlane.xlu0 %5289
    %5291 = vmax.xlane.f32.xlu0 %v5263
    %v5292 = vpop.xlane.xlu0 %5291
    %5293 = vmax.xlane.f32.xlu0 %v5264
    %v5294 = vpop.xlane.xlu0 %5293
    %5295 = vmax.xlane.f32.xlu0 %v5265
    %v5296 = vpop.xlane.xlu0 %5295
    %5297 = vmax.xlane.f32.xlu0 %v5266
    %v5298 = vpop.xlane.xlu0 %5297
    %v5299 = vsub.f32 %v5251, %v5268
    %v5300 = vsub.f32 %v5252, %v5270
    %v5301 = vsub.f32 %v5253, %v5272
    %v5302 = vsub.f32 %v5254, %v5274
    %v5303 = vsub.f32 %v5255, %v5276
    %v5304 = vsub.f32 %v5256, %v5278
    %v5305 = vsub.f32 %v5257, %v5280
    %v5306 = vsub.f32 %v5258, %v5282
    %v5307 = vsub.f32 %v5259, %v5284
    %v5308 = vsub.f32 %v5260, %v5286
    %v5309 = vsub.f32 %v5261, %v5288
    %v5310 = vsub.f32 %v5262, %v5290
    %v5311 = vsub.f32 %v5263, %v5292
    %v5312 = vsub.f32 %v5264, %v5294
    %v5313 = vsub.f32 %v5265, %v5296
    %v5314 = vsub.f32 %v5266, %v5298
    %v5315 = vmul.f32 %v5299, 1.442695
    %v5316 = vpow.pop %v5315
    %v5317 = vmul.f32 %v5300, 1.442695
    %v5318 = vpow.pop %v5317
    %v5319 = vmul.f32 %v5301, 1.442695
    %v5320 = vpow.pop %v5319
    %v5321 = vmul.f32 %v5302, 1.442695
    %v5322 = vpow.pop %v5321
    %v5323 = vmul.f32 %v5303, 1.442695
    %v5324 = vpow.pop %v5323
    %v5325 = vmul.f32 %v5304, 1.442695
    %v5326 = vpow.pop %v5325
    %v5327 = vmul.f32 %v5305, 1.442695
    %v5328 = vpow.pop %v5327
    %v5329 = vmul.f32 %v5306, 1.442695
    %v5330 = vpow.pop %v5329
    %v5331 = vmul.f32 %v5307, 1.442695
    %v5332 = vpow.pop %v5331
    %v5333 = vmul.f32 %v5308, 1.442695
    %v5334 = vpow.pop %v5333
    %v5335 = vmul.f32 %v5309, 1.442695
    %v5336 = vpow.pop %v5335
    %v5337 = vmul.f32 %v5310, 1.442695
    %v5338 = vpow.pop %v5337
    %v5339 = vmul.f32 %v5311, 1.442695
    %v5340 = vpow.pop %v5339
    %v5341 = vmul.f32 %v5312, 1.442695
    %v5342 = vpow.pop %v5341
    %v5343 = vmul.f32 %v5313, 1.442695
    %v5344 = vpow.pop %v5343
    %v5345 = vmul.f32 %v5314, 1.442695
    %v5346 = vpow.pop %v5345
    %5347 = vadd.xlane.f32.xlu0 %v5316
    %v5348 = vpop.xlane.xlu0 %5347
    %5349 = vadd.xlane.f32.xlu0 %v5318
    %v5350 = vpop.xlane.xlu0 %5349
    %5351 = vadd.xlane.f32.xlu0 %v5320
    %v5352 = vpop.xlane.xlu0 %5351
    %5353 = vadd.xlane.f32.xlu0 %v5322
    %v5354 = vpop.xlane.xlu0 %5353
    %5355 = vadd.xlane.f32.xlu0 %v5324
    %v5356 = vpop.xlane.xlu0 %5355
    %5357 = vadd.xlane.f32.xlu0 %v5326
    %v5358 = vpop.xlane.xlu0 %5357
    %5359 = vadd.xlane.f32.xlu0 %v5328
    %v5360 = vpop.xlane.xlu0 %5359
    %5361 = vadd.xlane.f32.xlu0 %v5330
    %v5362 = vpop.xlane.xlu0 %5361
    %5363 = vadd.xlane.f32.xlu0 %v5332
    %v5364 = vpop.xlane.xlu0 %5363
    %5365 = vadd.xlane.f32.xlu0 %v5334
    %v5366 = vpop.xlane.xlu0 %5365
    %5367 = vadd.xlane.f32.xlu0 %v5336
    %v5368 = vpop.xlane.xlu0 %5367
    %5369 = vadd.xlane.f32.xlu0 %v5338
    %v5370 = vpop.xlane.xlu0 %5369
    %5371 = vadd.xlane.f32.xlu0 %v5340
    %v5372 = vpop.xlane.xlu0 %5371
    %5373 = vadd.xlane.f32.xlu0 %v5342
    %v5374 = vpop.xlane.xlu0 %5373
    %5375 = vadd.xlane.f32.xlu0 %v5344
    %v5376 = vpop.xlane.xlu0 %5375
    %5377 = vadd.xlane.f32.xlu0 %v5346
    %v5378 = vpop.xlane.xlu0 %5377
    %v5379 = vrcp.pop %v5348
    %v5380 = vrcp.pop %v5350
    %v5381 = vrcp.pop %v5352
    %v5382 = vrcp.pop %v5354
    %v5383 = vrcp.pop %v5356
    %v5384 = vrcp.pop %v5358
    %v5385 = vrcp.pop %v5360
    %v5386 = vrcp.pop %v5362
    %v5387 = vrcp.pop %v5364
    %v5388 = vrcp.pop %v5366
    %v5389 = vrcp.pop %v5368
    %v5390 = vrcp.pop %v5370
    %v5391 = vrcp.pop %v5372
    %v5392 = vrcp.pop %v5374
    %v5393 = vrcp.pop %v5376
    %v5394 = vrcp.pop %v5378
    %v5395 = vmul.f32 %v5316, %v5379
    %v5396 = vmul.f32 %v5318, %v5380
    %v5397 = vmul.f32 %v5320, %v5381
    %v5398 = vmul.f32 %v5322, %v5382
    %v5399 = vmul.f32 %v5324, %v5383
    %v5400 = vmul.f32 %v5326, %v5384
    %v5401 = vmul.f32 %v5328, %v5385
    %v5402 = vmul.f32 %v5330, %v5386
    %v5403 = vmul.f32 %v5332, %v5387
    %v5404 = vmul.f32 %v5334, %v5388
    %v5405 = vmul.f32 %v5336, %v5389
    %v5406 = vmul.f32 %v5338, %v5390
    %v5407 = vmul.f32 %v5340, %v5391
    %v5408 = vmul.f32 %v5342, %v5392
    %v5409 = vmul.f32 %v5344, %v5393
    %v5410 = vmul.f32 %v5346, %v5394
    %v5411 = vpack.c.bf16 %v5396, %v5395
    %v5412 = vpack.c.bf16 %v5398, %v5397
    %v5413 = vpack.c.bf16 %v5400, %v5399
    %v5414 = vpack.c.bf16 %v5402, %v5401
    %v5415 = vpack.c.bf16 %v5404, %v5403
    %v5416 = vpack.c.bf16 %v5406, %v5405
    %v5417 = vpack.c.bf16 %v5408, %v5407
    %v5418 = vpack.c.bf16 %v5410, %v5409
    %v5427 = vunpack.c.l.b16 %v5411
    %v5428 = vunpack.c.h.b16 %v5411
    %v5429 = vunpack.c.l.b16 %v5412
    %v5430 = vunpack.c.h.b16 %v5412
    %v5431 = vunpack.c.l.b16 %v5413
    %v5432 = vunpack.c.h.b16 %v5413
    %v5433 = vunpack.c.l.b16 %v5414
    %v5434 = vunpack.c.h.b16 %v5414
    %v5435 = vunpack.c.l.b16 %v5415
    %v5436 = vunpack.c.h.b16 %v5415
    %v5437 = vunpack.c.l.b16 %v5416
    %v5438 = vunpack.c.h.b16 %v5416
    %v5439 = vunpack.c.l.b16 %v5417
    %v5440 = vunpack.c.h.b16 %v5417
    %v5441 = vunpack.c.l.b16 %v5418
    %v5442 = vunpack.c.h.b16 %v5418
    %v5443 = vpack.c.b16 %v5427, %v5427
    %v5444 = vpack.c.b16 %v5428, %v5428
    %v5445 = vpack.c.b16 %v5429, %v5429
    %v5446 = vpack.c.b16 %v5430, %v5430
    %v5447 = vpack.c.b16 %v5431, %v5431
    %v5448 = vpack.c.b16 %v5432, %v5432
    %v5449 = vpack.c.b16 %v5433, %v5433
    %v5450 = vpack.c.b16 %v5434, %v5434
    %v5451 = vpack.c.b16 %v5435, %v5435
    %v5452 = vpack.c.b16 %v5436, %v5436
    %v5453 = vpack.c.b16 %v5437, %v5437
    %v5454 = vpack.c.b16 %v5438, %v5438
    %v5455 = vpack.c.b16 %v5439, %v5439
    %v5456 = vpack.c.b16 %v5440, %v5440
    %v5457 = vpack.c.b16 %v5441, %v5441
    %v5458 = vpack.c.b16 %v5442, %v5442
    %s5475 = scalar_lea.vmem [#allocation6], 128
    %5476 = vst [vmem:[%s5475] sm:$0xf] %v5443
    %5477 = vst [vmem:[%s5475 + $0x4] sm:$0xf] %v5444
    %5478 = vst [vmem:[%s5475 + $0x8] sm:$0xf] %v5445
    %5479 = vst [vmem:[%s5475 + $0xc] sm:$0xf] %v5446
    %5480 = vst [vmem:[%s5475 + $0x10] sm:$0xf] %v5447
    %5481 = vst [vmem:[%s5475 + $0x14] sm:$0xf] %v5448
    %5482 = vst [vmem:[%s5475 + $0x18] sm:$0xf] %v5449
    %5483 = vst [vmem:[%s5475 + $0x1c] sm:$0xf] %v5450
    %5484 = vst [vmem:[%s5475 + $0x20] sm:$0xf] %v5451
    %5485 = vst [vmem:[%s5475 + $0x24] sm:$0xf] %v5452
    %5486 = vst [vmem:[%s5475 + $0x28] sm:$0xf] %v5453
    %5487 = vst [vmem:[%s5475 + $0x2c] sm:$0xf] %v5454
    %5488 = vst [vmem:[%s5475 + $0x30] sm:$0xf] %v5455
    %5489 = vst [vmem:[%s5475 + $0x34] sm:$0xf] %v5456
    %5490 = vst [vmem:[%s5475 + $0x38] sm:$0xf] %v5457
    %5491 = vst [vmem:[%s5475 + $0x3c] sm:$0xf] %v5458
    %v5492 = vpack.c.bf16 %v787, %v787
    %5493 = vmatprep.subr.bf16.mxu0 0
    %5494 = vmatpush1.bf16.xpose.msra.mxu0 %v5411
    %5495 = vmatprep.subr.bf16.mxu0 0
    %5496 = vmatpush1.bf16.xpose.msra.mxu0 %v5412
    %5497 = vmatprep.subr.bf16.mxu0 0
    %5498 = vmatpush1.bf16.xpose.msra.mxu0 %v5413
    %5499 = vmatprep.subr.bf16.mxu0 0
    %5500 = vmatpush1.bf16.xpose.msra.mxu0 %v5414
    %5501 = vmatprep.subr.bf16.mxu0 0
    %5502 = vmatpush1.bf16.xpose.msra.mxu0 %v5415
    %5503 = vmatprep.subr.bf16.mxu0 0
    %5504 = vmatpush1.bf16.xpose.msra.mxu0 %v5416
    %5505 = vmatprep.subr.bf16.mxu0 0
    %5506 = vmatpush1.bf16.xpose.msra.mxu0 %v5417
    %5507 = vmatprep.subr.bf16.mxu0 0
    %5508 = vmatpush1.bf16.xpose.msra.mxu0 %v5418
    %5509 = vmatprep.subr.bf16.mxu0 0
    %5510 = vmatpush1.bf16.xpose.msra.mxu0 0
    %5511 = vmatprep.subr.bf16.mxu0 0
    %5512 = vmatpush1.bf16.xpose.msra.mxu0 0
    %5513 = vmatprep.subr.bf16.mxu0 0
    %5514 = vmatpush1.bf16.xpose.msra.mxu0 0
    %5515 = vmatprep.subr.bf16.mxu0 0
    %5516 = vmatpush1.bf16.xpose.msra.mxu0 0
    %5517 = vmatprep.subr.bf16.mxu0 0
    %5518 = vmatpush1.bf16.xpose.msra.mxu0 0
    %5519 = vmatprep.subr.bf16.mxu0 0
    %5520 = vmatpush1.bf16.xpose.msra.mxu0 0
    %5521 = vmatprep.subr.bf16.mxu0 0
    %5522 = vmatpush1.bf16.xpose.msra.mxu0 0
    %5523 = vmatprep.subr.bf16.mxu0 0
    %5524 = vmatpush1.bf16.xpose.msra.mxu0 0
    %5525 = vmatprep.mubr.bf16.mxu0 0
    %5526 = vmatmul.mubr.bf16.gmra.mrb[0].mxu0 %v5492
    %v5527 = vpop.f32.mrb[0].mxu0
    %v5528 = vadd.f32 0.0, %v5527
    %v5529 = vpop.f32.mrb[0].mxu0
    %v5530 = vpop.f32.mrb[0].mxu0
    %v5531 = vpop.f32.mrb[0].mxu0
    %5532 = vdwg.mxu0
    %5533 = vxpose.xlu0.b32.start [1/16] %v342, 128
    %5534 = vxpose.xlu0.b32.cont [2/16] 0.0, 128
    %5535 = vxpose.xlu0.b32.cont [3/16] 0.0, 128
    %5536 = vxpose.xlu0.b32.cont [4/16] 0.0, 128
    %5537 = vxpose.xlu0.b32.cont [5/16] 0.0, 128
    %5538 = vxpose.xlu0.b32.cont [6/16] 0.0, 128
    %5539 = vxpose.xlu0.b32.cont [7/16] 0.0, 128
    %5540 = vxpose.xlu0.b32.cont [8/16] 0.0, 128
    %5541 = vxpose.xlu0.b32.cont [9/16] 0.0, 128
    %5542 = vxpose.xlu0.b32.cont [10/16] 0.0, 128
    %5543 = vxpose.xlu0.b32.cont [11/16] 0.0, 128
    %5544 = vxpose.xlu0.b32.cont [12/16] 0.0, 128
    %5545 = vxpose.xlu0.b32.cont [13/16] 0.0, 128
    %5546 = vxpose.xlu0.b32.cont [14/16] 0.0, 128
    %5547 = vxpose.xlu0.b32.cont [15/16] 0.0, 128
    %5548 = vxpose.xlu0.b32.end [16/16] 0.0, 128
    %v5549 = vpop.trf.xlu0
    %v5550 = vpop.trf.xlu0
    %v5551 = vpop.trf.xlu0
    %v5552 = vpop.trf.xlu0
    %v5553 = vpop.trf.xlu0
    %v5554 = vpop.trf.xlu0
    %v5555 = vpop.trf.xlu0
    %v5556 = vpop.trf.xlu0
    %v5557 = vpop.trf.xlu0
    %v5558 = vpop.trf.xlu0
    %v5559 = vpop.trf.xlu0
    %v5560 = vpop.trf.xlu0
    %v5561 = vpop.trf.xlu0
    %v5562 = vpop.trf.xlu0
    %v5563 = vpop.trf.xlu0
    %v5564 = vpop.trf.xlu0
    %v5566 = vsel %vm825, %v5549, 0
    %v5569 = vsel %vm825, %v5550, 0
    %v5572 = vsel %vm825, %v5551, 0
    %v5575 = vsel %vm825, %v5552, 0
    %v5578 = vsel %vm825, %v5553, 0
    %v5581 = vsel %vm825, %v5554, 0
    %v5584 = vsel %vm825, %v5555, 0
    %v5587 = vsel %vm825, %v5556, 0
    %v5590 = vsel %vm825, %v5557, 0
    %v5593 = vsel %vm825, %v5558, 0
    %v5596 = vsel %vm825, %v5559, 0
    %v5599 = vsel %vm825, %v5560, 0
    %v5602 = vsel %vm825, %v5561, 0
    %v5605 = vsel %vm825, %v5562, 0
    %v5608 = vsel %vm825, %v5563, 0
    %v5611 = vsel %vm825, %v5564, 0
    %5613 = vmatprep.subr.mxu0 0.0
    %5614 = vmatpush1.msra.mxu0 %v566
    %5615 = vmatprep.subr.mxu0 0.0
    %5616 = vmatpush1.msra.mxu0 0.0
    %5617 = vmatprep.subr.mxu0 0.0
    %5618 = vmatpush1.msra.mxu0 0.0
    %5619 = vmatprep.subr.mxu0 0.0
    %5620 = vmatpush1.msra.mxu0 0.0
    %5621 = vmatprep.subr.mxu0 0.0
    %5622 = vmatpush1.msra.mxu0 0.0
    %5623 = vmatprep.subr.mxu0 0.0
    %5624 = vmatpush1.msra.mxu0 0.0
    %5625 = vmatprep.subr.mxu0 0.0
    %5626 = vmatpush1.msra.mxu0 0.0
    %5627 = vmatprep.subr.mxu0 0.0
    %5628 = vmatpush1.msra.mxu0 0.0
    %5629 = vmatprep.subr.mxu0 0.0
    %5630 = vmatpush1.msra.mxu0 0.0
    %5631 = vmatprep.subr.mxu0 0.0
    %5632 = vmatpush1.msra.mxu0 0.0
    %5633 = vmatprep.subr.mxu0 0.0
    %5634 = vmatpush1.msra.mxu0 0.0
    %5635 = vmatprep.subr.mxu0 0.0
    %5636 = vmatpush1.msra.mxu0 0.0
    %5637 = vmatprep.subr.mxu0 0.0
    %5638 = vmatpush1.msra.mxu0 0.0
    %5639 = vmatprep.subr.mxu0 0.0
    %5640 = vmatpush1.msra.mxu0 0.0
    %5641 = vmatprep.subr.mxu0 0.0
    %5642 = vmatpush1.msra.mxu0 0.0
    %5643 = vmatprep.subr.mxu0 0.0
    %5644 = vmatpush1.msra.mxu0 0.0
    %5645 = vmatprep.subr.mxu0 0.0
    %5646 = vmatpush1.msra.mxu0 0.0
    %5647 = vmatprep.subr.mxu0 0.0
    %5648 = vmatpush1.msra.mxu0 0.0
    %5649 = vmatprep.subr.mxu0 0.0
    %5650 = vmatpush1.msra.mxu0 0.0
    %5651 = vmatprep.subr.mxu0 0.0
    %5652 = vmatpush1.msra.mxu0 0.0
    %5653 = vmatprep.subr.mxu0 0.0
    %5654 = vmatpush1.msra.mxu0 0.0
    %5655 = vmatprep.subr.mxu0 0.0
    %5656 = vmatpush1.msra.mxu0 0.0
    %5657 = vmatprep.subr.mxu0 0.0
    %5658 = vmatpush1.msra.mxu0 0.0
    %5659 = vmatprep.subr.mxu0 0.0
    %5660 = vmatpush1.msra.mxu0 0.0
    %5661 = vmatprep.subr.mxu0 0.0
    %5662 = vmatpush1.msra.mxu0 0.0
    %5663 = vmatprep.subr.mxu0 0.0
    %5664 = vmatpush1.msra.mxu0 0.0
    %5665 = vmatprep.subr.mxu0 0.0
    %5666 = vmatpush1.msra.mxu0 0.0
    %5667 = vmatprep.subr.mxu0 0.0
    %5668 = vmatpush1.msra.mxu0 0.0
    %5669 = vmatprep.subr.mxu0 0.0
    %5670 = vmatpush1.msra.mxu0 0.0
    %5671 = vmatprep.subr.mxu0 0.0
    %5672 = vmatpush1.msra.mxu0 0.0
    %5673 = vmatprep.subr.mxu0 0.0
    %5674 = vmatpush1.msra.mxu0 0.0
    %5675 = vmatprep.subr.mxu0 0.0
    %5676 = vmatpush1.msra.mxu0 0.0
    %5677 = vmatprep.mubr.f32.mxu0 0.0
    %5678 = vmatmul.mubr.f32.gmra.mrb[0].mxu0 %v5566
    %v5679 = vpop.f32.mrb[0].mxu0
    %v5680 = vadd.f32 0.0, %v5679
    %v5681 = vpop.f32.mrb[0].mxu0
    %5682 = vmatprep.mubr.f32.mxu0 0.0
    %5683 = vmatmul.mubr.f32.gmra.mrb[0].mxu0 %v5569
    %v5684 = vpop.f32.mrb[0].mxu0
    %v5685 = vadd.f32 0.0, %v5684
    %v5686 = vpop.f32.mrb[0].mxu0
    %5687 = vmatprep.mubr.f32.mxu0 0.0
    %5688 = vmatmul.mubr.f32.gmra.mrb[0].mxu0 %v5572
    %v5689 = vpop.f32.mrb[0].mxu0
    %v5690 = vadd.f32 0.0, %v5689
    %v5691 = vpop.f32.mrb[0].mxu0
    %5692 = vmatprep.mubr.f32.mxu0 0.0
    %5693 = vmatmul.mubr.f32.gmra.mrb[0].mxu0 %v5575
    %v5694 = vpop.f32.mrb[0].mxu0
    %v5695 = vadd.f32 0.0, %v5694
    %v5696 = vpop.f32.mrb[0].mxu0
    %5697 = vmatprep.mubr.f32.mxu0 0.0
    %5698 = vmatmul.mubr.f32.gmra.mrb[0].mxu0 %v5578
    %v5699 = vpop.f32.mrb[0].mxu0
    %v5700 = vadd.f32 0.0, %v5699
    %v5701 = vpop.f32.mrb[0].mxu0
    %5702 = vmatprep.mubr.f32.mxu0 0.0
    %5703 = vmatmul.mubr.f32.gmra.mrb[0].mxu0 %v5581
    %v5704 = vpop.f32.mrb[0].mxu0
    %v5705 = vadd.f32 0.0, %v5704
    %v5706 = vpop.f32.mrb[0].mxu0
    %5707 = vmatprep.mubr.f32.mxu0 0.0
    %5708 = vmatmul.mubr.f32.gmra.mrb[0].mxu0 %v5584
    %v5709 = vpop.f32.mrb[0].mxu0
    %v5710 = vadd.f32 0.0, %v5709
    %v5711 = vpop.f32.mrb[0].mxu0
    %5712 = vmatprep.mubr.f32.mxu0 0.0
    %5713 = vmatmul.mubr.f32.gmra.mrb[0].mxu0 %v5587
    %v5714 = vpop.f32.mrb[0].mxu0
    %v5715 = vadd.f32 0.0, %v5714
    %v5716 = vpop.f32.mrb[0].mxu0
    %5717 = vmatprep.mubr.f32.mxu0 0.0
    %5718 = vmatmul.mubr.f32.gmra.mrb[0].mxu0 %v5590
    %v5719 = vpop.f32.mrb[0].mxu0
    %v5720 = vadd.f32 0.0, %v5719
    %v5721 = vpop.f32.mrb[0].mxu0
    %5722 = vmatprep.mubr.f32.mxu0 0.0
    %5723 = vmatmul.mubr.f32.gmra.mrb[0].mxu0 %v5593
    %v5724 = vpop.f32.mrb[0].mxu0
    %v5725 = vadd.f32 0.0, %v5724
    %v5726 = vpop.f32.mrb[0].mxu0
    %5727 = vmatprep.mubr.f32.mxu0 0.0
    %5728 = vmatmul.mubr.f32.gmra.mrb[0].mxu0 %v5596
    %v5729 = vpop.f32.mrb[0].mxu0
    %v5730 = vadd.f32 0.0, %v5729
    %v5731 = vpop.f32.mrb[0].mxu0
    %5732 = vmatprep.mubr.f32.mxu0 0.0
    %5733 = vmatmul.mubr.f32.gmra.mrb[0].mxu0 %v5599
    %v5734 = vpop.f32.mrb[0].mxu0
    %v5735 = vadd.f32 0.0, %v5734
    %v5736 = vpop.f32.mrb[0].mxu0
    %5737 = vmatprep.mubr.f32.mxu0 0.0
    %5738 = vmatmul.mubr.f32.gmra.mrb[0].mxu0 %v5602
    %v5739 = vpop.f32.mrb[0].mxu0
    %v5740 = vadd.f32 0.0, %v5739
    %v5741 = vpop.f32.mrb[0].mxu0
    %5742 = vmatprep.mubr.f32.mxu0 0.0
    %5743 = vmatmul.mubr.f32.gmra.mrb[0].mxu0 %v5605
    %v5744 = vpop.f32.mrb[0].mxu0
    %v5745 = vadd.f32 0.0, %v5744
    %v5746 = vpop.f32.mrb[0].mxu0
    %5747 = vmatprep.mubr.f32.mxu0 0.0
    %5748 = vmatmul.mubr.f32.gmra.mrb[0].mxu0 %v5608
    %v5749 = vpop.f32.mrb[0].mxu0
    %v5750 = vadd.f32 0.0, %v5749
    %v5751 = vpop.f32.mrb[0].mxu0
    %5752 = vmatprep.mubr.f32.mxu0 0.0
    %5753 = vmatmul.mubr.f32.gmra.mrb[0].mxu0 %v5611
    %v5754 = vpop.f32.mrb[0].mxu0
    %v5755 = vadd.f32 0.0, %v5754
    %v5756 = vpop.f32.mrb[0].mxu0
    %5757 = vdwg.mxu0
    %v5758 = vmul.f32 %v566, %v566
    %v5759 = vrot.slane %v5758, 4
    %v5760 = vadd.f32 %v5758, %v5759
    %v5761 = vrot.slane %v5760, 2
    %v5762 = vadd.f32 %v5760, %v5761
    %v5763 = vrot.slane %v5762, 1
    %v5764 = vadd.f32 %v5762, %v5763
    %v5765 = vmul.f32 %v342, %v342
    %5766 = vxpose.xlu0.b32.start [1/16] %v5765, 128
    %5767 = vxpose.xlu0.b32.cont [2/16] 0.0, 128
    %5768 = vxpose.xlu0.b32.cont [3/16] 0.0, 128
    %5769 = vxpose.xlu0.b32.cont [4/16] 0.0, 128
    %5770 = vxpose.xlu0.b32.cont [5/16] 0.0, 128
    %5771 = vxpose.xlu0.b32.cont [6/16] 0.0, 128
    %5772 = vxpose.xlu0.b32.cont [7/16] 0.0, 128
    %5773 = vxpose.xlu0.b32.cont [8/16] 0.0, 128
    %5774 = vxpose.xlu0.b32.cont [9/16] 0.0, 128
    %5775 = vxpose.xlu0.b32.cont [10/16] 0.0, 128
    %5776 = vxpose.xlu0.b32.cont [11/16] 0.0, 128
    %5777 = vxpose.xlu0.b32.cont [12/16] 0.0, 128
    %5778 = vxpose.xlu0.b32.cont [13/16] 0.0, 128
    %5779 = vxpose.xlu0.b32.cont [14/16] 0.0, 128
    %5780 = vxpose.xlu0.b32.cont [15/16] 0.0, 128
    %5781 = vxpose.xlu0.b32.end [16/16] 0.0, 128
    %v5782 = vpop.trf.xlu0
    %v5783 = vpop.trf.xlu0
    %v5784 = vpop.trf.xlu0
    %v5785 = vpop.trf.xlu0
    %v5786 = vpop.trf.xlu0
    %v5787 = vpop.trf.xlu0
    %v5788 = vpop.trf.xlu0
    %v5789 = vpop.trf.xlu0
    %v5790 = vpop.trf.xlu0
    %v5791 = vpop.trf.xlu0
    %v5792 = vpop.trf.xlu0
    %v5793 = vpop.trf.xlu0
    %v5794 = vpop.trf.xlu0
    %v5795 = vpop.trf.xlu0
    %v5796 = vpop.trf.xlu0
    %v5797 = vpop.trf.xlu0
    %v5799 = vsel %vm825, %v5782, 0
    %v5802 = vsel %vm825, %v5783, 0
    %v5805 = vsel %vm825, %v5784, 0
    %v5808 = vsel %vm825, %v5785, 0
    %v5811 = vsel %vm825, %v5786, 0
    %v5814 = vsel %vm825, %v5787, 0
    %v5817 = vsel %vm825, %v5788, 0
    %v5820 = vsel %vm825, %v5789, 0
    %v5823 = vsel %vm825, %v5790, 0
    %v5826 = vsel %vm825, %v5791, 0
    %v5829 = vsel %vm825, %v5792, 0
    %v5832 = vsel %vm825, %v5793, 0
    %v5835 = vsel %vm825, %v5794, 0
    %v5838 = vsel %vm825, %v5795, 0
    %v5841 = vsel %vm825, %v5796, 0
    %v5844 = vsel %vm825, %v5797, 0
    %5846 = vmatprep.subr.mxu0 0.0
    %5847 = vmatpush1.msra.mxu0 %v5764
    %5848 = vmatprep.subr.mxu0 0.0
    %5849 = vmatpush1.msra.mxu0 0.0
    %5850 = vmatprep.subr.mxu0 0.0
    %5851 = vmatpush1.msra.mxu0 0.0
    %5852 = vmatprep.subr.mxu0 0.0
    %5853 = vmatpush1.msra.mxu0 0.0
    %5854 = vmatprep.subr.mxu0 0.0
    %5855 = vmatpush1.msra.mxu0 0.0
    %5856 = vmatprep.subr.mxu0 0.0
    %5857 = vmatpush1.msra.mxu0 0.0
    %5858 = vmatprep.subr.mxu0 0.0
    %5859 = vmatpush1.msra.mxu0 0.0
    %5860 = vmatprep.subr.mxu0 0.0
    %5861 = vmatpush1.msra.mxu0 0.0
    %5862 = vmatprep.subr.mxu0 0.0
    %5863 = vmatpush1.msra.mxu0 0.0
    %5864 = vmatprep.subr.mxu0 0.0
    %5865 = vmatpush1.msra.mxu0 0.0
    %5866 = vmatprep.subr.mxu0 0.0
    %5867 = vmatpush1.msra.mxu0 0.0
    %5868 = vmatprep.subr.mxu0 0.0
    %5869 = vmatpush1.msra.mxu0 0.0
    %5870 = vmatprep.subr.mxu0 0.0
    %5871 = vmatpush1.msra.mxu0 0.0
    %5872 = vmatprep.subr.mxu0 0.0
    %5873 = vmatpush1.msra.mxu0 0.0
    %5874 = vmatprep.subr.mxu0 0.0
    %5875 = vmatpush1.msra.mxu0 0.0
    %5876 = vmatprep.subr.mxu0 0.0
    %5877 = vmatpush1.msra.mxu0 0.0
    %5878 = vmatprep.subr.mxu0 0.0
    %5879 = vmatpush1.msra.mxu0 0.0
    %5880 = vmatprep.subr.mxu0 0.0
    %5881 = vmatpush1.msra.mxu0 0.0
    %5882 = vmatprep.subr.mxu0 0.0
    %5883 = vmatpush1.msra.mxu0 0.0
    %5884 = vmatprep.subr.mxu0 0.0
    %5885 = vmatpush1.msra.mxu0 0.0
    %5886 = vmatprep.subr.mxu0 0.0
    %5887 = vmatpush1.msra.mxu0 0.0
    %5888 = vmatprep.subr.mxu0 0.0
    %5889 = vmatpush1.msra.mxu0 0.0
    %5890 = vmatprep.subr.mxu0 0.0
    %5891 = vmatpush1.msra.mxu0 0.0
    %5892 = vmatprep.subr.mxu0 0.0
    %5893 = vmatpush1.msra.mxu0 0.0
    %5894 = vmatprep.subr.mxu0 0.0
    %5895 = vmatpush1.msra.mxu0 0.0
    %5896 = vmatprep.subr.mxu0 0.0
    %5897 = vmatpush1.msra.mxu0 0.0
    %5898 = vmatprep.subr.mxu0 0.0
    %5899 = vmatpush1.msra.mxu0 0.0
    %5900 = vmatprep.subr.mxu0 0.0
    %5901 = vmatpush1.msra.mxu0 0.0
    %5902 = vmatprep.subr.mxu0 0.0
    %5903 = vmatpush1.msra.mxu0 0.0
    %5904 = vmatprep.subr.mxu0 0.0
    %5905 = vmatpush1.msra.mxu0 0.0
    %5906 = vmatprep.subr.mxu0 0.0
    %5907 = vmatpush1.msra.mxu0 0.0
    %5908 = vmatprep.subr.mxu0 0.0
    %5909 = vmatpush1.msra.mxu0 0.0
    %5910 = vmatprep.mubr.f32.mxu0 0.0
    %5911 = vmatmul.mubr.f32.gmra.mrb[0].mxu0 %v5799
    %v5912 = vpop.f32.mrb[0].mxu0
    %v5913 = vadd.f32 0.0, %v5912
    %v5914 = vpop.f32.mrb[0].mxu0
    %5915 = vmatprep.mubr.f32.mxu0 0.0
    %5916 = vmatmul.mubr.f32.gmra.mrb[0].mxu0 %v5802
    %v5917 = vpop.f32.mrb[0].mxu0
    %v5918 = vadd.f32 0.0, %v5917
    %v5919 = vpop.f32.mrb[0].mxu0
    %5920 = vmatprep.mubr.f32.mxu0 0.0
    %5921 = vmatmul.mubr.f32.gmra.mrb[0].mxu0 %v5805
    %v5922 = vpop.f32.mrb[0].mxu0
    %v5923 = vadd.f32 0.0, %v5922
    %v5924 = vpop.f32.mrb[0].mxu0
    %5925 = vmatprep.mubr.f32.mxu0 0.0
    %5926 = vmatmul.mubr.f32.gmra.mrb[0].mxu0 %v5808
    %v5927 = vpop.f32.mrb[0].mxu0
    %v5928 = vadd.f32 0.0, %v5927
    %v5929 = vpop.f32.mrb[0].mxu0
    %5930 = vmatprep.mubr.f32.mxu0 0.0
    %5931 = vmatmul.mubr.f32.gmra.mrb[0].mxu0 %v5811
    %v5932 = vpop.f32.mrb[0].mxu0
    %v5933 = vadd.f32 0.0, %v5932
    %v5934 = vpop.f32.mrb[0].mxu0
    %5935 = vmatprep.mubr.f32.mxu0 0.0
    %5936 = vmatmul.mubr.f32.gmra.mrb[0].mxu0 %v5814
    %v5937 = vpop.f32.mrb[0].mxu0
    %v5938 = vadd.f32 0.0, %v5937
    %v5939 = vpop.f32.mrb[0].mxu0
    %5940 = vmatprep.mubr.f32.mxu0 0.0
    %5941 = vmatmul.mubr.f32.gmra.mrb[0].mxu0 %v5817
    %v5942 = vpop.f32.mrb[0].mxu0
    %v5943 = vadd.f32 0.0, %v5942
    %v5944 = vpop.f32.mrb[0].mxu0
    %5945 = vmatprep.mubr.f32.mxu0 0.0
    %5946 = vmatmul.mubr.f32.gmra.mrb[0].mxu0 %v5820
    %v5947 = vpop.f32.mrb[0].mxu0
    %v5948 = vadd.f32 0.0, %v5947
    %v5949 = vpop.f32.mrb[0].mxu0
    %5950 = vmatprep.mubr.f32.mxu0 0.0
    %5951 = vmatmul.mubr.f32.gmra.mrb[0].mxu0 %v5823
    %v5952 = vpop.f32.mrb[0].mxu0
    %v5953 = vadd.f32 0.0, %v5952
    %v5954 = vpop.f32.mrb[0].mxu0
    %5955 = vmatprep.mubr.f32.mxu0 0.0
    %5956 = vmatmul.mubr.f32.gmra.mrb[0].mxu0 %v5826
    %v5957 = vpop.f32.mrb[0].mxu0
    %v5958 = vadd.f32 0.0, %v5957
    %v5959 = vpop.f32.mrb[0].mxu0
    %5960 = vmatprep.mubr.f32.mxu0 0.0
    %5961 = vmatmul.mubr.f32.gmra.mrb[0].mxu0 %v5829
    %v5962 = vpop.f32.mrb[0].mxu0
    %v5963 = vadd.f32 0.0, %v5962
    %v5964 = vpop.f32.mrb[0].mxu0
    %5965 = vmatprep.mubr.f32.mxu0 0.0
    %5966 = vmatmul.mubr.f32.gmra.mrb[0].mxu0 %v5832
    %v5967 = vpop.f32.mrb[0].mxu0
    %v5968 = vadd.f32 0.0, %v5967
    %v5969 = vpop.f32.mrb[0].mxu0
    %5970 = vmatprep.mubr.f32.mxu0 0.0
    %5971 = vmatmul.mubr.f32.gmra.mrb[0].mxu0 %v5835
    %v5972 = vpop.f32.mrb[0].mxu0
    %v5973 = vadd.f32 0.0, %v5972
    %v5974 = vpop.f32.mrb[0].mxu0
    %5975 = vmatprep.mubr.f32.mxu0 0.0
    %5976 = vmatmul.mubr.f32.gmra.mrb[0].mxu0 %v5838
    %v5977 = vpop.f32.mrb[0].mxu0
    %v5978 = vadd.f32 0.0, %v5977
    %v5979 = vpop.f32.mrb[0].mxu0
    %5980 = vmatprep.mubr.f32.mxu0 0.0
    %5981 = vmatmul.mubr.f32.gmra.mrb[0].mxu0 %v5841
    %v5982 = vpop.f32.mrb[0].mxu0
    %v5983 = vadd.f32 0.0, %v5982
    %v5984 = vpop.f32.mrb[0].mxu0
    %5985 = vmatprep.mubr.f32.mxu0 0.0
    %5986 = vmatmul.mubr.f32.gmra.mrb[0].mxu0 %v5844
    %v5987 = vpop.f32.mrb[0].mxu0
    %v5988 = vadd.f32 0.0, %v5987
    %v5989 = vpop.f32.mrb[0].mxu0
    %5990 = vdwg.mxu0
    %v5991 = vmul.f32 %v5680, %v5680
    %v5992 = vmul.f32 %v5685, %v5685
    %v5993 = vmul.f32 %v5690, %v5690
    %v5994 = vmul.f32 %v5695, %v5695
    %v5995 = vmul.f32 %v5700, %v5700
    %v5996 = vmul.f32 %v5705, %v5705
    %v5997 = vmul.f32 %v5710, %v5710
    %v5998 = vmul.f32 %v5715, %v5715
    %v5999 = vmul.f32 %v5720, %v5720
    %v6000 = vmul.f32 %v5725, %v5725
    %v6001 = vmul.f32 %v5730, %v5730
    %v6002 = vmul.f32 %v5735, %v5735
    %v6003 = vmul.f32 %v5740, %v5740
    %v6004 = vmul.f32 %v5745, %v5745
    %v6005 = vmul.f32 %v5750, %v5750
    %v6006 = vmul.f32 %v5755, %v5755
    %v6007 = vsub.f32 %v5913, %v5991
    %v6008 = vsub.f32 %v5918, %v5992
    %v6009 = vsub.f32 %v5923, %v5993
    %v6010 = vsub.f32 %v5928, %v5994
    %v6011 = vsub.f32 %v5933, %v5995
    %v6012 = vsub.f32 %v5938, %v5996
    %v6013 = vsub.f32 %v5943, %v5997
    %v6014 = vsub.f32 %v5948, %v5998
    %v6015 = vsub.f32 %v5953, %v5999
    %v6016 = vsub.f32 %v5958, %v6000
    %v6017 = vsub.f32 %v5963, %v6001
    %v6018 = vsub.f32 %v5968, %v6002
    %v6019 = vsub.f32 %v5973, %v6003
    %v6020 = vsub.f32 %v5978, %v6004
    %v6021 = vsub.f32 %v5983, %v6005
    %v6022 = vsub.f32 %v5988, %v6006
    %v6023 = vmax.f32 %v6007, 0.0
    %v6024 = vmax.f32 %v6008, 0.0
    %v6025 = vmax.f32 %v6009, 0.0
    %v6026 = vmax.f32 %v6010, 0.0
    %v6027 = vmax.f32 %v6011, 0.0
    %v6028 = vmax.f32 %v6012, 0.0
    %v6029 = vmax.f32 %v6013, 0.0
    %v6030 = vmax.f32 %v6014, 0.0
    %v6031 = vmax.f32 %v6015, 0.0
    %v6032 = vmax.f32 %v6016, 0.0
    %v6033 = vmax.f32 %v6017, 0.0
    %v6034 = vmax.f32 %v6018, 0.0
    %v6035 = vmax.f32 %v6019, 0.0
    %v6036 = vmax.f32 %v6020, 0.0
    %v6037 = vmax.f32 %v6021, 0.0
    %v6038 = vmax.f32 %v6022, 0.0
    %v6039 = vadd.f32 %v6023, 1e-08
    %v6040 = vadd.f32 %v6024, 1e-08
    %v6041 = vadd.f32 %v6025, 1e-08
    %v6042 = vadd.f32 %v6026, 1e-08
    %v6043 = vadd.f32 %v6027, 1e-08
    %v6044 = vadd.f32 %v6028, 1e-08
    %v6045 = vadd.f32 %v6029, 1e-08
    %v6046 = vadd.f32 %v6030, 1e-08
    %v6047 = vadd.f32 %v6031, 1e-08
    %v6048 = vadd.f32 %v6032, 1e-08
    %v6049 = vadd.f32 %v6033, 1e-08
    %v6050 = vadd.f32 %v6034, 1e-08
    %v6051 = vadd.f32 %v6035, 1e-08
    %v6052 = vadd.f32 %v6036, 1e-08
    %v6053 = vadd.f32 %v6037, 1e-08
    %v6054 = vadd.f32 %v6038, 1e-08
    %v6055 = vrsqrt.pop %v6039
    %v6056 = vmul.f32 %v6039, %v6055
    %vm6057 = vcmp.eq.f32.partialorder %v6039, inf
    %v6058 = vsel %vm6057, %v6039, %v6056
    %vm6059 = vcmp.eq.f32.partialorder %v6039, 0.0
    %v6060 = vand.u32 %v6039, 2147483648
    %v6061 = vsel %vm6059, %v6060, %v6058
    %v6062 = vrsqrt.pop %v6040
    %v6063 = vmul.f32 %v6040, %v6062
    %vm6064 = vcmp.eq.f32.partialorder %v6040, inf
    %v6065 = vsel %vm6064, %v6040, %v6063
    %vm6066 = vcmp.eq.f32.partialorder %v6040, 0.0
    %v6067 = vand.u32 %v6040, 2147483648
    %v6068 = vsel %vm6066, %v6067, %v6065
    %v6069 = vrsqrt.pop %v6041
    %v6070 = vmul.f32 %v6041, %v6069
    %vm6071 = vcmp.eq.f32.partialorder %v6041, inf
    %v6072 = vsel %vm6071, %v6041, %v6070
    %vm6073 = vcmp.eq.f32.partialorder %v6041, 0.0
    %v6074 = vand.u32 %v6041, 2147483648
    %v6075 = vsel %vm6073, %v6074, %v6072
    %v6076 = vrsqrt.pop %v6042
    %v6077 = vmul.f32 %v6042, %v6076
    %vm6078 = vcmp.eq.f32.partialorder %v6042, inf
    %v6079 = vsel %vm6078, %v6042, %v6077
    %vm6080 = vcmp.eq.f32.partialorder %v6042, 0.0
    %v6081 = vand.u32 %v6042, 2147483648
    %v6082 = vsel %vm6080, %v6081, %v6079
    %v6083 = vrsqrt.pop %v6043
    %v6084 = vmul.f32 %v6043, %v6083
    %vm6085 = vcmp.eq.f32.partialorder %v6043, inf
    %v6086 = vsel %vm6085, %v6043, %v6084
    %vm6087 = vcmp.eq.f32.partialorder %v6043, 0.0
    %v6088 = vand.u32 %v6043, 2147483648
    %v6089 = vsel %vm6087, %v6088, %v6086
    %v6090 = vrsqrt.pop %v6044
    %v6091 = vmul.f32 %v6044, %v6090
    %vm6092 = vcmp.eq.f32.partialorder %v6044, inf
    %v6093 = vsel %vm6092, %v6044, %v6091
    %vm6094 = vcmp.eq.f32.partialorder %v6044, 0.0
    %v6095 = vand.u32 %v6044, 2147483648
    %v6096 = vsel %vm6094, %v6095, %v6093
    %v6097 = vrsqrt.pop %v6045
    %v6098 = vmul.f32 %v6045, %v6097
    %vm6099 = vcmp.eq.f32.partialorder %v6045, inf
    %v6100 = vsel %vm6099, %v6045, %v6098
    %vm6101 = vcmp.eq.f32.partialorder %v6045, 0.0
    %v6102 = vand.u32 %v6045, 2147483648
    %v6103 = vsel %vm6101, %v6102, %v6100
    %v6104 = vrsqrt.pop %v6046
    %v6105 = vmul.f32 %v6046, %v6104
    %vm6106 = vcmp.eq.f32.partialorder %v6046, inf
    %v6107 = vsel %vm6106, %v6046, %v6105
    %vm6108 = vcmp.eq.f32.partialorder %v6046, 0.0
    %v6109 = vand.u32 %v6046, 2147483648
    %v6110 = vsel %vm6108, %v6109, %v6107
    %v6111 = vrsqrt.pop %v6047
    %v6112 = vmul.f32 %v6047, %v6111
    %vm6113 = vcmp.eq.f32.partialorder %v6047, inf
    %v6114 = vsel %vm6113, %v6047, %v6112
    %vm6115 = vcmp.eq.f32.partialorder %v6047, 0.0
    %v6116 = vand.u32 %v6047, 2147483648
    %v6117 = vsel %vm6115, %v6116, %v6114
    %v6118 = vrsqrt.pop %v6048
    %v6119 = vmul.f32 %v6048, %v6118
    %vm6120 = vcmp.eq.f32.partialorder %v6048, inf
    %v6121 = vsel %vm6120, %v6048, %v6119
    %vm6122 = vcmp.eq.f32.partialorder %v6048, 0.0
    %v6123 = vand.u32 %v6048, 2147483648
    %v6124 = vsel %vm6122, %v6123, %v6121
    %v6125 = vrsqrt.pop %v6049
    %v6126 = vmul.f32 %v6049, %v6125
    %vm6127 = vcmp.eq.f32.partialorder %v6049, inf
    %v6128 = vsel %vm6127, %v6049, %v6126
    %vm6129 = vcmp.eq.f32.partialorder %v6049, 0.0
    %v6130 = vand.u32 %v6049, 2147483648
    %v6131 = vsel %vm6129, %v6130, %v6128
    %v6132 = vrsqrt.pop %v6050
    %v6133 = vmul.f32 %v6050, %v6132
    %vm6134 = vcmp.eq.f32.partialorder %v6050, inf
    %v6135 = vsel %vm6134, %v6050, %v6133
    %vm6136 = vcmp.eq.f32.partialorder %v6050, 0.0
    %v6137 = vand.u32 %v6050, 2147483648
    %v6138 = vsel %vm6136, %v6137, %v6135
    %v6139 = vrsqrt.pop %v6051
    %v6140 = vmul.f32 %v6051, %v6139
    %vm6141 = vcmp.eq.f32.partialorder %v6051, inf
    %v6142 = vsel %vm6141, %v6051, %v6140
    %vm6143 = vcmp.eq.f32.partialorder %v6051, 0.0
    %v6144 = vand.u32 %v6051, 2147483648
    %v6145 = vsel %vm6143, %v6144, %v6142
    %v6146 = vrsqrt.pop %v6052
    %v6147 = vmul.f32 %v6052, %v6146
    %vm6148 = vcmp.eq.f32.partialorder %v6052, inf
    %v6149 = vsel %vm6148, %v6052, %v6147
    %vm6150 = vcmp.eq.f32.partialorder %v6052, 0.0
    %v6151 = vand.u32 %v6052, 2147483648
    %v6152 = vsel %vm6150, %v6151, %v6149
    %v6153 = vrsqrt.pop %v6053
    %v6154 = vmul.f32 %v6053, %v6153
    %vm6155 = vcmp.eq.f32.partialorder %v6053, inf
    %v6156 = vsel %vm6155, %v6053, %v6154
    %vm6157 = vcmp.eq.f32.partialorder %v6053, 0.0
    %v6158 = vand.u32 %v6053, 2147483648
    %v6159 = vsel %vm6157, %v6158, %v6156
    %v6160 = vrsqrt.pop %v6054
    %v6161 = vmul.f32 %v6054, %v6160
    %vm6162 = vcmp.eq.f32.partialorder %v6054, inf
    %v6163 = vsel %vm6162, %v6054, %v6161
    %vm6164 = vcmp.eq.f32.partialorder %v6054, 0.0
    %v6165 = vand.u32 %v6054, 2147483648
    %v6166 = vsel %vm6164, %v6165, %v6163
    %v6167 = vmul.f32 %v5680, 0.17677669
    %v6168 = vmul.f32 %v5685, 0.17677669
    %v6169 = vmul.f32 %v5690, 0.17677669
    %v6170 = vmul.f32 %v5695, 0.17677669
    %v6171 = vmul.f32 %v5700, 0.17677669
    %v6172 = vmul.f32 %v5705, 0.17677669
    %v6173 = vmul.f32 %v5710, 0.17677669
    %v6174 = vmul.f32 %v5715, 0.17677669
    %v6175 = vmul.f32 %v5720, 0.17677669
    %v6176 = vmul.f32 %v5725, 0.17677669
    %v6177 = vmul.f32 %v5730, 0.17677669
    %v6178 = vmul.f32 %v5735, 0.17677669
    %v6179 = vmul.f32 %v5740, 0.17677669
    %v6180 = vmul.f32 %v5745, 0.17677669
    %v6181 = vmul.f32 %v5750, 0.17677669
    %v6182 = vmul.f32 %v5755, 0.17677669
    %v6183 = vmul.f32 %v6061, 0.17677669
    %v6184 = vmul.f32 %v6068, 0.17677669
    %v6185 = vmul.f32 %v6075, 0.17677669
    %v6186 = vmul.f32 %v6082, 0.17677669
    %v6187 = vmul.f32 %v6089, 0.17677669
    %v6188 = vmul.f32 %v6096, 0.17677669
    %v6189 = vmul.f32 %v6103, 0.17677669
    %v6190 = vmul.f32 %v6110, 0.17677669
    %v6191 = vmul.f32 %v6117, 0.17677669
    %v6192 = vmul.f32 %v6124, 0.17677669
    %v6193 = vmul.f32 %v6131, 0.17677669
    %v6194 = vmul.f32 %v6138, 0.17677669
    %v6195 = vmul.f32 %v6145, 0.17677669
    %v6196 = vmul.f32 %v6152, 0.17677669
    %v6197 = vmul.f32 %v6159, 0.17677669
    %v6198 = vmul.f32 %v6166, 0.17677669
    %v6199 = vadd.f32 %v6167, %v6183
    %v6200 = vadd.f32 %v6168, %v6184
    %v6201 = vadd.f32 %v6169, %v6185
    %v6202 = vadd.f32 %v6170, %v6186
    %v6203 = vadd.f32 %v6171, %v6187
    %v6204 = vadd.f32 %v6172, %v6188
    %v6205 = vadd.f32 %v6173, %v6189
    %v6206 = vadd.f32 %v6174, %v6190
    %v6207 = vadd.f32 %v6175, %v6191
    %v6208 = vadd.f32 %v6176, %v6192
    %v6209 = vadd.f32 %v6177, %v6193
    %v6210 = vadd.f32 %v6178, %v6194
    %v6211 = vadd.f32 %v6179, %v6195
    %v6212 = vadd.f32 %v6180, %v6196
    %v6213 = vadd.f32 %v6181, %v6197
    %v6214 = vadd.f32 %v6182, %v6198
    %6215 = vmax.xlane.f32.xlu0 %v6199
    %v6216 = vpop.xlane.xlu0 %6215
    %6217 = vmax.xlane.f32.xlu0 %v6200
    %v6218 = vpop.xlane.xlu0 %6217
    %6219 = vmax.xlane.f32.xlu0 %v6201
    %v6220 = vpop.xlane.xlu0 %6219
    %6221 = vmax.xlane.f32.xlu0 %v6202
    %v6222 = vpop.xlane.xlu0 %6221
    %6223 = vmax.xlane.f32.xlu0 %v6203
    %v6224 = vpop.xlane.xlu0 %6223
    %6225 = vmax.xlane.f32.xlu0 %v6204
    %v6226 = vpop.xlane.xlu0 %6225
    %6227 = vmax.xlane.f32.xlu0 %v6205
    %v6228 = vpop.xlane.xlu0 %6227
    %6229 = vmax.xlane.f32.xlu0 %v6206
    %v6230 = vpop.xlane.xlu0 %6229
    %6231 = vmax.xlane.f32.xlu0 %v6207
    %v6232 = vpop.xlane.xlu0 %6231
    %6233 = vmax.xlane.f32.xlu0 %v6208
    %v6234 = vpop.xlane.xlu0 %6233
    %6235 = vmax.xlane.f32.xlu0 %v6209
    %v6236 = vpop.xlane.xlu0 %6235
    %6237 = vmax.xlane.f32.xlu0 %v6210
    %v6238 = vpop.xlane.xlu0 %6237
    %6239 = vmax.xlane.f32.xlu0 %v6211
    %v6240 = vpop.xlane.xlu0 %6239
    %6241 = vmax.xlane.f32.xlu0 %v6212
    %v6242 = vpop.xlane.xlu0 %6241
    %6243 = vmax.xlane.f32.xlu0 %v6213
    %v6244 = vpop.xlane.xlu0 %6243
    %6245 = vmax.xlane.f32.xlu0 %v6214
    %v6246 = vpop.xlane.xlu0 %6245
    %v6247 = vsub.f32 %v6199, %v6216
    %v6248 = vsub.f32 %v6200, %v6218
    %v6249 = vsub.f32 %v6201, %v6220
    %v6250 = vsub.f32 %v6202, %v6222
    %v6251 = vsub.f32 %v6203, %v6224
    %v6252 = vsub.f32 %v6204, %v6226
    %v6253 = vsub.f32 %v6205, %v6228
    %v6254 = vsub.f32 %v6206, %v6230
    %v6255 = vsub.f32 %v6207, %v6232
    %v6256 = vsub.f32 %v6208, %v6234
    %v6257 = vsub.f32 %v6209, %v6236
    %v6258 = vsub.f32 %v6210, %v6238
    %v6259 = vsub.f32 %v6211, %v6240
    %v6260 = vsub.f32 %v6212, %v6242
    %v6261 = vsub.f32 %v6213, %v6244
    %v6262 = vsub.f32 %v6214, %v6246
    %v6263 = vmul.f32 %v6247, 1.442695
    %v6264 = vpow.pop %v6263
    %v6265 = vmul.f32 %v6248, 1.442695
    %v6266 = vpow.pop %v6265
    %v6267 = vmul.f32 %v6249, 1.442695
    %v6268 = vpow.pop %v6267
    %v6269 = vmul.f32 %v6250, 1.442695
    %v6270 = vpow.pop %v6269
    %v6271 = vmul.f32 %v6251, 1.442695
    %v6272 = vpow.pop %v6271
    %v6273 = vmul.f32 %v6252, 1.442695
    %v6274 = vpow.pop %v6273
    %v6275 = vmul.f32 %v6253, 1.442695
    %v6276 = vpow.pop %v6275
    %v6277 = vmul.f32 %v6254, 1.442695
    %v6278 = vpow.pop %v6277
    %v6279 = vmul.f32 %v6255, 1.442695
    %v6280 = vpow.pop %v6279
    %v6281 = vmul.f32 %v6256, 1.442695
    %v6282 = vpow.pop %v6281
    %v6283 = vmul.f32 %v6257, 1.442695
    %v6284 = vpow.pop %v6283
    %v6285 = vmul.f32 %v6258, 1.442695
    %v6286 = vpow.pop %v6285
    %v6287 = vmul.f32 %v6259, 1.442695
    %v6288 = vpow.pop %v6287
    %v6289 = vmul.f32 %v6260, 1.442695
    %v6290 = vpow.pop %v6289
    %v6291 = vmul.f32 %v6261, 1.442695
    %v6292 = vpow.pop %v6291
    %v6293 = vmul.f32 %v6262, 1.442695
    %v6294 = vpow.pop %v6293
    %6295 = vadd.xlane.f32.xlu0 %v6264
    %v6296 = vpop.xlane.xlu0 %6295
    %6297 = vadd.xlane.f32.xlu0 %v6266
    %v6298 = vpop.xlane.xlu0 %6297
    %6299 = vadd.xlane.f32.xlu0 %v6268
    %v6300 = vpop.xlane.xlu0 %6299
    %6301 = vadd.xlane.f32.xlu0 %v6270
    %v6302 = vpop.xlane.xlu0 %6301
    %6303 = vadd.xlane.f32.xlu0 %v6272
    %v6304 = vpop.xlane.xlu0 %6303
    %6305 = vadd.xlane.f32.xlu0 %v6274
    %v6306 = vpop.xlane.xlu0 %6305
    %6307 = vadd.xlane.f32.xlu0 %v6276
    %v6308 = vpop.xlane.xlu0 %6307
    %6309 = vadd.xlane.f32.xlu0 %v6278
    %v6310 = vpop.xlane.xlu0 %6309
    %6311 = vadd.xlane.f32.xlu0 %v6280
    %v6312 = vpop.xlane.xlu0 %6311
    %6313 = vadd.xlane.f32.xlu0 %v6282
    %v6314 = vpop.xlane.xlu0 %6313
    %6315 = vadd.xlane.f32.xlu0 %v6284
    %v6316 = vpop.xlane.xlu0 %6315
    %6317 = vadd.xlane.f32.xlu0 %v6286
    %v6318 = vpop.xlane.xlu0 %6317
    %6319 = vadd.xlane.f32.xlu0 %v6288
    %v6320 = vpop.xlane.xlu0 %6319
    %6321 = vadd.xlane.f32.xlu0 %v6290
    %v6322 = vpop.xlane.xlu0 %6321
    %6323 = vadd.xlane.f32.xlu0 %v6292
    %v6324 = vpop.xlane.xlu0 %6323
    %6325 = vadd.xlane.f32.xlu0 %v6294
    %v6326 = vpop.xlane.xlu0 %6325
    %v6327 = vrcp.pop %v6296
    %v6328 = vrcp.pop %v6298
    %v6329 = vrcp.pop %v6300
    %v6330 = vrcp.pop %v6302
    %v6331 = vrcp.pop %v6304
    %v6332 = vrcp.pop %v6306
    %v6333 = vrcp.pop %v6308
    %v6334 = vrcp.pop %v6310
    %v6335 = vrcp.pop %v6312
    %v6336 = vrcp.pop %v6314
    %v6337 = vrcp.pop %v6316
    %v6338 = vrcp.pop %v6318
    %v6339 = vrcp.pop %v6320
    %v6340 = vrcp.pop %v6322
    %v6341 = vrcp.pop %v6324
    %v6342 = vrcp.pop %v6326
    %v6343 = vmul.f32 %v6264, %v6327
    %v6344 = vmul.f32 %v6266, %v6328
    %v6345 = vmul.f32 %v6268, %v6329
    %v6346 = vmul.f32 %v6270, %v6330
    %v6347 = vmul.f32 %v6272, %v6331
    %v6348 = vmul.f32 %v6274, %v6332
    %v6349 = vmul.f32 %v6276, %v6333
    %v6350 = vmul.f32 %v6278, %v6334
    %v6351 = vmul.f32 %v6280, %v6335
    %v6352 = vmul.f32 %v6282, %v6336
    %v6353 = vmul.f32 %v6284, %v6337
    %v6354 = vmul.f32 %v6286, %v6338
    %v6355 = vmul.f32 %v6288, %v6339
    %v6356 = vmul.f32 %v6290, %v6340
    %v6357 = vmul.f32 %v6292, %v6341
    %v6358 = vmul.f32 %v6294, %v6342
    %v6359 = vpack.c.bf16 %v6344, %v6343
    %v6360 = vpack.c.bf16 %v6346, %v6345
    %v6361 = vpack.c.bf16 %v6348, %v6347
    %v6362 = vpack.c.bf16 %v6350, %v6349
    %v6363 = vpack.c.bf16 %v6352, %v6351
    %v6364 = vpack.c.bf16 %v6354, %v6353
    %v6365 = vpack.c.bf16 %v6356, %v6355
    %v6366 = vpack.c.bf16 %v6358, %v6357
    %v6375 = vunpack.c.l.b16 %v6359
    %v6376 = vunpack.c.h.b16 %v6359
    %v6377 = vunpack.c.l.b16 %v6360
    %v6378 = vunpack.c.h.b16 %v6360
    %v6379 = vunpack.c.l.b16 %v6361
    %v6380 = vunpack.c.h.b16 %v6361
    %v6381 = vunpack.c.l.b16 %v6362
    %v6382 = vunpack.c.h.b16 %v6362
    %v6383 = vunpack.c.l.b16 %v6363
    %v6384 = vunpack.c.h.b16 %v6363
    %v6385 = vunpack.c.l.b16 %v6364
    %v6386 = vunpack.c.h.b16 %v6364
    %v6387 = vunpack.c.l.b16 %v6365
    %v6388 = vunpack.c.h.b16 %v6365
    %v6389 = vunpack.c.l.b16 %v6366
    %v6390 = vunpack.c.h.b16 %v6366
    %v6391 = vpack.c.b16 %v6375, %v6375
    %v6392 = vpack.c.b16 %v6376, %v6376
    %v6393 = vpack.c.b16 %v6377, %v6377
    %v6394 = vpack.c.b16 %v6378, %v6378
    %v6395 = vpack.c.b16 %v6379, %v6379
    %v6396 = vpack.c.b16 %v6380, %v6380
    %v6397 = vpack.c.b16 %v6381, %v6381
    %v6398 = vpack.c.b16 %v6382, %v6382
    %v6399 = vpack.c.b16 %v6383, %v6383
    %v6400 = vpack.c.b16 %v6384, %v6384
    %v6401 = vpack.c.b16 %v6385, %v6385
    %v6402 = vpack.c.b16 %v6386, %v6386
    %v6403 = vpack.c.b16 %v6387, %v6387
    %v6404 = vpack.c.b16 %v6388, %v6388
    %v6405 = vpack.c.b16 %v6389, %v6389
    %v6406 = vpack.c.b16 %v6390, %v6390
    %s6423 = scalar_lea.vmem [#allocation6], 320
    %6424 = vst [vmem:[%s6423] sm:$0xf] %v6391
    %6425 = vst [vmem:[%s6423 + $0x4] sm:$0xf] %v6392
    %6426 = vst [vmem:[%s6423 + $0x8] sm:$0xf] %v6393
    %6427 = vst [vmem:[%s6423 + $0xc] sm:$0xf] %v6394
    %6428 = vst [vmem:[%s6423 + $0x10] sm:$0xf] %v6395
    %6429 = vst [vmem:[%s6423 + $0x14] sm:$0xf] %v6396
    %6430 = vst [vmem:[%s6423 + $0x18] sm:$0xf] %v6397
    %6431 = vst [vmem:[%s6423 + $0x1c] sm:$0xf] %v6398
    %6432 = vst [vmem:[%s6423 + $0x20] sm:$0xf] %v6399
    %6433 = vst [vmem:[%s6423 + $0x24] sm:$0xf] %v6400
    %6434 = vst [vmem:[%s6423 + $0x28] sm:$0xf] %v6401
    %6435 = vst [vmem:[%s6423 + $0x2c] sm:$0xf] %v6402
    %6436 = vst [vmem:[%s6423 + $0x30] sm:$0xf] %v6403
    %6437 = vst [vmem:[%s6423 + $0x34] sm:$0xf] %v6404
    %6438 = vst [vmem:[%s6423 + $0x38] sm:$0xf] %v6405
    %6439 = vst [vmem:[%s6423 + $0x3c] sm:$0xf] %v6406
    %v6440 = vpack.c.bf16 %v790, %v790
    %6441 = vmatprep.subr.bf16.mxu0 0
    %6442 = vmatpush1.bf16.xpose.msra.mxu0 %v6359
    %6443 = vmatprep.subr.bf16.mxu0 0
    %6444 = vmatpush1.bf16.xpose.msra.mxu0 %v6360
    %6445 = vmatprep.subr.bf16.mxu0 0
    %6446 = vmatpush1.bf16.xpose.msra.mxu0 %v6361
    %6447 = vmatprep.subr.bf16.mxu0 0
    %6448 = vmatpush1.bf16.xpose.msra.mxu0 %v6362
    %6449 = vmatprep.subr.bf16.mxu0 0
    %6450 = vmatpush1.bf16.xpose.msra.mxu0 %v6363
    %6451 = vmatprep.subr.bf16.mxu0 0
    %6452 = vmatpush1.bf16.xpose.msra.mxu0 %v6364
    %6453 = vmatprep.subr.bf16.mxu0 0
    %6454 = vmatpush1.bf16.xpose.msra.mxu0 %v6365
    %6455 = vmatprep.subr.bf16.mxu0 0
    %6456 = vmatpush1.bf16.xpose.msra.mxu0 %v6366
    %6457 = vmatprep.subr.bf16.mxu0 0
    %6458 = vmatpush1.bf16.xpose.msra.mxu0 0
    %6459 = vmatprep.subr.bf16.mxu0 0
    %6460 = vmatpush1.bf16.xpose.msra.mxu0 0
    %6461 = vmatprep.subr.bf16.mxu0 0
    %6462 = vmatpush1.bf16.xpose.msra.mxu0 0
    %6463 = vmatprep.subr.bf16.mxu0 0
    %6464 = vmatpush1.bf16.xpose.msra.mxu0 0
    %6465 = vmatprep.subr.bf16.mxu0 0
    %6466 = vmatpush1.bf16.xpose.msra.mxu0 0
    %6467 = vmatprep.subr.bf16.mxu0 0
    %6468 = vmatpush1.bf16.xpose.msra.mxu0 0
    %6469 = vmatprep.subr.bf16.mxu0 0
    %6470 = vmatpush1.bf16.xpose.msra.mxu0 0
    %6471 = vmatprep.subr.bf16.mxu0 0
    %6472 = vmatpush1.bf16.xpose.msra.mxu0 0
    %6473 = vmatprep.mubr.bf16.mxu0 0
    %6474 = vmatmul.mubr.bf16.gmra.mrb[0].mxu0 %v6440
    %v6475 = vpop.f32.mrb[0].mxu0
    %v6476 = vadd.f32 0.0, %v6475
    %v6477 = vpop.f32.mrb[0].mxu0
    %v6478 = vpop.f32.mrb[0].mxu0
    %v6479 = vpop.f32.mrb[0].mxu0
    %6480 = vdwg.mxu0
    %v6481 = vpack.c.bf16 %v2684, %v1736
    %v6482 = vpack.c.bf16 %v4580, %v3632
    %v6483 = vpack.c.bf16 %v6476, %v5528
    %s6484 = scalar_lea.vmem [#allocation2], 192
    %v6485 = vld [vmem:[%s6484] sm:$0xf]
    %v6486 = vld [vmem:[%s6484 + $0x4] sm:$0xf]
    %v6487 = vld [vmem:[%s6484 + $0x8] sm:$0xf]
    %v6488 = vld [vmem:[%s6484 + $0xc] sm:$0xf]
    %v6489 = vld [vmem:[%s6484 + $0x10] sm:$0xf]
    %v6490 = vld [vmem:[%s6484 + $0x14] sm:$0xf]
    %v6491 = vld [vmem:[%s6484 + $0x18] sm:$0xf]
    %v6492 = vld [vmem:[%s6484 + $0x1c] sm:$0xf]
    %v6493 = vld [vmem:[%s6484 + $0x20] sm:$0xf]
    %v6494 = vld [vmem:[%s6484 + $0x24] sm:$0xf]
    %v6495 = vld [vmem:[%s6484 + $0x28] sm:$0xf]
    %v6496 = vld [vmem:[%s6484 + $0x2c] sm:$0xf]
    %v6497 = vld [vmem:[%s6484 + $0x30] sm:$0xf]
    %v6498 = vld [vmem:[%s6484 + $0x34] sm:$0xf]
    %v6499 = vld [vmem:[%s6484 + $0x38] sm:$0xf]
    %v6500 = vld [vmem:[%s6484 + $0x3c] sm:$0xf]
    %s6501 = scalar_lea.vmem %s8, 3
    %v6502 = vld [vmem:[%s6501] sm:$0x1]
    %v6504 = vlaneseq
    %v6505 = vshrl.u32 %v6504, 7
    %v6506 = vsub.s32 0, %v6505
    %v6507 = vrot.slane %v6502, %v6506
    %v6525 = vunpack.c.l.b16 %v6485
    %v6526 = vunpack.c.l.b16 %v6486
    %v6527 = vunpack.c.l.b16 %v6487
    %v6528 = vunpack.c.l.b16 %v6488
    %v6529 = vunpack.c.l.b16 %v6489
    %v6530 = vunpack.c.l.b16 %v6490
    %v6531 = vunpack.c.l.b16 %v6491
    %v6532 = vunpack.c.l.b16 %v6492
    %v6533 = vunpack.c.l.b16 %v6493
    %v6534 = vunpack.c.l.b16 %v6494
    %v6535 = vunpack.c.l.b16 %v6495
    %v6536 = vunpack.c.l.b16 %v6496
    %v6537 = vunpack.c.l.b16 %v6497
    %v6538 = vunpack.c.l.b16 %v6498
    %v6539 = vunpack.c.l.b16 %v6499
    %v6540 = vunpack.c.l.b16 %v6500
    %v6541 = vpack.c.b16 %v6526, %v6525
    %v6542 = vpack.c.b16 %v6528, %v6527
    %v6543 = vpack.c.b16 %v6530, %v6529
    %v6544 = vpack.c.b16 %v6532, %v6531
    %v6545 = vpack.c.b16 %v6534, %v6533
    %v6546 = vpack.c.b16 %v6536, %v6535
    %v6547 = vpack.c.b16 %v6538, %v6537
    %v6548 = vpack.c.b16 %v6540, %v6539
    %6557 = vmatprep.subr.bf16.mxu0 0
    %6558 = vmatpush1.bf16.xpose.msra.mxu0 %v6541
    %6559 = vmatprep.subr.bf16.mxu0 0
    %6560 = vmatpush1.bf16.xpose.msra.mxu0 %v6542
    %6561 = vmatprep.subr.bf16.mxu0 0
    %6562 = vmatpush1.bf16.xpose.msra.mxu0 %v6543
    %6563 = vmatprep.subr.bf16.mxu0 0
    %6564 = vmatpush1.bf16.xpose.msra.mxu0 %v6544
    %6565 = vmatprep.subr.bf16.mxu0 0
    %6566 = vmatpush1.bf16.xpose.msra.mxu0 %v6545
    %6567 = vmatprep.subr.bf16.mxu0 0
    %6568 = vmatpush1.bf16.xpose.msra.mxu0 %v6546
    %6569 = vmatprep.subr.bf16.mxu0 0
    %6570 = vmatpush1.bf16.xpose.msra.mxu0 %v6547
    %6571 = vmatprep.subr.bf16.mxu0 0
    %6572 = vmatpush1.bf16.xpose.msra.mxu0 %v6548
    %6573 = vmatprep.subr.bf16.mxu0 0
    %6574 = vmatpush1.bf16.xpose.msra.mxu0 0
    %6575 = vmatprep.subr.bf16.mxu0 0
    %6576 = vmatpush1.bf16.xpose.msra.mxu0 0
    %6577 = vmatprep.subr.bf16.mxu0 0
    %6578 = vmatpush1.bf16.xpose.msra.mxu0 0
    %6579 = vmatprep.subr.bf16.mxu0 0
    %6580 = vmatpush1.bf16.xpose.msra.mxu0 0
    %6581 = vmatprep.subr.bf16.mxu0 0
    %6582 = vmatpush1.bf16.xpose.msra.mxu0 0
    %6583 = vmatprep.subr.bf16.mxu0 0
    %6584 = vmatpush1.bf16.xpose.msra.mxu0 0
    %6585 = vmatprep.subr.bf16.mxu0 0
    %6586 = vmatpush1.bf16.xpose.msra.mxu0 0
    %6587 = vmatprep.subr.bf16.mxu0 0
    %6588 = vmatpush1.bf16.xpose.msra.mxu0 0
    %6589 = vmatprep.mubr.bf16.mxu0 0
    %6590 = vmatmul.mubr.bf16.gmra.mrb[0].mxu0 %v6481
    %v6591 = vpop.f32.mrb[0].mxu0
    %v6592 = vadd.f32 %v6507, %v6591
    %v6593 = vpop.f32.mrb[0].mxu0
    %v6594 = vpop.f32.mrb[0].mxu0
    %v6595 = vadd.f32 %v6507, %v6594
    %v6596 = vpop.f32.mrb[0].mxu0
    %6597 = vmatprep.mubr.bf16.mxu0 0
    %6598 = vmatmul.mubr.bf16.gmra.mrb[0].mxu0 %v6482
    %v6599 = vpop.f32.mrb[0].mxu0
    %v6600 = vadd.f32 %v6507, %v6599
    %v6601 = vpop.f32.mrb[0].mxu0
    %v6602 = vpop.f32.mrb[0].mxu0
    %v6603 = vadd.f32 %v6507, %v6602
    %v6604 = vpop.f32.mrb[0].mxu0
    %6605 = vmatprep.mubr.bf16.mxu0 0
    %6606 = vmatmul.mubr.bf16.gmra.mrb[0].mxu0 %v6483
    %v6607 = vpop.f32.mrb[0].mxu0
    %v6608 = vadd.f32 %v6507, %v6607
    %v6609 = vpop.f32.mrb[0].mxu0
    %v6610 = vpop.f32.mrb[0].mxu0
    %v6611 = vadd.f32 %v6507, %v6610
    %v6612 = vpop.f32.mrb[0].mxu0
    %6613 = vdwg.mxu0
    %v6614 = vld [vmem:[%s5] sm:$0xff]
    %v6615 = vld [vmem:[%s5 + $0x8] sm:$0xff]
    %v6616 = vld [vmem:[%s6] sm:$0xff]
    %v6617 = vld [vmem:[%s6 + $0x8] sm:$0xff]
    %6618 = vrot.lane.b32.xlu0 %v6592, 4
    %v6619 = vpop.permute.xlu0 %6618
    %6620 = vrot.lane.b32.xlu0 %v6595, 4
    %v6621 = vpop.permute.xlu0 %6620
    %6623 = vset.pattern.permute.xlu0 0
    %6624 = vperm.xlu0 %6623, %v6614
    %v6625 = vpop.permute.xlu0 %6624
    %6628 = vset.pattern.permute.xlu0 0
    %6629 = vperm.xlu0 %6628, %v6615
    %v6630 = vpop.permute.xlu0 %6629
    %v6632 = vmul.f32 %v6619, %v6625
    %v6633 = vmul.f32 %v6621, %v6630
    %v6634 = vadd.f32 %v6632, 0.0
    %v6635 = vadd.f32 %v6633, 0.0
    %6636 = vrot.lane.b32.xlu0 %v6600, 4
    %v6637 = vpop.permute.xlu0 %6636
    %6638 = vrot.lane.b32.xlu0 %v6603, 4
    %v6639 = vpop.permute.xlu0 %6638
    %6641 = vset.pattern.permute.xlu0 0
    %6642 = vperm.xlu0 %6641, %v6616
    %v6643 = vpop.permute.xlu0 %6642
    %6646 = vset.pattern.permute.xlu0 0
    %6647 = vperm.xlu0 %6646, %v6617
    %v6648 = vpop.permute.xlu0 %6647
    %v6650 = vmul.f32 %v6637, %v6643
    %v6651 = vmul.f32 %v6639, %v6648
    %v6652 = vadd.f32 %v6634, %v6650
    %v6653 = vadd.f32 %v6635, %v6651
    %6654 = vrot.lane.b32.xlu0 %v6592, 2
    %v6655 = vpop.permute.xlu0 %6654
    %6656 = vrot.lane.b32.xlu0 %v6595, 2
    %v6657 = vpop.permute.xlu0 %6656
    %6658 = vset.pattern.permute.xlu0 1
    %6659 = vperm.xlu0 %6658, %v6614
    %v6660 = vpop.permute.xlu0 %6659
    %6662 = vset.pattern.permute.xlu0 1
    %6663 = vperm.xlu0 %6662, %v6615
    %v6664 = vpop.permute.xlu0 %6663
    %v6666 = vmul.f32 %v6655, %v6660
    %v6667 = vmul.f32 %v6657, %v6664
    %v6668 = vadd.f32 %v6652, %v6666
    %v6669 = vadd.f32 %v6653, %v6667
    %6670 = vrot.lane.b32.xlu0 %v6600, 2
    %v6671 = vpop.permute.xlu0 %6670
    %6672 = vrot.lane.b32.xlu0 %v6603, 2
    %v6673 = vpop.permute.xlu0 %6672
    %6674 = vset.pattern.permute.xlu0 1
    %6675 = vperm.xlu0 %6674, %v6616
    %v6676 = vpop.permute.xlu0 %6675
    %6678 = vset.pattern.permute.xlu0 1
    %6679 = vperm.xlu0 %6678, %v6617
    %v6680 = vpop.permute.xlu0 %6679
    %v6682 = vmul.f32 %v6671, %v6676
    %v6683 = vmul.f32 %v6673, %v6680
    %v6684 = vadd.f32 %v6668, %v6682
    %v6685 = vadd.f32 %v6669, %v6683
    %6686 = vset.pattern.permute.xlu0 2
    %6687 = vperm.xlu0 %6686, %v6614
    %v6688 = vpop.permute.xlu0 %6687
    %6690 = vset.pattern.permute.xlu0 2
    %6691 = vperm.xlu0 %6690, %v6615
    %v6692 = vpop.permute.xlu0 %6691
    %v6694 = vmul.f32 %v6592, %v6688
    %v6695 = vmul.f32 %v6595, %v6692
    %v6696 = vadd.f32 %v6684, %v6694
    %v6697 = vadd.f32 %v6685, %v6695
    %6698 = vset.pattern.permute.xlu0 2
    %6699 = vperm.xlu0 %6698, %v6616
    %v6700 = vpop.permute.xlu0 %6699
    %6702 = vset.pattern.permute.xlu0 2
    %6703 = vperm.xlu0 %6702, %v6617
    %v6704 = vpop.permute.xlu0 %6703
    %v6706 = vmul.f32 %v6600, %v6700
    %v6707 = vmul.f32 %v6603, %v6704
    %v6708 = vadd.f32 %v6696, %v6706
    %v6709 = vadd.f32 %v6697, %v6707
    %6710 = vrot.lane.b32.xlu0 %v6592, 126
    %v6711 = vpop.permute.xlu0 %6710
    %6712 = vrot.lane.b32.xlu0 %v6595, 126
    %v6713 = vpop.permute.xlu0 %6712
    %6714 = vset.pattern.permute.xlu0 3
    %6715 = vperm.xlu0 %6714, %v6614
    %v6716 = vpop.permute.xlu0 %6715
    %6718 = vset.pattern.permute.xlu0 3
    %6719 = vperm.xlu0 %6718, %v6615
    %v6720 = vpop.permute.xlu0 %6719
    %v6722 = vmul.f32 %v6711, %v6716
    %v6723 = vmul.f32 %v6713, %v6720
    %v6724 = vadd.f32 %v6708, %v6722
    %v6725 = vadd.f32 %v6709, %v6723
    %6726 = vrot.lane.b32.xlu0 %v6600, 126
    %v6727 = vpop.permute.xlu0 %6726
    %6728 = vrot.lane.b32.xlu0 %v6603, 126
    %v6729 = vpop.permute.xlu0 %6728
    %6730 = vset.pattern.permute.xlu0 3
    %6731 = vperm.xlu0 %6730, %v6616
    %v6732 = vpop.permute.xlu0 %6731
    %6734 = vset.pattern.permute.xlu0 3
    %6735 = vperm.xlu0 %6734, %v6617
    %v6736 = vpop.permute.xlu0 %6735
    %v6738 = vmul.f32 %v6727, %v6732
    %v6739 = vmul.f32 %v6729, %v6736
    %v6740 = vadd.f32 %v6724, %v6738
    %v6741 = vadd.f32 %v6725, %v6739
    %v6742 = vmul.f32 %v6740, 0.5
    %v6743 = vmul.f32 %v6741, 0.5
    %6744 = vrot.lane.b32.xlu0 %v6742, 2
    %v6745 = vpop.permute.xlu0 %6744
    %6746 = vrot.lane.b32.xlu0 %v6743, 2
    %v6747 = vpop.permute.xlu0 %6746
    %v6748 = vmul.f32 %v6745, %v6625
    %v6749 = vmul.f32 %v6747, %v6630
    %v6750 = vadd.f32 %v6748, 0.0
    %v6751 = vadd.f32 %v6749, 0.0
    %6752 = vrot.lane.b32.xlu0 %v6608, 2
    %v6753 = vpop.permute.xlu0 %6752
    %6754 = vrot.lane.b32.xlu0 %v6611, 2
    %v6755 = vpop.permute.xlu0 %6754
    %v6756 = vmul.f32 %v6753, %v6643
    %v6757 = vmul.f32 %v6755, %v6648
    %v6758 = vadd.f32 %v6750, %v6756
    %v6759 = vadd.f32 %v6751, %v6757
    %6760 = vrot.lane.b32.xlu0 %v6742, 1
    %v6761 = vpop.permute.xlu0 %6760
    %6762 = vrot.lane.b32.xlu0 %v6743, 1
    %v6763 = vpop.permute.xlu0 %6762
    %v6764 = vmul.f32 %v6761, %v6660
    %v6765 = vmul.f32 %v6763, %v6664
    %v6766 = vadd.f32 %v6758, %v6764
    %v6767 = vadd.f32 %v6759, %v6765
    %6768 = vrot.lane.b32.xlu0 %v6608, 1
    %v6769 = vpop.permute.xlu0 %6768
    %6770 = vrot.lane.b32.xlu0 %v6611, 1
    %v6771 = vpop.permute.xlu0 %6770
    %v6772 = vmul.f32 %v6769, %v6676
    %v6773 = vmul.f32 %v6771, %v6680
    %v6774 = vadd.f32 %v6766, %v6772
    %v6775 = vadd.f32 %v6767, %v6773
    %v6776 = vmul.f32 %v6742, %v6688
    %v6777 = vmul.f32 %v6743, %v6692
    %v6778 = vadd.f32 %v6774, %v6776
    %v6779 = vadd.f32 %v6775, %v6777
    %v6780 = vmul.f32 %v6608, %v6700
    %v6781 = vmul.f32 %v6611, %v6704
    %v6782 = vadd.f32 %v6778, %v6780
    %v6783 = vadd.f32 %v6779, %v6781
    %6784 = vrot.lane.b32.xlu0 %v6742, 127
    %v6785 = vpop.permute.xlu0 %6784
    %6786 = vrot.lane.b32.xlu0 %v6743, 127
    %v6787 = vpop.permute.xlu0 %6786
    %v6788 = vmul.f32 %v6785, %v6716
    %v6789 = vmul.f32 %v6787, %v6720
    %v6790 = vadd.f32 %v6782, %v6788
    %v6791 = vadd.f32 %v6783, %v6789
    %6792 = vrot.lane.b32.xlu0 %v6608, 127
    %v6793 = vpop.permute.xlu0 %6792
    %6794 = vrot.lane.b32.xlu0 %v6611, 127
    %v6795 = vpop.permute.xlu0 %6794
    %v6796 = vmul.f32 %v6793, %v6732
    %v6797 = vmul.f32 %v6795, %v6736
    %v6798 = vadd.f32 %v6790, %v6796
    %v6799 = vadd.f32 %v6791, %v6797
    %v6800 = vmul.f32 %v6798, 0.5
    %v6801 = vmul.f32 %v6799, 0.5
    %6802 = vst [vmem:[#allocation5] sm:$0xff] %v6800
    %s6803 = scalar_lea.vmem [#allocation5], 8
    %6804 = vst [vmem:[%s6803] sm:$0xff] %v6801
    // Predicated region
    $region42: #{tpu_custom_call.1} parent=1 // pred_check
      _
    $region43: #{tpu_custom_call.1} parent=1 // pred_check_branch
      %6806 = sbr.rel (0) target = $region45
    $region44: #{tpu_custom_call.1} parent=1 // pred_region
      %s6808 = ssub.s32 256, 256
      %6809 = vsyncadd [#allocation4], %s6808
      %s6810 = sshll.u32 [#allocation5], 4
      %s6811 = int_to_ptr.vmem [resolvable:$true] %s6810
      %6816 = dma.vmem_to_hbm [thread:$0]  %s6811, 256, %s9, [#allocation4], 128, 128, 8
    $region45: #{tpu_custom_call.1} parent=1 // pred_fallthru
      _
    // Predicated region
    $region46: #{tpu_custom_call.1} parent=1 // pred_check
      _
    $region47: #{tpu_custom_call.1} parent=1 // pred_check_branch
      %6818 = sbr.rel (0) target = $region49
    $region48: #{tpu_custom_call.1} parent=1 // pred_region
      %s6820 = ssub.s32 6144, 6144
      %6821 = vsyncadd [#allocation7], %s6820
      %s6822 = sshll.u32 [#allocation6], 4
      %s6823 = int_to_ptr.vmem [resolvable:$true] %s6822
      %6828 = dma.vmem_to_hbm [thread:$0]  %s6823, 6144, %s10, [#allocation7], 64, 64, 4
    $region49: #{tpu_custom_call.1} parent=1 // pred_fallthru
      _
    // Predicated region
    $region50: #{tpu_custom_call.1} parent=1 // pred_check
      _
    $region51: #{tpu_custom_call.1} parent=1 // pred_check_branch
      %6830 = sbr.rel (0) target = $region53
    $region52: #{tpu_custom_call.1} parent=1 // pred_region
      %6831 = dma.done [#allocation4], 256
    $region53: #{tpu_custom_call.1} parent=1 // pred_fallthru
      _
    // Predicated region
    $region54: #{tpu_custom_call.1} parent=1 // pred_check
      _
    $region55: #{tpu_custom_call.1} parent=1 // pred_check_branch
      %6833 = sbr.rel (0) target = $region57
    $region56: #{tpu_custom_call.1} parent=1 // pred_region
      %6834 = dma.done [#allocation7], 6144
    $region57: #{tpu_custom_call.1} parent=1 // pred_fallthru
      _
    %6835 = vsyncpa [#allocation3], 1
    %6836 = vsyncpa [#allocation4], 1
    %6837 = vsyncpa [#allocation7], 1

</llo_original>
